<compile_context>
chip_gen: v6e
topology: v6e:2x2x1
jax: 0.10.0
libtpu: 0.0.40
codegen_flags: <defaults>
</compile_context>

<pallas_src>
import functools

import jax
import jax.numpy as jnp
from jax import lax
from jax.experimental import pallas as pl
from jax.experimental.pallas import tpu as pltpu

EPS = 1e-5
LANE = 128


def _round_up(x, m):
    return (x + m - 1) // m * m


@functools.lru_cache(maxsize=None)
def _vmem_limit_bytes():
    # ~75% of physical VMEM (v5e/v6e: 128 MiB, v7x: 64 MiB); conservative
    # fallback if the query is unavailable.
    try:
        cap = pltpu.get_tpu_info().vmem_capacity_bytes
        return int(cap * 3 // 4)
    except Exception:
        return 64 * 1024 * 1024


def _compiler_params():
    return pltpu.CompilerParams(dimension_semantics=("parallel",),
                                vmem_limit_bytes=_vmem_limit_bytes())


# ---------------------------------------------------------------------------
# Kernels
# ---------------------------------------------------------------------------
def _conv3x3_kernel(*refs, Ho, Wo, stride, apply_act, shortcut):
    """3x3 conv (pad=1, stride s) of one NHWC image tile.

    Taps are fed to the MXU as 3 matmuls with K = 3*Ci (kw-major im2col built
    once in VMEM), accumulated into an f32 VMEM scratch.  Optionally applies
    the previous layer's BN affine + ReLU to the input tile while writing it
    into the padded scratch (conv2), and optionally emits the fused 1x1
    projection-shortcut conv + its BN partial stats (conv1 of a projection
    block).  Per-image per-channel (sum, sum-of-squares) of each conv output
    are emitted for the two-pass BatchNorm.
    """
    i = 0
    x_ref = refs[i]; i += 1
    if apply_act:
        scale_ref = refs[i]; shift_ref = refs[i + 1]; i += 2
    w_ref = refs[i]; i += 1
    if shortcut:
        ws_ref = refs[i]; i += 1
    y_ref, s_ref, q_ref = refs[i:i + 3]; i += 3
    if shortcut:
        ysc_ref, ssc_ref, qsc_ref = refs[i:i + 3]; i += 3
    pad_ref, col_ref, acc_ref = refs[i:i + 3]

    Hi, Wi, Ci = x_ref.shape[1], x_ref.shape[2], x_ref.shape[3]
    Co = w_ref.shape[-1]

    # 1) Zero only the 1-px halo; the interior is fully overwritten below.
    zrow = jnp.zeros((1, Wi + 2, Ci), jnp.float32)
    zcol = jnp.zeros((Hi + 2, 1, Ci), jnp.float32)
    pad_ref[0:1, :, :] = zrow
    pad_ref[Hi + 1:Hi + 2, :, :] = zrow
    pad_ref[:, 0:1, :] = zcol
    pad_ref[:, Wi + 1:Wi + 2, :] = zcol

    # 2) Previous-layer BN affine + ReLU fused into the padded-tile write.
    xv = x_ref[0].astype(jnp.float32)
    if apply_act:
        xv = jnp.maximum(xv * scale_ref[...] + shift_ref[...], 0.0)
    pad_ref[1:Hi + 1, 1:Wi + 1, :] = xv

    # 3) kw-shifted windows -> K = 3*Ci im2col buffer.  3 relayout/cast passes
    #    instead of 9 per-tap ones; bf16 stores are lane-aligned (x*128).
    for kw in range(3):
        if stride == 1:
            piece = pad_ref[:, kw:kw + Wo, :]
        else:
            piece = pad_ref[:, pl.ds(kw, Wo, stride=stride), :]
        col_ref[:, :, kw * Ci:(kw + 1) * Ci] = piece.astype(jnp.bfloat16)

    # 4) 3 MXU matmuls (K = 3*Ci) accumulated into the f32 VMEM scratch.
    xs = None
    for kh in range(3):
        if stride == 1:
            rows = col_ref[kh:kh + Ho, :, :]
        else:
            rows = col_ref[pl.ds(kh, Ho, stride=stride), :, :]
        if shortcut and kh == 1:
            # Center tap (kh=1, kw=1) is exactly raw x at the strided output
            # positions -> free input for the fused 1x1 shortcut conv.
            xs = rows[:, :, Ci:2 * Ci]
        part = jnp.dot(rows.reshape(Ho * Wo, 3 * Ci), w_ref[kh],
                       preferred_element_type=jnp.float32)
        if kh == 0:
            acc_ref[...] = part
        else:
            acc_ref[...] += part

    acc = acc_ref[...]
    y_ref[0] = acc.reshape(Ho, Wo, Co).astype(y_ref.dtype)
    s_ref[0] = jnp.sum(acc, axis=0, keepdims=True)
    q_ref[0] = jnp.sum(acc * acc, axis=0, keepdims=True)

    if shortcut:
        accs = jnp.dot(xs.reshape(Ho * Wo, Ci), ws_ref[...],
                       preferred_element_type=jnp.float32)
        ysc_ref[0] = accs.reshape(Ho, Wo, Co).astype(ysc_ref.dtype)
        ssc_ref[0] = jnp.sum(accs, axis=0, keepdims=True)
        qsc_ref[0] = jnp.sum(accs * accs, axis=0, keepdims=True)


def _bn_add_relu_kernel(y_ref, scale_ref, shift_ref, sc_ref, o_ref):
    # relu(bn2(y2) + identity shortcut)
    main = y_ref[...].astype(jnp.float32) * scale_ref[...] + shift_ref[...]
    o_ref[...] = jnp.maximum(main + sc_ref[...].astype(jnp.float32),
                             0.0).astype(o_ref.dtype)


def _bn_add_bn_relu_kernel(y_ref, scale_ref, shift_ref,
                           ysc_ref, scale_s_ref, shift_s_ref, o_ref):
    # relu(bn2(y2) + bn_s(conv1x1_s(x)))
    main = y_ref[...].astype(jnp.float32) * scale_ref[...] + shift_ref[...]
    sc = ysc_ref[...].astype(jnp.float32) * scale_s_ref[...] + shift_s_ref[...]
    o_ref[...] = jnp.maximum(main + sc, 0.0).astype(o_ref.dtype)


# ---------------------------------------------------------------------------
# pallas_call wrappers
# ---------------------------------------------------------------------------
def _conv3x3(x_nhwc, scale, shift, w3, Ho, Wo, stride, apply_act, ws=None):
    N, Hi, Wi, Ci = x_nhwc.shape
    Co = w3.shape[-1]
    shortcut = ws is not None
    assert not (apply_act and shortcut)

    kernel = functools.partial(_conv3x3_kernel, Ho=Ho, Wo=Wo, stride=stride,
                               apply_act=apply_act, shortcut=shortcut)

    inputs = [x_nhwc]
    in_specs = [pl.BlockSpec((1, Hi, Wi, Ci), lambda n: (n, 0, 0, 0))]
    if apply_act:
        inputs += [scale, shift]
        in_specs += [pl.BlockSpec((1, Ci), lambda n: (0, 0)),
                     pl.BlockSpec((1, Ci), lambda n: (0, 0))]
    inputs.append(w3)
    in_specs.append(pl.BlockSpec((3, 3 * Ci, Co), lambda n: (0, 0, 0)))
    if shortcut:
        inputs.append(ws)
        in_specs.append(pl.BlockSpec((Ci, Co), lambda n: (0, 0)))

    out_specs = [pl.BlockSpec((1, Ho, Wo, Co), lambda n: (n, 0, 0, 0)),
                 pl.BlockSpec((1, 1, Co), lambda n: (n, 0, 0)),
                 pl.BlockSpec((1, 1, Co), lambda n: (n, 0, 0))]
    out_shape = [jax.ShapeDtypeStruct((N, Ho, Wo, Co), jnp.bfloat16),
                 jax.ShapeDtypeStruct((N, 1, Co), jnp.float32),
                 jax.ShapeDtypeStruct((N, 1, Co), jnp.float32)]
    if shortcut:
        out_specs += [pl.BlockSpec((1, Ho, Wo, Co), lambda n: (n, 0, 0, 0)),
                      pl.BlockSpec((1, 1, Co), lambda n: (n, 0, 0)),
                      pl.BlockSpec((1, 1, Co), lambda n: (n, 0, 0))]
        out_shape += [jax.ShapeDtypeStruct((N, Ho, Wo, Co), jnp.bfloat16),
                      jax.ShapeDtypeStruct((N, 1, Co), jnp.float32),
                      jax.ShapeDtypeStruct((N, 1, Co), jnp.float32)]

    grid_spec = pltpu.PrefetchScalarGridSpec(
        num_scalar_prefetch=0,
        grid=(N,),
        in_specs=in_specs,
        out_specs=out_specs,
        scratch_shapes=[
            pltpu.VMEM((Hi + 2, Wi + 2, Ci), jnp.float32),      # padded tile
            pltpu.VMEM((Hi + 2, Wo, 3 * Ci), jnp.bfloat16),     # K=3*Ci im2col
            pltpu.VMEM((Ho * Wo, Co), jnp.float32),             # accumulator
        ],
    )
    return pl.pallas_call(
        kernel,
        out_shape=tuple(out_shape),
        grid_spec=grid_spec,
        compiler_params=_compiler_params(),
    )(*inputs)


def _bn_add_relu(y, scale, shift, sc):
    N, Ho, Wo, Co = y.shape
    grid_spec = pltpu.PrefetchScalarGridSpec(
        num_scalar_prefetch=0,
        grid=(N,),
        in_specs=[
            pl.BlockSpec((1, Ho, Wo, Co), lambda n: (n, 0, 0, 0)),
            pl.BlockSpec((1, Co), lambda n: (0, 0)),
            pl.BlockSpec((1, Co), lambda n: (0, 0)),
            pl.BlockSpec((1, Ho, Wo, Co), lambda n: (n, 0, 0, 0)),
        ],
        out_specs=pl.BlockSpec((1, Ho, Wo, Co), lambda n: (n, 0, 0, 0)),
    )
    return pl.pallas_call(
        _bn_add_relu_kernel,
        out_shape=jax.ShapeDtypeStruct((N, Ho, Wo, Co), jnp.bfloat16),
        grid_spec=grid_spec,
        compiler_params=_compiler_params(),
    )(y, scale, shift, sc)


def _bn_add_bn_relu(y, scale, shift, ysc, scale_s, shift_s):
    N, Ho, Wo, Co = y.shape
    grid_spec = pltpu.PrefetchScalarGridSpec(
        num_scalar_prefetch=0,
        grid=(N,),
        in_specs=[
            pl.BlockSpec((1, Ho, Wo, Co), lambda n: (n, 0, 0, 0)),
            pl.BlockSpec((1, Co), lambda n: (0, 0)),
            pl.BlockSpec((1, Co), lambda n: (0, 0)),
            pl.BlockSpec((1, Ho, Wo, Co), lambda n: (n, 0, 0, 0)),
            pl.BlockSpec((1, Co), lambda n: (0, 0)),
            pl.BlockSpec((1, Co), lambda n: (0, 0)),
        ],
        out_specs=pl.BlockSpec((1, Ho, Wo, Co), lambda n: (n, 0, 0, 0)),
    )
    return pl.pallas_call(
        _bn_add_bn_relu_kernel,
        out_shape=jax.ShapeDtypeStruct((N, Ho, Wo, Co), jnp.bfloat16),
        grid_spec=grid_spec,
        compiler_params=_compiler_params(),
    )(y, scale, shift, ysc, scale_s, shift_s)


# ---------------------------------------------------------------------------
# Parameter prep + BN finalization (tiny JAX glue)
# ---------------------------------------------------------------------------
def _pad_channels(v, c):
    return jnp.pad(v.astype(jnp.float32), (0, c - v.shape[0]))


def _prep_w3x3(w_oihw, ci_p, co_p):
    co, ci = w_oihw.shape[0], w_oihw.shape[1]
    w = jnp.transpose(w_oihw, (2, 3, 1, 0)).astype(jnp.float32)     # (kh,kw,ci,co)
    w = jnp.pad(w, ((0, 0), (0, 0), (0, ci_p - ci), (0, co_p - co)))
    # kw-major, ci-minor along K so it matches the kernel's im2col layout.
    return w.reshape(3, 3 * ci_p, co_p).astype(jnp.bfloat16)


def _prep_w1x1(w_oihw, ci_p, co_p):
    co, ci = w_oihw.shape[0], w_oihw.shape[1]
    w = jnp.transpose(w_oihw[:, :, 0, 0], (1, 0)).astype(jnp.float32)  # (ci,co)
    w = jnp.pad(w, ((0, ci_p - ci), (0, co_p - co)))
    return w.astype(jnp.bfloat16)


def _bn_affine(s_partials, q_partials, gamma, beta, count):
    """Fold per-image (sum, sumsq) partials into a per-channel affine.

    Note: E[x^2]-E[x]^2 in f32; fine at these problem sizes, centered
    accumulation would be preferable at very large N*H*W.
    """
    total_s = jnp.sum(s_partials, axis=(0, 1))
    total_q = jnp.sum(q_partials, axis=(0, 1))
    mean = total_s / count
    var = jnp.maximum(total_q / count - mean * mean, 0.0)   # biased, like PyTorch
    scale = gamma * lax.rsqrt(var + EPS)
    shift = beta - mean * scale
    return scale.reshape(1, -1), shift.reshape(1, -1)


# ---------------------------------------------------------------------------
# BasicBlock forward
# ---------------------------------------------------------------------------
def basic_block_forward(x_nchw, params, stride=1):
    """Pallas implementation of BasicBlock.forward (training-mode BatchNorm)."""
    x = jnp.transpose(x_nchw, (0, 2, 3, 1))                          # NCHW -> NHWC
    N, H, W, cin = x.shape
    planes = params["w1"].shape[0]
    c1p = _round_up(cin, LANE)
    c2p = _round_up(planes, LANE)
    Ho = (H - 1) // stride + 1
    Wo = (W - 1) // stride + 1
    count = float(N * Ho * Wo)
    has_proj = (stride != 1) or (cin != planes)

    x_p = jnp.pad(x.astype(jnp.bfloat16),
                  ((0, 0), (0, 0), (0, 0), (0, c1p - cin)))

    w1 = _prep_w3x3(params["w1"], c1p, c2p)
    w2 = _prep_w3x3(params["w2"], c2p, c2p)
    g1 = _pad_channels(params["g1"], c2p)
    b1 = _pad_channels(params["b1"], c2p)
    g2 = _pad_channels(params["g2"], c2p)
    b2 = _pad_channels(params["b2"], c2p)

    # ---- conv1 (+ bn1 partial stats), with the 1x1 shortcut fused in -------
    if has_proj:
        ws = _prep_w1x1(params["ws"], c1p, c2p)
        y1, s1, q1, ysc, ssc, qsc = _conv3x3(
            x_p, None, None, w1, Ho, Wo, stride, apply_act=False, ws=ws)
    else:
        y1, s1, q1 = _conv3x3(
            x_p, None, None, w1, Ho, Wo, stride, apply_act=False)
    scale1, shift1 = _bn_affine(s1, q1, g1, b1, count)

    # ---- conv2 on relu(bn1(y1)) applied in-kernel (+ bn2 partial stats) ----
    y2, s2, q2 = _conv3x3(y1, scale1, shift1, w2, Ho, Wo, 1, apply_act=True)
    scale2, shift2 = _bn_affine(s2, q2, g2, b2, count)

    # ---- bn2 apply + shortcut + residual add + relu ------------------------
    if has_proj:
        gs = _pad_channels(params["gs"], c2p)
        bs = _pad_channels(params["bs"], c2p)
        scale_s, shift_s = _bn_affine(ssc, qsc, gs, bs, count)
        out = _bn_add_bn_relu(y2, scale2, shift2, ysc, scale_s, shift_s)
    else:
        out = _bn_add_relu(y2, scale2, shift2, x_p)

    out = out[..., :planes].astype(jnp.float32)
    return jnp.transpose(out, (0, 3, 1, 2))                          # back to NCHW


# ---------------------------------------------------------------------------
# Pure-JAX reference (mirrors the PyTorch forward in training mode)
# ---------------------------------------------------------------------------
def _conv_ref(x_nhwc, w_oihw, stride, pad):
    w_hwio = jnp.transpose(w_oihw, (2, 3, 1, 0))
    return lax.conv_general_dilated(
        x_nhwc, w_hwio, (stride, stride), [(pad, pad), (pad, pad)],
        dimension_numbers=("NHWC", "HWIO", "NHWC"))


def _bn_ref(y, g, b):
    mean = y.mean(axis=(0, 1, 2), keepdims=True)
    var = ((y - mean) ** 2).mean(axis=(0, 1, 2), keepdims=True)
    return (y - mean) * lax.rsqrt(var + EPS) * g + b


def basic_block_ref(x_nchw, params, stride=1):
    x = jnp.transpose(x_nchw, (0, 2, 3, 1)).astype(jnp.float32)
    cin = x.shape[-1]
    planes = params["w1"].shape[0]
    out = jax.nn.relu(_bn_ref(_conv_ref(x, params["w1"], stride, 1),
                              params["g1"], params["b1"]))
    out = _bn_ref(_conv_ref(out, params["w2"], 1, 1), params["g2"], params["b2"])
    if stride != 1 or cin != planes:
        sc = _bn_ref(_conv_ref(x, params["ws"], stride, 0),
                     params["gs"], params["bs"])
    else:
        sc = x
    out = jax.nn.relu(out + sc)
    return jnp.transpose(out, (0, 3, 1, 2))


# ---------------------------------------------------------------------------
if __name__ == "__main__":
    key = jax.random.PRNGKey(0)

    def make_params(k, in_planes, planes, with_proj):
        ks = jax.random.split(k, 8)
        p = {
            "w1": 0.1 * jax.random.normal(ks[0], (planes, in_planes, 3, 3), jnp.float32),
            "w2": 0.1 * jax.random.normal(ks[1], (planes, planes, 3, 3), jnp.float32),
            "g1": 1.0 + 0.1 * jax.random.normal(ks[3], (planes,), jnp.float32),
            "b1": 0.1 * jax.random.normal(ks[4], (planes,), jnp.float32),
            "g2": 1.0 + 0.1 * jax.random.normal(ks[5], (planes,), jnp.float32),
            "b2": 0.1 * jax.random.normal(ks[6], (planes,), jnp.float32),
        }
        if with_proj:
            p["ws"] = 0.1 * jax.random.normal(ks[2], (planes, in_planes, 1, 1), jnp.float32)
            p["gs"] = jnp.ones((planes,), jnp.float32)   # BN default init
            p["bs"] = jnp.zeros((planes,), jnp.float32)
        return p

    N, H, W = 2, 16, 16
    k1, k2, kx1, kx2 = jax.random.split(key, 4)
    fwd = jax.jit(functools.partial(basic_block_forward, stride=1))

    # Case 1: projection shortcut (in_planes != planes), stride 1.
    params_p = make_params(k1, 4, 8, with_proj=True)
    x1 = jax.random.normal(kx1, (N, 4, H, W), jnp.float32)
    out1 = jax.block_until_ready(fwd(x1, params_p))
    ref1 = jax.block_until_ready(basic_block_ref(x1, params_p, 1))
    assert out1.shape == (N, 8, H, W), out1.shape
    err1 = float(jnp.max(jnp.abs(out1 - ref1)))
    assert err1 < 1e-1, f"projection-shortcut max abs err {err1}"

    # Case 2: identity shortcut (in_planes == planes), stride 1.
    params_i = make_params(k2, 8, 8, with_proj=False)
    x2 = jax.random.normal(kx2, (N, 8, H, W), jnp.float32)
    out2 = jax.block_until_ready(fwd(x2, params_i))
    ref2 = jax.block_until_ready(basic_block_ref(x2, params_i, 1))
    assert out2.shape == (N, 8, H, W), out2.shape
    err2 = float(jnp.max(jnp.abs(out2 - ref2)))
    assert err2 < 1e-1, f"identity-shortcut max abs err {err2}"

    print("KERNEL_OK")
</pallas_src>

<mosaic_0001>
module attributes {stable_mosaic.version = 11 : i64} {
  func.func @_conv3x3_kernel(%arg0: i32, %arg1: memref<1x16x16x128xbf16, #tpu.memory_space<vmem>>, %arg2: memref<3x384x128xbf16, #tpu.memory_space<vmem>>, %arg3: memref<128x128xbf16, #tpu.memory_space<vmem>>, %arg4: memref<1x16x16x128xbf16, #tpu.memory_space<vmem>>, %arg5: memref<1x1x128xf32, #tpu.memory_space<vmem>>, %arg6: memref<1x1x128xf32, #tpu.memory_space<vmem>>, %arg7: memref<1x16x16x128xbf16, #tpu.memory_space<vmem>>, %arg8: memref<1x1x128xf32, #tpu.memory_space<vmem>>, %arg9: memref<1x1x128xf32, #tpu.memory_space<vmem>>, %arg10: memref<18x18x128xf32, #tpu.memory_space<vmem>>, %arg11: memref<18x16x384xbf16, #tpu.memory_space<vmem>>, %arg12: memref<256x128xf32, #tpu.memory_space<vmem>>) attributes {dimension_semantics = [#tpu.dimension_semantics<parallel>], iteration_bounds = array<i64: 2>, scalar_prefetch = 0 : i64, scratch_operands = 3 : i64, tpu.core_type = #tpu.core_type<tc>, window_params = [{transform_indices = @transform_0, window_bounds = array<i64: 1, 16, 16, 128>}, {pipeline_mode = #tpu.pipeline_mode<synchronous>, transform_indices = @transform_1, window_bounds = array<i64: 3, 384, 128>}, {pipeline_mode = #tpu.pipeline_mode<synchronous>, transform_indices = @transform_2, window_bounds = array<i64: 128, 128>}, {transform_indices = @transform_3, window_bounds = array<i64: 1, 16, 16, 128>}, {transform_indices = @transform_4, window_bounds = array<i64: 1, 1, 128>}, {transform_indices = @transform_5, window_bounds = array<i64: 1, 1, 128>}, {transform_indices = @transform_6, window_bounds = array<i64: 1, 16, 16, 128>}, {transform_indices = @transform_7, window_bounds = array<i64: 1, 1, 128>}, {transform_indices = @transform_8, window_bounds = array<i64: 1, 1, 128>}]} {
    %cst = arith.constant 0.000000e+00 : f32
    %0 = vector.broadcast %cst : f32 to vector<1x18x128xf32>
    %cst_0 = arith.constant 0.000000e+00 : f32
    %1 = vector.broadcast %cst_0 : f32 to vector<18x1x128xf32>
    %c0 = arith.constant 0 : index
    %c0_1 = arith.constant 0 : index
    %c0_2 = arith.constant 0 : index
    %2 = vector.load %arg10[%c0, %c0_1, %c0_2] : memref<18x18x128xf32, #tpu.memory_space<vmem>>, vector<1x18x128xf32>
    tpu.vector_store %arg10[%c0, %c0_1, %c0_2], %0 {strides = array<i32>} : memref<18x18x128xf32, #tpu.memory_space<vmem>>, vector<1x18x128xf32>,
    %c17 = arith.constant 17 : index
    %c0_3 = arith.constant 0 : index
    %c0_4 = arith.constant 0 : index
    %3 = vector.load %arg10[%c17, %c0_3, %c0_4] : memref<18x18x128xf32, #tpu.memory_space<vmem>>, vector<1x18x128xf32>
    tpu.vector_store %arg10[%c17, %c0_3, %c0_4], %0 {strides = array<i32>} : memref<18x18x128xf32, #tpu.memory_space<vmem>>, vector<1x18x128xf32>,
    %c0_5 = arith.constant 0 : index
    %c0_6 = arith.constant 0 : index
    %c0_7 = arith.constant 0 : index
    %4 = vector.load %arg10[%c0_5, %c0_6, %c0_7] : memref<18x18x128xf32, #tpu.memory_space<vmem>>, vector<18x1x128xf32>
    tpu.vector_store %arg10[%c0_5, %c0_6, %c0_7], %1 {strides = array<i32>} : memref<18x18x128xf32, #tpu.memory_space<vmem>>, vector<18x1x128xf32>,
    %c0_8 = arith.constant 0 : index
    %c17_9 = arith.constant 17 : index
    %c0_10 = arith.constant 0 : index
    %5 = vector.load %arg10[%c0_8, %c17_9, %c0_10] : memref<18x18x128xf32, #tpu.memory_space<vmem>>, vector<18x1x128xf32>
    tpu.vector_store %arg10[%c0_8, %c17_9, %c0_10], %1 {strides = array<i32>} : memref<18x18x128xf32, #tpu.memory_space<vmem>>, vector<18x1x128xf32>,
    %c0_11 = arith.constant 0 : index
    %c0_12 = arith.constant 0 : index
    %c0_13 = arith.constant 0 : index
    %c0_14 = arith.constant 0 : index
    %6 = vector.load %arg1[%c0_11, %c0_12, %c0_13, %c0_14] : memref<1x16x16x128xbf16, #tpu.memory_space<vmem>>, vector<1x16x16x128xbf16>
    %7 = vector.shape_cast %6 : vector<1x16x16x128xbf16> to vector<16x16x128xbf16>
    %8 = arith.extf %7 : vector<16x16x128xbf16> to vector<16x16x128xf32>
    %c1 = arith.constant 1 : index
    %c1_15 = arith.constant 1 : index
    %c0_16 = arith.constant 0 : index
    %9 = vector.load %arg10[%c1, %c1_15, %c0_16] : memref<18x18x128xf32, #tpu.memory_space<vmem>>, vector<16x16x128xf32>
    tpu.vector_store %arg10[%c1, %c1_15, %c0_16], %8 {strides = array<i32>} : memref<18x18x128xf32, #tpu.memory_space<vmem>>, vector<16x16x128xf32>,
    %c0_17 = arith.constant 0 : index
    %c0_18 = arith.constant 0 : index
    %c0_19 = arith.constant 0 : index
    %10 = vector.load %arg10[%c0_17, %c0_18, %c0_19] : memref<18x18x128xf32, #tpu.memory_space<vmem>>, vector<18x16x128xf32>
    %11 = arith.truncf %10 : vector<18x16x128xf32> to vector<18x16x128xbf16>
    %c0_20 = arith.constant 0 : index
    %c0_21 = arith.constant 0 : index
    %c0_22 = arith.constant 0 : index
    %12 = vector.load %arg11[%c0_20, %c0_21, %c0_22] : memref<18x16x384xbf16, #tpu.memory_space<vmem>>, vector<18x16x128xbf16>
    tpu.vector_store %arg11[%c0_20, %c0_21, %c0_22], %11 {strides = array<i32>} : memref<18x16x384xbf16, #tpu.memory_space<vmem>>, vector<18x16x128xbf16>,
    %c0_23 = arith.constant 0 : index
    %c1_24 = arith.constant 1 : index
    %c0_25 = arith.constant 0 : index
    %13 = vector.load %arg10[%c0_23, %c1_24, %c0_25] : memref<18x18x128xf32, #tpu.memory_space<vmem>>, vector<18x16x128xf32>
    %14 = arith.truncf %13 : vector<18x16x128xf32> to vector<18x16x128xbf16>
    %c0_26 = arith.constant 0 : index
    %c0_27 = arith.constant 0 : index
    %c128 = arith.constant 128 : index
    %15 = vector.load %arg11[%c0_26, %c0_27, %c128] : memref<18x16x384xbf16, #tpu.memory_space<vmem>>, vector<18x16x128xbf16>
    tpu.vector_store %arg11[%c0_26, %c0_27, %c128], %14 {strides = array<i32>} : memref<18x16x384xbf16, #tpu.memory_space<vmem>>, vector<18x16x128xbf16>,
    %c0_28 = arith.constant 0 : index
    %c2 = arith.constant 2 : index
    %c0_29 = arith.constant 0 : index
    %16 = vector.load %arg10[%c0_28, %c2, %c0_29] : memref<18x18x128xf32, #tpu.memory_space<vmem>>, vector<18x16x128xf32>
    %17 = arith.truncf %16 : vector<18x16x128xf32> to vector<18x16x128xbf16>
    %c0_30 = arith.constant 0 : index
    %c0_31 = arith.constant 0 : index
    %c256 = arith.constant 256 : index
    %18 = vector.load %arg11[%c0_30, %c0_31, %c256] : memref<18x16x384xbf16, #tpu.memory_space<vmem>>, vector<18x16x128xbf16>
    tpu.vector_store %arg11[%c0_30, %c0_31, %c256], %17 {strides = array<i32>} : memref<18x16x384xbf16, #tpu.memory_space<vmem>>, vector<18x16x128xbf16>,
    %c0_32 = arith.constant 0 : index
    %c0_33 = arith.constant 0 : index
    %c0_34 = arith.constant 0 : index
    %19 = vector.load %arg11[%c0_32, %c0_33, %c0_34] : memref<18x16x384xbf16, #tpu.memory_space<vmem>>, vector<16x16x384xbf16>
    %20 = vector.shape_cast %19 : vector<16x16x384xbf16> to vector<256x384xbf16>
    %c0_35 = arith.constant 0 : index
    %c0_36 = arith.constant 0 : index
    %c0_37 = arith.constant 0 : index
    %21 = vector.load %arg2[%c0_35, %c0_36, %c0_37] : memref<3x384x128xbf16, #tpu.memory_space<vmem>>, vector<1x384x128xbf16>
    %22 = vector.shape_cast %21 : vector<1x384x128xbf16> to vector<384x128xbf16>
    %cst_38 = arith.constant dense<0.000000e+00> : vector<256x128xf32>
    %23 = tpu.matmul %20, %22, %cst_38 {dimension_numbers = #tpu.dot_dimension_numbers<[1], [0], [0], [1], [0, 0, 1, 1], [], []>} : vector<256x384xbf16>, vector<384x128xbf16>, vector<256x128xf32> -> vector<256x128xf32>
    %c0_39 = arith.constant 0 : index
    %c0_40 = arith.constant 0 : index
    %24 = vector.load %arg12[%c0_39, %c0_40] : memref<256x128xf32, #tpu.memory_space<vmem>>, vector<256x128xf32>
    tpu.vector_store %arg12[%c0_39, %c0_40], %23 {strides = array<i32>} : memref<256x128xf32, #tpu.memory_space<vmem>>, vector<256x128xf32>,
    %c1_41 = arith.constant 1 : index
    %c0_42 = arith.constant 0 : index
    %c0_43 = arith.constant 0 : index
    %25 = vector.load %arg11[%c1_41, %c0_42, %c0_43] : memref<18x16x384xbf16, #tpu.memory_space<vmem>>, vector<16x16x384xbf16>
    %26 = vector.extract_strided_slice %25 {offsets = [0, 0, 128], sizes = [16, 16, 128], strides = [1, 1, 1]} : vector<16x16x384xbf16> to vector<16x16x128xbf16>
    %27 = vector.shape_cast %25 : vector<16x16x384xbf16> to vector<256x384xbf16>
    %c1_44 = arith.constant 1 : index
    %c0_45 = arith.constant 0 : index
    %c0_46 = arith.constant 0 : index
    %28 = vector.load %arg2[%c1_44, %c0_45, %c0_46] : memref<3x384x128xbf16, #tpu.memory_space<vmem>>, vector<1x384x128xbf16>
    %29 = vector.shape_cast %28 : vector<1x384x128xbf16> to vector<384x128xbf16>
    %cst_47 = arith.constant dense<0.000000e+00> : vector<256x128xf32>
    %30 = tpu.matmul %27, %29, %cst_47 {dimension_numbers = #tpu.dot_dimension_numbers<[1], [0], [0], [1], [0, 0, 1, 1], [], []>} : vector<256x384xbf16>, vector<384x128xbf16>, vector<256x128xf32> -> vector<256x128xf32>
    %c0_48 = arith.constant 0 : index
    %c0_49 = arith.constant 0 : index
    %31 = vector.load %arg12[%c0_48, %c0_49] : memref<256x128xf32, #tpu.memory_space<vmem>>, vector<256x128xf32>
    %32 = arith.addf %31, %30 : vector<256x128xf32>
    %c0_50 = arith.constant 0 : index
    %c0_51 = arith.constant 0 : index
    %33 = vector.load %arg12[%c0_50, %c0_51] : memref<256x128xf32, #tpu.memory_space<vmem>>, vector<256x128xf32>
    tpu.vector_store %arg12[%c0_50, %c0_51], %32 {strides = array<i32>} : memref<256x128xf32, #tpu.memory_space<vmem>>, vector<256x128xf32>,
    %c2_52 = arith.constant 2 : index
    %c0_53 = arith.constant 0 : index
    %c0_54 = arith.constant 0 : index
    %34 = vector.load %arg11[%c2_52, %c0_53, %c0_54] : memref<18x16x384xbf16, #tpu.memory_space<vmem>>, vector<16x16x384xbf16>
    %35 = vector.shape_cast %34 : vector<16x16x384xbf16> to vector<256x384xbf16>
    %c2_55 = arith.constant 2 : index
    %c0_56 = arith.constant 0 : index
    %c0_57 = arith.constant 0 : index
    %36 = vector.load %arg2[%c2_55, %c0_56, %c0_57] : memref<3x384x128xbf16, #tpu.memory_space<vmem>>, vector<1x384x128xbf16>
    %37 = vector.shape_cast %36 : vector<1x384x128xbf16> to vector<384x128xbf16>
    %cst_58 = arith.constant dense<0.000000e+00> : vector<256x128xf32>
    %38 = tpu.matmul %35, %37, %cst_58 {dimension_numbers = #tpu.dot_dimension_numbers<[1], [0], [0], [1], [0, 0, 1, 1], [], []>} : vector<256x384xbf16>, vector<384x128xbf16>, vector<256x128xf32> -> vector<256x128xf32>
    %c0_59 = arith.constant 0 : index
    %c0_60 = arith.constant 0 : index
    %39 = vector.load %arg12[%c0_59, %c0_60] : memref<256x128xf32, #tpu.memory_space<vmem>>, vector<256x128xf32>
    %40 = arith.addf %39, %38 : vector<256x128xf32>
    %c0_61 = arith.constant 0 : index
    %c0_62 = arith.constant 0 : index
    %41 = vector.load %arg12[%c0_61, %c0_62] : memref<256x128xf32, #tpu.memory_space<vmem>>, vector<256x128xf32>
    tpu.vector_store %arg12[%c0_61, %c0_62], %40 {strides = array<i32>} : memref<256x128xf32, #tpu.memory_space<vmem>>, vector<256x128xf32>,
    %c0_63 = arith.constant 0 : index
    %c0_64 = arith.constant 0 : index
    %42 = vector.load %arg12[%c0_63, %c0_64] : memref<256x128xf32, #tpu.memory_space<vmem>>, vector<256x128xf32>
    %43 = vector.shape_cast %42 : vector<256x128xf32> to vector<16x16x128xf32>
    %44 = arith.truncf %43 : vector<16x16x128xf32> to vector<16x16x128xbf16>
    %c0_65 = arith.constant 0 : index
    %c0_66 = arith.constant 0 : index
    %c0_67 = arith.constant 0 : index
    %c0_68 = arith.constant 0 : index
    %45 = vector.load %arg4[%c0_65, %c0_66, %c0_67, %c0_68] : memref<1x16x16x128xbf16, #tpu.memory_space<vmem>>, vector<1x16x16x128xbf16>
    %46 = vector.shape_cast %45 : vector<1x16x16x128xbf16> to vector<16x16x128xbf16>
    %47 = vector.shape_cast %44 : vector<16x16x128xbf16> to vector<1x16x16x128xbf16>
    tpu.vector_store %arg4[%c0_65, %c0_66, %c0_67, %c0_68], %47 {strides = array<i32>} : memref<1x16x16x128xbf16, #tpu.memory_space<vmem>>, vector<1x16x16x128xbf16>,
    %cst_69 = arith.constant dense<0.000000e+00> : vector<128xf32>
    %48 = vector.multi_reduction <add>, %42, %cst_69 [0] : vector<256x128xf32> to vector<128xf32>
    %49 = vector.shape_cast %48 : vector<128xf32> to vector<1x128xf32>
    %c0_70 = arith.constant 0 : index
    %c0_71 = arith.constant 0 : index
    %c0_72 = arith.constant 0 : index
    %50 = vector.load %arg5[%c0_70, %c0_71, %c0_72] : memref<1x1x128xf32, #tpu.memory_space<vmem>>, vector<1x1x128xf32>
    %51 = vector.shape_cast %50 : vector<1x1x128xf32> to vector<1x128xf32>
    %52 = vector.shape_cast %49 : vector<1x128xf32> to vector<1x1x128xf32>
    tpu.vector_store %arg5[%c0_70, %c0_71, %c0_72], %52 {strides = array<i32>} : memref<1x1x128xf32, #tpu.memory_space<vmem>>, vector<1x1x128xf32>,
    %53 = arith.mulf %42, %42 : vector<256x128xf32>
    %cst_73 = arith.constant dense<0.000000e+00> : vector<128xf32>
    %54 = vector.multi_reduction <add>, %53, %cst_73 [0] : vector<256x128xf32> to vector<128xf32>
    %55 = vector.shape_cast %54 : vector<128xf32> to vector<1x128xf32>
    %c0_74 = arith.constant 0 : index
    %c0_75 = arith.constant 0 : index
    %c0_76 = arith.constant 0 : index
    %56 = vector.load %arg6[%c0_74, %c0_75, %c0_76] : memref<1x1x128xf32, #tpu.memory_space<vmem>>, vector<1x1x128xf32>
    %57 = vector.shape_cast %56 : vector<1x1x128xf32> to vector<1x128xf32>
    %58 = vector.shape_cast %55 : vector<1x128xf32> to vector<1x1x128xf32>
    tpu.vector_store %arg6[%c0_74, %c0_75, %c0_76], %58 {strides = array<i32>} : memref<1x1x128xf32, #tpu.memory_space<vmem>>, vector<1x1x128xf32>,
    %59 = vector.shape_cast %26 : vector<16x16x128xbf16> to vector<256x128xbf16>
    %c0_77 = arith.constant 0 : index
    %c0_78 = arith.constant 0 : index
    %60 = vector.load %arg3[%c0_77, %c0_78] : memref<128x128xbf16, #tpu.memory_space<vmem>>, vector<128x128xbf16>
    %cst_79 = arith.constant dense<0.000000e+00> : vector<256x128xf32>
    %61 = tpu.matmul %59, %60, %cst_79 {dimension_numbers = #tpu.dot_dimension_numbers<[1], [0], [0], [1], [0, 0, 1, 1], [], []>} : vector<256x128xbf16>, vector<128x128xbf16>, vector<256x128xf32> -> vector<256x128xf32>
    %62 = vector.shape_cast %61 : vector<256x128xf32> to vector<16x16x128xf32>
    %63 = arith.truncf %62 : vector<16x16x128xf32> to vector<16x16x128xbf16>
    %c0_80 = arith.constant 0 : index
    %c0_81 = arith.constant 0 : index
    %c0_82 = arith.constant 0 : index
    %c0_83 = arith.constant 0 : index
    %64 = vector.load %arg7[%c0_80, %c0_81, %c0_82, %c0_83] : memref<1x16x16x128xbf16, #tpu.memory_space<vmem>>, vector<1x16x16x128xbf16>
    %65 = vector.shape_cast %64 : vector<1x16x16x128xbf16> to vector<16x16x128xbf16>
    %66 = vector.shape_cast %63 : vector<16x16x128xbf16> to vector<1x16x16x128xbf16>
    tpu.vector_store %arg7[%c0_80, %c0_81, %c0_82, %c0_83], %66 {strides = array<i32>} : memref<1x16x16x128xbf16, #tpu.memory_space<vmem>>, vector<1x16x16x128xbf16>,
    %cst_84 = arith.constant dense<0.000000e+00> : vector<128xf32>
    %67 = vector.multi_reduction <add>, %61, %cst_84 [0] : vector<256x128xf32> to vector<128xf32>
    %68 = vector.shape_cast %67 : vector<128xf32> to vector<1x128xf32>
    %c0_85 = arith.constant 0 : index
    %c0_86 = arith.constant 0 : index
    %c0_87 = arith.constant 0 : index
    %69 = vector.load %arg8[%c0_85, %c0_86, %c0_87] : memref<1x1x128xf32, #tpu.memory_space<vmem>>, vector<1x1x128xf32>
    %70 = vector.shape_cast %69 : vector<1x1x128xf32> to vector<1x128xf32>
    %71 = vector.shape_cast %68 : vector<1x128xf32> to vector<1x1x128xf32>
    tpu.vector_store %arg8[%c0_85, %c0_86, %c0_87], %71 {strides = array<i32>} : memref<1x1x128xf32, #tpu.memory_space<vmem>>, vector<1x1x128xf32>,
    %72 = arith.mulf %61, %61 : vector<256x128xf32>
    %cst_88 = arith.constant dense<0.000000e+00> : vector<128xf32>
    %73 = vector.multi_reduction <add>, %72, %cst_88 [0] : vector<256x128xf32> to vector<128xf32>
    %74 = vector.shape_cast %73 : vector<128xf32> to vector<1x128xf32>
    %c0_89 = arith.constant 0 : index
    %c0_90 = arith.constant 0 : index
    %c0_91 = arith.constant 0 : index
    %75 = vector.load %arg9[%c0_89, %c0_90, %c0_91] : memref<1x1x128xf32, #tpu.memory_space<vmem>>, vector<1x1x128xf32>
    %76 = vector.shape_cast %75 : vector<1x1x128xf32> to vector<1x128xf32>
    %77 = vector.shape_cast %74 : vector<1x128xf32> to vector<1x1x128xf32>
    tpu.vector_store %arg9[%c0_89, %c0_90, %c0_91], %77 {strides = array<i32>} : memref<1x1x128xf32, #tpu.memory_space<vmem>>, vector<1x1x128xf32>,
    return
  }
  func.func @transform_0(%arg0: i32) -> (i32, i32, i32, i32) {
    %c0_i32 = arith.constant 0 : i32
    %c0_i32_0 = arith.constant 0 : i32
    %c0_i32_1 = arith.constant 0 : i32
    %c0_i32_2 = arith.constant 0 : i32
    return %arg0, %c0_i32, %c0_i32_0, %c0_i32_1 : i32, i32, i32, i32
  }
  func.func @transform_1(%arg0: i32) -> (i32, i32, i32) {
    %c0_i32 = arith.constant 0 : i32
    %c0_i32_0 = arith.constant 0 : i32
    %c0_i32_1 = arith.constant 0 : i32
    %c0_i32_2 = arith.constant 0 : i32
    return %c0_i32, %c0_i32_0, %c0_i32_1 : i32, i32, i32
  }
  func.func @transform_2(%arg0: i32) -> (i32, i32) {
    %c0_i32 = arith.constant 0 : i32
    %c0_i32_0 = arith.constant 0 : i32
    %c0_i32_1 = arith.constant 0 : i32
    return %c0_i32, %c0_i32_0 : i32, i32
  }
  func.func @transform_3(%arg0: i32) -> (i32, i32, i32, i32) {
    %c0_i32 = arith.constant 0 : i32
    %c0_i32_0 = arith.constant 0 : i32
    %c0_i32_1 = arith.constant 0 : i32
    %c0_i32_2 = arith.constant 0 : i32
    return %arg0, %c0_i32, %c0_i32_0, %c0_i32_1 : i32, i32, i32, i32
  }
  func.func @transform_4(%arg0: i32) -> (i32, i32, i32) {
    %c0_i32 = arith.constant 0 : i32
    %c0_i32_0 = arith.constant 0 : i32
    %c0_i32_1 = arith.constant 0 : i32
    return %arg0, %c0_i32, %c0_i32_0 : i32, i32, i32
  }
  func.func @transform_5(%arg0: i32) -> (i32, i32, i32) {
    %c0_i32 = arith.constant 0 : i32
    %c0_i32_0 = arith.constant 0 : i32
    %c0_i32_1 = arith.constant 0 : i32
    return %arg0, %c0_i32, %c0_i32_0 : i32, i32, i32
  }
  func.func @transform_6(%arg0: i32) -> (i32, i32, i32, i32) {
    %c0_i32 = arith.constant 0 : i32
    %c0_i32_0 = arith.constant 0 : i32
    %c0_i32_1 = arith.constant 0 : i32
    %c0_i32_2 = arith.constant 0 : i32
    return %arg0, %c0_i32, %c0_i32_0, %c0_i32_1 : i32, i32, i32, i32
  }
  func.func @transform_7(%arg0: i32) -> (i32, i32, i32) {
    %c0_i32 = arith.constant 0 : i32
    %c0_i32_0 = arith.constant 0 : i32
    %c0_i32_1 = arith.constant 0 : i32
    return %arg0, %c0_i32, %c0_i32_0 : i32, i32, i32
  }
  func.func @transform_8(%arg0: i32) -> (i32, i32, i32) {
    %c0_i32 = arith.constant 0 : i32
    %c0_i32_0 = arith.constant 0 : i32
    %c0_i32_1 = arith.constant 0 : i32
    return %arg0, %c0_i32, %c0_i32_0 : i32, i32, i32
  }
}

module attributes {stable_mosaic.version = 11 : i64} {
  func.func @_conv3x3_kernel(%arg0: i32, %arg1: memref<1x16x16x128xbf16, #tpu.memory_space<vmem>>, %arg2: memref<1x128xf32, #tpu.memory_space<vmem>>, %arg3: memref<1x128xf32, #tpu.memory_space<vmem>>, %arg4: memref<3x384x128xbf16, #tpu.memory_space<vmem>>, %arg5: memref<1x16x16x128xbf16, #tpu.memory_space<vmem>>, %arg6: memref<1x1x128xf32, #tpu.memory_space<vmem>>, %arg7: memref<1x1x128xf32, #tpu.memory_space<vmem>>, %arg8: memref<18x18x128xf32, #tpu.memory_space<vmem>>, %arg9: memref<18x16x384xbf16, #tpu.memory_space<vmem>>, %arg10: memref<256x128xf32, #tpu.memory_space<vmem>>) attributes {dimension_semantics = [#tpu.dimension_semantics<parallel>], iteration_bounds = array<i64: 2>, scalar_prefetch = 0 : i64, scratch_operands = 3 : i64, tpu.core_type = #tpu.core_type<tc>, window_params = [{transform_indices = @transform_0, window_bounds = array<i64: 1, 16, 16, 128>}, {pipeline_mode = #tpu.pipeline_mode<synchronous>, transform_indices = @transform_1, window_bounds = array<i64: 1, 128>}, {pipeline_mode = #tpu.pipeline_mode<synchronous>, transform_indices = @transform_2, window_bounds = array<i64: 1, 128>}, {pipeline_mode = #tpu.pipeline_mode<synchronous>, transform_indices = @transform_3, window_bounds = array<i64: 3, 384, 128>}, {transform_indices = @transform_4, window_bounds = array<i64: 1, 16, 16, 128>}, {transform_indices = @transform_5, window_bounds = array<i64: 1, 1, 128>}, {transform_indices = @transform_6, window_bounds = array<i64: 1, 1, 128>}]} {
    %cst = arith.constant 0.000000e+00 : f32
    %0 = vector.broadcast %cst : f32 to vector<1x18x128xf32>
    %cst_0 = arith.constant 0.000000e+00 : f32
    %1 = vector.broadcast %cst_0 : f32 to vector<18x1x128xf32>
    %c0 = arith.constant 0 : index
    %c0_1 = arith.constant 0 : index
    %c0_2 = arith.constant 0 : index
    %2 = vector.load %arg8[%c0, %c0_1, %c0_2] : memref<18x18x128xf32, #tpu.memory_space<vmem>>, vector<1x18x128xf32>
    tpu.vector_store %arg8[%c0, %c0_1, %c0_2], %0 {strides = array<i32>} : memref<18x18x128xf32, #tpu.memory_space<vmem>>, vector<1x18x128xf32>,
    %c17 = arith.constant 17 : index
    %c0_3 = arith.constant 0 : index
    %c0_4 = arith.constant 0 : index
    %3 = vector.load %arg8[%c17, %c0_3, %c0_4] : memref<18x18x128xf32, #tpu.memory_space<vmem>>, vector<1x18x128xf32>
    tpu.vector_store %arg8[%c17, %c0_3, %c0_4], %0 {strides = array<i32>} : memref<18x18x128xf32, #tpu.memory_space<vmem>>, vector<1x18x128xf32>,
    %c0_5 = arith.constant 0 : index
    %c0_6 = arith.constant 0 : index
    %c0_7 = arith.constant 0 : index
    %4 = vector.load %arg8[%c0_5, %c0_6, %c0_7] : memref<18x18x128xf32, #tpu.memory_space<vmem>>, vector<18x1x128xf32>
    tpu.vector_store %arg8[%c0_5, %c0_6, %c0_7], %1 {strides = array<i32>} : memref<18x18x128xf32, #tpu.memory_space<vmem>>, vector<18x1x128xf32>,
    %c0_8 = arith.constant 0 : index
    %c17_9 = arith.constant 17 : index
    %c0_10 = arith.constant 0 : index
    %5 = vector.load %arg8[%c0_8, %c17_9, %c0_10] : memref<18x18x128xf32, #tpu.memory_space<vmem>>, vector<18x1x128xf32>
    tpu.vector_store %arg8[%c0_8, %c17_9, %c0_10], %1 {strides = array<i32>} : memref<18x18x128xf32, #tpu.memory_space<vmem>>, vector<18x1x128xf32>,
    %c0_11 = arith.constant 0 : index
    %c0_12 = arith.constant 0 : index
    %c0_13 = arith.constant 0 : index
    %c0_14 = arith.constant 0 : index
    %6 = vector.load %arg1[%c0_11, %c0_12, %c0_13, %c0_14] : memref<1x16x16x128xbf16, #tpu.memory_space<vmem>>, vector<1x16x16x128xbf16>
    %7 = vector.shape_cast %6 : vector<1x16x16x128xbf16> to vector<16x16x128xbf16>
    %8 = arith.extf %7 : vector<16x16x128xbf16> to vector<16x16x128xf32>
    %c0_15 = arith.constant 0 : index
    %c0_16 = arith.constant 0 : index
    %9 = vector.load %arg2[%c0_15, %c0_16] : memref<1x128xf32, #tpu.memory_space<vmem>>, vector<1x128xf32>
    %10 = vector.shape_cast %9 : vector<1x128xf32> to vector<1x1x128xf32>
    %11 = vector.broadcast %10 : vector<1x1x128xf32> to vector<16x16x128xf32>
    %12 = arith.mulf %8, %11 : vector<16x16x128xf32>
    %c0_17 = arith.constant 0 : index
    %c0_18 = arith.constant 0 : index
    %13 = vector.load %arg3[%c0_17, %c0_18] : memref<1x128xf32, #tpu.memory_space<vmem>>, vector<1x128xf32>
    %14 = vector.shape_cast %13 : vector<1x128xf32> to vector<1x1x128xf32>
    %15 = vector.broadcast %14 : vector<1x1x128xf32> to vector<16x16x128xf32>
    %16 = arith.addf %12, %15 : vector<16x16x128xf32>
    %cst_19 = arith.constant 0.000000e+00 : f32
    %17 = vector.broadcast %cst_19 : f32 to vector<16x16x128xf32>
    %18 = arith.maximumf %16, %17 : vector<16x16x128xf32>
    %c1 = arith.constant 1 : index
    %c1_20 = arith.constant 1 : index
    %c0_21 = arith.constant 0 : index
    %19 = vector.load %arg8[%c1, %c1_20, %c0_21] : memref<18x18x128xf32, #tpu.memory_space<vmem>>, vector<16x16x128xf32>
    tpu.vector_store %arg8[%c1, %c1_20, %c0_21], %18 {strides = array<i32>} : memref<18x18x128xf32, #tpu.memory_space<vmem>>, vector<16x16x128xf32>,
    %c0_22 = arith.constant 0 : index
    %c0_23 = arith.constant 0 : index
    %c0_24 = arith.constant 0 : index
    %20 = vector.load %arg8[%c0_22, %c0_23, %c0_24] : memref<18x18x128xf32, #tpu.memory_space<vmem>>, vector<18x16x128xf32>
    %21 = arith.truncf %20 : vector<18x16x128xf32> to vector<18x16x128xbf16>
    %c0_25 = arith.constant 0 : index
    %c0_26 = arith.constant 0 : index
    %c0_27 = arith.constant 0 : index
    %22 = vector.load %arg9[%c0_25, %c0_26, %c0_27] : memref<18x16x384xbf16, #tpu.memory_space<vmem>>, vector<18x16x128xbf16>
    tpu.vector_store %arg9[%c0_25, %c0_26, %c0_27], %21 {strides = array<i32>} : memref<18x16x384xbf16, #tpu.memory_space<vmem>>, vector<18x16x128xbf16>,
    %c0_28 = arith.constant 0 : index
    %c1_29 = arith.constant 1 : index
    %c0_30 = arith.constant 0 : index
    %23 = vector.load %arg8[%c0_28, %c1_29, %c0_30] : memref<18x18x128xf32, #tpu.memory_space<vmem>>, vector<18x16x128xf32>
    %24 = arith.truncf %23 : vector<18x16x128xf32> to vector<18x16x128xbf16>
    %c0_31 = arith.constant 0 : index
    %c0_32 = arith.constant 0 : index
    %c128 = arith.constant 128 : index
    %25 = vector.load %arg9[%c0_31, %c0_32, %c128] : memref<18x16x384xbf16, #tpu.memory_space<vmem>>, vector<18x16x128xbf16>
    tpu.vector_store %arg9[%c0_31, %c0_32, %c128], %24 {strides = array<i32>} : memref<18x16x384xbf16, #tpu.memory_space<vmem>>, vector<18x16x128xbf16>,
    %c0_33 = arith.constant 0 : index
    %c2 = arith.constant 2 : index
    %c0_34 = arith.constant 0 : index
    %26 = vector.load %arg8[%c0_33, %c2, %c0_34] : memref<18x18x128xf32, #tpu.memory_space<vmem>>, vector<18x16x128xf32>
    %27 = arith.truncf %26 : vector<18x16x128xf32> to vector<18x16x128xbf16>
    %c0_35 = arith.constant 0 : index
    %c0_36 = arith.constant 0 : index
    %c256 = arith.constant 256 : index
    %28 = vector.load %arg9[%c0_35, %c0_36, %c256] : memref<18x16x384xbf16, #tpu.memory_space<vmem>>, vector<18x16x128xbf16>
    tpu.vector_store %arg9[%c0_35, %c0_36, %c256], %27 {strides = array<i32>} : memref<18x16x384xbf16, #tpu.memory_space<vmem>>, vector<18x16x128xbf16>,
    %c0_37 = arith.constant 0 : index
    %c0_38 = arith.constant 0 : index
    %c0_39 = arith.constant 0 : index
    %29 = vector.load %arg9[%c0_37, %c0_38, %c0_39] : memref<18x16x384xbf16, #tpu.memory_space<vmem>>, vector<16x16x384xbf16>
    %30 = vector.shape_cast %29 : vector<16x16x384xbf16> to vector<256x384xbf16>
    %c0_40 = arith.constant 0 : index
    %c0_41 = arith.constant 0 : index
    %c0_42 = arith.constant 0 : index
    %31 = vector.load %arg4[%c0_40, %c0_41, %c0_42] : memref<3x384x128xbf16, #tpu.memory_space<vmem>>, vector<1x384x128xbf16>
    %32 = vector.shape_cast %31 : vector<1x384x128xbf16> to vector<384x128xbf16>
    %cst_43 = arith.constant dense<0.000000e+00> : vector<256x128xf32>
    %33 = tpu.matmul %30, %32, %cst_43 {dimension_numbers = #tpu.dot_dimension_numbers<[1], [0], [0], [1], [0, 0, 1, 1], [], []>} : vector<256x384xbf16>, vector<384x128xbf16>, vector<256x128xf32> -> vector<256x128xf32>
    %c0_44 = arith.constant 0 : index
    %c0_45 = arith.constant 0 : index
    %34 = vector.load %arg10[%c0_44, %c0_45] : memref<256x128xf32, #tpu.memory_space<vmem>>, vector<256x128xf32>
    tpu.vector_store %arg10[%c0_44, %c0_45], %33 {strides = array<i32>} : memref<256x128xf32, #tpu.memory_space<vmem>>, vector<256x128xf32>,
    %c1_46 = arith.constant 1 : index
    %c0_47 = arith.constant 0 : index
    %c0_48 = arith.constant 0 : index
    %35 = vector.load %arg9[%c1_46, %c0_47, %c0_48] : memref<18x16x384xbf16, #tpu.memory_space<vmem>>, vector<16x16x384xbf16>
    %36 = vector.shape_cast %35 : vector<16x16x384xbf16> to vector<256x384xbf16>
    %c1_49 = arith.constant 1 : index
    %c0_50 = arith.constant 0 : index
    %c0_51 = arith.constant 0 : index
    %37 = vector.load %arg4[%c1_49, %c0_50, %c0_51] : memref<3x384x128xbf16, #tpu.memory_space<vmem>>, vector<1x384x128xbf16>
    %38 = vector.shape_cast %37 : vector<1x384x128xbf16> to vector<384x128xbf16>
    %cst_52 = arith.constant dense<0.000000e+00> : vector<256x128xf32>
    %39 = tpu.matmul %36, %38, %cst_52 {dimension_numbers = #tpu.dot_dimension_numbers<[1], [0], [0], [1], [0, 0, 1, 1], [], []>} : vector<256x384xbf16>, vector<384x128xbf16>, vector<256x128xf32> -> vector<256x128xf32>
    %c0_53 = arith.constant 0 : index
    %c0_54 = arith.constant 0 : index
    %40 = vector.load %arg10[%c0_53, %c0_54] : memref<256x128xf32, #tpu.memory_space<vmem>>, vector<256x128xf32>
    %41 = arith.addf %40, %39 : vector<256x128xf32>
    %c0_55 = arith.constant 0 : index
    %c0_56 = arith.constant 0 : index
    %42 = vector.load %arg10[%c0_55, %c0_56] : memref<256x128xf32, #tpu.memory_space<vmem>>, vector<256x128xf32>
    tpu.vector_store %arg10[%c0_55, %c0_56], %41 {strides = array<i32>} : memref<256x128xf32, #tpu.memory_space<vmem>>, vector<256x128xf32>,
    %c2_57 = arith.constant 2 : index
    %c0_58 = arith.constant 0 : index
    %c0_59 = arith.constant 0 : index
    %43 = vector.load %arg9[%c2_57, %c0_58, %c0_59] : memref<18x16x384xbf16, #tpu.memory_space<vmem>>, vector<16x16x384xbf16>
    %44 = vector.shape_cast %43 : vector<16x16x384xbf16> to vector<256x384xbf16>
    %c2_60 = arith.constant 2 : index
    %c0_61 = arith.constant 0 : index
    %c0_62 = arith.constant 0 : index
    %45 = vector.load %arg4[%c2_60, %c0_61, %c0_62] : memref<3x384x128xbf16, #tpu.memory_space<vmem>>, vector<1x384x128xbf16>
    %46 = vector.shape_cast %45 : vector<1x384x128xbf16> to vector<384x128xbf16>
    %cst_63 = arith.constant dense<0.000000e+00> : vector<256x128xf32>
    %47 = tpu.matmul %44, %46, %cst_63 {dimension_numbers = #tpu.dot_dimension_numbers<[1], [0], [0], [1], [0, 0, 1, 1], [], []>} : vector<256x384xbf16>, vector<384x128xbf16>, vector<256x128xf32> -> vector<256x128xf32>
    %c0_64 = arith.constant 0 : index
    %c0_65 = arith.constant 0 : index
    %48 = vector.load %arg10[%c0_64, %c0_65] : memref<256x128xf32, #tpu.memory_space<vmem>>, vector<256x128xf32>
    %49 = arith.addf %48, %47 : vector<256x128xf32>
    %c0_66 = arith.constant 0 : index
    %c0_67 = arith.constant 0 : index
    %50 = vector.load %arg10[%c0_66, %c0_67] : memref<256x128xf32, #tpu.memory_space<vmem>>, vector<256x128xf32>
    tpu.vector_store %arg10[%c0_66, %c0_67], %49 {strides = array<i32>} : memref<256x128xf32, #tpu.memory_space<vmem>>, vector<256x128xf32>,
    %c0_68 = arith.constant 0 : index
    %c0_69 = arith.constant 0 : index
    %51 = vector.load %arg10[%c0_68, %c0_69] : memref<256x128xf32, #tpu.memory_space<vmem>>, vector<256x128xf32>
    %52 = vector.shape_cast %51 : vector<256x128xf32> to vector<16x16x128xf32>
    %53 = arith.truncf %52 : vector<16x16x128xf32> to vector<16x16x128xbf16>
    %c0_70 = arith.constant 0 : index
    %c0_71 = arith.constant 0 : index
    %c0_72 = arith.constant 0 : index
    %c0_73 = arith.constant 0 : index
    %54 = vector.load %arg5[%c0_70, %c0_71, %c0_72, %c0_73] : memref<1x16x16x128xbf16, #tpu.memory_space<vmem>>, vector<1x16x16x128xbf16>
    %55 = vector.shape_cast %54 : vector<1x16x16x128xbf16> to vector<16x16x128xbf16>
    %56 = vector.shape_cast %53 : vector<16x16x128xbf16> to vector<1x16x16x128xbf16>
    tpu.vector_store %arg5[%c0_70, %c0_71, %c0_72, %c0_73], %56 {strides = array<i32>} : memref<1x16x16x128xbf16, #tpu.memory_space<vmem>>, vector<1x16x16x128xbf16>,
    %cst_74 = arith.constant dense<0.000000e+00> : vector<128xf32>
    %57 = vector.multi_reduction <add>, %51, %cst_74 [0] : vector<256x128xf32> to vector<128xf32>
    %58 = vector.shape_cast %57 : vector<128xf32> to vector<1x128xf32>
    %c0_75 = arith.constant 0 : index
    %c0_76 = arith.constant 0 : index
    %c0_77 = arith.constant 0 : index
    %59 = vector.load %arg6[%c0_75, %c0_76, %c0_77] : memref<1x1x128xf32, #tpu.memory_space<vmem>>, vector<1x1x128xf32>
    %60 = vector.shape_cast %59 : vector<1x1x128xf32> to vector<1x128xf32>
    %61 = vector.shape_cast %58 : vector<1x128xf32> to vector<1x1x128xf32>
    tpu.vector_store %arg6[%c0_75, %c0_76, %c0_77], %61 {strides = array<i32>} : memref<1x1x128xf32, #tpu.memory_space<vmem>>, vector<1x1x128xf32>,
    %62 = arith.mulf %51, %51 : vector<256x128xf32>
    %cst_78 = arith.constant dense<0.000000e+00> : vector<128xf32>
    %63 = vector.multi_reduction <add>, %62, %cst_78 [0] : vector<256x128xf32> to vector<128xf32>
    %64 = vector.shape_cast %63 : vector<128xf32> to vector<1x128xf32>
    %c0_79 = arith.constant 0 : index
    %c0_80 = arith.constant 0 : index
    %c0_81 = arith.constant 0 : index
    %65 = vector.load %arg7[%c0_79, %c0_80, %c0_81] : memref<1x1x128xf32, #tpu.memory_space<vmem>>, vector<1x1x128xf32>
    %66 = vector.shape_cast %65 : vector<1x1x128xf32> to vector<1x128xf32>
    %67 = vector.shape_cast %64 : vector<1x128xf32> to vector<1x1x128xf32>
    tpu.vector_store %arg7[%c0_79, %c0_80, %c0_81], %67 {strides = array<i32>} : memref<1x1x128xf32, #tpu.memory_space<vmem>>, vector<1x1x128xf32>,
    return
  }
  func.func @transform_0(%arg0: i32) -> (i32, i32, i32, i32) {
    %c0_i32 = arith.constant 0 : i32
    %c0_i32_0 = arith.constant 0 : i32
    %c0_i32_1 = arith.constant 0 : i32
    %c0_i32_2 = arith.constant 0 : i32
    return %arg0, %c0_i32, %c0_i32_0, %c0_i32_1 : i32, i32, i32, i32
  }
  func.func @transform_1(%arg0: i32) -> (i32, i32) {
    %c0_i32 = arith.constant 0 : i32
    %c0_i32_0 = arith.constant 0 : i32
    %c0_i32_1 = arith.constant 0 : i32
    return %c0_i32, %c0_i32_0 : i32, i32
  }
  func.func @transform_2(%arg0: i32) -> (i32, i32) {
    %c0_i32 = arith.constant 0 : i32
    %c0_i32_0 = arith.constant 0 : i32
    %c0_i32_1 = arith.constant 0 : i32
    return %c0_i32, %c0_i32_0 : i32, i32
  }
  func.func @transform_3(%arg0: i32) -> (i32, i32, i32) {
    %c0_i32 = arith.constant 0 : i32
    %c0_i32_0 = arith.constant 0 : i32
    %c0_i32_1 = arith.constant 0 : i32
    %c0_i32_2 = arith.constant 0 : i32
    return %c0_i32, %c0_i32_0, %c0_i32_1 : i32, i32, i32
  }
  func.func @transform_4(%arg0: i32) -> (i32, i32, i32, i32) {
    %c0_i32 = arith.constant 0 : i32
    %c0_i32_0 = arith.constant 0 : i32
    %c0_i32_1 = arith.constant 0 : i32
    %c0_i32_2 = arith.constant 0 : i32
    return %arg0, %c0_i32, %c0_i32_0, %c0_i32_1 : i32, i32, i32, i32
  }
  func.func @transform_5(%arg0: i32) -> (i32, i32, i32) {
    %c0_i32 = arith.constant 0 : i32
    %c0_i32_0 = arith.constant 0 : i32
    %c0_i32_1 = arith.constant 0 : i32
    return %arg0, %c0_i32, %c0_i32_0 : i32, i32, i32
  }
  func.func @transform_6(%arg0: i32) -> (i32, i32, i32) {
    %c0_i32 = arith.constant 0 : i32
    %c0_i32_0 = arith.constant 0 : i32
    %c0_i32_1 = arith.constant 0 : i32
    return %arg0, %c0_i32, %c0_i32_0 : i32, i32, i32
  }
}

module attributes {stable_mosaic.version = 11 : i64} {
  func.func @_bn_add_bn_relu_kernel(%arg0: i32, %arg1: memref<1x16x16x128xbf16, #tpu.memory_space<vmem>>, %arg2: memref<1x128xf32, #tpu.memory_space<vmem>>, %arg3: memref<1x128xf32, #tpu.memory_space<vmem>>, %arg4: memref<1x16x16x128xbf16, #tpu.memory_space<vmem>>, %arg5: memref<1x128xf32, #tpu.memory_space<vmem>>, %arg6: memref<1x128xf32, #tpu.memory_space<vmem>>, %arg7: memref<1x16x16x128xbf16, #tpu.memory_space<vmem>>) attributes {dimension_semantics = [#tpu.dimension_semantics<parallel>], iteration_bounds = array<i64: 2>, scalar_prefetch = 0 : i64, scratch_operands = 0 : i64, tpu.core_type = #tpu.core_type<tc>, window_params = [{transform_indices = @transform_0, window_bounds = array<i64: 1, 16, 16, 128>}, {pipeline_mode = #tpu.pipeline_mode<synchronous>, transform_indices = @transform_1, window_bounds = array<i64: 1, 128>}, {pipeline_mode = #tpu.pipeline_mode<synchronous>, transform_indices = @transform_2, window_bounds = array<i64: 1, 128>}, {transform_indices = @transform_3, window_bounds = array<i64: 1, 16, 16, 128>}, {pipeline_mode = #tpu.pipeline_mode<synchronous>, transform_indices = @transform_4, window_bounds = array<i64: 1, 128>}, {pipeline_mode = #tpu.pipeline_mode<synchronous>, transform_indices = @transform_5, window_bounds = array<i64: 1, 128>}, {transform_indices = @transform_6, window_bounds = array<i64: 1, 16, 16, 128>}]} {
    %c0 = arith.constant 0 : index
    %c0_0 = arith.constant 0 : index
    %c0_1 = arith.constant 0 : index
    %c0_2 = arith.constant 0 : index
    %0 = vector.load %arg1[%c0, %c0_0, %c0_1, %c0_2] : memref<1x16x16x128xbf16, #tpu.memory_space<vmem>>, vector<1x16x16x128xbf16>
    %1 = arith.extf %0 : vector<1x16x16x128xbf16> to vector<1x16x16x128xf32>
    %c0_3 = arith.constant 0 : index
    %c0_4 = arith.constant 0 : index
    %2 = vector.load %arg2[%c0_3, %c0_4] : memref<1x128xf32, #tpu.memory_space<vmem>>, vector<1x128xf32>
    %3 = vector.shape_cast %2 : vector<1x128xf32> to vector<1x1x1x128xf32>
    %4 = vector.broadcast %3 : vector<1x1x1x128xf32> to vector<1x16x16x128xf32>
    %5 = arith.mulf %1, %4 : vector<1x16x16x128xf32>
    %c0_5 = arith.constant 0 : index
    %c0_6 = arith.constant 0 : index
    %6 = vector.load %arg3[%c0_5, %c0_6] : memref<1x128xf32, #tpu.memory_space<vmem>>, vector<1x128xf32>
    %7 = vector.shape_cast %6 : vector<1x128xf32> to vector<1x1x1x128xf32>
    %8 = vector.broadcast %7 : vector<1x1x1x128xf32> to vector<1x16x16x128xf32>
    %9 = arith.addf %5, %8 : vector<1x16x16x128xf32>
    %c0_7 = arith.constant 0 : index
    %c0_8 = arith.constant 0 : index
    %c0_9 = arith.constant 0 : index
    %c0_10 = arith.constant 0 : index
    %10 = vector.load %arg4[%c0_7, %c0_8, %c0_9, %c0_10] : memref<1x16x16x128xbf16, #tpu.memory_space<vmem>>, vector<1x16x16x128xbf16>
    %11 = arith.extf %10 : vector<1x16x16x128xbf16> to vector<1x16x16x128xf32>
    %c0_11 = arith.constant 0 : index
    %c0_12 = arith.constant 0 : index
    %12 = vector.load %arg5[%c0_11, %c0_12] : memref<1x128xf32, #tpu.memory_space<vmem>>, vector<1x128xf32>
    %13 = vector.shape_cast %12 : vector<1x128xf32> to vector<1x1x1x128xf32>
    %14 = vector.broadcast %13 : vector<1x1x1x128xf32> to vector<1x16x16x128xf32>
    %15 = arith.mulf %11, %14 : vector<1x16x16x128xf32>
    %c0_13 = arith.constant 0 : index
    %c0_14 = arith.constant 0 : index
    %16 = vector.load %arg6[%c0_13, %c0_14] : memref<1x128xf32, #tpu.memory_space<vmem>>, vector<1x128xf32>
    %17 = vector.shape_cast %16 : vector<1x128xf32> to vector<1x1x1x128xf32>
    %18 = vector.broadcast %17 : vector<1x1x1x128xf32> to vector<1x16x16x128xf32>
    %19 = arith.addf %15, %18 : vector<1x16x16x128xf32>
    %20 = arith.addf %9, %19 : vector<1x16x16x128xf32>
    %cst = arith.constant 0.000000e+00 : f32
    %21 = vector.broadcast %cst : f32 to vector<1x16x16x128xf32>
    %22 = arith.maximumf %20, %21 : vector<1x16x16x128xf32>
    %23 = arith.truncf %22 : vector<1x16x16x128xf32> to vector<1x16x16x128xbf16>
    %c0_15 = arith.constant 0 : index
    %c0_16 = arith.constant 0 : index
    %c0_17 = arith.constant 0 : index
    %c0_18 = arith.constant 0 : index
    %24 = vector.load %arg7[%c0_15, %c0_16, %c0_17, %c0_18] : memref<1x16x16x128xbf16, #tpu.memory_space<vmem>>, vector<1x16x16x128xbf16>
    tpu.vector_store %arg7[%c0_15, %c0_16, %c0_17, %c0_18], %23 {strides = array<i32>} : memref<1x16x16x128xbf16, #tpu.memory_space<vmem>>, vector<1x16x16x128xbf16>,
    return
  }
  func.func @transform_0(%arg0: i32) -> (i32, i32, i32, i32) {
    %c0_i32 = arith.constant 0 : i32
    %c0_i32_0 = arith.constant 0 : i32
    %c0_i32_1 = arith.constant 0 : i32
    %c0_i32_2 = arith.constant 0 : i32
    return %arg0, %c0_i32, %c0_i32_0, %c0_i32_1 : i32, i32, i32, i32
  }
  func.func @transform_1(%arg0: i32) -> (i32, i32) {
    %c0_i32 = arith.constant 0 : i32
    %c0_i32_0 = arith.constant 0 : i32
    %c0_i32_1 = arith.constant 0 : i32
    return %c0_i32, %c0_i32_0 : i32, i32
  }
  func.func @transform_2(%arg0: i32) -> (i32, i32) {
    %c0_i32 = arith.constant 0 : i32
    %c0_i32_0 = arith.constant 0 : i32
    %c0_i32_1 = arith.constant 0 : i32
    return %c0_i32, %c0_i32_0 : i32, i32
  }
  func.func @transform_3(%arg0: i32) -> (i32, i32, i32, i32) {
    %c0_i32 = arith.constant 0 : i32
    %c0_i32_0 = arith.constant 0 : i32
    %c0_i32_1 = arith.constant 0 : i32
    %c0_i32_2 = arith.constant 0 : i32
    return %arg0, %c0_i32, %c0_i32_0, %c0_i32_1 : i32, i32, i32, i32
  }
  func.func @transform_4(%arg0: i32) -> (i32, i32) {
    %c0_i32 = arith.constant 0 : i32
    %c0_i32_0 = arith.constant 0 : i32
    %c0_i32_1 = arith.constant 0 : i32
    return %c0_i32, %c0_i32_0 : i32, i32
  }
  func.func @transform_5(%arg0: i32) -> (i32, i32) {
    %c0_i32 = arith.constant 0 : i32
    %c0_i32_0 = arith.constant 0 : i32
    %c0_i32_1 = arith.constant 0 : i32
    return %c0_i32, %c0_i32_0 : i32, i32
  }
  func.func @transform_6(%arg0: i32) -> (i32, i32, i32, i32) {
    %c0_i32 = arith.constant 0 : i32
    %c0_i32_0 = arith.constant 0 : i32
    %c0_i32_1 = arith.constant 0 : i32
    %c0_i32_2 = arith.constant 0 : i32
    return %arg0, %c0_i32, %c0_i32_0, %c0_i32_1 : i32, i32, i32, i32
  }
}

</mosaic_0001>

<llo_original>
// kernel: basic_block_forward.5
$region0: #{basic_block_forward.5}
  #allocation0 [shape = 'u32[]', space=smem, size = 0x4, offset = 0x4, fixed_abs, tag = 'smem constant byte address 0x4 - core index']
  #allocation1 [shape = 'u32[144,128]{1,0:T(1,128)}', space=vmem, size = 0x12000, scoped, tag = 'internal scratch']
  %s0 = inlined_call_operand.vmem [shape: bf16[2,16,16,128], index: 0, kind: input, shape index: {}]
  %s1 = inlined_call_operand.vmem [shape: f32[1,128], index: 1, kind: input, shape index: {}]
  %s2 = inlined_call_operand.vmem [shape: f32[1,128], index: 2, kind: input, shape index: {}]
  %s3 = inlined_call_operand.vmem [shape: bf16[2,16,16,128], index: 3, kind: input, shape index: {}]
  %s4 = inlined_call_operand.vmem [shape: f32[1,128], index: 4, kind: input, shape index: {}]
  %s5 = inlined_call_operand.vmem [shape: f32[1,128], index: 5, kind: input, shape index: {}]
  %s6 = inlined_call_operand.vmem [shape: bf16[2,16,16,128], index: 6, kind: output, shape index: {}]
  %s7 = sld [smem:[#allocation0]]
  $region57: #{basic_block_forward.5} parent=0
    _
  %s9 = ssub.s32 1, %s7
  %s10 = scalar_select 0, %s9, %s7
  loop: start=0, step=1, limit=4
  $region2: #{basic_block_forward.5} parent=0 // loop_pre_header
    _
  $region3: #{basic_block_forward.5} parent=0 // loop_header
    %s12 = sphi 0, %s16
    %p13 = scmp.ge.s32.totalorder %s12, 4
    %s22 = sphi 0, %s24
    %s25 = sphi 0, %s22
    %s26 = sphi 0, %s25
    %s42 = sphi 0, %s26
    %s46 = sphi 0, %s46
    %s48 = sphi 0, %s46
    %s49 = sphi 0, %s48
    %s63 = sphi 0, %s49
    %s67 = sphi 0, %s67
    %s69 = sphi 0, %s67
    %s70 = sphi 0, %s69
    %s84 = sphi 0, %s70
    %s90 = sphi 0, %s92
    %s93 = sphi 0, %s90
    %s94 = sphi 0, %s93
    %s110 = sphi 0, %s94
    %s114 = sphi 0, %s114
    %s116 = sphi 0, %s114
    %s117 = sphi 0, %s116
    %s131 = sphi 0, %s117
    %s135 = sphi 0, %s135
    %s137 = sphi 0, %s135
    %s138 = sphi 0, %s137
    %s152 = sphi 0, %s138
    %s158 = sphi 0, %s160
    %s161 = sphi 0, %s158
    %s162 = sphi 0, %s161
    %s178 = sphi 0, %s162
  $region4: #{basic_block_forward.5} parent=0 // loop_header_branch
    %15 = sbr.rel (%p13) target = $region8
  $region5: #{basic_block_forward.5} parent=0 // loop_body
    %s17 = ssub.s32 %s12, 1
    %s18 = ssub.s32 %s12, 2
    %s19 = sadd.s32 %s12, 1
    %s20 = ssub.s32 %s12, %s19
    %p21 = scmp.eq.s32.totalorder %s20, 0
    %s23 = sadd.s32 %s22, 1
    %s24 = scalar_select %p21, %s22, %s23
    %p27 = pneg %p21
    %p28 = scmp.eq.s32.totalorder %s12, 1
    %p29 = por %p27, %p28
    %p30 = scmp.ne.s32.totalorder %s22, %s25
    %p31 = scmp.eq.s32.totalorder %s12, 0
    %p32 = por %p30, %p31
    %p33 = scmp.ne.s32.totalorder %s22, %s25
    %p34 = scmp.eq.s32.totalorder %s17, 1
    %p35 = por %p33, %p34
    %p36 = scmp.ne.s32.totalorder %s25, %s26
    %p37 = scmp.eq.s32.totalorder %s17, 0
    %p38 = por %p36, %p37
    %p39 = scmp.ne.s32.totalorder %s25, %s26
    %p40 = scmp.eq.s32.totalorder %s18, 1
    %p41 = por %p39, %p40
    %p43 = scmp.ne.s32.totalorder %s26, %s42
    %p44 = scmp.eq.s32.totalorder %s18, 0
    %p45 = por %p43, %p44
    %s47 = sadd.s32 %s46, 1
    %p50 = scmp.eq.s32.totalorder %s12, 1
    %p51 = scmp.ne.s32.totalorder %s46, %s48
    %p52 = scmp.eq.s32.totalorder %s12, 0
    %p53 = por %p51, %p52
    %p54 = scmp.ne.s32.totalorder %s46, %s48
    %p55 = scmp.eq.s32.totalorder %s17, 1
    %p56 = por %p54, %p55
    %p57 = scmp.ne.s32.totalorder %s48, %s49
    %p58 = scmp.eq.s32.totalorder %s17, 0
    %p59 = por %p57, %p58
    %p60 = scmp.ne.s32.totalorder %s48, %s49
    %p61 = scmp.eq.s32.totalorder %s18, 1
    %p62 = por %p60, %p61
    %p64 = scmp.ne.s32.totalorder %s49, %s63
    %p65 = scmp.eq.s32.totalorder %s18, 0
    %p66 = por %p64, %p65
    %s68 = sadd.s32 %s67, 1
    %p71 = scmp.eq.s32.totalorder %s12, 1
    %p72 = scmp.ne.s32.totalorder %s67, %s69
    %p73 = scmp.eq.s32.totalorder %s12, 0
    %p74 = por %p72, %p73
    %p75 = scmp.ne.s32.totalorder %s67, %s69
    %p76 = scmp.eq.s32.totalorder %s17, 1
    %p77 = por %p75, %p76
    %p78 = scmp.ne.s32.totalorder %s69, %s70
    %p79 = scmp.eq.s32.totalorder %s17, 0
    %p80 = por %p78, %p79
    %p81 = scmp.ne.s32.totalorder %s69, %s70
    %p82 = scmp.eq.s32.totalorder %s18, 1
    %p83 = por %p81, %p82
    %p85 = scmp.ne.s32.totalorder %s70, %s84
    %p86 = scmp.eq.s32.totalorder %s18, 0
    %p87 = por %p85, %p86
    %s88 = ssub.s32 %s12, %s19
    %p89 = scmp.eq.s32.totalorder %s88, 0
    %s91 = sadd.s32 %s90, 1
    %s92 = scalar_select %p89, %s90, %s91
    %p95 = pneg %p89
    %p96 = scmp.eq.s32.totalorder %s12, 1
    %p97 = por %p95, %p96
    %p98 = scmp.ne.s32.totalorder %s90, %s93
    %p99 = scmp.eq.s32.totalorder %s12, 0
    %p100 = por %p98, %p99
    %p101 = scmp.ne.s32.totalorder %s90, %s93
    %p102 = scmp.eq.s32.totalorder %s17, 1
    %p103 = por %p101, %p102
    %p104 = scmp.ne.s32.totalorder %s93, %s94
    %p105 = scmp.eq.s32.totalorder %s17, 0
    %p106 = por %p104, %p105
    %p107 = scmp.ne.s32.totalorder %s93, %s94
    %p108 = scmp.eq.s32.totalorder %s18, 1
    %p109 = por %p107, %p108
    %p111 = scmp.ne.s32.totalorder %s94, %s110
    %p112 = scmp.eq.s32.totalorder %s18, 0
    %p113 = por %p111, %p112
    %s115 = sadd.s32 %s114, 1
    %p118 = scmp.eq.s32.totalorder %s12, 1
    %p119 = scmp.ne.s32.totalorder %s114, %s116
    %p120 = scmp.eq.s32.totalorder %s12, 0
    %p121 = por %p119, %p120
    %p122 = scmp.ne.s32.totalorder %s114, %s116
    %p123 = scmp.eq.s32.totalorder %s17, 1
    %p124 = por %p122, %p123
    %p125 = scmp.ne.s32.totalorder %s116, %s117
    %p126 = scmp.eq.s32.totalorder %s17, 0
    %p127 = por %p125, %p126
    %p128 = scmp.ne.s32.totalorder %s116, %s117
    %p129 = scmp.eq.s32.totalorder %s18, 1
    %p130 = por %p128, %p129
    %p132 = scmp.ne.s32.totalorder %s117, %s131
    %p133 = scmp.eq.s32.totalorder %s18, 0
    %p134 = por %p132, %p133
    %s136 = sadd.s32 %s135, 1
    %p139 = scmp.eq.s32.totalorder %s12, 1
    %p140 = scmp.ne.s32.totalorder %s135, %s137
    %p141 = scmp.eq.s32.totalorder %s12, 0
    %p142 = por %p140, %p141
    %p143 = scmp.ne.s32.totalorder %s135, %s137
    %p144 = scmp.eq.s32.totalorder %s17, 1
    %p145 = por %p143, %p144
    %p146 = scmp.ne.s32.totalorder %s137, %s138
    %p147 = scmp.eq.s32.totalorder %s17, 0
    %p148 = por %p146, %p147
    %p149 = scmp.ne.s32.totalorder %s137, %s138
    %p150 = scmp.eq.s32.totalorder %s18, 1
    %p151 = por %p149, %p150
    %p153 = scmp.ne.s32.totalorder %s138, %s152
    %p154 = scmp.eq.s32.totalorder %s18, 0
    %p155 = por %p153, %p154
    %s156 = ssub.s32 %s12, %s19
    %p157 = scmp.eq.s32.totalorder %s156, 0
    %s159 = sadd.s32 %s158, 1
    %s160 = scalar_select %p157, %s158, %s159
    %p163 = pneg %p157
    %p164 = scmp.eq.s32.totalorder %s12, 1
    %p165 = por %p163, %p164
    %p166 = scmp.ne.s32.totalorder %s158, %s161
    %p167 = scmp.eq.s32.totalorder %s12, 0
    %p168 = por %p166, %p167
    %p169 = scmp.ne.s32.totalorder %s158, %s161
    %p170 = scmp.eq.s32.totalorder %s17, 1
    %p171 = por %p169, %p170
    %p172 = scmp.ne.s32.totalorder %s161, %s162
    %p173 = scmp.eq.s32.totalorder %s17, 0
    %p174 = por %p172, %p173
    %p175 = scmp.ne.s32.totalorder %s161, %s162
    %p176 = scmp.eq.s32.totalorder %s18, 1
    %p177 = por %p175, %p176
    %p179 = scmp.ne.s32.totalorder %s162, %s178
    %p180 = scmp.eq.s32.totalorder %s18, 0
    %p181 = por %p179, %p180
    %p182 = scmp.le.s32.totalorder 1, %s12
    %p183 = scmp.lt.s32.totalorder %s12, 3
    %p184 = pnand %p182, %p183
    %p185 = pneg %p184
    // Predicated region
    $region9: #{basic_block_forward.5} parent=5 // pred_check
      _
    $region10: #{basic_block_forward.5} parent=5 // pred_check_branch
      %187 = sbr.rel (%p184) target = $region12
    $region11: #{basic_block_forward.5} parent=5 // pred_region
      %s188 = ssub.s32 %s12, 1
      // Predicated region
      $region13: #{basic_block_forward.5} parent=11 // pred_check
        %p189 = pneg %p59
      $region14: #{basic_block_forward.5} parent=11 // pred_check_branch
        %191 = sbr.rel (%p189) target = $region16
      $region15: #{basic_block_forward.5} parent=11 // pred_region
        _
      $region16: #{basic_block_forward.5} parent=11 // pred_fallthru
        _
      // Predicated region
      $region17: #{basic_block_forward.5} parent=11 // pred_check
        %p192 = pneg %p80
      $region18: #{basic_block_forward.5} parent=11 // pred_check_branch
        %194 = sbr.rel (%p192) target = $region20
      $region19: #{basic_block_forward.5} parent=11 // pred_region
        _
      $region20: #{basic_block_forward.5} parent=11 // pred_fallthru
        _
      // Predicated region
      $region21: #{basic_block_forward.5} parent=11 // pred_check
        %p195 = pneg %p127
      $region22: #{basic_block_forward.5} parent=11 // pred_check_branch
        %197 = sbr.rel (%p195) target = $region24
      $region23: #{basic_block_forward.5} parent=11 // pred_region
        _
      $region24: #{basic_block_forward.5} parent=11 // pred_fallthru
        _
      // Predicated region
      $region25: #{basic_block_forward.5} parent=11 // pred_check
        %p198 = pneg %p148
      $region26: #{basic_block_forward.5} parent=11 // pred_check_branch
        %200 = sbr.rel (%p198) target = $region28
      $region27: #{basic_block_forward.5} parent=11 // pred_region
        _
      $region28: #{basic_block_forward.5} parent=11 // pred_fallthru
        _
    $region12: #{basic_block_forward.5} parent=5 // pred_fallthru
      _
    %p201 = scmp.lt.s32.totalorder %s12, 2
    // Predicated region
    $region29: #{basic_block_forward.5} parent=5 // pred_check
      %p202 = pneg %p201
    $region30: #{basic_block_forward.5} parent=5 // pred_check_branch
      %204 = sbr.rel (%p202) target = $region32
    $region31: #{basic_block_forward.5} parent=5 // pred_region
      // Predicated region
      $region33: #{basic_block_forward.5} parent=31 // pred_check
        %p205 = pneg %p32
      $region34: #{basic_block_forward.5} parent=31 // pred_check_branch
        %207 = sbr.rel (%p205) target = $region36
      $region35: #{basic_block_forward.5} parent=31 // pred_region
        %p208 = scmp.lt.s32.totalorder %s12, 1
        %s209 = scalar_select %p208, %s12, 1
        %s210 = smul.addr %s209, 32
        %s211 = smul.addr %s210, 4
        %s212 = scalar_lea.vmem %s0, %s211
      $region36: #{basic_block_forward.5} parent=31 // pred_fallthru
        _
      // Predicated region
      $region37: #{basic_block_forward.5} parent=31 // pred_check
        %p213 = pneg %p100
      $region38: #{basic_block_forward.5} parent=31 // pred_check_branch
        %215 = sbr.rel (%p213) target = $region40
      $region39: #{basic_block_forward.5} parent=31 // pred_region
        %p216 = scmp.lt.s32.totalorder %s12, 1
        %s217 = scalar_select %p216, %s12, 1
        %s218 = smul.addr %s217, 32
        %s219 = smul.addr %s218, 4
        %s220 = scalar_lea.vmem %s3, %s219
      $region40: #{basic_block_forward.5} parent=31 // pred_fallthru
        _
    $region32: #{basic_block_forward.5} parent=5 // pred_fallthru
      _
    %p221 = scmp.le.s32.totalorder 1, %s12
    %p222 = scmp.lt.s32.totalorder %s12, 3
    %p223 = pnand %p221, %p222
    %p224 = pneg %p223
    // Predicated region
    $region41: #{basic_block_forward.5} parent=5 // pred_check
      _
    $region42: #{basic_block_forward.5} parent=5 // pred_check_branch
      %226 = sbr.rel (%p223) target = $region44
    $region43: #{basic_block_forward.5} parent=5 // pred_region
      %s227 = ssub.s32 %s12, 1
      %p228 = scmp.lt.s32.totalorder %s17, 1
      %s229 = scalar_select %p228, %s17, 1
      %s230 = smul.addr %s229, 32
      %s231 = smul.addr %s230, 4
      %s232 = scalar_lea.vmem %s0, %s231
      %p233 = pneg %p38
      %p234 = pneg %p35
      %p235 = pneg %p59
      %p236 = pneg %p56
      %p237 = pneg %p80
      %p238 = pneg %p77
      %p239 = scmp.lt.s32.totalorder %s17, 1
      %s240 = scalar_select %p239, %s17, 1
      %s241 = smul.addr %s240, 32
      %s242 = smul.addr %s241, 4
      %s243 = scalar_lea.vmem %s3, %s242
      %p244 = pneg %p106
      %p245 = pneg %p103
      %p246 = pneg %p127
      %p247 = pneg %p124
      %p248 = pneg %p148
      %p249 = pneg %p145
      %p250 = pneg %p174
      %p251 = pneg %p171
      %p252 = scmp.lt.s32.totalorder %s17, 1
      %s253 = scalar_select %p252, %s17, 1
      %s254 = smul.addr %s253, 32
      %s255 = smul.addr %s254, 4
      %s256 = scalar_lea.vmem %s6, %s255
      %p257 = scmp.lt.s32.totalorder %s17, 1
      %s258 = scalar_select %p257, %s17, 1
      %s259 = smul.addr %s258, 32
      %s260 = smul.addr %s259, 4
      %s261 = scalar_lea.vmem %s0, %s260
      %p262 = scmp.lt.s32.totalorder %s17, 1
      %s263 = scalar_select %p262, %s17, 1
      %s264 = smul.addr %s263, 32
      %s265 = smul.addr %s264, 4
      %s266 = scalar_lea.vmem %s3, %s265
      %p267 = scmp.lt.s32.totalorder %s17, 1
      %s268 = scalar_select %p267, %s17, 1
      %s269 = smul.addr %s268, 32
      %s270 = smul.addr %s269, 4
      %s271 = scalar_lea.vmem %s6, %s270
      %v272 = vld [vmem:[%s261] sm:$0xf]
      %v273 = vld [vmem:[%s261 + $0x4] sm:$0xf]
      %v274 = vld [vmem:[%s261 + $0x8] sm:$0xf]
      %v275 = vld [vmem:[%s261 + $0xc] sm:$0xf]
      %v276 = vld [vmem:[%s261 + $0x10] sm:$0xf]
      %v277 = vld [vmem:[%s261 + $0x14] sm:$0xf]
      %v278 = vld [vmem:[%s261 + $0x18] sm:$0xf]
      %v279 = vld [vmem:[%s261 + $0x1c] sm:$0xf]
      %v280 = vld [vmem:[%s261 + $0x20] sm:$0xf]
      %v281 = vld [vmem:[%s261 + $0x24] sm:$0xf]
      %v282 = vld [vmem:[%s261 + $0x28] sm:$0xf]
      %v283 = vld [vmem:[%s261 + $0x2c] sm:$0xf]
      %v284 = vld [vmem:[%s261 + $0x30] sm:$0xf]
      %v285 = vld [vmem:[%s261 + $0x34] sm:$0xf]
      %v286 = vld [vmem:[%s261 + $0x38] sm:$0xf]
      %v287 = vld [vmem:[%s261 + $0x3c] sm:$0xf]
      %v288 = vld [vmem:[%s261 + $0x40] sm:$0xf]
      %v289 = vld [vmem:[%s261 + $0x44] sm:$0xf]
      %v290 = vld [vmem:[%s261 + $0x48] sm:$0xf]
      %v291 = vld [vmem:[%s261 + $0x4c] sm:$0xf]
      %v292 = vld [vmem:[%s261 + $0x50] sm:$0xf]
      %v293 = vld [vmem:[%s261 + $0x54] sm:$0xf]
      %v294 = vld [vmem:[%s261 + $0x58] sm:$0xf]
      %v295 = vld [vmem:[%s261 + $0x5c] sm:$0xf]
      %v296 = vld [vmem:[%s261 + $0x60] sm:$0xf]
      %v297 = vld [vmem:[%s261 + $0x64] sm:$0xf]
      %v298 = vld [vmem:[%s261 + $0x68] sm:$0xf]
      %v299 = vld [vmem:[%s261 + $0x6c] sm:$0xf]
      %v300 = vld [vmem:[%s261 + $0x70] sm:$0xf]
      %v301 = vld [vmem:[%s261 + $0x74] sm:$0xf]
      %v302 = vld [vmem:[%s261 + $0x78] sm:$0xf]
      %v303 = vld [vmem:[%s261 + $0x7c] sm:$0xf]
      %v304 = vunpack.c.l.bf16 %v272
      %v305 = vunpack.c.l.bf16 %v273
      %v306 = vunpack.c.l.bf16 %v274
      %v307 = vunpack.c.l.bf16 %v275
      %v308 = vunpack.c.l.bf16 %v276
      %v309 = vunpack.c.l.bf16 %v277
      %v310 = vunpack.c.l.bf16 %v278
      %v311 = vunpack.c.l.bf16 %v279
      %v312 = vunpack.c.l.bf16 %v280
      %v313 = vunpack.c.l.bf16 %v281
      %v314 = vunpack.c.l.bf16 %v282
      %v315 = vunpack.c.l.bf16 %v283
      %v316 = vunpack.c.l.bf16 %v284
      %v317 = vunpack.c.l.bf16 %v285
      %v318 = vunpack.c.l.bf16 %v286
      %v319 = vunpack.c.l.bf16 %v287
      %v320 = vunpack.c.l.bf16 %v288
      %v321 = vunpack.c.l.bf16 %v289
      %v322 = vunpack.c.l.bf16 %v290
      %v323 = vunpack.c.l.bf16 %v291
      %v324 = vunpack.c.l.bf16 %v292
      %v325 = vunpack.c.l.bf16 %v293
      %v326 = vunpack.c.l.bf16 %v294
      %v327 = vunpack.c.l.bf16 %v295
      %v328 = vunpack.c.l.bf16 %v296
      %v329 = vunpack.c.l.bf16 %v297
      %v330 = vunpack.c.l.bf16 %v298
      %v331 = vunpack.c.l.bf16 %v299
      %v332 = vunpack.c.l.bf16 %v300
      %v333 = vunpack.c.l.bf16 %v301
      %v334 = vunpack.c.l.bf16 %v302
      %v335 = vunpack.c.l.bf16 %v303
      %v336 = vld [vmem:[%s1] sm:$0x1]
      %v338 = vlaneseq
      %v339 = vshrl.u32 %v338, 7
      %v340 = vsub.s32 0, %v339
      %v341 = vrot.slane %v336, %v340
      %v343 = vmul.f32 %v304, %v341
      %v344 = vmul.f32 %v305, %v341
      %v345 = vmul.f32 %v306, %v341
      %v346 = vmul.f32 %v307, %v341
      %v347 = vmul.f32 %v308, %v341
      %v348 = vmul.f32 %v309, %v341
      %v349 = vmul.f32 %v310, %v341
      %v350 = vmul.f32 %v311, %v341
      %v351 = vmul.f32 %v312, %v341
      %v352 = vmul.f32 %v313, %v341
      %v353 = vmul.f32 %v314, %v341
      %v354 = vmul.f32 %v315, %v341
      %v355 = vmul.f32 %v316, %v341
      %v356 = vmul.f32 %v317, %v341
      %v357 = vmul.f32 %v318, %v341
      %v358 = vmul.f32 %v319, %v341
      %v359 = vmul.f32 %v320, %v341
      %v360 = vmul.f32 %v321, %v341
      %v361 = vmul.f32 %v322, %v341
      %v362 = vmul.f32 %v323, %v341
      %v363 = vmul.f32 %v324, %v341
      %v364 = vmul.f32 %v325, %v341
      %v365 = vmul.f32 %v326, %v341
      %v366 = vmul.f32 %v327, %v341
      %v367 = vmul.f32 %v328, %v341
      %v368 = vmul.f32 %v329, %v341
      %v369 = vmul.f32 %v330, %v341
      %v370 = vmul.f32 %v331, %v341
      %v371 = vmul.f32 %v332, %v341
      %v372 = vmul.f32 %v333, %v341
      %v373 = vmul.f32 %v334, %v341
      %v374 = vmul.f32 %v335, %v341
      %v375 = vld [vmem:[%s2] sm:$0x1]
      %v377 = vlaneseq
      %v378 = vshrl.u32 %v377, 7
      %v379 = vsub.s32 0, %v378
      %v380 = vrot.slane %v375, %v379
      %v382 = vadd.f32 %v343, %v380
      %v383 = vadd.f32 %v344, %v380
      %v384 = vadd.f32 %v345, %v380
      %v385 = vadd.f32 %v346, %v380
      %v386 = vadd.f32 %v347, %v380
      %v387 = vadd.f32 %v348, %v380
      %v388 = vadd.f32 %v349, %v380
      %v389 = vadd.f32 %v350, %v380
      %v390 = vadd.f32 %v351, %v380
      %v391 = vadd.f32 %v352, %v380
      %v392 = vadd.f32 %v353, %v380
      %v393 = vadd.f32 %v354, %v380
      %v394 = vadd.f32 %v355, %v380
      %v395 = vadd.f32 %v356, %v380
      %v396 = vadd.f32 %v357, %v380
      %v397 = vadd.f32 %v358, %v380
      %v398 = vadd.f32 %v359, %v380
      %v399 = vadd.f32 %v360, %v380
      %v400 = vadd.f32 %v361, %v380
      %v401 = vadd.f32 %v362, %v380
      %v402 = vadd.f32 %v363, %v380
      %v403 = vadd.f32 %v364, %v380
      %v404 = vadd.f32 %v365, %v380
      %v405 = vadd.f32 %v366, %v380
      %v406 = vadd.f32 %v367, %v380
      %v407 = vadd.f32 %v368, %v380
      %v408 = vadd.f32 %v369, %v380
      %v409 = vadd.f32 %v370, %v380
      %v410 = vadd.f32 %v371, %v380
      %v411 = vadd.f32 %v372, %v380
      %v412 = vadd.f32 %v373, %v380
      %v413 = vadd.f32 %v374, %v380
      %v414 = vld [vmem:[%s266] sm:$0xf]
      %v415 = vld [vmem:[%s266 + $0x4] sm:$0xf]
      %v416 = vld [vmem:[%s266 + $0x8] sm:$0xf]
      %v417 = vld [vmem:[%s266 + $0xc] sm:$0xf]
      %v418 = vld [vmem:[%s266 + $0x10] sm:$0xf]
      %v419 = vld [vmem:[%s266 + $0x14] sm:$0xf]
      %v420 = vld [vmem:[%s266 + $0x18] sm:$0xf]
      %v421 = vld [vmem:[%s266 + $0x1c] sm:$0xf]
      %v422 = vld [vmem:[%s266 + $0x20] sm:$0xf]
      %v423 = vld [vmem:[%s266 + $0x24] sm:$0xf]
      %v424 = vld [vmem:[%s266 + $0x28] sm:$0xf]
      %v425 = vld [vmem:[%s266 + $0x2c] sm:$0xf]
      %v426 = vld [vmem:[%s266 + $0x30] sm:$0xf]
      %v427 = vld [vmem:[%s266 + $0x34] sm:$0xf]
      %v428 = vld [vmem:[%s266 + $0x38] sm:$0xf]
      %v429 = vld [vmem:[%s266 + $0x3c] sm:$0xf]
      %v430 = vld [vmem:[%s266 + $0x40] sm:$0xf]
      %v431 = vld [vmem:[%s266 + $0x44] sm:$0xf]
      %v432 = vld [vmem:[%s266 + $0x48] sm:$0xf]
      %v433 = vld [vmem:[%s266 + $0x4c] sm:$0xf]
      %v434 = vld [vmem:[%s266 + $0x50] sm:$0xf]
      %v435 = vld [vmem:[%s266 + $0x54] sm:$0xf]
      %v436 = vld [vmem:[%s266 + $0x58] sm:$0xf]
      %v437 = vld [vmem:[%s266 + $0x5c] sm:$0xf]
      %v438 = vld [vmem:[%s266 + $0x60] sm:$0xf]
      %v439 = vld [vmem:[%s266 + $0x64] sm:$0xf]
      %v440 = vld [vmem:[%s266 + $0x68] sm:$0xf]
      %v441 = vld [vmem:[%s266 + $0x6c] sm:$0xf]
      %v442 = vld [vmem:[%s266 + $0x70] sm:$0xf]
      %v443 = vld [vmem:[%s266 + $0x74] sm:$0xf]
      %v444 = vld [vmem:[%s266 + $0x78] sm:$0xf]
      %v445 = vld [vmem:[%s266 + $0x7c] sm:$0xf]
      %v446 = vunpack.c.l.bf16 %v414
      %v447 = vunpack.c.l.bf16 %v415
      %v448 = vunpack.c.l.bf16 %v416
      %v449 = vunpack.c.l.bf16 %v417
      %v450 = vunpack.c.l.bf16 %v418
      %v451 = vunpack.c.l.bf16 %v419
      %v452 = vunpack.c.l.bf16 %v420
      %v453 = vunpack.c.l.bf16 %v421
      %v454 = vunpack.c.l.bf16 %v422
      %v455 = vunpack.c.l.bf16 %v423
      %v456 = vunpack.c.l.bf16 %v424
      %v457 = vunpack.c.l.bf16 %v425
      %v458 = vunpack.c.l.bf16 %v426
      %v459 = vunpack.c.l.bf16 %v427
      %v460 = vunpack.c.l.bf16 %v428
      %v461 = vunpack.c.l.bf16 %v429
      %v462 = vunpack.c.l.bf16 %v430
      %v463 = vunpack.c.l.bf16 %v431
      %v464 = vunpack.c.l.bf16 %v432
      %v465 = vunpack.c.l.bf16 %v433
      %v466 = vunpack.c.l.bf16 %v434
      %v467 = vunpack.c.l.bf16 %v435
      %v468 = vunpack.c.l.bf16 %v436
      %v469 = vunpack.c.l.bf16 %v437
      %v470 = vunpack.c.l.bf16 %v438
      %v471 = vunpack.c.l.bf16 %v439
      %v472 = vunpack.c.l.bf16 %v440
      %v473 = vunpack.c.l.bf16 %v441
      %v474 = vunpack.c.l.bf16 %v442
      %v475 = vunpack.c.l.bf16 %v443
      %v476 = vunpack.c.l.bf16 %v444
      %v477 = vunpack.c.l.bf16 %v445
      %v478 = vld [vmem:[%s4] sm:$0x1]
      %v480 = vlaneseq
      %v481 = vshrl.u32 %v480, 7
      %v482 = vsub.s32 0, %v481
      %v483 = vrot.slane %v478, %v482
      %v485 = vmul.f32 %v446, %v483
      %v486 = vmul.f32 %v447, %v483
      %v487 = vmul.f32 %v448, %v483
      %v488 = vmul.f32 %v449, %v483
      %v489 = vmul.f32 %v450, %v483
      %v490 = vmul.f32 %v451, %v483
      %v491 = vmul.f32 %v452, %v483
      %v492 = vmul.f32 %v453, %v483
      %v493 = vmul.f32 %v454, %v483
      %v494 = vmul.f32 %v455, %v483
      %v495 = vmul.f32 %v456, %v483
      %v496 = vmul.f32 %v457, %v483
      %v497 = vmul.f32 %v458, %v483
      %v498 = vmul.f32 %v459, %v483
      %v499 = vmul.f32 %v460, %v483
      %v500 = vmul.f32 %v461, %v483
      %v501 = vmul.f32 %v462, %v483
      %v502 = vmul.f32 %v463, %v483
      %v503 = vmul.f32 %v464, %v483
      %v504 = vmul.f32 %v465, %v483
      %v505 = vmul.f32 %v466, %v483
      %v506 = vmul.f32 %v467, %v483
      %v507 = vmul.f32 %v468, %v483
      %v508 = vmul.f32 %v469, %v483
      %v509 = vmul.f32 %v470, %v483
      %v510 = vmul.f32 %v471, %v483
      %v511 = vmul.f32 %v472, %v483
      %v512 = vmul.f32 %v473, %v483
      %v513 = vmul.f32 %v474, %v483
      %v514 = vmul.f32 %v475, %v483
      %v515 = vmul.f32 %v476, %v483
      %v516 = vmul.f32 %v477, %v483
      %v517 = vld [vmem:[%s5] sm:$0x1]
      %v519 = vlaneseq
      %v520 = vshrl.u32 %v519, 7
      %v521 = vsub.s32 0, %v520
      %v522 = vrot.slane %v517, %v521
      %v524 = vadd.f32 %v485, %v522
      %v525 = vadd.f32 %v486, %v522
      %v526 = vadd.f32 %v487, %v522
      %v527 = vadd.f32 %v488, %v522
      %v528 = vadd.f32 %v489, %v522
      %v529 = vadd.f32 %v490, %v522
      %v530 = vadd.f32 %v491, %v522
      %v531 = vadd.f32 %v492, %v522
      %v532 = vadd.f32 %v493, %v522
      %v533 = vadd.f32 %v494, %v522
      %v534 = vadd.f32 %v495, %v522
      %v535 = vadd.f32 %v496, %v522
      %v536 = vadd.f32 %v497, %v522
      %v537 = vadd.f32 %v498, %v522
      %v538 = vadd.f32 %v499, %v522
      %v539 = vadd.f32 %v500, %v522
      %v540 = vadd.f32 %v501, %v522
      %v541 = vadd.f32 %v502, %v522
      %v542 = vadd.f32 %v503, %v522
      %v543 = vadd.f32 %v504, %v522
      %v544 = vadd.f32 %v505, %v522
      %v545 = vadd.f32 %v506, %v522
      %v546 = vadd.f32 %v507, %v522
      %v547 = vadd.f32 %v508, %v522
      %v548 = vadd.f32 %v509, %v522
      %v549 = vadd.f32 %v510, %v522
      %v550 = vadd.f32 %v511, %v522
      %v551 = vadd.f32 %v512, %v522
      %v552 = vadd.f32 %v513, %v522
      %v553 = vadd.f32 %v514, %v522
      %v554 = vadd.f32 %v515, %v522
      %v555 = vadd.f32 %v516, %v522
      %v556 = vadd.f32 %v382, %v524
      %v557 = vadd.f32 %v383, %v525
      %v558 = vadd.f32 %v384, %v526
      %v559 = vadd.f32 %v385, %v527
      %v560 = vadd.f32 %v386, %v528
      %v561 = vadd.f32 %v387, %v529
      %v562 = vadd.f32 %v388, %v530
      %v563 = vadd.f32 %v389, %v531
      %v564 = vadd.f32 %v390, %v532
      %v565 = vadd.f32 %v391, %v533
      %v566 = vadd.f32 %v392, %v534
      %v567 = vadd.f32 %v393, %v535
      %v568 = vadd.f32 %v394, %v536
      %v569 = vadd.f32 %v395, %v537
      %v570 = vadd.f32 %v396, %v538
      %v571 = vadd.f32 %v397, %v539
      %v572 = vadd.f32 %v398, %v540
      %v573 = vadd.f32 %v399, %v541
      %v574 = vadd.f32 %v400, %v542
      %v575 = vadd.f32 %v401, %v543
      %v576 = vadd.f32 %v402, %v544
      %v577 = vadd.f32 %v403, %v545
      %v578 = vadd.f32 %v404, %v546
      %v579 = vadd.f32 %v405, %v547
      %v580 = vadd.f32 %v406, %v548
      %v581 = vadd.f32 %v407, %v549
      %v582 = vadd.f32 %v408, %v550
      %v583 = vadd.f32 %v409, %v551
      %v584 = vadd.f32 %v410, %v552
      %v585 = vadd.f32 %v411, %v553
      %v586 = vadd.f32 %v412, %v554
      %v587 = vadd.f32 %v413, %v555
      %v588 = vmax.f32 %v556, 0.0
      %v589 = vmax.f32 %v557, 0.0
      %v590 = vmax.f32 %v558, 0.0
      %v591 = vmax.f32 %v559, 0.0
      %v592 = vmax.f32 %v560, 0.0
      %v593 = vmax.f32 %v561, 0.0
      %v594 = vmax.f32 %v562, 0.0
      %v595 = vmax.f32 %v563, 0.0
      %v596 = vmax.f32 %v564, 0.0
      %v597 = vmax.f32 %v565, 0.0
      %v598 = vmax.f32 %v566, 0.0
      %v599 = vmax.f32 %v567, 0.0
      %v600 = vmax.f32 %v568, 0.0
      %v601 = vmax.f32 %v569, 0.0
      %v602 = vmax.f32 %v570, 0.0
      %v603 = vmax.f32 %v571, 0.0
      %v604 = vmax.f32 %v572, 0.0
      %v605 = vmax.f32 %v573, 0.0
      %v606 = vmax.f32 %v574, 0.0
      %v607 = vmax.f32 %v575, 0.0
      %v608 = vmax.f32 %v576, 0.0
      %v609 = vmax.f32 %v577, 0.0
      %v610 = vmax.f32 %v578, 0.0
      %v611 = vmax.f32 %v579, 0.0
      %v612 = vmax.f32 %v580, 0.0
      %v613 = vmax.f32 %v581, 0.0
      %v614 = vmax.f32 %v582, 0.0
      %v615 = vmax.f32 %v583, 0.0
      %v616 = vmax.f32 %v584, 0.0
      %v617 = vmax.f32 %v585, 0.0
      %v618 = vmax.f32 %v586, 0.0
      %v619 = vmax.f32 %v587, 0.0
      %v620 = vpack.c.bf16 %v589, %v588
      %v621 = vpack.c.bf16 %v591, %v590
      %v622 = vpack.c.bf16 %v593, %v592
      %v623 = vpack.c.bf16 %v595, %v594
      %v624 = vpack.c.bf16 %v597, %v596
      %v625 = vpack.c.bf16 %v599, %v598
      %v626 = vpack.c.bf16 %v601, %v600
      %v627 = vpack.c.bf16 %v603, %v602
      %v628 = vpack.c.bf16 %v605, %v604
      %v629 = vpack.c.bf16 %v607, %v606
      %v630 = vpack.c.bf16 %v609, %v608
      %v631 = vpack.c.bf16 %v611, %v610
      %v632 = vpack.c.bf16 %v613, %v612
      %v633 = vpack.c.bf16 %v615, %v614
      %v634 = vpack.c.bf16 %v617, %v616
      %v635 = vpack.c.bf16 %v619, %v618
      %v652 = vunpack.c.l.b16 %v620
      %v653 = vunpack.c.h.b16 %v620
      %v654 = vunpack.c.l.b16 %v621
      %v655 = vunpack.c.h.b16 %v621
      %v656 = vunpack.c.l.b16 %v622
      %v657 = vunpack.c.h.b16 %v622
      %v658 = vunpack.c.l.b16 %v623
      %v659 = vunpack.c.h.b16 %v623
      %v660 = vunpack.c.l.b16 %v624
      %v661 = vunpack.c.h.b16 %v624
      %v662 = vunpack.c.l.b16 %v625
      %v663 = vunpack.c.h.b16 %v625
      %v664 = vunpack.c.l.b16 %v626
      %v665 = vunpack.c.h.b16 %v626
      %v666 = vunpack.c.l.b16 %v627
      %v667 = vunpack.c.h.b16 %v627
      %v668 = vunpack.c.l.b16 %v628
      %v669 = vunpack.c.h.b16 %v628
      %v670 = vunpack.c.l.b16 %v629
      %v671 = vunpack.c.h.b16 %v629
      %v672 = vunpack.c.l.b16 %v630
      %v673 = vunpack.c.h.b16 %v630
      %v674 = vunpack.c.l.b16 %v631
      %v675 = vunpack.c.h.b16 %v631
      %v676 = vunpack.c.l.b16 %v632
      %v677 = vunpack.c.h.b16 %v632
      %v678 = vunpack.c.l.b16 %v633
      %v679 = vunpack.c.h.b16 %v633
      %v680 = vunpack.c.l.b16 %v634
      %v681 = vunpack.c.h.b16 %v634
      %v682 = vunpack.c.l.b16 %v635
      %v683 = vunpack.c.h.b16 %v635
      %v684 = vpack.c.b16 %v652, %v652
      %v685 = vpack.c.b16 %v653, %v653
      %v686 = vpack.c.b16 %v654, %v654
      %v687 = vpack.c.b16 %v655, %v655
      %v688 = vpack.c.b16 %v656, %v656
      %v689 = vpack.c.b16 %v657, %v657
      %v690 = vpack.c.b16 %v658, %v658
      %v691 = vpack.c.b16 %v659, %v659
      %v692 = vpack.c.b16 %v660, %v660
      %v693 = vpack.c.b16 %v661, %v661
      %v694 = vpack.c.b16 %v662, %v662
      %v695 = vpack.c.b16 %v663, %v663
      %v696 = vpack.c.b16 %v664, %v664
      %v697 = vpack.c.b16 %v665, %v665
      %v698 = vpack.c.b16 %v666, %v666
      %v699 = vpack.c.b16 %v667, %v667
      %v700 = vpack.c.b16 %v668, %v668
      %v701 = vpack.c.b16 %v669, %v669
      %v702 = vpack.c.b16 %v670, %v670
      %v703 = vpack.c.b16 %v671, %v671
      %v704 = vpack.c.b16 %v672, %v672
      %v705 = vpack.c.b16 %v673, %v673
      %v706 = vpack.c.b16 %v674, %v674
      %v707 = vpack.c.b16 %v675, %v675
      %v708 = vpack.c.b16 %v676, %v676
      %v709 = vpack.c.b16 %v677, %v677
      %v710 = vpack.c.b16 %v678, %v678
      %v711 = vpack.c.b16 %v679, %v679
      %v712 = vpack.c.b16 %v680, %v680
      %v713 = vpack.c.b16 %v681, %v681
      %v714 = vpack.c.b16 %v682, %v682
      %v715 = vpack.c.b16 %v683, %v683
      %748 = vst [vmem:[%s271] sm:$0xf] %v684
      %749 = vst [vmem:[%s271 + $0x4] sm:$0xf] %v685
      %750 = vst [vmem:[%s271 + $0x8] sm:$0xf] %v686
      %751 = vst [vmem:[%s271 + $0xc] sm:$0xf] %v687
      %752 = vst [vmem:[%s271 + $0x10] sm:$0xf] %v688
      %753 = vst [vmem:[%s271 + $0x14] sm:$0xf] %v689
      %754 = vst [vmem:[%s271 + $0x18] sm:$0xf] %v690
      %755 = vst [vmem:[%s271 + $0x1c] sm:$0xf] %v691
      %756 = vst [vmem:[%s271 + $0x20] sm:$0xf] %v692
      %757 = vst [vmem:[%s271 + $0x24] sm:$0xf] %v693
      %758 = vst [vmem:[%s271 + $0x28] sm:$0xf] %v694
      %759 = vst [vmem:[%s271 + $0x2c] sm:$0xf] %v695
      %760 = vst [vmem:[%s271 + $0x30] sm:$0xf] %v696
      %761 = vst [vmem:[%s271 + $0x34] sm:$0xf] %v697
      %762 = vst [vmem:[%s271 + $0x38] sm:$0xf] %v698
      %763 = vst [vmem:[%s271 + $0x3c] sm:$0xf] %v699
      %764 = vst [vmem:[%s271 + $0x40] sm:$0xf] %v700
      %765 = vst [vmem:[%s271 + $0x44] sm:$0xf] %v701
      %766 = vst [vmem:[%s271 + $0x48] sm:$0xf] %v702
      %767 = vst [vmem:[%s271 + $0x4c] sm:$0xf] %v703
      %768 = vst [vmem:[%s271 + $0x50] sm:$0xf] %v704
      %769 = vst [vmem:[%s271 + $0x54] sm:$0xf] %v705
      %770 = vst [vmem:[%s271 + $0x58] sm:$0xf] %v706
      %771 = vst [vmem:[%s271 + $0x5c] sm:$0xf] %v707
      %772 = vst [vmem:[%s271 + $0x60] sm:$0xf] %v708
      %773 = vst [vmem:[%s271 + $0x64] sm:$0xf] %v709
      %774 = vst [vmem:[%s271 + $0x68] sm:$0xf] %v710
      %775 = vst [vmem:[%s271 + $0x6c] sm:$0xf] %v711
      %776 = vst [vmem:[%s271 + $0x70] sm:$0xf] %v712
      %777 = vst [vmem:[%s271 + $0x74] sm:$0xf] %v713
      %778 = vst [vmem:[%s271 + $0x78] sm:$0xf] %v714
      %779 = vst [vmem:[%s271 + $0x7c] sm:$0xf] %v715
      %p780 = scmp.lt.s32.totalorder %s17, 1
      %s781 = scalar_select %p780, %s17, 1
      %s782 = smul.addr %s781, 32
      %s783 = smul.addr %s782, 4
      %s784 = scalar_lea.vmem %s6, %s783
      // Predicated region
      $region45: #{basic_block_forward.5} parent=43 // pred_check
        %p785 = pneg %p171
      $region46: #{basic_block_forward.5} parent=43 // pred_check_branch
        %787 = sbr.rel (%p785) target = $region48
      $region47: #{basic_block_forward.5} parent=43 // pred_region
        _
      $region48: #{basic_block_forward.5} parent=43 // pred_fallthru
        _
    $region44: #{basic_block_forward.5} parent=5 // pred_fallthru
      _
    %p788 = scmp.le.s32.totalorder 2, %s12
    // Predicated region
    $region49: #{basic_block_forward.5} parent=5 // pred_check
      %p789 = pneg %p788
    $region50: #{basic_block_forward.5} parent=5 // pred_check_branch
      %791 = sbr.rel (%p789) target = $region52
    $region51: #{basic_block_forward.5} parent=5 // pred_region
      %s792 = ssub.s32 %s12, 2
      // Predicated region
      $region53: #{basic_block_forward.5} parent=51 // pred_check
        %p793 = pneg %p177
      $region54: #{basic_block_forward.5} parent=51 // pred_check_branch
        %795 = sbr.rel (%p793) target = $region56
      $region55: #{basic_block_forward.5} parent=51 // pred_region
        %p796 = scmp.lt.s32.totalorder %s18, 1
        %s797 = scalar_select %p796, %s18, 1
        %s798 = smul.addr %s797, 32
        %s799 = smul.addr %s798, 4
        %s800 = scalar_lea.vmem %s6, %s799
      $region56: #{basic_block_forward.5} parent=51 // pred_fallthru
        _
    $region52: #{basic_block_forward.5} parent=5 // pred_fallthru
      _
  $region6: #{basic_block_forward.5} parent=0 // loop_footer
    %s16 = sadd.s32 1, %s12
  $region7: #{basic_block_forward.5} parent=0 // loop_footer_branch
    %11 = sbr.rel target = $region3
  $region8: #{basic_block_forward.5} parent=0 // loop_exit
    _

// kernel: basic_block_forward.4
$region0: #{basic_block_forward.4}
  #allocation0 [shape = 'u32[]', space=smem, size = 0x4, offset = 0x4, fixed_abs, tag = 'smem constant byte address 0x4 - core index']
  #allocation1 [shape = 'u32[144,128]{1,0:T(1,128)}', space=vmem, size = 0x12000, scoped, tag = 'internal scratch']
  #allocation2 [shape = 'f32[18,18,128]{2,1,0:T(8,128)}', space=vmem, size = 0x36000, scoped, tag = 'scratch operand']
  #allocation3 [shape = 'bf16[18,16,384]{2,1,0:T(8,128)(2,1)}', space=vmem, size = 0x36000, scoped, tag = 'scratch operand']
  #allocation4 [shape = 'f32[256,128]{1,0:T(8,128)}', space=vmem, size = 0x20000, scoped, tag = 'scratch operand']
  %s0 = inlined_call_operand.vmem [shape: bf16[2,16,16,128], index: 0, kind: input, shape index: {}]
  %s1 = inlined_call_operand.vmem [shape: f32[1,128], index: 1, kind: input, shape index: {}]
  %s2 = inlined_call_operand.vmem [shape: f32[1,128], index: 2, kind: input, shape index: {}]
  %s3 = inlined_call_operand.vmem [shape: bf16[3,384,128], index: 3, kind: input, shape index: {}]
  %s4 = inlined_call_operand.vmem [shape: bf16[2,16,16,128], index: 4, kind: output, shape index: {0}]
  %s5 = inlined_call_operand.vmem [shape: f32[2,1,128], index: 5, kind: output, shape index: {1}]
  %s6 = inlined_call_operand.vmem [shape: f32[2,1,128], index: 6, kind: output, shape index: {2}]
  %7 = xla_tuple %s4, %s5, %s6
  %s8 = sld [smem:[#allocation0]]
  $region65: #{basic_block_forward.4} parent=0
    _
  %s10 = ssub.s32 1, %s8
  %s11 = scalar_select 0, %s10, %s8
  loop: start=0, step=1, limit=4
  $region2: #{basic_block_forward.4} parent=0 // loop_pre_header
    _
  $region3: #{basic_block_forward.4} parent=0 // loop_header
    %s13 = sphi 0, %s17
    %p14 = scmp.ge.s32.totalorder %s13, 4
    %s23 = sphi 0, %s25
    %s26 = sphi 0, %s23
    %s27 = sphi 0, %s26
    %s43 = sphi 0, %s27
    %s47 = sphi 0, %s47
    %s49 = sphi 0, %s47
    %s50 = sphi 0, %s49
    %s64 = sphi 0, %s50
    %s68 = sphi 0, %s68
    %s70 = sphi 0, %s68
    %s71 = sphi 0, %s70
    %s85 = sphi 0, %s71
    %s89 = sphi 0, %s89
    %s91 = sphi 0, %s89
    %s92 = sphi 0, %s91
    %s106 = sphi 0, %s92
    %s112 = sphi 0, %s114
    %s115 = sphi 0, %s112
    %s116 = sphi 0, %s115
    %s132 = sphi 0, %s116
    %s138 = sphi 0, %s140
    %s141 = sphi 0, %s138
    %s142 = sphi 0, %s141
    %s158 = sphi 0, %s142
    %s164 = sphi 0, %s166
    %s167 = sphi 0, %s164
    %s168 = sphi 0, %s167
    %s184 = sphi 0, %s168
  $region4: #{basic_block_forward.4} parent=0 // loop_header_branch
    %16 = sbr.rel (%p14) target = $region8
  $region5: #{basic_block_forward.4} parent=0 // loop_body
    %s18 = ssub.s32 %s13, 1
    %s19 = ssub.s32 %s13, 2
    %s20 = sadd.s32 %s13, 1
    %s21 = ssub.s32 %s13, %s20
    %p22 = scmp.eq.s32.totalorder %s21, 0
    %s24 = sadd.s32 %s23, 1
    %s25 = scalar_select %p22, %s23, %s24
    %p28 = pneg %p22
    %p29 = scmp.eq.s32.totalorder %s13, 1
    %p30 = por %p28, %p29
    %p31 = scmp.ne.s32.totalorder %s23, %s26
    %p32 = scmp.eq.s32.totalorder %s13, 0
    %p33 = por %p31, %p32
    %p34 = scmp.ne.s32.totalorder %s23, %s26
    %p35 = scmp.eq.s32.totalorder %s18, 1
    %p36 = por %p34, %p35
    %p37 = scmp.ne.s32.totalorder %s26, %s27
    %p38 = scmp.eq.s32.totalorder %s18, 0
    %p39 = por %p37, %p38
    %p40 = scmp.ne.s32.totalorder %s26, %s27
    %p41 = scmp.eq.s32.totalorder %s19, 1
    %p42 = por %p40, %p41
    %p44 = scmp.ne.s32.totalorder %s27, %s43
    %p45 = scmp.eq.s32.totalorder %s19, 0
    %p46 = por %p44, %p45
    %s48 = sadd.s32 %s47, 1
    %p51 = scmp.eq.s32.totalorder %s13, 1
    %p52 = scmp.ne.s32.totalorder %s47, %s49
    %p53 = scmp.eq.s32.totalorder %s13, 0
    %p54 = por %p52, %p53
    %p55 = scmp.ne.s32.totalorder %s47, %s49
    %p56 = scmp.eq.s32.totalorder %s18, 1
    %p57 = por %p55, %p56
    %p58 = scmp.ne.s32.totalorder %s49, %s50
    %p59 = scmp.eq.s32.totalorder %s18, 0
    %p60 = por %p58, %p59
    %p61 = scmp.ne.s32.totalorder %s49, %s50
    %p62 = scmp.eq.s32.totalorder %s19, 1
    %p63 = por %p61, %p62
    %p65 = scmp.ne.s32.totalorder %s50, %s64
    %p66 = scmp.eq.s32.totalorder %s19, 0
    %p67 = por %p65, %p66
    %s69 = sadd.s32 %s68, 1
    %p72 = scmp.eq.s32.totalorder %s13, 1
    %p73 = scmp.ne.s32.totalorder %s68, %s70
    %p74 = scmp.eq.s32.totalorder %s13, 0
    %p75 = por %p73, %p74
    %p76 = scmp.ne.s32.totalorder %s68, %s70
    %p77 = scmp.eq.s32.totalorder %s18, 1
    %p78 = por %p76, %p77
    %p79 = scmp.ne.s32.totalorder %s70, %s71
    %p80 = scmp.eq.s32.totalorder %s18, 0
    %p81 = por %p79, %p80
    %p82 = scmp.ne.s32.totalorder %s70, %s71
    %p83 = scmp.eq.s32.totalorder %s19, 1
    %p84 = por %p82, %p83
    %p86 = scmp.ne.s32.totalorder %s71, %s85
    %p87 = scmp.eq.s32.totalorder %s19, 0
    %p88 = por %p86, %p87
    %s90 = sadd.s32 %s89, 1
    %p93 = scmp.eq.s32.totalorder %s13, 1
    %p94 = scmp.ne.s32.totalorder %s89, %s91
    %p95 = scmp.eq.s32.totalorder %s13, 0
    %p96 = por %p94, %p95
    %p97 = scmp.ne.s32.totalorder %s89, %s91
    %p98 = scmp.eq.s32.totalorder %s18, 1
    %p99 = por %p97, %p98
    %p100 = scmp.ne.s32.totalorder %s91, %s92
    %p101 = scmp.eq.s32.totalorder %s18, 0
    %p102 = por %p100, %p101
    %p103 = scmp.ne.s32.totalorder %s91, %s92
    %p104 = scmp.eq.s32.totalorder %s19, 1
    %p105 = por %p103, %p104
    %p107 = scmp.ne.s32.totalorder %s92, %s106
    %p108 = scmp.eq.s32.totalorder %s19, 0
    %p109 = por %p107, %p108
    %s110 = ssub.s32 %s13, %s20
    %p111 = scmp.eq.s32.totalorder %s110, 0
    %s113 = sadd.s32 %s112, 1
    %s114 = scalar_select %p111, %s112, %s113
    %p117 = pneg %p111
    %p118 = scmp.eq.s32.totalorder %s13, 1
    %p119 = por %p117, %p118
    %p120 = scmp.ne.s32.totalorder %s112, %s115
    %p121 = scmp.eq.s32.totalorder %s13, 0
    %p122 = por %p120, %p121
    %p123 = scmp.ne.s32.totalorder %s112, %s115
    %p124 = scmp.eq.s32.totalorder %s18, 1
    %p125 = por %p123, %p124
    %p126 = scmp.ne.s32.totalorder %s115, %s116
    %p127 = scmp.eq.s32.totalorder %s18, 0
    %p128 = por %p126, %p127
    %p129 = scmp.ne.s32.totalorder %s115, %s116
    %p130 = scmp.eq.s32.totalorder %s19, 1
    %p131 = por %p129, %p130
    %p133 = scmp.ne.s32.totalorder %s116, %s132
    %p134 = scmp.eq.s32.totalorder %s19, 0
    %p135 = por %p133, %p134
    %s136 = ssub.s32 %s13, %s20
    %p137 = scmp.eq.s32.totalorder %s136, 0
    %s139 = sadd.s32 %s138, 1
    %s140 = scalar_select %p137, %s138, %s139
    %p143 = pneg %p137
    %p144 = scmp.eq.s32.totalorder %s13, 1
    %p145 = por %p143, %p144
    %p146 = scmp.ne.s32.totalorder %s138, %s141
    %p147 = scmp.eq.s32.totalorder %s13, 0
    %p148 = por %p146, %p147
    %p149 = scmp.ne.s32.totalorder %s138, %s141
    %p150 = scmp.eq.s32.totalorder %s18, 1
    %p151 = por %p149, %p150
    %p152 = scmp.ne.s32.totalorder %s141, %s142
    %p153 = scmp.eq.s32.totalorder %s18, 0
    %p154 = por %p152, %p153
    %p155 = scmp.ne.s32.totalorder %s141, %s142
    %p156 = scmp.eq.s32.totalorder %s19, 1
    %p157 = por %p155, %p156
    %p159 = scmp.ne.s32.totalorder %s142, %s158
    %p160 = scmp.eq.s32.totalorder %s19, 0
    %p161 = por %p159, %p160
    %s162 = ssub.s32 %s13, %s20
    %p163 = scmp.eq.s32.totalorder %s162, 0
    %s165 = sadd.s32 %s164, 1
    %s166 = scalar_select %p163, %s164, %s165
    %p169 = pneg %p163
    %p170 = scmp.eq.s32.totalorder %s13, 1
    %p171 = por %p169, %p170
    %p172 = scmp.ne.s32.totalorder %s164, %s167
    %p173 = scmp.eq.s32.totalorder %s13, 0
    %p174 = por %p172, %p173
    %p175 = scmp.ne.s32.totalorder %s164, %s167
    %p176 = scmp.eq.s32.totalorder %s18, 1
    %p177 = por %p175, %p176
    %p178 = scmp.ne.s32.totalorder %s167, %s168
    %p179 = scmp.eq.s32.totalorder %s18, 0
    %p180 = por %p178, %p179
    %p181 = scmp.ne.s32.totalorder %s167, %s168
    %p182 = scmp.eq.s32.totalorder %s19, 1
    %p183 = por %p181, %p182
    %p185 = scmp.ne.s32.totalorder %s168, %s184
    %p186 = scmp.eq.s32.totalorder %s19, 0
    %p187 = por %p185, %p186
    %p188 = scmp.le.s32.totalorder 1, %s13
    %p189 = scmp.lt.s32.totalorder %s13, 3
    %p190 = pnand %p188, %p189
    %p191 = pneg %p190
    // Predicated region
    $region9: #{basic_block_forward.4} parent=5 // pred_check
      _
    $region10: #{basic_block_forward.4} parent=5 // pred_check_branch
      %193 = sbr.rel (%p190) target = $region12
    $region11: #{basic_block_forward.4} parent=5 // pred_region
      %s194 = ssub.s32 %s13, 1
      // Predicated region
      $region13: #{basic_block_forward.4} parent=11 // pred_check
        %p195 = pneg %p60
      $region14: #{basic_block_forward.4} parent=11 // pred_check_branch
        %197 = sbr.rel (%p195) target = $region16
      $region15: #{basic_block_forward.4} parent=11 // pred_region
        _
      $region16: #{basic_block_forward.4} parent=11 // pred_fallthru
        _
      // Predicated region
      $region17: #{basic_block_forward.4} parent=11 // pred_check
        %p198 = pneg %p81
      $region18: #{basic_block_forward.4} parent=11 // pred_check_branch
        %200 = sbr.rel (%p198) target = $region20
      $region19: #{basic_block_forward.4} parent=11 // pred_region
        _
      $region20: #{basic_block_forward.4} parent=11 // pred_fallthru
        _
      // Predicated region
      $region21: #{basic_block_forward.4} parent=11 // pred_check
        %p201 = pneg %p102
      $region22: #{basic_block_forward.4} parent=11 // pred_check_branch
        %203 = sbr.rel (%p201) target = $region24
      $region23: #{basic_block_forward.4} parent=11 // pred_region
        _
      $region24: #{basic_block_forward.4} parent=11 // pred_fallthru
        _
    $region12: #{basic_block_forward.4} parent=5 // pred_fallthru
      _
    %p204 = scmp.lt.s32.totalorder %s13, 2
    // Predicated region
    $region25: #{basic_block_forward.4} parent=5 // pred_check
      %p205 = pneg %p204
    $region26: #{basic_block_forward.4} parent=5 // pred_check_branch
      %207 = sbr.rel (%p205) target = $region28
    $region27: #{basic_block_forward.4} parent=5 // pred_region
      // Predicated region
      $region29: #{basic_block_forward.4} parent=27 // pred_check
        %p208 = pneg %p33
      $region30: #{basic_block_forward.4} parent=27 // pred_check_branch
        %210 = sbr.rel (%p208) target = $region32
      $region31: #{basic_block_forward.4} parent=27 // pred_region
        %p211 = scmp.lt.s32.totalorder %s13, 1
        %s212 = scalar_select %p211, %s13, 1
        %s213 = smul.addr %s212, 32
        %s214 = smul.addr %s213, 4
        %s215 = scalar_lea.vmem %s0, %s214
      $region32: #{basic_block_forward.4} parent=27 // pred_fallthru
        _
    $region28: #{basic_block_forward.4} parent=5 // pred_fallthru
      _
    %p216 = scmp.le.s32.totalorder 1, %s13
    %p217 = scmp.lt.s32.totalorder %s13, 3
    %p218 = pnand %p216, %p217
    %p219 = pneg %p218
    // Predicated region
    $region33: #{basic_block_forward.4} parent=5 // pred_check
      _
    $region34: #{basic_block_forward.4} parent=5 // pred_check_branch
      %221 = sbr.rel (%p218) target = $region36
    $region35: #{basic_block_forward.4} parent=5 // pred_region
      %s222 = ssub.s32 %s13, 1
      %p223 = scmp.lt.s32.totalorder %s18, 1
      %s224 = scalar_select %p223, %s18, 1
      %s225 = smul.addr %s224, 32
      %s226 = smul.addr %s225, 4
      %s227 = scalar_lea.vmem %s0, %s226
      %p228 = pneg %p39
      %p229 = pneg %p36
      %p230 = pneg %p60
      %p231 = pneg %p57
      %p232 = pneg %p81
      %p233 = pneg %p78
      %p234 = pneg %p102
      %p235 = pneg %p99
      %p236 = pneg %p128
      %p237 = pneg %p125
      %p238 = scmp.lt.s32.totalorder %s18, 1
      %s239 = scalar_select %p238, %s18, 1
      %s240 = smul.addr %s239, 32
      %s241 = smul.addr %s240, 4
      %s242 = scalar_lea.vmem %s4, %s241
      %p243 = pneg %p154
      %p244 = pneg %p151
      %p245 = scmp.lt.s32.totalorder %s18, 1
      %s246 = scalar_select %p245, %s18, 1
      %s247 = scalar_lea.vmem %s5, %s246
      %p248 = pneg %p180
      %p249 = pneg %p177
      %p250 = scmp.lt.s32.totalorder %s18, 1
      %s251 = scalar_select %p250, %s18, 1
      %s252 = scalar_lea.vmem %s6, %s251
      %p253 = scmp.lt.s32.totalorder %s18, 1
      %s254 = scalar_select %p253, %s18, 1
      %s255 = smul.addr %s254, 32
      %s256 = smul.addr %s255, 4
      %s257 = scalar_lea.vmem %s0, %s256
      %p258 = scmp.lt.s32.totalorder %s18, 1
      %s259 = scalar_select %p258, %s18, 1
      %s260 = smul.addr %s259, 32
      %s261 = smul.addr %s260, 4
      %s262 = scalar_lea.vmem %s4, %s261
      %p263 = scmp.lt.s32.totalorder %s18, 1
      %s264 = scalar_select %p263, %s18, 1
      %s265 = scalar_lea.vmem %s5, %s264
      %p266 = scmp.lt.s32.totalorder %s18, 1
      %s267 = scalar_select %p266, %s18, 1
      %s268 = scalar_lea.vmem %s6, %s267
      %270 = vst [vmem:[#allocation2] sm:$0xff] 0.0
      %271 = vst [vmem:[#allocation2 + $0x8] sm:$0xff] 0.0
      %272 = vst [vmem:[#allocation2 + $0x10] sm:$0x3] 0.0
      %s273 = scalar_lea.vmem [#allocation2], 408
      %274 = vst [vmem:[%s273] sm:$0xff] 0.0
      %275 = vst [vmem:[%s273 + $0x8] sm:$0xff] 0.0
      %276 = vst [vmem:[%s273 + $0x10] sm:$0x3] 0.0
      %277 = vst [vmem:[#allocation2] sm:$0x1] 0.0
      %278 = vst [vmem:[#allocation2 + $0x18] sm:$0x1] 0.0
      %279 = vst [vmem:[#allocation2 + $0x30] sm:$0x1] 0.0
      %280 = vst [vmem:[#allocation2 + $0x48] sm:$0x1] 0.0
      %281 = vst [vmem:[#allocation2 + $0x60] sm:$0x1] 0.0
      %282 = vst [vmem:[#allocation2 + $0x78] sm:$0x1] 0.0
      %283 = vst [vmem:[#allocation2 + $0x90] sm:$0x1] 0.0
      %284 = vst [vmem:[#allocation2 + $0xa8] sm:$0x1] 0.0
      %285 = vst [vmem:[#allocation2 + $0xc0] sm:$0x1] 0.0
      %286 = vst [vmem:[#allocation2 + $0xd8] sm:$0x1] 0.0
      %287 = vst [vmem:[#allocation2 + $0xf0] sm:$0x1] 0.0
      %288 = vst [vmem:[#allocation2 + $0x108] sm:$0x1] 0.0
      %289 = vst [vmem:[#allocation2 + $0x120] sm:$0x1] 0.0
      %290 = vst [vmem:[#allocation2 + $0x138] sm:$0x1] 0.0
      %291 = vst [vmem:[#allocation2 + $0x150] sm:$0x1] 0.0
      %292 = vst [vmem:[#allocation2 + $0x168] sm:$0x1] 0.0
      %293 = vst [vmem:[#allocation2 + $0x180] sm:$0x1] 0.0
      %294 = vst [vmem:[#allocation2 + $0x198] sm:$0x1] 0.0
      %295 = vst [vmem:[#allocation2 + $0x11] sm:$0x1] 0.0
      %296 = vst [vmem:[#allocation2 + $0x29] sm:$0x1] 0.0
      %297 = vst [vmem:[#allocation2 + $0x41] sm:$0x1] 0.0
      %298 = vst [vmem:[#allocation2 + $0x59] sm:$0x1] 0.0
      %299 = vst [vmem:[#allocation2 + $0x71] sm:$0x1] 0.0
      %300 = vst [vmem:[#allocation2 + $0x89] sm:$0x1] 0.0
      %301 = vst [vmem:[#allocation2 + $0xa1] sm:$0x1] 0.0
      %302 = vst [vmem:[#allocation2 + $0xb9] sm:$0x1] 0.0
      %303 = vst [vmem:[#allocation2 + $0xd1] sm:$0x1] 0.0
      %304 = vst [vmem:[#allocation2 + $0xe9] sm:$0x1] 0.0
      %305 = vst [vmem:[#allocation2 + $0x101] sm:$0x1] 0.0
      %306 = vst [vmem:[#allocation2 + $0x119] sm:$0x1] 0.0
      %307 = vst [vmem:[#allocation2 + $0x131] sm:$0x1] 0.0
      %308 = vst [vmem:[#allocation2 + $0x149] sm:$0x1] 0.0
      %309 = vst [vmem:[#allocation2 + $0x161] sm:$0x1] 0.0
      %310 = vst [vmem:[#allocation2 + $0x179] sm:$0x1] 0.0
      %311 = vst [vmem:[#allocation2 + $0x191] sm:$0x1] 0.0
      %312 = vst [vmem:[#allocation2 + $0x1a9] sm:$0x1] 0.0
      %v313 = vld [vmem:[%s257] sm:$0xf]
      %v314 = vld [vmem:[%s257 + $0x4] sm:$0xf]
      %v315 = vld [vmem:[%s257 + $0x8] sm:$0xf]
      %v316 = vld [vmem:[%s257 + $0xc] sm:$0xf]
      %v317 = vld [vmem:[%s257 + $0x10] sm:$0xf]
      %v318 = vld [vmem:[%s257 + $0x14] sm:$0xf]
      %v319 = vld [vmem:[%s257 + $0x18] sm:$0xf]
      %v320 = vld [vmem:[%s257 + $0x1c] sm:$0xf]
      %v321 = vld [vmem:[%s257 + $0x20] sm:$0xf]
      %v322 = vld [vmem:[%s257 + $0x24] sm:$0xf]
      %v323 = vld [vmem:[%s257 + $0x28] sm:$0xf]
      %v324 = vld [vmem:[%s257 + $0x2c] sm:$0xf]
      %v325 = vld [vmem:[%s257 + $0x30] sm:$0xf]
      %v326 = vld [vmem:[%s257 + $0x34] sm:$0xf]
      %v327 = vld [vmem:[%s257 + $0x38] sm:$0xf]
      %v328 = vld [vmem:[%s257 + $0x3c] sm:$0xf]
      %v329 = vld [vmem:[%s257 + $0x40] sm:$0xf]
      %v330 = vld [vmem:[%s257 + $0x44] sm:$0xf]
      %v331 = vld [vmem:[%s257 + $0x48] sm:$0xf]
      %v332 = vld [vmem:[%s257 + $0x4c] sm:$0xf]
      %v333 = vld [vmem:[%s257 + $0x50] sm:$0xf]
      %v334 = vld [vmem:[%s257 + $0x54] sm:$0xf]
      %v335 = vld [vmem:[%s257 + $0x58] sm:$0xf]
      %v336 = vld [vmem:[%s257 + $0x5c] sm:$0xf]
      %v337 = vld [vmem:[%s257 + $0x60] sm:$0xf]
      %v338 = vld [vmem:[%s257 + $0x64] sm:$0xf]
      %v339 = vld [vmem:[%s257 + $0x68] sm:$0xf]
      %v340 = vld [vmem:[%s257 + $0x6c] sm:$0xf]
      %v341 = vld [vmem:[%s257 + $0x70] sm:$0xf]
      %v342 = vld [vmem:[%s257 + $0x74] sm:$0xf]
      %v343 = vld [vmem:[%s257 + $0x78] sm:$0xf]
      %v344 = vld [vmem:[%s257 + $0x7c] sm:$0xf]
      %v345 = vunpack.c.l.bf16 %v313
      %v346 = vunpack.c.l.bf16 %v314
      %v347 = vunpack.c.l.bf16 %v315
      %v348 = vunpack.c.l.bf16 %v316
      %v349 = vunpack.c.l.bf16 %v317
      %v350 = vunpack.c.l.bf16 %v318
      %v351 = vunpack.c.l.bf16 %v319
      %v352 = vunpack.c.l.bf16 %v320
      %v353 = vunpack.c.l.bf16 %v321
      %v354 = vunpack.c.l.bf16 %v322
      %v355 = vunpack.c.l.bf16 %v323
      %v356 = vunpack.c.l.bf16 %v324
      %v357 = vunpack.c.l.bf16 %v325
      %v358 = vunpack.c.l.bf16 %v326
      %v359 = vunpack.c.l.bf16 %v327
      %v360 = vunpack.c.l.bf16 %v328
      %v361 = vunpack.c.l.bf16 %v329
      %v362 = vunpack.c.l.bf16 %v330
      %v363 = vunpack.c.l.bf16 %v331
      %v364 = vunpack.c.l.bf16 %v332
      %v365 = vunpack.c.l.bf16 %v333
      %v366 = vunpack.c.l.bf16 %v334
      %v367 = vunpack.c.l.bf16 %v335
      %v368 = vunpack.c.l.bf16 %v336
      %v369 = vunpack.c.l.bf16 %v337
      %v370 = vunpack.c.l.bf16 %v338
      %v371 = vunpack.c.l.bf16 %v339
      %v372 = vunpack.c.l.bf16 %v340
      %v373 = vunpack.c.l.bf16 %v341
      %v374 = vunpack.c.l.bf16 %v342
      %v375 = vunpack.c.l.bf16 %v343
      %v376 = vunpack.c.l.bf16 %v344
      %v377 = vld [vmem:[%s1] sm:$0x1]
      %v379 = vlaneseq
      %v380 = vshrl.u32 %v379, 7
      %v381 = vsub.s32 0, %v380
      %v382 = vrot.slane %v377, %v381
      %v384 = vmul.f32 %v345, %v382
      %v385 = vmul.f32 %v346, %v382
      %v386 = vmul.f32 %v347, %v382
      %v387 = vmul.f32 %v348, %v382
      %v388 = vmul.f32 %v349, %v382
      %v389 = vmul.f32 %v350, %v382
      %v390 = vmul.f32 %v351, %v382
      %v391 = vmul.f32 %v352, %v382
      %v392 = vmul.f32 %v353, %v382
      %v393 = vmul.f32 %v354, %v382
      %v394 = vmul.f32 %v355, %v382
      %v395 = vmul.f32 %v356, %v382
      %v396 = vmul.f32 %v357, %v382
      %v397 = vmul.f32 %v358, %v382
      %v398 = vmul.f32 %v359, %v382
      %v399 = vmul.f32 %v360, %v382
      %v400 = vmul.f32 %v361, %v382
      %v401 = vmul.f32 %v362, %v382
      %v402 = vmul.f32 %v363, %v382
      %v403 = vmul.f32 %v364, %v382
      %v404 = vmul.f32 %v365, %v382
      %v405 = vmul.f32 %v366, %v382
      %v406 = vmul.f32 %v367, %v382
      %v407 = vmul.f32 %v368, %v382
      %v408 = vmul.f32 %v369, %v382
      %v409 = vmul.f32 %v370, %v382
      %v410 = vmul.f32 %v371, %v382
      %v411 = vmul.f32 %v372, %v382
      %v412 = vmul.f32 %v373, %v382
      %v413 = vmul.f32 %v374, %v382
      %v414 = vmul.f32 %v375, %v382
      %v415 = vmul.f32 %v376, %v382
      %v416 = vld [vmem:[%s2] sm:$0x1]
      %v418 = vlaneseq
      %v419 = vshrl.u32 %v418, 7
      %v420 = vsub.s32 0, %v419
      %v421 = vrot.slane %v416, %v420
      %v423 = vadd.f32 %v384, %v421
      %v424 = vadd.f32 %v385, %v421
      %v425 = vadd.f32 %v386, %v421
      %v426 = vadd.f32 %v387, %v421
      %v427 = vadd.f32 %v388, %v421
      %v428 = vadd.f32 %v389, %v421
      %v429 = vadd.f32 %v390, %v421
      %v430 = vadd.f32 %v391, %v421
      %v431 = vadd.f32 %v392, %v421
      %v432 = vadd.f32 %v393, %v421
      %v433 = vadd.f32 %v394, %v421
      %v434 = vadd.f32 %v395, %v421
      %v435 = vadd.f32 %v396, %v421
      %v436 = vadd.f32 %v397, %v421
      %v437 = vadd.f32 %v398, %v421
      %v438 = vadd.f32 %v399, %v421
      %v439 = vadd.f32 %v400, %v421
      %v440 = vadd.f32 %v401, %v421
      %v441 = vadd.f32 %v402, %v421
      %v442 = vadd.f32 %v403, %v421
      %v443 = vadd.f32 %v404, %v421
      %v444 = vadd.f32 %v405, %v421
      %v445 = vadd.f32 %v406, %v421
      %v446 = vadd.f32 %v407, %v421
      %v447 = vadd.f32 %v408, %v421
      %v448 = vadd.f32 %v409, %v421
      %v449 = vadd.f32 %v410, %v421
      %v450 = vadd.f32 %v411, %v421
      %v451 = vadd.f32 %v412, %v421
      %v452 = vadd.f32 %v413, %v421
      %v453 = vadd.f32 %v414, %v421
      %v454 = vadd.f32 %v415, %v421
      %v455 = vmax.f32 %v423, 0.0
      %v456 = vmax.f32 %v424, 0.0
      %v457 = vmax.f32 %v425, 0.0
      %v458 = vmax.f32 %v426, 0.0
      %v459 = vmax.f32 %v427, 0.0
      %v460 = vmax.f32 %v428, 0.0
      %v461 = vmax.f32 %v429, 0.0
      %v462 = vmax.f32 %v430, 0.0
      %v463 = vmax.f32 %v431, 0.0
      %v464 = vmax.f32 %v432, 0.0
      %v465 = vmax.f32 %v433, 0.0
      %v466 = vmax.f32 %v434, 0.0
      %v467 = vmax.f32 %v435, 0.0
      %v468 = vmax.f32 %v436, 0.0
      %v469 = vmax.f32 %v437, 0.0
      %v470 = vmax.f32 %v438, 0.0
      %v471 = vmax.f32 %v439, 0.0
      %v472 = vmax.f32 %v440, 0.0
      %v473 = vmax.f32 %v441, 0.0
      %v474 = vmax.f32 %v442, 0.0
      %v475 = vmax.f32 %v443, 0.0
      %v476 = vmax.f32 %v444, 0.0
      %v477 = vmax.f32 %v445, 0.0
      %v478 = vmax.f32 %v446, 0.0
      %v479 = vmax.f32 %v447, 0.0
      %v480 = vmax.f32 %v448, 0.0
      %v481 = vmax.f32 %v449, 0.0
      %v482 = vmax.f32 %v450, 0.0
      %v483 = vmax.f32 %v451, 0.0
      %v484 = vmax.f32 %v452, 0.0
      %v485 = vmax.f32 %v453, 0.0
      %v486 = vmax.f32 %v454, 0.0
      %s487 = scalar_lea.vmem [#allocation2], 24
      %488 = vst [vmem:[%s487 + $0x1] sm:$0xff] %v455
      %489 = vst [vmem:[%s487 + $0x9] sm:$0xff] %v456
      %490 = vst [vmem:[%s487 + $0x19] sm:$0xff] %v457
      %491 = vst [vmem:[%s487 + $0x21] sm:$0xff] %v458
      %492 = vst [vmem:[%s487 + $0x31] sm:$0xff] %v459
      %493 = vst [vmem:[%s487 + $0x39] sm:$0xff] %v460
      %494 = vst [vmem:[%s487 + $0x49] sm:$0xff] %v461
      %495 = vst [vmem:[%s487 + $0x51] sm:$0xff] %v462
      %496 = vst [vmem:[%s487 + $0x61] sm:$0xff] %v463
      %497 = vst [vmem:[%s487 + $0x69] sm:$0xff] %v464
      %498 = vst [vmem:[%s487 + $0x79] sm:$0xff] %v465
      %499 = vst [vmem:[%s487 + $0x81] sm:$0xff] %v466
      %500 = vst [vmem:[%s487 + $0x91] sm:$0xff] %v467
      %501 = vst [vmem:[%s487 + $0x99] sm:$0xff] %v468
      %502 = vst [vmem:[%s487 + $0xa9] sm:$0xff] %v469
      %503 = vst [vmem:[%s487 + $0xb1] sm:$0xff] %v470
      %504 = vst [vmem:[%s487 + $0xc1] sm:$0xff] %v471
      %505 = vst [vmem:[%s487 + $0xc9] sm:$0xff] %v472
      %506 = vst [vmem:[%s487 + $0xd9] sm:$0xff] %v473
      %507 = vst [vmem:[%s487 + $0xe1] sm:$0xff] %v474
      %508 = vst [vmem:[%s487 + $0xf1] sm:$0xff] %v475
      %509 = vst [vmem:[%s487 + $0xf9] sm:$0xff] %v476
      %510 = vst [vmem:[%s487 + $0x109] sm:$0xff] %v477
      %511 = vst [vmem:[%s487 + $0x111] sm:$0xff] %v478
      %512 = vst [vmem:[%s487 + $0x121] sm:$0xff] %v479
      %513 = vst [vmem:[%s487 + $0x129] sm:$0xff] %v480
      %514 = vst [vmem:[%s487 + $0x139] sm:$0xff] %v481
      %515 = vst [vmem:[%s487 + $0x141] sm:$0xff] %v482
      %516 = vst [vmem:[%s487 + $0x151] sm:$0xff] %v483
      %517 = vst [vmem:[%s487 + $0x159] sm:$0xff] %v484
      %518 = vst [vmem:[%s487 + $0x169] sm:$0xff] %v485
      %519 = vst [vmem:[%s487 + $0x171] sm:$0xff] %v486
      %v520 = vld [vmem:[#allocation2] sm:$0xff]
      %v521 = vld [vmem:[#allocation2 + $0x8] sm:$0xff]
      %v522 = vld [vmem:[#allocation2 + $0x18] sm:$0xff]
      %v523 = vld [vmem:[#allocation2 + $0x20] sm:$0xff]
      %v524 = vld [vmem:[#allocation2 + $0x30] sm:$0xff]
      %v525 = vld [vmem:[#allocation2 + $0x38] sm:$0xff]
      %v526 = vld [vmem:[#allocation2 + $0x48] sm:$0xff]
      %v527 = vld [vmem:[#allocation2 + $0x50] sm:$0xff]
      %v528 = vld [vmem:[#allocation2 + $0x60] sm:$0xff]
      %v529 = vld [vmem:[#allocation2 + $0x68] sm:$0xff]
      %v530 = vld [vmem:[#allocation2 + $0x78] sm:$0xff]
      %v531 = vld [vmem:[#allocation2 + $0x80] sm:$0xff]
      %v532 = vld [vmem:[#allocation2 + $0x90] sm:$0xff]
      %v533 = vld [vmem:[#allocation2 + $0x98] sm:$0xff]
      %v534 = vld [vmem:[#allocation2 + $0xa8] sm:$0xff]
      %v535 = vld [vmem:[#allocation2 + $0xb0] sm:$0xff]
      %v536 = vld [vmem:[#allocation2 + $0xc0] sm:$0xff]
      %v537 = vld [vmem:[#allocation2 + $0xc8] sm:$0xff]
      %v538 = vld [vmem:[#allocation2 + $0xd8] sm:$0xff]
      %v539 = vld [vmem:[#allocation2 + $0xe0] sm:$0xff]
      %v540 = vld [vmem:[#allocation2 + $0xf0] sm:$0xff]
      %v541 = vld [vmem:[#allocation2 + $0xf8] sm:$0xff]
      %v542 = vld [vmem:[#allocation2 + $0x108] sm:$0xff]
      %v543 = vld [vmem:[#allocation2 + $0x110] sm:$0xff]
      %v544 = vld [vmem:[#allocation2 + $0x120] sm:$0xff]
      %v545 = vld [vmem:[#allocation2 + $0x128] sm:$0xff]
      %v546 = vld [vmem:[#allocation2 + $0x138] sm:$0xff]
      %v547 = vld [vmem:[#allocation2 + $0x140] sm:$0xff]
      %v548 = vld [vmem:[#allocation2 + $0x150] sm:$0xff]
      %v549 = vld [vmem:[#allocation2 + $0x158] sm:$0xff]
      %v550 = vld [vmem:[#allocation2 + $0x168] sm:$0xff]
      %v551 = vld [vmem:[#allocation2 + $0x170] sm:$0xff]
      %v552 = vld [vmem:[#allocation2 + $0x180] sm:$0xff]
      %v553 = vld [vmem:[#allocation2 + $0x188] sm:$0xff]
      %v554 = vld [vmem:[#allocation2 + $0x198] sm:$0xff]
      %v555 = vld [vmem:[#allocation2 + $0x1a0] sm:$0xff]
      %v556 = vpack.c.bf16 %v521, %v520
      %v557 = vpack.c.bf16 %v523, %v522
      %v558 = vpack.c.bf16 %v525, %v524
      %v559 = vpack.c.bf16 %v527, %v526
      %v560 = vpack.c.bf16 %v529, %v528
      %v561 = vpack.c.bf16 %v531, %v530
      %v562 = vpack.c.bf16 %v533, %v532
      %v563 = vpack.c.bf16 %v535, %v534
      %v564 = vpack.c.bf16 %v537, %v536
      %v565 = vpack.c.bf16 %v539, %v538
      %v566 = vpack.c.bf16 %v541, %v540
      %v567 = vpack.c.bf16 %v543, %v542
      %v568 = vpack.c.bf16 %v545, %v544
      %v569 = vpack.c.bf16 %v547, %v546
      %v570 = vpack.c.bf16 %v549, %v548
      %v571 = vpack.c.bf16 %v551, %v550
      %v572 = vpack.c.bf16 %v553, %v552
      %v573 = vpack.c.bf16 %v555, %v554
      %v592 = vunpack.c.l.b16 %v556
      %v593 = vunpack.c.h.b16 %v556
      %v594 = vunpack.c.l.b16 %v557
      %v595 = vunpack.c.h.b16 %v557
      %v596 = vunpack.c.l.b16 %v558
      %v597 = vunpack.c.h.b16 %v558
      %v598 = vunpack.c.l.b16 %v559
      %v599 = vunpack.c.h.b16 %v559
      %v600 = vunpack.c.l.b16 %v560
      %v601 = vunpack.c.h.b16 %v560
      %v602 = vunpack.c.l.b16 %v561
      %v603 = vunpack.c.h.b16 %v561
      %v604 = vunpack.c.l.b16 %v562
      %v605 = vunpack.c.h.b16 %v562
      %v606 = vunpack.c.l.b16 %v563
      %v607 = vunpack.c.h.b16 %v563
      %v608 = vunpack.c.l.b16 %v564
      %v609 = vunpack.c.h.b16 %v564
      %v610 = vunpack.c.l.b16 %v565
      %v611 = vunpack.c.h.b16 %v565
      %v612 = vunpack.c.l.b16 %v566
      %v613 = vunpack.c.h.b16 %v566
      %v614 = vunpack.c.l.b16 %v567
      %v615 = vunpack.c.h.b16 %v567
      %v616 = vunpack.c.l.b16 %v568
      %v617 = vunpack.c.h.b16 %v568
      %v618 = vunpack.c.l.b16 %v569
      %v619 = vunpack.c.h.b16 %v569
      %v620 = vunpack.c.l.b16 %v570
      %v621 = vunpack.c.h.b16 %v570
      %v622 = vunpack.c.l.b16 %v571
      %v623 = vunpack.c.h.b16 %v571
      %v624 = vunpack.c.l.b16 %v572
      %v625 = vunpack.c.h.b16 %v572
      %v626 = vunpack.c.l.b16 %v573
      %v627 = vunpack.c.h.b16 %v573
      %v628 = vpack.c.b16 %v592, %v592
      %v629 = vpack.c.b16 %v593, %v593
      %v630 = vpack.c.b16 %v594, %v594
      %v631 = vpack.c.b16 %v595, %v595
      %v632 = vpack.c.b16 %v596, %v596
      %v633 = vpack.c.b16 %v597, %v597
      %v634 = vpack.c.b16 %v598, %v598
      %v635 = vpack.c.b16 %v599, %v599
      %v636 = vpack.c.b16 %v600, %v600
      %v637 = vpack.c.b16 %v601, %v601
      %v638 = vpack.c.b16 %v602, %v602
      %v639 = vpack.c.b16 %v603, %v603
      %v640 = vpack.c.b16 %v604, %v604
      %v641 = vpack.c.b16 %v605, %v605
      %v642 = vpack.c.b16 %v606, %v606
      %v643 = vpack.c.b16 %v607, %v607
      %v644 = vpack.c.b16 %v608, %v608
      %v645 = vpack.c.b16 %v609, %v609
      %v646 = vpack.c.b16 %v610, %v610
      %v647 = vpack.c.b16 %v611, %v611
      %v648 = vpack.c.b16 %v612, %v612
      %v649 = vpack.c.b16 %v613, %v613
      %v650 = vpack.c.b16 %v614, %v614
      %v651 = vpack.c.b16 %v615, %v615
      %v652 = vpack.c.b16 %v616, %v616
      %v653 = vpack.c.b16 %v617, %v617
      %v654 = vpack.c.b16 %v618, %v618
      %v655 = vpack.c.b16 %v619, %v619
      %v656 = vpack.c.b16 %v620, %v620
      %v657 = vpack.c.b16 %v621, %v621
      %v658 = vpack.c.b16 %v622, %v622
      %v659 = vpack.c.b16 %v623, %v623
      %v660 = vpack.c.b16 %v624, %v624
      %v661 = vpack.c.b16 %v625, %v625
      %v662 = vpack.c.b16 %v626, %v626
      %v663 = vpack.c.b16 %v627, %v627
      %700 = vst [vmem:[#allocation3] sm:$0xf] %v628
      %701 = vst [vmem:[#allocation3 + $0xc] sm:$0xf] %v629
      %702 = vst [vmem:[#allocation3 + $0x18] sm:$0xf] %v630
      %703 = vst [vmem:[#allocation3 + $0x24] sm:$0xf] %v631
      %704 = vst [vmem:[#allocation3 + $0x30] sm:$0xf] %v632
      %705 = vst [vmem:[#allocation3 + $0x3c] sm:$0xf] %v633
      %706 = vst [vmem:[#allocation3 + $0x48] sm:$0xf] %v634
      %707 = vst [vmem:[#allocation3 + $0x54] sm:$0xf] %v635
      %708 = vst [vmem:[#allocation3 + $0x60] sm:$0xf] %v636
      %709 = vst [vmem:[#allocation3 + $0x6c] sm:$0xf] %v637
      %710 = vst [vmem:[#allocation3 + $0x78] sm:$0xf] %v638
      %711 = vst [vmem:[#allocation3 + $0x84] sm:$0xf] %v639
      %712 = vst [vmem:[#allocation3 + $0x90] sm:$0xf] %v640
      %713 = vst [vmem:[#allocation3 + $0x9c] sm:$0xf] %v641
      %714 = vst [vmem:[#allocation3 + $0xa8] sm:$0xf] %v642
      %715 = vst [vmem:[#allocation3 + $0xb4] sm:$0xf] %v643
      %716 = vst [vmem:[#allocation3 + $0xc0] sm:$0xf] %v644
      %717 = vst [vmem:[#allocation3 + $0xcc] sm:$0xf] %v645
      %718 = vst [vmem:[#allocation3 + $0xd8] sm:$0xf] %v646
      %719 = vst [vmem:[#allocation3 + $0xe4] sm:$0xf] %v647
      %720 = vst [vmem:[#allocation3 + $0xf0] sm:$0xf] %v648
      %721 = vst [vmem:[#allocation3 + $0xfc] sm:$0xf] %v649
      %722 = vst [vmem:[#allocation3 + $0x108] sm:$0xf] %v650
      %723 = vst [vmem:[#allocation3 + $0x114] sm:$0xf] %v651
      %724 = vst [vmem:[#allocation3 + $0x120] sm:$0xf] %v652
      %725 = vst [vmem:[#allocation3 + $0x12c] sm:$0xf] %v653
      %726 = vst [vmem:[#allocation3 + $0x138] sm:$0xf] %v654
      %727 = vst [vmem:[#allocation3 + $0x144] sm:$0xf] %v655
      %728 = vst [vmem:[#allocation3 + $0x150] sm:$0xf] %v656
      %729 = vst [vmem:[#allocation3 + $0x15c] sm:$0xf] %v657
      %730 = vst [vmem:[#allocation3 + $0x168] sm:$0xf] %v658
      %731 = vst [vmem:[#allocation3 + $0x174] sm:$0xf] %v659
      %732 = vst [vmem:[#allocation3 + $0x180] sm:$0xf] %v660
      %733 = vst [vmem:[#allocation3 + $0x18c] sm:$0xf] %v661
      %734 = vst [vmem:[#allocation3 + $0x198] sm:$0xf] %v662
      %735 = vst [vmem:[#allocation3 + $0x1a4] sm:$0xf] %v663
      %v736 = vld [vmem:[#allocation2 + $0x1] sm:$0xff]
      %v737 = vld [vmem:[#allocation2 + $0x9] sm:$0xff]
      %v738 = vld [vmem:[#allocation2 + $0x19] sm:$0xff]
      %v739 = vld [vmem:[#allocation2 + $0x21] sm:$0xff]
      %v740 = vld [vmem:[#allocation2 + $0x31] sm:$0xff]
      %v741 = vld [vmem:[#allocation2 + $0x39] sm:$0xff]
      %v742 = vld [vmem:[#allocation2 + $0x49] sm:$0xff]
      %v743 = vld [vmem:[#allocation2 + $0x51] sm:$0xff]
      %v744 = vld [vmem:[#allocation2 + $0x61] sm:$0xff]
      %v745 = vld [vmem:[#allocation2 + $0x69] sm:$0xff]
      %v746 = vld [vmem:[#allocation2 + $0x79] sm:$0xff]
      %v747 = vld [vmem:[#allocation2 + $0x81] sm:$0xff]
      %v748 = vld [vmem:[#allocation2 + $0x91] sm:$0xff]
      %v749 = vld [vmem:[#allocation2 + $0x99] sm:$0xff]
      %v750 = vld [vmem:[#allocation2 + $0xa9] sm:$0xff]
      %v751 = vld [vmem:[#allocation2 + $0xb1] sm:$0xff]
      %v752 = vld [vmem:[#allocation2 + $0xc1] sm:$0xff]
      %v753 = vld [vmem:[#allocation2 + $0xc9] sm:$0xff]
      %v754 = vld [vmem:[#allocation2 + $0xd9] sm:$0xff]
      %v755 = vld [vmem:[#allocation2 + $0xe1] sm:$0xff]
      %v756 = vld [vmem:[#allocation2 + $0xf1] sm:$0xff]
      %v757 = vld [vmem:[#allocation2 + $0xf9] sm:$0xff]
      %v758 = vld [vmem:[#allocation2 + $0x109] sm:$0xff]
      %v759 = vld [vmem:[#allocation2 + $0x111] sm:$0xff]
      %v760 = vld [vmem:[#allocation2 + $0x121] sm:$0xff]
      %v761 = vld [vmem:[#allocation2 + $0x129] sm:$0xff]
      %v762 = vld [vmem:[#allocation2 + $0x139] sm:$0xff]
      %v763 = vld [vmem:[#allocation2 + $0x141] sm:$0xff]
      %v764 = vld [vmem:[#allocation2 + $0x151] sm:$0xff]
      %v765 = vld [vmem:[#allocation2 + $0x159] sm:$0xff]
      %v766 = vld [vmem:[#allocation2 + $0x169] sm:$0xff]
      %v767 = vld [vmem:[#allocation2 + $0x171] sm:$0xff]
      %v768 = vld [vmem:[#allocation2 + $0x181] sm:$0xff]
      %v769 = vld [vmem:[#allocation2 + $0x189] sm:$0xff]
      %v770 = vld [vmem:[#allocation2 + $0x199] sm:$0xff]
      %v771 = vld [vmem:[#allocation2 + $0x1a1] sm:$0xff]
      %v772 = vpack.c.bf16 %v737, %v736
      %v773 = vpack.c.bf16 %v739, %v738
      %v774 = vpack.c.bf16 %v741, %v740
      %v775 = vpack.c.bf16 %v743, %v742
      %v776 = vpack.c.bf16 %v745, %v744
      %v777 = vpack.c.bf16 %v747, %v746
      %v778 = vpack.c.bf16 %v749, %v748
      %v779 = vpack.c.bf16 %v751, %v750
      %v780 = vpack.c.bf16 %v753, %v752
      %v781 = vpack.c.bf16 %v755, %v754
      %v782 = vpack.c.bf16 %v757, %v756
      %v783 = vpack.c.bf16 %v759, %v758
      %v784 = vpack.c.bf16 %v761, %v760
      %v785 = vpack.c.bf16 %v763, %v762
      %v786 = vpack.c.bf16 %v765, %v764
      %v787 = vpack.c.bf16 %v767, %v766
      %v788 = vpack.c.bf16 %v769, %v768
      %v789 = vpack.c.bf16 %v771, %v770
      %v808 = vunpack.c.l.b16 %v772
      %v809 = vunpack.c.h.b16 %v772
      %v810 = vunpack.c.l.b16 %v773
      %v811 = vunpack.c.h.b16 %v773
      %v812 = vunpack.c.l.b16 %v774
      %v813 = vunpack.c.h.b16 %v774
      %v814 = vunpack.c.l.b16 %v775
      %v815 = vunpack.c.h.b16 %v775
      %v816 = vunpack.c.l.b16 %v776
      %v817 = vunpack.c.h.b16 %v776
      %v818 = vunpack.c.l.b16 %v777
      %v819 = vunpack.c.h.b16 %v777
      %v820 = vunpack.c.l.b16 %v778
      %v821 = vunpack.c.h.b16 %v778
      %v822 = vunpack.c.l.b16 %v779
      %v823 = vunpack.c.h.b16 %v779
      %v824 = vunpack.c.l.b16 %v780
      %v825 = vunpack.c.h.b16 %v780
      %v826 = vunpack.c.l.b16 %v781
      %v827 = vunpack.c.h.b16 %v781
      %v828 = vunpack.c.l.b16 %v782
      %v829 = vunpack.c.h.b16 %v782
      %v830 = vunpack.c.l.b16 %v783
      %v831 = vunpack.c.h.b16 %v783
      %v832 = vunpack.c.l.b16 %v784
      %v833 = vunpack.c.h.b16 %v784
      %v834 = vunpack.c.l.b16 %v785
      %v835 = vunpack.c.h.b16 %v785
      %v836 = vunpack.c.l.b16 %v786
      %v837 = vunpack.c.h.b16 %v786
      %v838 = vunpack.c.l.b16 %v787
      %v839 = vunpack.c.h.b16 %v787
      %v840 = vunpack.c.l.b16 %v788
      %v841 = vunpack.c.h.b16 %v788
      %v842 = vunpack.c.l.b16 %v789
      %v843 = vunpack.c.h.b16 %v789
      %v844 = vpack.c.b16 %v808, %v808
      %v845 = vpack.c.b16 %v809, %v809
      %v846 = vpack.c.b16 %v810, %v810
      %v847 = vpack.c.b16 %v811, %v811
      %v848 = vpack.c.b16 %v812, %v812
      %v849 = vpack.c.b16 %v813, %v813
      %v850 = vpack.c.b16 %v814, %v814
      %v851 = vpack.c.b16 %v815, %v815
      %v852 = vpack.c.b16 %v816, %v816
      %v853 = vpack.c.b16 %v817, %v817
      %v854 = vpack.c.b16 %v818, %v818
      %v855 = vpack.c.b16 %v819, %v819
      %v856 = vpack.c.b16 %v820, %v820
      %v857 = vpack.c.b16 %v821, %v821
      %v858 = vpack.c.b16 %v822, %v822
      %v859 = vpack.c.b16 %v823, %v823
      %v860 = vpack.c.b16 %v824, %v824
      %v861 = vpack.c.b16 %v825, %v825
      %v862 = vpack.c.b16 %v826, %v826
      %v863 = vpack.c.b16 %v827, %v827
      %v864 = vpack.c.b16 %v828, %v828
      %v865 = vpack.c.b16 %v829, %v829
      %v866 = vpack.c.b16 %v830, %v830
      %v867 = vpack.c.b16 %v831, %v831
      %v868 = vpack.c.b16 %v832, %v832
      %v869 = vpack.c.b16 %v833, %v833
      %v870 = vpack.c.b16 %v834, %v834
      %v871 = vpack.c.b16 %v835, %v835
      %v872 = vpack.c.b16 %v836, %v836
      %v873 = vpack.c.b16 %v837, %v837
      %v874 = vpack.c.b16 %v838, %v838
      %v875 = vpack.c.b16 %v839, %v839
      %v876 = vpack.c.b16 %v840, %v840
      %v877 = vpack.c.b16 %v841, %v841
      %v878 = vpack.c.b16 %v842, %v842
      %v879 = vpack.c.b16 %v843, %v843
      %916 = vst [vmem:[#allocation3 + $0x4] sm:$0xf] %v844
      %917 = vst [vmem:[#allocation3 + $0x10] sm:$0xf] %v845
      %918 = vst [vmem:[#allocation3 + $0x1c] sm:$0xf] %v846
      %919 = vst [vmem:[#allocation3 + $0x28] sm:$0xf] %v847
      %920 = vst [vmem:[#allocation3 + $0x34] sm:$0xf] %v848
      %921 = vst [vmem:[#allocation3 + $0x40] sm:$0xf] %v849
      %922 = vst [vmem:[#allocation3 + $0x4c] sm:$0xf] %v850
      %923 = vst [vmem:[#allocation3 + $0x58] sm:$0xf] %v851
      %924 = vst [vmem:[#allocation3 + $0x64] sm:$0xf] %v852
      %925 = vst [vmem:[#allocation3 + $0x70] sm:$0xf] %v853
      %926 = vst [vmem:[#allocation3 + $0x7c] sm:$0xf] %v854
      %927 = vst [vmem:[#allocation3 + $0x88] sm:$0xf] %v855
      %928 = vst [vmem:[#allocation3 + $0x94] sm:$0xf] %v856
      %929 = vst [vmem:[#allocation3 + $0xa0] sm:$0xf] %v857
      %930 = vst [vmem:[#allocation3 + $0xac] sm:$0xf] %v858
      %931 = vst [vmem:[#allocation3 + $0xb8] sm:$0xf] %v859
      %932 = vst [vmem:[#allocation3 + $0xc4] sm:$0xf] %v860
      %933 = vst [vmem:[#allocation3 + $0xd0] sm:$0xf] %v861
      %934 = vst [vmem:[#allocation3 + $0xdc] sm:$0xf] %v862
      %935 = vst [vmem:[#allocation3 + $0xe8] sm:$0xf] %v863
      %936 = vst [vmem:[#allocation3 + $0xf4] sm:$0xf] %v864
      %937 = vst [vmem:[#allocation3 + $0x100] sm:$0xf] %v865
      %938 = vst [vmem:[#allocation3 + $0x10c] sm:$0xf] %v866
      %939 = vst [vmem:[#allocation3 + $0x118] sm:$0xf] %v867
      %940 = vst [vmem:[#allocation3 + $0x124] sm:$0xf] %v868
      %941 = vst [vmem:[#allocation3 + $0x130] sm:$0xf] %v869
      %942 = vst [vmem:[#allocation3 + $0x13c] sm:$0xf] %v870
      %943 = vst [vmem:[#allocation3 + $0x148] sm:$0xf] %v871
      %944 = vst [vmem:[#allocation3 + $0x154] sm:$0xf] %v872
      %945 = vst [vmem:[#allocation3 + $0x160] sm:$0xf] %v873
      %946 = vst [vmem:[#allocation3 + $0x16c] sm:$0xf] %v874
      %947 = vst [vmem:[#allocation3 + $0x178] sm:$0xf] %v875
      %948 = vst [vmem:[#allocation3 + $0x184] sm:$0xf] %v876
      %949 = vst [vmem:[#allocation3 + $0x190] sm:$0xf] %v877
      %950 = vst [vmem:[#allocation3 + $0x19c] sm:$0xf] %v878
      %951 = vst [vmem:[#allocation3 + $0x1a8] sm:$0xf] %v879
      %v952 = vld [vmem:[#allocation2 + $0x2] sm:$0xff]
      %v953 = vld [vmem:[#allocation2 + $0xa] sm:$0xff]
      %v954 = vld [vmem:[#allocation2 + $0x1a] sm:$0xff]
      %v955 = vld [vmem:[#allocation2 + $0x22] sm:$0xff]
      %v956 = vld [vmem:[#allocation2 + $0x32] sm:$0xff]
      %v957 = vld [vmem:[#allocation2 + $0x3a] sm:$0xff]
      %v958 = vld [vmem:[#allocation2 + $0x4a] sm:$0xff]
      %v959 = vld [vmem:[#allocation2 + $0x52] sm:$0xff]
      %v960 = vld [vmem:[#allocation2 + $0x62] sm:$0xff]
      %v961 = vld [vmem:[#allocation2 + $0x6a] sm:$0xff]
      %v962 = vld [vmem:[#allocation2 + $0x7a] sm:$0xff]
      %v963 = vld [vmem:[#allocation2 + $0x82] sm:$0xff]
      %v964 = vld [vmem:[#allocation2 + $0x92] sm:$0xff]
      %v965 = vld [vmem:[#allocation2 + $0x9a] sm:$0xff]
      %v966 = vld [vmem:[#allocation2 + $0xaa] sm:$0xff]
      %v967 = vld [vmem:[#allocation2 + $0xb2] sm:$0xff]
      %v968 = vld [vmem:[#allocation2 + $0xc2] sm:$0xff]
      %v969 = vld [vmem:[#allocation2 + $0xca] sm:$0xff]
      %v970 = vld [vmem:[#allocation2 + $0xda] sm:$0xff]
      %v971 = vld [vmem:[#allocation2 + $0xe2] sm:$0xff]
      %v972 = vld [vmem:[#allocation2 + $0xf2] sm:$0xff]
      %v973 = vld [vmem:[#allocation2 + $0xfa] sm:$0xff]
      %v974 = vld [vmem:[#allocation2 + $0x10a] sm:$0xff]
      %v975 = vld [vmem:[#allocation2 + $0x112] sm:$0xff]
      %v976 = vld [vmem:[#allocation2 + $0x122] sm:$0xff]
      %v977 = vld [vmem:[#allocation2 + $0x12a] sm:$0xff]
      %v978 = vld [vmem:[#allocation2 + $0x13a] sm:$0xff]
      %v979 = vld [vmem:[#allocation2 + $0x142] sm:$0xff]
      %v980 = vld [vmem:[#allocation2 + $0x152] sm:$0xff]
      %v981 = vld [vmem:[#allocation2 + $0x15a] sm:$0xff]
      %v982 = vld [vmem:[#allocation2 + $0x16a] sm:$0xff]
      %v983 = vld [vmem:[#allocation2 + $0x172] sm:$0xff]
      %v984 = vld [vmem:[#allocation2 + $0x182] sm:$0xff]
      %v985 = vld [vmem:[#allocation2 + $0x18a] sm:$0xff]
      %v986 = vld [vmem:[#allocation2 + $0x19a] sm:$0xff]
      %v987 = vld [vmem:[#allocation2 + $0x1a2] sm:$0xff]
      %v988 = vpack.c.bf16 %v953, %v952
      %v989 = vpack.c.bf16 %v955, %v954
      %v990 = vpack.c.bf16 %v957, %v956
      %v991 = vpack.c.bf16 %v959, %v958
      %v992 = vpack.c.bf16 %v961, %v960
      %v993 = vpack.c.bf16 %v963, %v962
      %v994 = vpack.c.bf16 %v965, %v964
      %v995 = vpack.c.bf16 %v967, %v966
      %v996 = vpack.c.bf16 %v969, %v968
      %v997 = vpack.c.bf16 %v971, %v970
      %v998 = vpack.c.bf16 %v973, %v972
      %v999 = vpack.c.bf16 %v975, %v974
      %v1000 = vpack.c.bf16 %v977, %v976
      %v1001 = vpack.c.bf16 %v979, %v978
      %v1002 = vpack.c.bf16 %v981, %v980
      %v1003 = vpack.c.bf16 %v983, %v982
      %v1004 = vpack.c.bf16 %v985, %v984
      %v1005 = vpack.c.bf16 %v987, %v986
      %v1024 = vunpack.c.l.b16 %v988
      %v1025 = vunpack.c.h.b16 %v988
      %v1026 = vunpack.c.l.b16 %v989
      %v1027 = vunpack.c.h.b16 %v989
      %v1028 = vunpack.c.l.b16 %v990
      %v1029 = vunpack.c.h.b16 %v990
      %v1030 = vunpack.c.l.b16 %v991
      %v1031 = vunpack.c.h.b16 %v991
      %v1032 = vunpack.c.l.b16 %v992
      %v1033 = vunpack.c.h.b16 %v992
      %v1034 = vunpack.c.l.b16 %v993
      %v1035 = vunpack.c.h.b16 %v993
      %v1036 = vunpack.c.l.b16 %v994
      %v1037 = vunpack.c.h.b16 %v994
      %v1038 = vunpack.c.l.b16 %v995
      %v1039 = vunpack.c.h.b16 %v995
      %v1040 = vunpack.c.l.b16 %v996
      %v1041 = vunpack.c.h.b16 %v996
      %v1042 = vunpack.c.l.b16 %v997
      %v1043 = vunpack.c.h.b16 %v997
      %v1044 = vunpack.c.l.b16 %v998
      %v1045 = vunpack.c.h.b16 %v998
      %v1046 = vunpack.c.l.b16 %v999
      %v1047 = vunpack.c.h.b16 %v999
      %v1048 = vunpack.c.l.b16 %v1000
      %v1049 = vunpack.c.h.b16 %v1000
      %v1050 = vunpack.c.l.b16 %v1001
      %v1051 = vunpack.c.h.b16 %v1001
      %v1052 = vunpack.c.l.b16 %v1002
      %v1053 = vunpack.c.h.b16 %v1002
      %v1054 = vunpack.c.l.b16 %v1003
      %v1055 = vunpack.c.h.b16 %v1003
      %v1056 = vunpack.c.l.b16 %v1004
      %v1057 = vunpack.c.h.b16 %v1004
      %v1058 = vunpack.c.l.b16 %v1005
      %v1059 = vunpack.c.h.b16 %v1005
      %v1060 = vpack.c.b16 %v1024, %v1024
      %v1061 = vpack.c.b16 %v1025, %v1025
      %v1062 = vpack.c.b16 %v1026, %v1026
      %v1063 = vpack.c.b16 %v1027, %v1027
      %v1064 = vpack.c.b16 %v1028, %v1028
      %v1065 = vpack.c.b16 %v1029, %v1029
      %v1066 = vpack.c.b16 %v1030, %v1030
      %v1067 = vpack.c.b16 %v1031, %v1031
      %v1068 = vpack.c.b16 %v1032, %v1032
      %v1069 = vpack.c.b16 %v1033, %v1033
      %v1070 = vpack.c.b16 %v1034, %v1034
      %v1071 = vpack.c.b16 %v1035, %v1035
      %v1072 = vpack.c.b16 %v1036, %v1036
      %v1073 = vpack.c.b16 %v1037, %v1037
      %v1074 = vpack.c.b16 %v1038, %v1038
      %v1075 = vpack.c.b16 %v1039, %v1039
      %v1076 = vpack.c.b16 %v1040, %v1040
      %v1077 = vpack.c.b16 %v1041, %v1041
      %v1078 = vpack.c.b16 %v1042, %v1042
      %v1079 = vpack.c.b16 %v1043, %v1043
      %v1080 = vpack.c.b16 %v1044, %v1044
      %v1081 = vpack.c.b16 %v1045, %v1045
      %v1082 = vpack.c.b16 %v1046, %v1046
      %v1083 = vpack.c.b16 %v1047, %v1047
      %v1084 = vpack.c.b16 %v1048, %v1048
      %v1085 = vpack.c.b16 %v1049, %v1049
      %v1086 = vpack.c.b16 %v1050, %v1050
      %v1087 = vpack.c.b16 %v1051, %v1051
      %v1088 = vpack.c.b16 %v1052, %v1052
      %v1089 = vpack.c.b16 %v1053, %v1053
      %v1090 = vpack.c.b16 %v1054, %v1054
      %v1091 = vpack.c.b16 %v1055, %v1055
      %v1092 = vpack.c.b16 %v1056, %v1056
      %v1093 = vpack.c.b16 %v1057, %v1057
      %v1094 = vpack.c.b16 %v1058, %v1058
      %v1095 = vpack.c.b16 %v1059, %v1059
      %1132 = vst [vmem:[#allocation3 + $0x8] sm:$0xf] %v1060
      %1133 = vst [vmem:[#allocation3 + $0x14] sm:$0xf] %v1061
      %1134 = vst [vmem:[#allocation3 + $0x20] sm:$0xf] %v1062
      %1135 = vst [vmem:[#allocation3 + $0x2c] sm:$0xf] %v1063
      %1136 = vst [vmem:[#allocation3 + $0x38] sm:$0xf] %v1064
      %1137 = vst [vmem:[#allocation3 + $0x44] sm:$0xf] %v1065
      %1138 = vst [vmem:[#allocation3 + $0x50] sm:$0xf] %v1066
      %1139 = vst [vmem:[#allocation3 + $0x5c] sm:$0xf] %v1067
      %1140 = vst [vmem:[#allocation3 + $0x68] sm:$0xf] %v1068
      %1141 = vst [vmem:[#allocation3 + $0x74] sm:$0xf] %v1069
      %1142 = vst [vmem:[#allocation3 + $0x80] sm:$0xf] %v1070
      %1143 = vst [vmem:[#allocation3 + $0x8c] sm:$0xf] %v1071
      %1144 = vst [vmem:[#allocation3 + $0x98] sm:$0xf] %v1072
      %1145 = vst [vmem:[#allocation3 + $0xa4] sm:$0xf] %v1073
      %1146 = vst [vmem:[#allocation3 + $0xb0] sm:$0xf] %v1074
      %1147 = vst [vmem:[#allocation3 + $0xbc] sm:$0xf] %v1075
      %1148 = vst [vmem:[#allocation3 + $0xc8] sm:$0xf] %v1076
      %1149 = vst [vmem:[#allocation3 + $0xd4] sm:$0xf] %v1077
      %1150 = vst [vmem:[#allocation3 + $0xe0] sm:$0xf] %v1078
      %1151 = vst [vmem:[#allocation3 + $0xec] sm:$0xf] %v1079
      %1152 = vst [vmem:[#allocation3 + $0xf8] sm:$0xf] %v1080
      %1153 = vst [vmem:[#allocation3 + $0x104] sm:$0xf] %v1081
      %1154 = vst [vmem:[#allocation3 + $0x110] sm:$0xf] %v1082
      %1155 = vst [vmem:[#allocation3 + $0x11c] sm:$0xf] %v1083
      %1156 = vst [vmem:[#allocation3 + $0x128] sm:$0xf] %v1084
      %1157 = vst [vmem:[#allocation3 + $0x134] sm:$0xf] %v1085
      %1158 = vst [vmem:[#allocation3 + $0x140] sm:$0xf] %v1086
      %1159 = vst [vmem:[#allocation3 + $0x14c] sm:$0xf] %v1087
      %1160 = vst [vmem:[#allocation3 + $0x158] sm:$0xf] %v1088
      %1161 = vst [vmem:[#allocation3 + $0x164] sm:$0xf] %v1089
      %1162 = vst [vmem:[#allocation3 + $0x170] sm:$0xf] %v1090
      %1163 = vst [vmem:[#allocation3 + $0x17c] sm:$0xf] %v1091
      %1164 = vst [vmem:[#allocation3 + $0x188] sm:$0xf] %v1092
      %1165 = vst [vmem:[#allocation3 + $0x194] sm:$0xf] %v1093
      %1166 = vst [vmem:[#allocation3 + $0x1a0] sm:$0xf] %v1094
      %1167 = vst [vmem:[#allocation3 + $0x1ac] sm:$0xf] %v1095
      %v1168 = vld [vmem:[#allocation3] sm:$0xff]
      %v1169 = vld [vmem:[#allocation3 + $0x8] sm:$0xf]
      %v1170 = vld [vmem:[#allocation3 + $0xc] sm:$0xff]
      %v1171 = vld [vmem:[#allocation3 + $0x14] sm:$0xf]
      %v1172 = vld [vmem:[#allocation3 + $0x18] sm:$0xff]
      %v1173 = vld [vmem:[#allocation3 + $0x20] sm:$0xf]
      %v1174 = vld [vmem:[#allocation3 + $0x24] sm:$0xff]
      %v1175 = vld [vmem:[#allocation3 + $0x2c] sm:$0xf]
      %v1176 = vld [vmem:[#allocation3 + $0x30] sm:$0xff]
      %v1177 = vld [vmem:[#allocation3 + $0x38] sm:$0xf]
      %v1178 = vld [vmem:[#allocation3 + $0x3c] sm:$0xff]
      %v1179 = vld [vmem:[#allocation3 + $0x44] sm:$0xf]
      %v1180 = vld [vmem:[#allocation3 + $0x48] sm:$0xff]
      %v1181 = vld [vmem:[#allocation3 + $0x50] sm:$0xf]
      %v1182 = vld [vmem:[#allocation3 + $0x54] sm:$0xff]
      %v1183 = vld [vmem:[#allocation3 + $0x5c] sm:$0xf]
      %v1184 = vld [vmem:[#allocation3 + $0x60] sm:$0xff]
      %v1185 = vld [vmem:[#allocation3 + $0x68] sm:$0xf]
      %v1186 = vld [vmem:[#allocation3 + $0x6c] sm:$0xff]
      %v1187 = vld [vmem:[#allocation3 + $0x74] sm:$0xf]
      %v1188 = vld [vmem:[#allocation3 + $0x78] sm:$0xff]
      %v1189 = vld [vmem:[#allocation3 + $0x80] sm:$0xf]
      %v1190 = vld [vmem:[#allocation3 + $0x84] sm:$0xff]
      %v1191 = vld [vmem:[#allocation3 + $0x8c] sm:$0xf]
      %v1192 = vld [vmem:[#allocation3 + $0x90] sm:$0xff]
      %v1193 = vld [vmem:[#allocation3 + $0x98] sm:$0xf]
      %v1194 = vld [vmem:[#allocation3 + $0x9c] sm:$0xff]
      %v1195 = vld [vmem:[#allocation3 + $0xa4] sm:$0xf]
      %v1196 = vld [vmem:[#allocation3 + $0xa8] sm:$0xff]
      %v1197 = vld [vmem:[#allocation3 + $0xb0] sm:$0xf]
      %v1198 = vld [vmem:[#allocation3 + $0xb4] sm:$0xff]
      %v1199 = vld [vmem:[#allocation3 + $0xbc] sm:$0xf]
      %v1200 = vld [vmem:[#allocation3 + $0xc0] sm:$0xff]
      %v1201 = vld [vmem:[#allocation3 + $0xc8] sm:$0xf]
      %v1202 = vld [vmem:[#allocation3 + $0xcc] sm:$0xff]
      %v1203 = vld [vmem:[#allocation3 + $0xd4] sm:$0xf]
      %v1204 = vld [vmem:[#allocation3 + $0xd8] sm:$0xff]
      %v1205 = vld [vmem:[#allocation3 + $0xe0] sm:$0xf]
      %v1206 = vld [vmem:[#allocation3 + $0xe4] sm:$0xff]
      %v1207 = vld [vmem:[#allocation3 + $0xec] sm:$0xf]
      %v1208 = vld [vmem:[#allocation3 + $0xf0] sm:$0xff]
      %v1209 = vld [vmem:[#allocation3 + $0xf8] sm:$0xf]
      %v1210 = vld [vmem:[#allocation3 + $0xfc] sm:$0xff]
      %v1211 = vld [vmem:[#allocation3 + $0x104] sm:$0xf]
      %v1212 = vld [vmem:[#allocation3 + $0x108] sm:$0xff]
      %v1213 = vld [vmem:[#allocation3 + $0x110] sm:$0xf]
      %v1214 = vld [vmem:[#allocation3 + $0x114] sm:$0xff]
      %v1215 = vld [vmem:[#allocation3 + $0x11c] sm:$0xf]
      %v1216 = vld [vmem:[#allocation3 + $0x120] sm:$0xff]
      %v1217 = vld [vmem:[#allocation3 + $0x128] sm:$0xf]
      %v1218 = vld [vmem:[#allocation3 + $0x12c] sm:$0xff]
      %v1219 = vld [vmem:[#allocation3 + $0x134] sm:$0xf]
      %v1220 = vld [vmem:[#allocation3 + $0x138] sm:$0xff]
      %v1221 = vld [vmem:[#allocation3 + $0x140] sm:$0xf]
      %v1222 = vld [vmem:[#allocation3 + $0x144] sm:$0xff]
      %v1223 = vld [vmem:[#allocation3 + $0x14c] sm:$0xf]
      %v1224 = vld [vmem:[#allocation3 + $0x150] sm:$0xff]
      %v1225 = vld [vmem:[#allocation3 + $0x158] sm:$0xf]
      %v1226 = vld [vmem:[#allocation3 + $0x15c] sm:$0xff]
      %v1227 = vld [vmem:[#allocation3 + $0x164] sm:$0xf]
      %v1228 = vld [vmem:[#allocation3 + $0x168] sm:$0xff]
      %v1229 = vld [vmem:[#allocation3 + $0x170] sm:$0xf]
      %v1230 = vld [vmem:[#allocation3 + $0x174] sm:$0xff]
      %v1231 = vld [vmem:[#allocation3 + $0x17c] sm:$0xf]
      %v1232 = vld [vmem:[%s3] sm:$0xf]
      %v1233 = vld [vmem:[%s3 + $0x4] sm:$0xf]
      %v1234 = vld [vmem:[%s3 + $0x8] sm:$0xf]
      %v1235 = vld [vmem:[%s3 + $0xc] sm:$0xf]
      %v1236 = vld [vmem:[%s3 + $0x10] sm:$0xf]
      %v1237 = vld [vmem:[%s3 + $0x14] sm:$0xf]
      %v1238 = vld [vmem:[%s3 + $0x18] sm:$0xf]
      %v1239 = vld [vmem:[%s3 + $0x1c] sm:$0xf]
      %v1240 = vld [vmem:[%s3 + $0x20] sm:$0xf]
      %v1241 = vld [vmem:[%s3 + $0x24] sm:$0xf]
      %v1242 = vld [vmem:[%s3 + $0x28] sm:$0xf]
      %v1243 = vld [vmem:[%s3 + $0x2c] sm:$0xf]
      %v1244 = vld [vmem:[%s3 + $0x30] sm:$0xf]
      %v1245 = vld [vmem:[%s3 + $0x34] sm:$0xf]
      %v1246 = vld [vmem:[%s3 + $0x38] sm:$0xf]
      %v1247 = vld [vmem:[%s3 + $0x3c] sm:$0xf]
      %v1248 = vld [vmem:[%s3 + $0x40] sm:$0xf]
      %v1249 = vld [vmem:[%s3 + $0x44] sm:$0xf]
      %v1250 = vld [vmem:[%s3 + $0x48] sm:$0xf]
      %v1251 = vld [vmem:[%s3 + $0x4c] sm:$0xf]
      %v1252 = vld [vmem:[%s3 + $0x50] sm:$0xf]
      %v1253 = vld [vmem:[%s3 + $0x54] sm:$0xf]
      %v1254 = vld [vmem:[%s3 + $0x58] sm:$0xf]
      %v1255 = vld [vmem:[%s3 + $0x5c] sm:$0xf]
      %v1256 = vld [vmem:[%s3 + $0x60] sm:$0xf]
      %v1257 = vld [vmem:[%s3 + $0x64] sm:$0xf]
      %v1258 = vld [vmem:[%s3 + $0x68] sm:$0xf]
      %v1259 = vld [vmem:[%s3 + $0x6c] sm:$0xf]
      %v1260 = vld [vmem:[%s3 + $0x70] sm:$0xf]
      %v1261 = vld [vmem:[%s3 + $0x74] sm:$0xf]
      %v1262 = vld [vmem:[%s3 + $0x78] sm:$0xf]
      %v1263 = vld [vmem:[%s3 + $0x7c] sm:$0xf]
      %v1264 = vld [vmem:[%s3 + $0x80] sm:$0xf]
      %v1265 = vld [vmem:[%s3 + $0x84] sm:$0xf]
      %v1266 = vld [vmem:[%s3 + $0x88] sm:$0xf]
      %v1267 = vld [vmem:[%s3 + $0x8c] sm:$0xf]
      %v1268 = vld [vmem:[%s3 + $0x90] sm:$0xf]
      %v1269 = vld [vmem:[%s3 + $0x94] sm:$0xf]
      %v1270 = vld [vmem:[%s3 + $0x98] sm:$0xf]
      %v1271 = vld [vmem:[%s3 + $0x9c] sm:$0xf]
      %v1272 = vld [vmem:[%s3 + $0xa0] sm:$0xf]
      %v1273 = vld [vmem:[%s3 + $0xa4] sm:$0xf]
      %v1274 = vld [vmem:[%s3 + $0xa8] sm:$0xf]
      %v1275 = vld [vmem:[%s3 + $0xac] sm:$0xf]
      %v1276 = vld [vmem:[%s3 + $0xb0] sm:$0xf]
      %v1277 = vld [vmem:[%s3 + $0xb4] sm:$0xf]
      %v1278 = vld [vmem:[%s3 + $0xb8] sm:$0xf]
      %v1279 = vld [vmem:[%s3 + $0xbc] sm:$0xf]
      %v1344 = vunpack.c.l.b16 %v1168
      %v1345 = vunpack.c.h.b16 %v1168
      %v1346 = vunpack.c.l.b16 %v1169
      %v1347 = vunpack.c.l.b16 %v1170
      %v1348 = vunpack.c.h.b16 %v1170
      %v1349 = vunpack.c.l.b16 %v1171
      %v1350 = vunpack.c.l.b16 %v1172
      %v1351 = vunpack.c.h.b16 %v1172
      %v1352 = vunpack.c.l.b16 %v1173
      %v1353 = vunpack.c.l.b16 %v1174
      %v1354 = vunpack.c.h.b16 %v1174
      %v1355 = vunpack.c.l.b16 %v1175
      %v1356 = vunpack.c.l.b16 %v1176
      %v1357 = vunpack.c.h.b16 %v1176
      %v1358 = vunpack.c.l.b16 %v1177
      %v1359 = vunpack.c.l.b16 %v1178
      %v1360 = vunpack.c.h.b16 %v1178
      %v1361 = vunpack.c.l.b16 %v1179
      %v1362 = vunpack.c.l.b16 %v1180
      %v1363 = vunpack.c.h.b16 %v1180
      %v1364 = vunpack.c.l.b16 %v1181
      %v1365 = vunpack.c.l.b16 %v1182
      %v1366 = vunpack.c.h.b16 %v1182
      %v1367 = vunpack.c.l.b16 %v1183
      %v1368 = vunpack.c.l.b16 %v1184
      %v1369 = vunpack.c.h.b16 %v1184
      %v1370 = vunpack.c.l.b16 %v1185
      %v1371 = vunpack.c.l.b16 %v1186
      %v1372 = vunpack.c.h.b16 %v1186
      %v1373 = vunpack.c.l.b16 %v1187
      %v1374 = vunpack.c.l.b16 %v1188
      %v1375 = vunpack.c.h.b16 %v1188
      %v1376 = vunpack.c.l.b16 %v1189
      %v1377 = vunpack.c.l.b16 %v1190
      %v1378 = vunpack.c.h.b16 %v1190
      %v1379 = vunpack.c.l.b16 %v1191
      %v1380 = vunpack.c.l.b16 %v1192
      %v1381 = vunpack.c.h.b16 %v1192
      %v1382 = vunpack.c.l.b16 %v1193
      %v1383 = vunpack.c.l.b16 %v1194
      %v1384 = vunpack.c.h.b16 %v1194
      %v1385 = vunpack.c.l.b16 %v1195
      %v1386 = vunpack.c.l.b16 %v1196
      %v1387 = vunpack.c.h.b16 %v1196
      %v1388 = vunpack.c.l.b16 %v1197
      %v1389 = vunpack.c.l.b16 %v1198
      %v1390 = vunpack.c.h.b16 %v1198
      %v1391 = vunpack.c.l.b16 %v1199
      %v1392 = vunpack.c.l.b16 %v1200
      %v1393 = vunpack.c.h.b16 %v1200
      %v1394 = vunpack.c.l.b16 %v1201
      %v1395 = vunpack.c.l.b16 %v1202
      %v1396 = vunpack.c.h.b16 %v1202
      %v1397 = vunpack.c.l.b16 %v1203
      %v1398 = vunpack.c.l.b16 %v1204
      %v1399 = vunpack.c.h.b16 %v1204
      %v1400 = vunpack.c.l.b16 %v1205
      %v1401 = vunpack.c.l.b16 %v1206
      %v1402 = vunpack.c.h.b16 %v1206
      %v1403 = vunpack.c.l.b16 %v1207
      %v1404 = vunpack.c.l.b16 %v1208
      %v1405 = vunpack.c.h.b16 %v1208
      %v1406 = vunpack.c.l.b16 %v1209
      %v1407 = vunpack.c.l.b16 %v1210
      %v1408 = vunpack.c.h.b16 %v1210
      %v1409 = vunpack.c.l.b16 %v1211
      %v1410 = vunpack.c.l.b16 %v1212
      %v1411 = vunpack.c.h.b16 %v1212
      %v1412 = vunpack.c.l.b16 %v1213
      %v1413 = vunpack.c.l.b16 %v1214
      %v1414 = vunpack.c.h.b16 %v1214
      %v1415 = vunpack.c.l.b16 %v1215
      %v1416 = vunpack.c.l.b16 %v1216
      %v1417 = vunpack.c.h.b16 %v1216
      %v1418 = vunpack.c.l.b16 %v1217
      %v1419 = vunpack.c.l.b16 %v1218
      %v1420 = vunpack.c.h.b16 %v1218
      %v1421 = vunpack.c.l.b16 %v1219
      %v1422 = vunpack.c.l.b16 %v1220
      %v1423 = vunpack.c.h.b16 %v1220
      %v1424 = vunpack.c.l.b16 %v1221
      %v1425 = vunpack.c.l.b16 %v1222
      %v1426 = vunpack.c.h.b16 %v1222
      %v1427 = vunpack.c.l.b16 %v1223
      %v1428 = vunpack.c.l.b16 %v1224
      %v1429 = vunpack.c.h.b16 %v1224
      %v1430 = vunpack.c.l.b16 %v1225
      %v1431 = vunpack.c.l.b16 %v1226
      %v1432 = vunpack.c.h.b16 %v1226
      %v1433 = vunpack.c.l.b16 %v1227
      %v1434 = vunpack.c.l.b16 %v1228
      %v1435 = vunpack.c.h.b16 %v1228
      %v1436 = vunpack.c.l.b16 %v1229
      %v1437 = vunpack.c.l.b16 %v1230
      %v1438 = vunpack.c.h.b16 %v1230
      %v1439 = vunpack.c.l.b16 %v1231
      %v1440 = vpack.c.b16 %v1347, %v1344
      %v1441 = vpack.c.b16 %v1348, %v1345
      %v1442 = vpack.c.b16 %v1349, %v1346
      %v1443 = vpack.c.b16 %v1353, %v1350
      %v1444 = vpack.c.b16 %v1354, %v1351
      %v1445 = vpack.c.b16 %v1355, %v1352
      %v1446 = vpack.c.b16 %v1359, %v1356
      %v1447 = vpack.c.b16 %v1360, %v1357
      %v1448 = vpack.c.b16 %v1361, %v1358
      %v1449 = vpack.c.b16 %v1365, %v1362
      %v1450 = vpack.c.b16 %v1366, %v1363
      %v1451 = vpack.c.b16 %v1367, %v1364
      %v1452 = vpack.c.b16 %v1371, %v1368
      %v1453 = vpack.c.b16 %v1372, %v1369
      %v1454 = vpack.c.b16 %v1373, %v1370
      %v1455 = vpack.c.b16 %v1377, %v1374
      %v1456 = vpack.c.b16 %v1378, %v1375
      %v1457 = vpack.c.b16 %v1379, %v1376
      %v1458 = vpack.c.b16 %v1383, %v1380
      %v1459 = vpack.c.b16 %v1384, %v1381
      %v1460 = vpack.c.b16 %v1385, %v1382
      %v1461 = vpack.c.b16 %v1389, %v1386
      %v1462 = vpack.c.b16 %v1390, %v1387
      %v1463 = vpack.c.b16 %v1391, %v1388
      %v1464 = vpack.c.b16 %v1395, %v1392
      %v1465 = vpack.c.b16 %v1396, %v1393
      %v1466 = vpack.c.b16 %v1397, %v1394
      %v1467 = vpack.c.b16 %v1401, %v1398
      %v1468 = vpack.c.b16 %v1402, %v1399
      %v1469 = vpack.c.b16 %v1403, %v1400
      %v1470 = vpack.c.b16 %v1407, %v1404
      %v1471 = vpack.c.b16 %v1408, %v1405
      %v1472 = vpack.c.b16 %v1409, %v1406
      %v1473 = vpack.c.b16 %v1413, %v1410
      %v1474 = vpack.c.b16 %v1414, %v1411
      %v1475 = vpack.c.b16 %v1415, %v1412
      %v1476 = vpack.c.b16 %v1419, %v1416
      %v1477 = vpack.c.b16 %v1420, %v1417
      %v1478 = vpack.c.b16 %v1421, %v1418
      %v1479 = vpack.c.b16 %v1425, %v1422
      %v1480 = vpack.c.b16 %v1426, %v1423
      %v1481 = vpack.c.b16 %v1427, %v1424
      %v1482 = vpack.c.b16 %v1431, %v1428
      %v1483 = vpack.c.b16 %v1432, %v1429
      %v1484 = vpack.c.b16 %v1433, %v1430
      %v1485 = vpack.c.b16 %v1437, %v1434
      %v1486 = vpack.c.b16 %v1438, %v1435
      %v1487 = vpack.c.b16 %v1439, %v1436
      %v1584 = vunpack.c.l.b16 %v1232
      %v1585 = vunpack.c.l.b16 %v1233
      %v1586 = vunpack.c.l.b16 %v1234
      %v1587 = vunpack.c.l.b16 %v1235
      %v1588 = vunpack.c.l.b16 %v1236
      %v1589 = vunpack.c.l.b16 %v1237
      %v1590 = vunpack.c.l.b16 %v1238
      %v1591 = vunpack.c.l.b16 %v1239
      %v1592 = vunpack.c.l.b16 %v1240
      %v1593 = vunpack.c.l.b16 %v1241
      %v1594 = vunpack.c.l.b16 %v1242
      %v1595 = vunpack.c.l.b16 %v1243
      %v1596 = vunpack.c.l.b16 %v1244
      %v1597 = vunpack.c.l.b16 %v1245
      %v1598 = vunpack.c.l.b16 %v1246
      %v1599 = vunpack.c.l.b16 %v1247
      %v1600 = vunpack.c.l.b16 %v1248
      %v1601 = vunpack.c.l.b16 %v1249
      %v1602 = vunpack.c.l.b16 %v1250
      %v1603 = vunpack.c.l.b16 %v1251
      %v1604 = vunpack.c.l.b16 %v1252
      %v1605 = vunpack.c.l.b16 %v1253
      %v1606 = vunpack.c.l.b16 %v1254
      %v1607 = vunpack.c.l.b16 %v1255
      %v1608 = vunpack.c.l.b16 %v1256
      %v1609 = vunpack.c.l.b16 %v1257
      %v1610 = vunpack.c.l.b16 %v1258
      %v1611 = vunpack.c.l.b16 %v1259
      %v1612 = vunpack.c.l.b16 %v1260
      %v1613 = vunpack.c.l.b16 %v1261
      %v1614 = vunpack.c.l.b16 %v1262
      %v1615 = vunpack.c.l.b16 %v1263
      %v1616 = vunpack.c.l.b16 %v1264
      %v1617 = vunpack.c.l.b16 %v1265
      %v1618 = vunpack.c.l.b16 %v1266
      %v1619 = vunpack.c.l.b16 %v1267
      %v1620 = vunpack.c.l.b16 %v1268
      %v1621 = vunpack.c.l.b16 %v1269
      %v1622 = vunpack.c.l.b16 %v1270
      %v1623 = vunpack.c.l.b16 %v1271
      %v1624 = vunpack.c.l.b16 %v1272
      %v1625 = vunpack.c.l.b16 %v1273
      %v1626 = vunpack.c.l.b16 %v1274
      %v1627 = vunpack.c.l.b16 %v1275
      %v1628 = vunpack.c.l.b16 %v1276
      %v1629 = vunpack.c.l.b16 %v1277
      %v1630 = vunpack.c.l.b16 %v1278
      %v1631 = vunpack.c.l.b16 %v1279
      %v1632 = vpack.c.b16 %v1585, %v1584
      %v1633 = vpack.c.b16 %v1587, %v1586
      %v1634 = vpack.c.b16 %v1589, %v1588
      %v1635 = vpack.c.b16 %v1591, %v1590
      %v1636 = vpack.c.b16 %v1593, %v1592
      %v1637 = vpack.c.b16 %v1595, %v1594
      %v1638 = vpack.c.b16 %v1597, %v1596
      %v1639 = vpack.c.b16 %v1599, %v1598
      %v1640 = vpack.c.b16 %v1601, %v1600
      %v1641 = vpack.c.b16 %v1603, %v1602
      %v1642 = vpack.c.b16 %v1605, %v1604
      %v1643 = vpack.c.b16 %v1607, %v1606
      %v1644 = vpack.c.b16 %v1609, %v1608
      %v1645 = vpack.c.b16 %v1611, %v1610
      %v1646 = vpack.c.b16 %v1613, %v1612
      %v1647 = vpack.c.b16 %v1615, %v1614
      %v1648 = vpack.c.b16 %v1617, %v1616
      %v1649 = vpack.c.b16 %v1619, %v1618
      %v1650 = vpack.c.b16 %v1621, %v1620
      %v1651 = vpack.c.b16 %v1623, %v1622
      %v1652 = vpack.c.b16 %v1625, %v1624
      %v1653 = vpack.c.b16 %v1627, %v1626
      %v1654 = vpack.c.b16 %v1629, %v1628
      %v1655 = vpack.c.b16 %v1631, %v1630
      %1680 = vmatprep.subr.bf16.mxu0 0
      %1681 = vmatpush1.bf16.msra.mxu0 %v1639
      %1682 = vmatprep.subr.bf16.mxu0 0
      %1683 = vmatpush1.bf16.msra.mxu0 %v1638
      %1684 = vmatprep.subr.bf16.mxu0 0
      %1685 = vmatpush1.bf16.msra.mxu0 %v1637
      %1686 = vmatprep.subr.bf16.mxu0 0
      %1687 = vmatpush1.bf16.msra.mxu0 %v1636
      %1688 = vmatprep.subr.bf16.mxu0 0
      %1689 = vmatpush1.bf16.msra.mxu0 %v1635
      %1690 = vmatprep.subr.bf16.mxu0 0
      %1691 = vmatpush1.bf16.msra.mxu0 %v1634
      %1692 = vmatprep.subr.bf16.mxu0 0
      %1693 = vmatpush1.bf16.msra.mxu0 %v1633
      %1694 = vmatprep.subr.bf16.mxu0 0
      %1695 = vmatpush1.bf16.msra.mxu0 %v1632
      %1696 = vmatprep.subr.bf16.mxu0 0
      %1697 = vmatpush2.bf16.msra.mxu0 %v1647
      %1698 = vmatprep.subr.bf16.mxu0 0
      %1699 = vmatpush2.bf16.msra.mxu0 %v1646
      %1700 = vmatprep.subr.bf16.mxu0 0
      %1701 = vmatpush2.bf16.msra.mxu0 %v1645
      %1702 = vmatprep.subr.bf16.mxu0 0
      %1703 = vmatpush2.bf16.msra.mxu0 %v1644
      %1704 = vmatprep.subr.bf16.mxu0 0
      %1705 = vmatpush2.bf16.msra.mxu0 %v1643
      %1706 = vmatprep.subr.bf16.mxu0 0
      %1707 = vmatpush2.bf16.msra.mxu0 %v1642
      %1708 = vmatprep.subr.bf16.mxu0 0
      %1709 = vmatpush2.bf16.msra.mxu0 %v1641
      %1710 = vmatprep.subr.bf16.mxu0 0
      %1711 = vmatpush2.bf16.msra.mxu0 %v1640
      %1712 = vmatprep.mubr.bf16.mxu0 %v1441
      %1713 = vmatmul.mubr.bf16.gmra.mxu0 %v1440
      %v1714 = vpop.f32.mrf.mxu0
      %v1715 = vadd.f32 0.0, %v1714
      %v1716 = vpop.f32.mrf.mxu0
      %v1717 = vpop.f32.mrf.mxu0
      %v1718 = vadd.f32 0.0, %v1717
      %v1719 = vpop.f32.mrf.mxu0
      %1720 = vmatprep.mubr.bf16.mxu0 %v1444
      %1721 = vmatmul.mubr.bf16.gmra.mxu0 %v1443
      %v1722 = vpop.f32.mrf.mxu0
      %v1723 = vadd.f32 0.0, %v1722
      %v1724 = vpop.f32.mrf.mxu0
      %v1725 = vpop.f32.mrf.mxu0
      %v1726 = vadd.f32 0.0, %v1725
      %v1727 = vpop.f32.mrf.mxu0
      %1728 = vmatprep.mubr.bf16.mxu0 %v1447
      %1729 = vmatmul.mubr.bf16.gmra.mxu0 %v1446
      %v1730 = vpop.f32.mrf.mxu0
      %v1731 = vadd.f32 0.0, %v1730
      %v1732 = vpop.f32.mrf.mxu0
      %v1733 = vpop.f32.mrf.mxu0
      %v1734 = vadd.f32 0.0, %v1733
      %v1735 = vpop.f32.mrf.mxu0
      %1736 = vmatprep.mubr.bf16.mxu0 %v1450
      %1737 = vmatmul.mubr.bf16.gmra.mxu0 %v1449
      %v1738 = vpop.f32.mrf.mxu0
      %v1739 = vadd.f32 0.0, %v1738
      %v1740 = vpop.f32.mrf.mxu0
      %v1741 = vpop.f32.mrf.mxu0
      %v1742 = vadd.f32 0.0, %v1741
      %v1743 = vpop.f32.mrf.mxu0
      %1744 = vmatprep.mubr.bf16.mxu0 %v1453
      %1745 = vmatmul.mubr.bf16.gmra.mxu0 %v1452
      %v1746 = vpop.f32.mrf.mxu0
      %v1747 = vadd.f32 0.0, %v1746
      %v1748 = vpop.f32.mrf.mxu0
      %v1749 = vpop.f32.mrf.mxu0
      %v1750 = vadd.f32 0.0, %v1749
      %v1751 = vpop.f32.mrf.mxu0
      %1752 = vmatprep.mubr.bf16.mxu0 %v1456
      %1753 = vmatmul.mubr.bf16.gmra.mxu0 %v1455
      %v1754 = vpop.f32.mrf.mxu0
      %v1755 = vadd.f32 0.0, %v1754
      %v1756 = vpop.f32.mrf.mxu0
      %v1757 = vpop.f32.mrf.mxu0
      %v1758 = vadd.f32 0.0, %v1757
      %v1759 = vpop.f32.mrf.mxu0
      %1760 = vmatprep.mubr.bf16.mxu0 %v1459
      %1761 = vmatmul.mubr.bf16.gmra.mxu0 %v1458
      %v1762 = vpop.f32.mrf.mxu0
      %v1763 = vadd.f32 0.0, %v1762
      %v1764 = vpop.f32.mrf.mxu0
      %v1765 = vpop.f32.mrf.mxu0
      %v1766 = vadd.f32 0.0, %v1765
      %v1767 = vpop.f32.mrf.mxu0
      %1768 = vmatprep.mubr.bf16.mxu0 %v1462
      %1769 = vmatmul.mubr.bf16.gmra.mxu0 %v1461
      %v1770 = vpop.f32.mrf.mxu0
      %v1771 = vadd.f32 0.0, %v1770
      %v1772 = vpop.f32.mrf.mxu0
      %v1773 = vpop.f32.mrf.mxu0
      %v1774 = vadd.f32 0.0, %v1773
      %v1775 = vpop.f32.mrf.mxu0
      %1776 = vmatprep.mubr.bf16.mxu0 %v1465
      %1777 = vmatmul.mubr.bf16.gmra.mxu0 %v1464
      %v1778 = vpop.f32.mrf.mxu0
      %v1779 = vadd.f32 0.0, %v1778
      %v1780 = vpop.f32.mrf.mxu0
      %v1781 = vpop.f32.mrf.mxu0
      %v1782 = vadd.f32 0.0, %v1781
      %v1783 = vpop.f32.mrf.mxu0
      %1784 = vmatprep.mubr.bf16.mxu0 %v1468
      %1785 = vmatmul.mubr.bf16.gmra.mxu0 %v1467
      %v1786 = vpop.f32.mrf.mxu0
      %v1787 = vadd.f32 0.0, %v1786
      %v1788 = vpop.f32.mrf.mxu0
      %v1789 = vpop.f32.mrf.mxu0
      %v1790 = vadd.f32 0.0, %v1789
      %v1791 = vpop.f32.mrf.mxu0
      %1792 = vmatprep.mubr.bf16.mxu0 %v1471
      %1793 = vmatmul.mubr.bf16.gmra.mxu0 %v1470
      %v1794 = vpop.f32.mrf.mxu0
      %v1795 = vadd.f32 0.0, %v1794
      %v1796 = vpop.f32.mrf.mxu0
      %v1797 = vpop.f32.mrf.mxu0
      %v1798 = vadd.f32 0.0, %v1797
      %v1799 = vpop.f32.mrf.mxu0
      %1800 = vmatprep.mubr.bf16.mxu0 %v1474
      %1801 = vmatmul.mubr.bf16.gmra.mxu0 %v1473
      %v1802 = vpop.f32.mrf.mxu0
      %v1803 = vadd.f32 0.0, %v1802
      %v1804 = vpop.f32.mrf.mxu0
      %v1805 = vpop.f32.mrf.mxu0
      %v1806 = vadd.f32 0.0, %v1805
      %v1807 = vpop.f32.mrf.mxu0
      %1808 = vmatprep.mubr.bf16.mxu0 %v1477
      %1809 = vmatmul.mubr.bf16.gmra.mxu0 %v1476
      %v1810 = vpop.f32.mrf.mxu0
      %v1811 = vadd.f32 0.0, %v1810
      %v1812 = vpop.f32.mrf.mxu0
      %v1813 = vpop.f32.mrf.mxu0
      %v1814 = vadd.f32 0.0, %v1813
      %v1815 = vpop.f32.mrf.mxu0
      %1816 = vmatprep.mubr.bf16.mxu0 %v1480
      %1817 = vmatmul.mubr.bf16.gmra.mxu0 %v1479
      %v1818 = vpop.f32.mrf.mxu0
      %v1819 = vadd.f32 0.0, %v1818
      %v1820 = vpop.f32.mrf.mxu0
      %v1821 = vpop.f32.mrf.mxu0
      %v1822 = vadd.f32 0.0, %v1821
      %v1823 = vpop.f32.mrf.mxu0
      %1824 = vmatprep.mubr.bf16.mxu0 %v1483
      %1825 = vmatmul.mubr.bf16.gmra.mxu0 %v1482
      %v1826 = vpop.f32.mrf.mxu0
      %v1827 = vadd.f32 0.0, %v1826
      %v1828 = vpop.f32.mrf.mxu0
      %v1829 = vpop.f32.mrf.mxu0
      %v1830 = vadd.f32 0.0, %v1829
      %v1831 = vpop.f32.mrf.mxu0
      %1832 = vmatprep.mubr.bf16.mxu0 %v1486
      %1833 = vmatmul.mubr.bf16.gmra.mxu0 %v1485
      %v1834 = vpop.f32.mrf.mxu0
      %v1835 = vadd.f32 0.0, %v1834
      %v1836 = vpop.f32.mrf.mxu0
      %v1837 = vpop.f32.mrf.mxu0
      %v1838 = vadd.f32 0.0, %v1837
      %v1839 = vpop.f32.mrf.mxu0
      %1840 = vdwg.mxu0
      %1841 = vmatprep.subr.bf16.mxu0 0
      %1842 = vmatpush1.bf16.msra.mxu0 %v1655
      %1843 = vmatprep.subr.bf16.mxu0 0
      %1844 = vmatpush1.bf16.msra.mxu0 %v1654
      %1845 = vmatprep.subr.bf16.mxu0 0
      %1846 = vmatpush1.bf16.msra.mxu0 %v1653
      %1847 = vmatprep.subr.bf16.mxu0 0
      %1848 = vmatpush1.bf16.msra.mxu0 %v1652
      %1849 = vmatprep.subr.bf16.mxu0 0
      %1850 = vmatpush1.bf16.msra.mxu0 %v1651
      %1851 = vmatprep.subr.bf16.mxu0 0
      %1852 = vmatpush1.bf16.msra.mxu0 %v1650
      %1853 = vmatprep.subr.bf16.mxu0 0
      %1854 = vmatpush1.bf16.msra.mxu0 %v1649
      %1855 = vmatprep.subr.bf16.mxu0 0
      %1856 = vmatpush1.bf16.msra.mxu0 %v1648
      %1857 = vmatprep.subr.bf16.mxu0 0
      %1858 = vmatpush2.bf16.msra.mxu0 0
      %1859 = vmatprep.subr.bf16.mxu0 0
      %1860 = vmatpush2.bf16.msra.mxu0 0
      %1861 = vmatprep.subr.bf16.mxu0 0
      %1862 = vmatpush2.bf16.msra.mxu0 0
      %1863 = vmatprep.subr.bf16.mxu0 0
      %1864 = vmatpush2.bf16.msra.mxu0 0
      %1865 = vmatprep.subr.bf16.mxu0 0
      %1866 = vmatpush2.bf16.msra.mxu0 0
      %1867 = vmatprep.subr.bf16.mxu0 0
      %1868 = vmatpush2.bf16.msra.mxu0 0
      %1869 = vmatprep.subr.bf16.mxu0 0
      %1870 = vmatpush2.bf16.msra.mxu0 0
      %1871 = vmatprep.subr.bf16.mxu0 0
      %1872 = vmatpush2.bf16.msra.mxu0 0
      %1873 = vmatprep.mubr.bf16.mxu0 0
      %1874 = vmatmul.mubr.bf16.gmra.mxu0 %v1442
      %v1875 = vpop.f32.mrf.mxu0
      %v1876 = vadd.f32 %v1715, %v1875
      %v1877 = vpop.f32.mrf.mxu0
      %v1878 = vpop.f32.mrf.mxu0
      %v1879 = vadd.f32 %v1718, %v1878
      %v1880 = vpop.f32.mrf.mxu0
      %1881 = vmatprep.mubr.bf16.mxu0 0
      %1882 = vmatmul.mubr.bf16.gmra.mxu0 %v1445
      %v1883 = vpop.f32.mrf.mxu0
      %v1884 = vadd.f32 %v1723, %v1883
      %v1885 = vpop.f32.mrf.mxu0
      %v1886 = vpop.f32.mrf.mxu0
      %v1887 = vadd.f32 %v1726, %v1886
      %v1888 = vpop.f32.mrf.mxu0
      %1889 = vmatprep.mubr.bf16.mxu0 0
      %1890 = vmatmul.mubr.bf16.gmra.mxu0 %v1448
      %v1891 = vpop.f32.mrf.mxu0
      %v1892 = vadd.f32 %v1731, %v1891
      %v1893 = vpop.f32.mrf.mxu0
      %v1894 = vpop.f32.mrf.mxu0
      %v1895 = vadd.f32 %v1734, %v1894
      %v1896 = vpop.f32.mrf.mxu0
      %1897 = vmatprep.mubr.bf16.mxu0 0
      %1898 = vmatmul.mubr.bf16.gmra.mxu0 %v1451
      %v1899 = vpop.f32.mrf.mxu0
      %v1900 = vadd.f32 %v1739, %v1899
      %v1901 = vpop.f32.mrf.mxu0
      %v1902 = vpop.f32.mrf.mxu0
      %v1903 = vadd.f32 %v1742, %v1902
      %v1904 = vpop.f32.mrf.mxu0
      %1905 = vmatprep.mubr.bf16.mxu0 0
      %1906 = vmatmul.mubr.bf16.gmra.mxu0 %v1454
      %v1907 = vpop.f32.mrf.mxu0
      %v1908 = vadd.f32 %v1747, %v1907
      %v1909 = vpop.f32.mrf.mxu0
      %v1910 = vpop.f32.mrf.mxu0
      %v1911 = vadd.f32 %v1750, %v1910
      %v1912 = vpop.f32.mrf.mxu0
      %1913 = vmatprep.mubr.bf16.mxu0 0
      %1914 = vmatmul.mubr.bf16.gmra.mxu0 %v1457
      %v1915 = vpop.f32.mrf.mxu0
      %v1916 = vadd.f32 %v1755, %v1915
      %v1917 = vpop.f32.mrf.mxu0
      %v1918 = vpop.f32.mrf.mxu0
      %v1919 = vadd.f32 %v1758, %v1918
      %v1920 = vpop.f32.mrf.mxu0
      %1921 = vmatprep.mubr.bf16.mxu0 0
      %1922 = vmatmul.mubr.bf16.gmra.mxu0 %v1460
      %v1923 = vpop.f32.mrf.mxu0
      %v1924 = vadd.f32 %v1763, %v1923
      %v1925 = vpop.f32.mrf.mxu0
      %v1926 = vpop.f32.mrf.mxu0
      %v1927 = vadd.f32 %v1766, %v1926
      %v1928 = vpop.f32.mrf.mxu0
      %1929 = vmatprep.mubr.bf16.mxu0 0
      %1930 = vmatmul.mubr.bf16.gmra.mxu0 %v1463
      %v1931 = vpop.f32.mrf.mxu0
      %v1932 = vadd.f32 %v1771, %v1931
      %v1933 = vpop.f32.mrf.mxu0
      %v1934 = vpop.f32.mrf.mxu0
      %v1935 = vadd.f32 %v1774, %v1934
      %v1936 = vpop.f32.mrf.mxu0
      %1937 = vmatprep.mubr.bf16.mxu0 0
      %1938 = vmatmul.mubr.bf16.gmra.mxu0 %v1466
      %v1939 = vpop.f32.mrf.mxu0
      %v1940 = vadd.f32 %v1779, %v1939
      %v1941 = vpop.f32.mrf.mxu0
      %v1942 = vpop.f32.mrf.mxu0
      %v1943 = vadd.f32 %v1782, %v1942
      %v1944 = vpop.f32.mrf.mxu0
      %1945 = vmatprep.mubr.bf16.mxu0 0
      %1946 = vmatmul.mubr.bf16.gmra.mxu0 %v1469
      %v1947 = vpop.f32.mrf.mxu0
      %v1948 = vadd.f32 %v1787, %v1947
      %v1949 = vpop.f32.mrf.mxu0
      %v1950 = vpop.f32.mrf.mxu0
      %v1951 = vadd.f32 %v1790, %v1950
      %v1952 = vpop.f32.mrf.mxu0
      %1953 = vmatprep.mubr.bf16.mxu0 0
      %1954 = vmatmul.mubr.bf16.gmra.mxu0 %v1472
      %v1955 = vpop.f32.mrf.mxu0
      %v1956 = vadd.f32 %v1795, %v1955
      %v1957 = vpop.f32.mrf.mxu0
      %v1958 = vpop.f32.mrf.mxu0
      %v1959 = vadd.f32 %v1798, %v1958
      %v1960 = vpop.f32.mrf.mxu0
      %1961 = vmatprep.mubr.bf16.mxu0 0
      %1962 = vmatmul.mubr.bf16.gmra.mxu0 %v1475
      %v1963 = vpop.f32.mrf.mxu0
      %v1964 = vadd.f32 %v1803, %v1963
      %v1965 = vpop.f32.mrf.mxu0
      %v1966 = vpop.f32.mrf.mxu0
      %v1967 = vadd.f32 %v1806, %v1966
      %v1968 = vpop.f32.mrf.mxu0
      %1969 = vmatprep.mubr.bf16.mxu0 0
      %1970 = vmatmul.mubr.bf16.gmra.mxu0 %v1478
      %v1971 = vpop.f32.mrf.mxu0
      %v1972 = vadd.f32 %v1811, %v1971
      %v1973 = vpop.f32.mrf.mxu0
      %v1974 = vpop.f32.mrf.mxu0
      %v1975 = vadd.f32 %v1814, %v1974
      %v1976 = vpop.f32.mrf.mxu0
      %1977 = vmatprep.mubr.bf16.mxu0 0
      %1978 = vmatmul.mubr.bf16.gmra.mxu0 %v1481
      %v1979 = vpop.f32.mrf.mxu0
      %v1980 = vadd.f32 %v1819, %v1979
      %v1981 = vpop.f32.mrf.mxu0
      %v1982 = vpop.f32.mrf.mxu0
      %v1983 = vadd.f32 %v1822, %v1982
      %v1984 = vpop.f32.mrf.mxu0
      %1985 = vmatprep.mubr.bf16.mxu0 0
      %1986 = vmatmul.mubr.bf16.gmra.mxu0 %v1484
      %v1987 = vpop.f32.mrf.mxu0
      %v1988 = vadd.f32 %v1827, %v1987
      %v1989 = vpop.f32.mrf.mxu0
      %v1990 = vpop.f32.mrf.mxu0
      %v1991 = vadd.f32 %v1830, %v1990
      %v1992 = vpop.f32.mrf.mxu0
      %1993 = vmatprep.mubr.bf16.mxu0 0
      %1994 = vmatmul.mubr.bf16.gmra.mxu0 %v1487
      %v1995 = vpop.f32.mrf.mxu0
      %v1996 = vadd.f32 %v1835, %v1995
      %v1997 = vpop.f32.mrf.mxu0
      %v1998 = vpop.f32.mrf.mxu0
      %v1999 = vadd.f32 %v1838, %v1998
      %v2000 = vpop.f32.mrf.mxu0
      %2001 = vdwg.mxu0
      %2002 = vst [vmem:[#allocation4] sm:$0xff] %v1876
      %2003 = vst [vmem:[#allocation4 + $0x8] sm:$0xff] %v1879
      %2004 = vst [vmem:[#allocation4 + $0x10] sm:$0xff] %v1884
      %2005 = vst [vmem:[#allocation4 + $0x18] sm:$0xff] %v1887
      %2006 = vst [vmem:[#allocation4 + $0x20] sm:$0xff] %v1892
      %2007 = vst [vmem:[#allocation4 + $0x28] sm:$0xff] %v1895
      %2008 = vst [vmem:[#allocation4 + $0x30] sm:$0xff] %v1900
      %2009 = vst [vmem:[#allocation4 + $0x38] sm:$0xff] %v1903
      %2010 = vst [vmem:[#allocation4 + $0x40] sm:$0xff] %v1908
      %2011 = vst [vmem:[#allocation4 + $0x48] sm:$0xff] %v1911
      %2012 = vst [vmem:[#allocation4 + $0x50] sm:$0xff] %v1916
      %2013 = vst [vmem:[#allocation4 + $0x58] sm:$0xff] %v1919
      %2014 = vst [vmem:[#allocation4 + $0x60] sm:$0xff] %v1924
      %2015 = vst [vmem:[#allocation4 + $0x68] sm:$0xff] %v1927
      %2016 = vst [vmem:[#allocation4 + $0x70] sm:$0xff] %v1932
      %2017 = vst [vmem:[#allocation4 + $0x78] sm:$0xff] %v1935
      %2018 = vst [vmem:[#allocation4 + $0x80] sm:$0xff] %v1940
      %2019 = vst [vmem:[#allocation4 + $0x88] sm:$0xff] %v1943
      %2020 = vst [vmem:[#allocation4 + $0x90] sm:$0xff] %v1948
      %2021 = vst [vmem:[#allocation4 + $0x98] sm:$0xff] %v1951
      %2022 = vst [vmem:[#allocation4 + $0xa0] sm:$0xff] %v1956
      %2023 = vst [vmem:[#allocation4 + $0xa8] sm:$0xff] %v1959
      %2024 = vst [vmem:[#allocation4 + $0xb0] sm:$0xff] %v1964
      %2025 = vst [vmem:[#allocation4 + $0xb8] sm:$0xff] %v1967
      %2026 = vst [vmem:[#allocation4 + $0xc0] sm:$0xff] %v1972
      %2027 = vst [vmem:[#allocation4 + $0xc8] sm:$0xff] %v1975
      %2028 = vst [vmem:[#allocation4 + $0xd0] sm:$0xff] %v1980
      %2029 = vst [vmem:[#allocation4 + $0xd8] sm:$0xff] %v1983
      %2030 = vst [vmem:[#allocation4 + $0xe0] sm:$0xff] %v1988
      %2031 = vst [vmem:[#allocation4 + $0xe8] sm:$0xff] %v1991
      %2032 = vst [vmem:[#allocation4 + $0xf0] sm:$0xff] %v1996
      %2033 = vst [vmem:[#allocation4 + $0xf8] sm:$0xff] %v1999
      %s2034 = scalar_lea.vmem [#allocation3], 24
      %v2035 = vld [vmem:[%s2034] sm:$0xff]
      %v2036 = vld [vmem:[%s2034 + $0x8] sm:$0xf]
      %v2037 = vld [vmem:[%s2034 + $0xc] sm:$0xff]
      %v2038 = vld [vmem:[%s2034 + $0x14] sm:$0xf]
      %v2039 = vld [vmem:[%s2034 + $0x18] sm:$0xff]
      %v2040 = vld [vmem:[%s2034 + $0x20] sm:$0xf]
      %v2041 = vld [vmem:[%s2034 + $0x24] sm:$0xff]
      %v2042 = vld [vmem:[%s2034 + $0x2c] sm:$0xf]
      %v2043 = vld [vmem:[%s2034 + $0x30] sm:$0xff]
      %v2044 = vld [vmem:[%s2034 + $0x38] sm:$0xf]
      %v2045 = vld [vmem:[%s2034 + $0x3c] sm:$0xff]
      %v2046 = vld [vmem:[%s2034 + $0x44] sm:$0xf]
      %v2047 = vld [vmem:[%s2034 + $0x48] sm:$0xff]
      %v2048 = vld [vmem:[%s2034 + $0x50] sm:$0xf]
      %v2049 = vld [vmem:[%s2034 + $0x54] sm:$0xff]
      %v2050 = vld [vmem:[%s2034 + $0x5c] sm:$0xf]
      %v2051 = vld [vmem:[%s2034 + $0x60] sm:$0xff]
      %v2052 = vld [vmem:[%s2034 + $0x68] sm:$0xf]
      %v2053 = vld [vmem:[%s2034 + $0x6c] sm:$0xff]
      %v2054 = vld [vmem:[%s2034 + $0x74] sm:$0xf]
      %v2055 = vld [vmem:[%s2034 + $0x78] sm:$0xff]
      %v2056 = vld [vmem:[%s2034 + $0x80] sm:$0xf]
      %v2057 = vld [vmem:[%s2034 + $0x84] sm:$0xff]
      %v2058 = vld [vmem:[%s2034 + $0x8c] sm:$0xf]
      %v2059 = vld [vmem:[%s2034 + $0x90] sm:$0xff]
      %v2060 = vld [vmem:[%s2034 + $0x98] sm:$0xf]
      %v2061 = vld [vmem:[%s2034 + $0x9c] sm:$0xff]
      %v2062 = vld [vmem:[%s2034 + $0xa4] sm:$0xf]
      %v2063 = vld [vmem:[%s2034 + $0xa8] sm:$0xff]
      %v2064 = vld [vmem:[%s2034 + $0xb0] sm:$0xf]
      %v2065 = vld [vmem:[%s2034 + $0xb4] sm:$0xff]
      %v2066 = vld [vmem:[%s2034 + $0xbc] sm:$0xf]
      %v2067 = vld [vmem:[%s2034 + $0xc0] sm:$0xff]
      %v2068 = vld [vmem:[%s2034 + $0xc8] sm:$0xf]
      %v2069 = vld [vmem:[%s2034 + $0xcc] sm:$0xff]
      %v2070 = vld [vmem:[%s2034 + $0xd4] sm:$0xf]
      %v2071 = vld [vmem:[%s2034 + $0xd8] sm:$0xff]
      %v2072 = vld [vmem:[%s2034 + $0xe0] sm:$0xf]
      %v2073 = vld [vmem:[%s2034 + $0xe4] sm:$0xff]
      %v2074 = vld [vmem:[%s2034 + $0xec] sm:$0xf]
      %v2075 = vld [vmem:[%s2034 + $0xf0] sm:$0xff]
      %v2076 = vld [vmem:[%s2034 + $0xf8] sm:$0xf]
      %v2077 = vld [vmem:[%s2034 + $0xfc] sm:$0xff]
      %v2078 = vld [vmem:[%s2034 + $0x104] sm:$0xf]
      %v2079 = vld [vmem:[%s2034 + $0x108] sm:$0xff]
      %v2080 = vld [vmem:[%s2034 + $0x110] sm:$0xf]
      %v2081 = vld [vmem:[%s2034 + $0x114] sm:$0xff]
      %v2082 = vld [vmem:[%s2034 + $0x11c] sm:$0xf]
      %v2083 = vld [vmem:[%s2034 + $0x120] sm:$0xff]
      %v2084 = vld [vmem:[%s2034 + $0x128] sm:$0xf]
      %v2085 = vld [vmem:[%s2034 + $0x12c] sm:$0xff]
      %v2086 = vld [vmem:[%s2034 + $0x134] sm:$0xf]
      %v2087 = vld [vmem:[%s2034 + $0x138] sm:$0xff]
      %v2088 = vld [vmem:[%s2034 + $0x140] sm:$0xf]
      %v2089 = vld [vmem:[%s2034 + $0x144] sm:$0xff]
      %v2090 = vld [vmem:[%s2034 + $0x14c] sm:$0xf]
      %v2091 = vld [vmem:[%s2034 + $0x150] sm:$0xff]
      %v2092 = vld [vmem:[%s2034 + $0x158] sm:$0xf]
      %v2093 = vld [vmem:[%s2034 + $0x15c] sm:$0xff]
      %v2094 = vld [vmem:[%s2034 + $0x164] sm:$0xf]
      %v2095 = vld [vmem:[%s2034 + $0x168] sm:$0xff]
      %v2096 = vld [vmem:[%s2034 + $0x170] sm:$0xf]
      %v2097 = vld [vmem:[%s2034 + $0x174] sm:$0xff]
      %v2098 = vld [vmem:[%s2034 + $0x17c] sm:$0xf]
      %s2099 = scalar_lea.vmem %s3, 192
      %v2100 = vld [vmem:[%s2099] sm:$0xf]
      %v2101 = vld [vmem:[%s2099 + $0x4] sm:$0xf]
      %v2102 = vld [vmem:[%s2099 + $0x8] sm:$0xf]
      %v2103 = vld [vmem:[%s2099 + $0xc] sm:$0xf]
      %v2104 = vld [vmem:[%s2099 + $0x10] sm:$0xf]
      %v2105 = vld [vmem:[%s2099 + $0x14] sm:$0xf]
      %v2106 = vld [vmem:[%s2099 + $0x18] sm:$0xf]
      %v2107 = vld [vmem:[%s2099 + $0x1c] sm:$0xf]
      %v2108 = vld [vmem:[%s2099 + $0x20] sm:$0xf]
      %v2109 = vld [vmem:[%s2099 + $0x24] sm:$0xf]
      %v2110 = vld [vmem:[%s2099 + $0x28] sm:$0xf]
      %v2111 = vld [vmem:[%s2099 + $0x2c] sm:$0xf]
      %v2112 = vld [vmem:[%s2099 + $0x30] sm:$0xf]
      %v2113 = vld [vmem:[%s2099 + $0x34] sm:$0xf]
      %v2114 = vld [vmem:[%s2099 + $0x38] sm:$0xf]
      %v2115 = vld [vmem:[%s2099 + $0x3c] sm:$0xf]
      %v2116 = vld [vmem:[%s2099 + $0x40] sm:$0xf]
      %v2117 = vld [vmem:[%s2099 + $0x44] sm:$0xf]
      %v2118 = vld [vmem:[%s2099 + $0x48] sm:$0xf]
      %v2119 = vld [vmem:[%s2099 + $0x4c] sm:$0xf]
      %v2120 = vld [vmem:[%s2099 + $0x50] sm:$0xf]
      %v2121 = vld [vmem:[%s2099 + $0x54] sm:$0xf]
      %v2122 = vld [vmem:[%s2099 + $0x58] sm:$0xf]
      %v2123 = vld [vmem:[%s2099 + $0x5c] sm:$0xf]
      %v2124 = vld [vmem:[%s2099 + $0x60] sm:$0xf]
      %v2125 = vld [vmem:[%s2099 + $0x64] sm:$0xf]
      %v2126 = vld [vmem:[%s2099 + $0x68] sm:$0xf]
      %v2127 = vld [vmem:[%s2099 + $0x6c] sm:$0xf]
      %v2128 = vld [vmem:[%s2099 + $0x70] sm:$0xf]
      %v2129 = vld [vmem:[%s2099 + $0x74] sm:$0xf]
      %v2130 = vld [vmem:[%s2099 + $0x78] sm:$0xf]
      %v2131 = vld [vmem:[%s2099 + $0x7c] sm:$0xf]
      %v2132 = vld [vmem:[%s2099 + $0x80] sm:$0xf]
      %v2133 = vld [vmem:[%s2099 + $0x84] sm:$0xf]
      %v2134 = vld [vmem:[%s2099 + $0x88] sm:$0xf]
      %v2135 = vld [vmem:[%s2099 + $0x8c] sm:$0xf]
      %v2136 = vld [vmem:[%s2099 + $0x90] sm:$0xf]
      %v2137 = vld [vmem:[%s2099 + $0x94] sm:$0xf]
      %v2138 = vld [vmem:[%s2099 + $0x98] sm:$0xf]
      %v2139 = vld [vmem:[%s2099 + $0x9c] sm:$0xf]
      %v2140 = vld [vmem:[%s2099 + $0xa0] sm:$0xf]
      %v2141 = vld [vmem:[%s2099 + $0xa4] sm:$0xf]
      %v2142 = vld [vmem:[%s2099 + $0xa8] sm:$0xf]
      %v2143 = vld [vmem:[%s2099 + $0xac] sm:$0xf]
      %v2144 = vld [vmem:[%s2099 + $0xb0] sm:$0xf]
      %v2145 = vld [vmem:[%s2099 + $0xb4] sm:$0xf]
      %v2146 = vld [vmem:[%s2099 + $0xb8] sm:$0xf]
      %v2147 = vld [vmem:[%s2099 + $0xbc] sm:$0xf]
      %v2212 = vunpack.c.l.b16 %v2035
      %v2213 = vunpack.c.h.b16 %v2035
      %v2214 = vunpack.c.l.b16 %v2036
      %v2215 = vunpack.c.l.b16 %v2037
      %v2216 = vunpack.c.h.b16 %v2037
      %v2217 = vunpack.c.l.b16 %v2038
      %v2218 = vunpack.c.l.b16 %v2039
      %v2219 = vunpack.c.h.b16 %v2039
      %v2220 = vunpack.c.l.b16 %v2040
      %v2221 = vunpack.c.l.b16 %v2041
      %v2222 = vunpack.c.h.b16 %v2041
      %v2223 = vunpack.c.l.b16 %v2042
      %v2224 = vunpack.c.l.b16 %v2043
      %v2225 = vunpack.c.h.b16 %v2043
      %v2226 = vunpack.c.l.b16 %v2044
      %v2227 = vunpack.c.l.b16 %v2045
      %v2228 = vunpack.c.h.b16 %v2045
      %v2229 = vunpack.c.l.b16 %v2046
      %v2230 = vunpack.c.l.b16 %v2047
      %v2231 = vunpack.c.h.b16 %v2047
      %v2232 = vunpack.c.l.b16 %v2048
      %v2233 = vunpack.c.l.b16 %v2049
      %v2234 = vunpack.c.h.b16 %v2049
      %v2235 = vunpack.c.l.b16 %v2050
      %v2236 = vunpack.c.l.b16 %v2051
      %v2237 = vunpack.c.h.b16 %v2051
      %v2238 = vunpack.c.l.b16 %v2052
      %v2239 = vunpack.c.l.b16 %v2053
      %v2240 = vunpack.c.h.b16 %v2053
      %v2241 = vunpack.c.l.b16 %v2054
      %v2242 = vunpack.c.l.b16 %v2055
      %v2243 = vunpack.c.h.b16 %v2055
      %v2244 = vunpack.c.l.b16 %v2056
      %v2245 = vunpack.c.l.b16 %v2057
      %v2246 = vunpack.c.h.b16 %v2057
      %v2247 = vunpack.c.l.b16 %v2058
      %v2248 = vunpack.c.l.b16 %v2059
      %v2249 = vunpack.c.h.b16 %v2059
      %v2250 = vunpack.c.l.b16 %v2060
      %v2251 = vunpack.c.l.b16 %v2061
      %v2252 = vunpack.c.h.b16 %v2061
      %v2253 = vunpack.c.l.b16 %v2062
      %v2254 = vunpack.c.l.b16 %v2063
      %v2255 = vunpack.c.h.b16 %v2063
      %v2256 = vunpack.c.l.b16 %v2064
      %v2257 = vunpack.c.l.b16 %v2065
      %v2258 = vunpack.c.h.b16 %v2065
      %v2259 = vunpack.c.l.b16 %v2066
      %v2260 = vunpack.c.l.b16 %v2067
      %v2261 = vunpack.c.h.b16 %v2067
      %v2262 = vunpack.c.l.b16 %v2068
      %v2263 = vunpack.c.l.b16 %v2069
      %v2264 = vunpack.c.h.b16 %v2069
      %v2265 = vunpack.c.l.b16 %v2070
      %v2266 = vunpack.c.l.b16 %v2071
      %v2267 = vunpack.c.h.b16 %v2071
      %v2268 = vunpack.c.l.b16 %v2072
      %v2269 = vunpack.c.l.b16 %v2073
      %v2270 = vunpack.c.h.b16 %v2073
      %v2271 = vunpack.c.l.b16 %v2074
      %v2272 = vunpack.c.l.b16 %v2075
      %v2273 = vunpack.c.h.b16 %v2075
      %v2274 = vunpack.c.l.b16 %v2076
      %v2275 = vunpack.c.l.b16 %v2077
      %v2276 = vunpack.c.h.b16 %v2077
      %v2277 = vunpack.c.l.b16 %v2078
      %v2278 = vunpack.c.l.b16 %v2079
      %v2279 = vunpack.c.h.b16 %v2079
      %v2280 = vunpack.c.l.b16 %v2080
      %v2281 = vunpack.c.l.b16 %v2081
      %v2282 = vunpack.c.h.b16 %v2081
      %v2283 = vunpack.c.l.b16 %v2082
      %v2284 = vunpack.c.l.b16 %v2083
      %v2285 = vunpack.c.h.b16 %v2083
      %v2286 = vunpack.c.l.b16 %v2084
      %v2287 = vunpack.c.l.b16 %v2085
      %v2288 = vunpack.c.h.b16 %v2085
      %v2289 = vunpack.c.l.b16 %v2086
      %v2290 = vunpack.c.l.b16 %v2087
      %v2291 = vunpack.c.h.b16 %v2087
      %v2292 = vunpack.c.l.b16 %v2088
      %v2293 = vunpack.c.l.b16 %v2089
      %v2294 = vunpack.c.h.b16 %v2089
      %v2295 = vunpack.c.l.b16 %v2090
      %v2296 = vunpack.c.l.b16 %v2091
      %v2297 = vunpack.c.h.b16 %v2091
      %v2298 = vunpack.c.l.b16 %v2092
      %v2299 = vunpack.c.l.b16 %v2093
      %v2300 = vunpack.c.h.b16 %v2093
      %v2301 = vunpack.c.l.b16 %v2094
      %v2302 = vunpack.c.l.b16 %v2095
      %v2303 = vunpack.c.h.b16 %v2095
      %v2304 = vunpack.c.l.b16 %v2096
      %v2305 = vunpack.c.l.b16 %v2097
      %v2306 = vunpack.c.h.b16 %v2097
      %v2307 = vunpack.c.l.b16 %v2098
      %v2308 = vpack.c.b16 %v2215, %v2212
      %v2309 = vpack.c.b16 %v2216, %v2213
      %v2310 = vpack.c.b16 %v2217, %v2214
      %v2311 = vpack.c.b16 %v2221, %v2218
      %v2312 = vpack.c.b16 %v2222, %v2219
      %v2313 = vpack.c.b16 %v2223, %v2220
      %v2314 = vpack.c.b16 %v2227, %v2224
      %v2315 = vpack.c.b16 %v2228, %v2225
      %v2316 = vpack.c.b16 %v2229, %v2226
      %v2317 = vpack.c.b16 %v2233, %v2230
      %v2318 = vpack.c.b16 %v2234, %v2231
      %v2319 = vpack.c.b16 %v2235, %v2232
      %v2320 = vpack.c.b16 %v2239, %v2236
      %v2321 = vpack.c.b16 %v2240, %v2237
      %v2322 = vpack.c.b16 %v2241, %v2238
      %v2323 = vpack.c.b16 %v2245, %v2242
      %v2324 = vpack.c.b16 %v2246, %v2243
      %v2325 = vpack.c.b16 %v2247, %v2244
      %v2326 = vpack.c.b16 %v2251, %v2248
      %v2327 = vpack.c.b16 %v2252, %v2249
      %v2328 = vpack.c.b16 %v2253, %v2250
      %v2329 = vpack.c.b16 %v2257, %v2254
      %v2330 = vpack.c.b16 %v2258, %v2255
      %v2331 = vpack.c.b16 %v2259, %v2256
      %v2332 = vpack.c.b16 %v2263, %v2260
      %v2333 = vpack.c.b16 %v2264, %v2261
      %v2334 = vpack.c.b16 %v2265, %v2262
      %v2335 = vpack.c.b16 %v2269, %v2266
      %v2336 = vpack.c.b16 %v2270, %v2267
      %v2337 = vpack.c.b16 %v2271, %v2268
      %v2338 = vpack.c.b16 %v2275, %v2272
      %v2339 = vpack.c.b16 %v2276, %v2273
      %v2340 = vpack.c.b16 %v2277, %v2274
      %v2341 = vpack.c.b16 %v2281, %v2278
      %v2342 = vpack.c.b16 %v2282, %v2279
      %v2343 = vpack.c.b16 %v2283, %v2280
      %v2344 = vpack.c.b16 %v2287, %v2284
      %v2345 = vpack.c.b16 %v2288, %v2285
      %v2346 = vpack.c.b16 %v2289, %v2286
      %v2347 = vpack.c.b16 %v2293, %v2290
      %v2348 = vpack.c.b16 %v2294, %v2291
      %v2349 = vpack.c.b16 %v2295, %v2292
      %v2350 = vpack.c.b16 %v2299, %v2296
      %v2351 = vpack.c.b16 %v2300, %v2297
      %v2352 = vpack.c.b16 %v2301, %v2298
      %v2353 = vpack.c.b16 %v2305, %v2302
      %v2354 = vpack.c.b16 %v2306, %v2303
      %v2355 = vpack.c.b16 %v2307, %v2304
      %v2452 = vunpack.c.l.b16 %v2100
      %v2453 = vunpack.c.l.b16 %v2101
      %v2454 = vunpack.c.l.b16 %v2102
      %v2455 = vunpack.c.l.b16 %v2103
      %v2456 = vunpack.c.l.b16 %v2104
      %v2457 = vunpack.c.l.b16 %v2105
      %v2458 = vunpack.c.l.b16 %v2106
      %v2459 = vunpack.c.l.b16 %v2107
      %v2460 = vunpack.c.l.b16 %v2108
      %v2461 = vunpack.c.l.b16 %v2109
      %v2462 = vunpack.c.l.b16 %v2110
      %v2463 = vunpack.c.l.b16 %v2111
      %v2464 = vunpack.c.l.b16 %v2112
      %v2465 = vunpack.c.l.b16 %v2113
      %v2466 = vunpack.c.l.b16 %v2114
      %v2467 = vunpack.c.l.b16 %v2115
      %v2468 = vunpack.c.l.b16 %v2116
      %v2469 = vunpack.c.l.b16 %v2117
      %v2470 = vunpack.c.l.b16 %v2118
      %v2471 = vunpack.c.l.b16 %v2119
      %v2472 = vunpack.c.l.b16 %v2120
      %v2473 = vunpack.c.l.b16 %v2121
      %v2474 = vunpack.c.l.b16 %v2122
      %v2475 = vunpack.c.l.b16 %v2123
      %v2476 = vunpack.c.l.b16 %v2124
      %v2477 = vunpack.c.l.b16 %v2125
      %v2478 = vunpack.c.l.b16 %v2126
      %v2479 = vunpack.c.l.b16 %v2127
      %v2480 = vunpack.c.l.b16 %v2128
      %v2481 = vunpack.c.l.b16 %v2129
      %v2482 = vunpack.c.l.b16 %v2130
      %v2483 = vunpack.c.l.b16 %v2131
      %v2484 = vunpack.c.l.b16 %v2132
      %v2485 = vunpack.c.l.b16 %v2133
      %v2486 = vunpack.c.l.b16 %v2134
      %v2487 = vunpack.c.l.b16 %v2135
      %v2488 = vunpack.c.l.b16 %v2136
      %v2489 = vunpack.c.l.b16 %v2137
      %v2490 = vunpack.c.l.b16 %v2138
      %v2491 = vunpack.c.l.b16 %v2139
      %v2492 = vunpack.c.l.b16 %v2140
      %v2493 = vunpack.c.l.b16 %v2141
      %v2494 = vunpack.c.l.b16 %v2142
      %v2495 = vunpack.c.l.b16 %v2143
      %v2496 = vunpack.c.l.b16 %v2144
      %v2497 = vunpack.c.l.b16 %v2145
      %v2498 = vunpack.c.l.b16 %v2146
      %v2499 = vunpack.c.l.b16 %v2147
      %v2500 = vpack.c.b16 %v2453, %v2452
      %v2501 = vpack.c.b16 %v2455, %v2454
      %v2502 = vpack.c.b16 %v2457, %v2456
      %v2503 = vpack.c.b16 %v2459, %v2458
      %v2504 = vpack.c.b16 %v2461, %v2460
      %v2505 = vpack.c.b16 %v2463, %v2462
      %v2506 = vpack.c.b16 %v2465, %v2464
      %v2507 = vpack.c.b16 %v2467, %v2466
      %v2508 = vpack.c.b16 %v2469, %v2468
      %v2509 = vpack.c.b16 %v2471, %v2470
      %v2510 = vpack.c.b16 %v2473, %v2472
      %v2511 = vpack.c.b16 %v2475, %v2474
      %v2512 = vpack.c.b16 %v2477, %v2476
      %v2513 = vpack.c.b16 %v2479, %v2478
      %v2514 = vpack.c.b16 %v2481, %v2480
      %v2515 = vpack.c.b16 %v2483, %v2482
      %v2516 = vpack.c.b16 %v2485, %v2484
      %v2517 = vpack.c.b16 %v2487, %v2486
      %v2518 = vpack.c.b16 %v2489, %v2488
      %v2519 = vpack.c.b16 %v2491, %v2490
      %v2520 = vpack.c.b16 %v2493, %v2492
      %v2521 = vpack.c.b16 %v2495, %v2494
      %v2522 = vpack.c.b16 %v2497, %v2496
      %v2523 = vpack.c.b16 %v2499, %v2498
      %2548 = vmatprep.subr.bf16.mxu0 0
      %2549 = vmatpush1.bf16.msra.mxu0 %v2507
      %2550 = vmatprep.subr.bf16.mxu0 0
      %2551 = vmatpush1.bf16.msra.mxu0 %v2506
      %2552 = vmatprep.subr.bf16.mxu0 0
      %2553 = vmatpush1.bf16.msra.mxu0 %v2505
      %2554 = vmatprep.subr.bf16.mxu0 0
      %2555 = vmatpush1.bf16.msra.mxu0 %v2504
      %2556 = vmatprep.subr.bf16.mxu0 0
      %2557 = vmatpush1.bf16.msra.mxu0 %v2503
      %2558 = vmatprep.subr.bf16.mxu0 0
      %2559 = vmatpush1.bf16.msra.mxu0 %v2502
      %2560 = vmatprep.subr.bf16.mxu0 0
      %2561 = vmatpush1.bf16.msra.mxu0 %v2501
      %2562 = vmatprep.subr.bf16.mxu0 0
      %2563 = vmatpush1.bf16.msra.mxu0 %v2500
      %2564 = vmatprep.subr.bf16.mxu0 0
      %2565 = vmatpush2.bf16.msra.mxu0 %v2515
      %2566 = vmatprep.subr.bf16.mxu0 0
      %2567 = vmatpush2.bf16.msra.mxu0 %v2514
      %2568 = vmatprep.subr.bf16.mxu0 0
      %2569 = vmatpush2.bf16.msra.mxu0 %v2513
      %2570 = vmatprep.subr.bf16.mxu0 0
      %2571 = vmatpush2.bf16.msra.mxu0 %v2512
      %2572 = vmatprep.subr.bf16.mxu0 0
      %2573 = vmatpush2.bf16.msra.mxu0 %v2511
      %2574 = vmatprep.subr.bf16.mxu0 0
      %2575 = vmatpush2.bf16.msra.mxu0 %v2510
      %2576 = vmatprep.subr.bf16.mxu0 0
      %2577 = vmatpush2.bf16.msra.mxu0 %v2509
      %2578 = vmatprep.subr.bf16.mxu0 0
      %2579 = vmatpush2.bf16.msra.mxu0 %v2508
      %2580 = vmatprep.mubr.bf16.mxu0 %v2309
      %2581 = vmatmul.mubr.bf16.gmra.mxu0 %v2308
      %v2582 = vpop.f32.mrf.mxu0
      %v2583 = vadd.f32 0.0, %v2582
      %v2584 = vpop.f32.mrf.mxu0
      %v2585 = vpop.f32.mrf.mxu0
      %v2586 = vadd.f32 0.0, %v2585
      %v2587 = vpop.f32.mrf.mxu0
      %2588 = vmatprep.mubr.bf16.mxu0 %v2312
      %2589 = vmatmul.mubr.bf16.gmra.mxu0 %v2311
      %v2590 = vpop.f32.mrf.mxu0
      %v2591 = vadd.f32 0.0, %v2590
      %v2592 = vpop.f32.mrf.mxu0
      %v2593 = vpop.f32.mrf.mxu0
      %v2594 = vadd.f32 0.0, %v2593
      %v2595 = vpop.f32.mrf.mxu0
      %2596 = vmatprep.mubr.bf16.mxu0 %v2315
      %2597 = vmatmul.mubr.bf16.gmra.mxu0 %v2314
      %v2598 = vpop.f32.mrf.mxu0
      %v2599 = vadd.f32 0.0, %v2598
      %v2600 = vpop.f32.mrf.mxu0
      %v2601 = vpop.f32.mrf.mxu0
      %v2602 = vadd.f32 0.0, %v2601
      %v2603 = vpop.f32.mrf.mxu0
      %2604 = vmatprep.mubr.bf16.mxu0 %v2318
      %2605 = vmatmul.mubr.bf16.gmra.mxu0 %v2317
      %v2606 = vpop.f32.mrf.mxu0
      %v2607 = vadd.f32 0.0, %v2606
      %v2608 = vpop.f32.mrf.mxu0
      %v2609 = vpop.f32.mrf.mxu0
      %v2610 = vadd.f32 0.0, %v2609
      %v2611 = vpop.f32.mrf.mxu0
      %2612 = vmatprep.mubr.bf16.mxu0 %v2321
      %2613 = vmatmul.mubr.bf16.gmra.mxu0 %v2320
      %v2614 = vpop.f32.mrf.mxu0
      %v2615 = vadd.f32 0.0, %v2614
      %v2616 = vpop.f32.mrf.mxu0
      %v2617 = vpop.f32.mrf.mxu0
      %v2618 = vadd.f32 0.0, %v2617
      %v2619 = vpop.f32.mrf.mxu0
      %2620 = vmatprep.mubr.bf16.mxu0 %v2324
      %2621 = vmatmul.mubr.bf16.gmra.mxu0 %v2323
      %v2622 = vpop.f32.mrf.mxu0
      %v2623 = vadd.f32 0.0, %v2622
      %v2624 = vpop.f32.mrf.mxu0
      %v2625 = vpop.f32.mrf.mxu0
      %v2626 = vadd.f32 0.0, %v2625
      %v2627 = vpop.f32.mrf.mxu0
      %2628 = vmatprep.mubr.bf16.mxu0 %v2327
      %2629 = vmatmul.mubr.bf16.gmra.mxu0 %v2326
      %v2630 = vpop.f32.mrf.mxu0
      %v2631 = vadd.f32 0.0, %v2630
      %v2632 = vpop.f32.mrf.mxu0
      %v2633 = vpop.f32.mrf.mxu0
      %v2634 = vadd.f32 0.0, %v2633
      %v2635 = vpop.f32.mrf.mxu0
      %2636 = vmatprep.mubr.bf16.mxu0 %v2330
      %2637 = vmatmul.mubr.bf16.gmra.mxu0 %v2329
      %v2638 = vpop.f32.mrf.mxu0
      %v2639 = vadd.f32 0.0, %v2638
      %v2640 = vpop.f32.mrf.mxu0
      %v2641 = vpop.f32.mrf.mxu0
      %v2642 = vadd.f32 0.0, %v2641
      %v2643 = vpop.f32.mrf.mxu0
      %2644 = vmatprep.mubr.bf16.mxu0 %v2333
      %2645 = vmatmul.mubr.bf16.gmra.mxu0 %v2332
      %v2646 = vpop.f32.mrf.mxu0
      %v2647 = vadd.f32 0.0, %v2646
      %v2648 = vpop.f32.mrf.mxu0
      %v2649 = vpop.f32.mrf.mxu0
      %v2650 = vadd.f32 0.0, %v2649
      %v2651 = vpop.f32.mrf.mxu0
      %2652 = vmatprep.mubr.bf16.mxu0 %v2336
      %2653 = vmatmul.mubr.bf16.gmra.mxu0 %v2335
      %v2654 = vpop.f32.mrf.mxu0
      %v2655 = vadd.f32 0.0, %v2654
      %v2656 = vpop.f32.mrf.mxu0
      %v2657 = vpop.f32.mrf.mxu0
      %v2658 = vadd.f32 0.0, %v2657
      %v2659 = vpop.f32.mrf.mxu0
      %2660 = vmatprep.mubr.bf16.mxu0 %v2339
      %2661 = vmatmul.mubr.bf16.gmra.mxu0 %v2338
      %v2662 = vpop.f32.mrf.mxu0
      %v2663 = vadd.f32 0.0, %v2662
      %v2664 = vpop.f32.mrf.mxu0
      %v2665 = vpop.f32.mrf.mxu0
      %v2666 = vadd.f32 0.0, %v2665
      %v2667 = vpop.f32.mrf.mxu0
      %2668 = vmatprep.mubr.bf16.mxu0 %v2342
      %2669 = vmatmul.mubr.bf16.gmra.mxu0 %v2341
      %v2670 = vpop.f32.mrf.mxu0
      %v2671 = vadd.f32 0.0, %v2670
      %v2672 = vpop.f32.mrf.mxu0
      %v2673 = vpop.f32.mrf.mxu0
      %v2674 = vadd.f32 0.0, %v2673
      %v2675 = vpop.f32.mrf.mxu0
      %2676 = vmatprep.mubr.bf16.mxu0 %v2345
      %2677 = vmatmul.mubr.bf16.gmra.mxu0 %v2344
      %v2678 = vpop.f32.mrf.mxu0
      %v2679 = vadd.f32 0.0, %v2678
      %v2680 = vpop.f32.mrf.mxu0
      %v2681 = vpop.f32.mrf.mxu0
      %v2682 = vadd.f32 0.0, %v2681
      %v2683 = vpop.f32.mrf.mxu0
      %2684 = vmatprep.mubr.bf16.mxu0 %v2348
      %2685 = vmatmul.mubr.bf16.gmra.mxu0 %v2347
      %v2686 = vpop.f32.mrf.mxu0
      %v2687 = vadd.f32 0.0, %v2686
      %v2688 = vpop.f32.mrf.mxu0
      %v2689 = vpop.f32.mrf.mxu0
      %v2690 = vadd.f32 0.0, %v2689
      %v2691 = vpop.f32.mrf.mxu0
      %2692 = vmatprep.mubr.bf16.mxu0 %v2351
      %2693 = vmatmul.mubr.bf16.gmra.mxu0 %v2350
      %v2694 = vpop.f32.mrf.mxu0
      %v2695 = vadd.f32 0.0, %v2694
      %v2696 = vpop.f32.mrf.mxu0
      %v2697 = vpop.f32.mrf.mxu0
      %v2698 = vadd.f32 0.0, %v2697
      %v2699 = vpop.f32.mrf.mxu0
      %2700 = vmatprep.mubr.bf16.mxu0 %v2354
      %2701 = vmatmul.mubr.bf16.gmra.mxu0 %v2353
      %v2702 = vpop.f32.mrf.mxu0
      %v2703 = vadd.f32 0.0, %v2702
      %v2704 = vpop.f32.mrf.mxu0
      %v2705 = vpop.f32.mrf.mxu0
      %v2706 = vadd.f32 0.0, %v2705
      %v2707 = vpop.f32.mrf.mxu0
      %2708 = vdwg.mxu0
      %2709 = vmatprep.subr.bf16.mxu0 0
      %2710 = vmatpush1.bf16.msra.mxu0 %v2523
      %2711 = vmatprep.subr.bf16.mxu0 0
      %2712 = vmatpush1.bf16.msra.mxu0 %v2522
      %2713 = vmatprep.subr.bf16.mxu0 0
      %2714 = vmatpush1.bf16.msra.mxu0 %v2521
      %2715 = vmatprep.subr.bf16.mxu0 0
      %2716 = vmatpush1.bf16.msra.mxu0 %v2520
      %2717 = vmatprep.subr.bf16.mxu0 0
      %2718 = vmatpush1.bf16.msra.mxu0 %v2519
      %2719 = vmatprep.subr.bf16.mxu0 0
      %2720 = vmatpush1.bf16.msra.mxu0 %v2518
      %2721 = vmatprep.subr.bf16.mxu0 0
      %2722 = vmatpush1.bf16.msra.mxu0 %v2517
      %2723 = vmatprep.subr.bf16.mxu0 0
      %2724 = vmatpush1.bf16.msra.mxu0 %v2516
      %2725 = vmatprep.subr.bf16.mxu0 0
      %2726 = vmatpush2.bf16.msra.mxu0 0
      %2727 = vmatprep.subr.bf16.mxu0 0
      %2728 = vmatpush2.bf16.msra.mxu0 0
      %2729 = vmatprep.subr.bf16.mxu0 0
      %2730 = vmatpush2.bf16.msra.mxu0 0
      %2731 = vmatprep.subr.bf16.mxu0 0
      %2732 = vmatpush2.bf16.msra.mxu0 0
      %2733 = vmatprep.subr.bf16.mxu0 0
      %2734 = vmatpush2.bf16.msra.mxu0 0
      %2735 = vmatprep.subr.bf16.mxu0 0
      %2736 = vmatpush2.bf16.msra.mxu0 0
      %2737 = vmatprep.subr.bf16.mxu0 0
      %2738 = vmatpush2.bf16.msra.mxu0 0
      %2739 = vmatprep.subr.bf16.mxu0 0
      %2740 = vmatpush2.bf16.msra.mxu0 0
      %2741 = vmatprep.mubr.bf16.mxu0 0
      %2742 = vmatmul.mubr.bf16.gmra.mxu0 %v2310
      %v2743 = vpop.f32.mrf.mxu0
      %v2744 = vadd.f32 %v2583, %v2743
      %v2745 = vpop.f32.mrf.mxu0
      %v2746 = vpop.f32.mrf.mxu0
      %v2747 = vadd.f32 %v2586, %v2746
      %v2748 = vpop.f32.mrf.mxu0
      %2749 = vmatprep.mubr.bf16.mxu0 0
      %2750 = vmatmul.mubr.bf16.gmra.mxu0 %v2313
      %v2751 = vpop.f32.mrf.mxu0
      %v2752 = vadd.f32 %v2591, %v2751
      %v2753 = vpop.f32.mrf.mxu0
      %v2754 = vpop.f32.mrf.mxu0
      %v2755 = vadd.f32 %v2594, %v2754
      %v2756 = vpop.f32.mrf.mxu0
      %2757 = vmatprep.mubr.bf16.mxu0 0
      %2758 = vmatmul.mubr.bf16.gmra.mxu0 %v2316
      %v2759 = vpop.f32.mrf.mxu0
      %v2760 = vadd.f32 %v2599, %v2759
      %v2761 = vpop.f32.mrf.mxu0
      %v2762 = vpop.f32.mrf.mxu0
      %v2763 = vadd.f32 %v2602, %v2762
      %v2764 = vpop.f32.mrf.mxu0
      %2765 = vmatprep.mubr.bf16.mxu0 0
      %2766 = vmatmul.mubr.bf16.gmra.mxu0 %v2319
      %v2767 = vpop.f32.mrf.mxu0
      %v2768 = vadd.f32 %v2607, %v2767
      %v2769 = vpop.f32.mrf.mxu0
      %v2770 = vpop.f32.mrf.mxu0
      %v2771 = vadd.f32 %v2610, %v2770
      %v2772 = vpop.f32.mrf.mxu0
      %2773 = vmatprep.mubr.bf16.mxu0 0
      %2774 = vmatmul.mubr.bf16.gmra.mxu0 %v2322
      %v2775 = vpop.f32.mrf.mxu0
      %v2776 = vadd.f32 %v2615, %v2775
      %v2777 = vpop.f32.mrf.mxu0
      %v2778 = vpop.f32.mrf.mxu0
      %v2779 = vadd.f32 %v2618, %v2778
      %v2780 = vpop.f32.mrf.mxu0
      %2781 = vmatprep.mubr.bf16.mxu0 0
      %2782 = vmatmul.mubr.bf16.gmra.mxu0 %v2325
      %v2783 = vpop.f32.mrf.mxu0
      %v2784 = vadd.f32 %v2623, %v2783
      %v2785 = vpop.f32.mrf.mxu0
      %v2786 = vpop.f32.mrf.mxu0
      %v2787 = vadd.f32 %v2626, %v2786
      %v2788 = vpop.f32.mrf.mxu0
      %2789 = vmatprep.mubr.bf16.mxu0 0
      %2790 = vmatmul.mubr.bf16.gmra.mxu0 %v2328
      %v2791 = vpop.f32.mrf.mxu0
      %v2792 = vadd.f32 %v2631, %v2791
      %v2793 = vpop.f32.mrf.mxu0
      %v2794 = vpop.f32.mrf.mxu0
      %v2795 = vadd.f32 %v2634, %v2794
      %v2796 = vpop.f32.mrf.mxu0
      %2797 = vmatprep.mubr.bf16.mxu0 0
      %2798 = vmatmul.mubr.bf16.gmra.mxu0 %v2331
      %v2799 = vpop.f32.mrf.mxu0
      %v2800 = vadd.f32 %v2639, %v2799
      %v2801 = vpop.f32.mrf.mxu0
      %v2802 = vpop.f32.mrf.mxu0
      %v2803 = vadd.f32 %v2642, %v2802
      %v2804 = vpop.f32.mrf.mxu0
      %2805 = vmatprep.mubr.bf16.mxu0 0
      %2806 = vmatmul.mubr.bf16.gmra.mxu0 %v2334
      %v2807 = vpop.f32.mrf.mxu0
      %v2808 = vadd.f32 %v2647, %v2807
      %v2809 = vpop.f32.mrf.mxu0
      %v2810 = vpop.f32.mrf.mxu0
      %v2811 = vadd.f32 %v2650, %v2810
      %v2812 = vpop.f32.mrf.mxu0
      %2813 = vmatprep.mubr.bf16.mxu0 0
      %2814 = vmatmul.mubr.bf16.gmra.mxu0 %v2337
      %v2815 = vpop.f32.mrf.mxu0
      %v2816 = vadd.f32 %v2655, %v2815
      %v2817 = vpop.f32.mrf.mxu0
      %v2818 = vpop.f32.mrf.mxu0
      %v2819 = vadd.f32 %v2658, %v2818
      %v2820 = vpop.f32.mrf.mxu0
      %2821 = vmatprep.mubr.bf16.mxu0 0
      %2822 = vmatmul.mubr.bf16.gmra.mxu0 %v2340
      %v2823 = vpop.f32.mrf.mxu0
      %v2824 = vadd.f32 %v2663, %v2823
      %v2825 = vpop.f32.mrf.mxu0
      %v2826 = vpop.f32.mrf.mxu0
      %v2827 = vadd.f32 %v2666, %v2826
      %v2828 = vpop.f32.mrf.mxu0
      %2829 = vmatprep.mubr.bf16.mxu0 0
      %2830 = vmatmul.mubr.bf16.gmra.mxu0 %v2343
      %v2831 = vpop.f32.mrf.mxu0
      %v2832 = vadd.f32 %v2671, %v2831
      %v2833 = vpop.f32.mrf.mxu0
      %v2834 = vpop.f32.mrf.mxu0
      %v2835 = vadd.f32 %v2674, %v2834
      %v2836 = vpop.f32.mrf.mxu0
      %2837 = vmatprep.mubr.bf16.mxu0 0
      %2838 = vmatmul.mubr.bf16.gmra.mxu0 %v2346
      %v2839 = vpop.f32.mrf.mxu0
      %v2840 = vadd.f32 %v2679, %v2839
      %v2841 = vpop.f32.mrf.mxu0
      %v2842 = vpop.f32.mrf.mxu0
      %v2843 = vadd.f32 %v2682, %v2842
      %v2844 = vpop.f32.mrf.mxu0
      %2845 = vmatprep.mubr.bf16.mxu0 0
      %2846 = vmatmul.mubr.bf16.gmra.mxu0 %v2349
      %v2847 = vpop.f32.mrf.mxu0
      %v2848 = vadd.f32 %v2687, %v2847
      %v2849 = vpop.f32.mrf.mxu0
      %v2850 = vpop.f32.mrf.mxu0
      %v2851 = vadd.f32 %v2690, %v2850
      %v2852 = vpop.f32.mrf.mxu0
      %2853 = vmatprep.mubr.bf16.mxu0 0
      %2854 = vmatmul.mubr.bf16.gmra.mxu0 %v2352
      %v2855 = vpop.f32.mrf.mxu0
      %v2856 = vadd.f32 %v2695, %v2855
      %v2857 = vpop.f32.mrf.mxu0
      %v2858 = vpop.f32.mrf.mxu0
      %v2859 = vadd.f32 %v2698, %v2858
      %v2860 = vpop.f32.mrf.mxu0
      %2861 = vmatprep.mubr.bf16.mxu0 0
      %2862 = vmatmul.mubr.bf16.gmra.mxu0 %v2355
      %v2863 = vpop.f32.mrf.mxu0
      %v2864 = vadd.f32 %v2703, %v2863
      %v2865 = vpop.f32.mrf.mxu0
      %v2866 = vpop.f32.mrf.mxu0
      %v2867 = vadd.f32 %v2706, %v2866
      %v2868 = vpop.f32.mrf.mxu0
      %2869 = vdwg.mxu0
      %v2870 = vld [vmem:[#allocation4] sm:$0xff]
      %v2871 = vld [vmem:[#allocation4 + $0x8] sm:$0xff]
      %v2872 = vld [vmem:[#allocation4 + $0x10] sm:$0xff]
      %v2873 = vld [vmem:[#allocation4 + $0x18] sm:$0xff]
      %v2874 = vld [vmem:[#allocation4 + $0x20] sm:$0xff]
      %v2875 = vld [vmem:[#allocation4 + $0x28] sm:$0xff]
      %v2876 = vld [vmem:[#allocation4 + $0x30] sm:$0xff]
      %v2877 = vld [vmem:[#allocation4 + $0x38] sm:$0xff]
      %v2878 = vld [vmem:[#allocation4 + $0x40] sm:$0xff]
      %v2879 = vld [vmem:[#allocation4 + $0x48] sm:$0xff]
      %v2880 = vld [vmem:[#allocation4 + $0x50] sm:$0xff]
      %v2881 = vld [vmem:[#allocation4 + $0x58] sm:$0xff]
      %v2882 = vld [vmem:[#allocation4 + $0x60] sm:$0xff]
      %v2883 = vld [vmem:[#allocation4 + $0x68] sm:$0xff]
      %v2884 = vld [vmem:[#allocation4 + $0x70] sm:$0xff]
      %v2885 = vld [vmem:[#allocation4 + $0x78] sm:$0xff]
      %v2886 = vld [vmem:[#allocation4 + $0x80] sm:$0xff]
      %v2887 = vld [vmem:[#allocation4 + $0x88] sm:$0xff]
      %v2888 = vld [vmem:[#allocation4 + $0x90] sm:$0xff]
      %v2889 = vld [vmem:[#allocation4 + $0x98] sm:$0xff]
      %v2890 = vld [vmem:[#allocation4 + $0xa0] sm:$0xff]
      %v2891 = vld [vmem:[#allocation4 + $0xa8] sm:$0xff]
      %v2892 = vld [vmem:[#allocation4 + $0xb0] sm:$0xff]
      %v2893 = vld [vmem:[#allocation4 + $0xb8] sm:$0xff]
      %v2894 = vld [vmem:[#allocation4 + $0xc0] sm:$0xff]
      %v2895 = vld [vmem:[#allocation4 + $0xc8] sm:$0xff]
      %v2896 = vld [vmem:[#allocation4 + $0xd0] sm:$0xff]
      %v2897 = vld [vmem:[#allocation4 + $0xd8] sm:$0xff]
      %v2898 = vld [vmem:[#allocation4 + $0xe0] sm:$0xff]
      %v2899 = vld [vmem:[#allocation4 + $0xe8] sm:$0xff]
      %v2900 = vld [vmem:[#allocation4 + $0xf0] sm:$0xff]
      %v2901 = vld [vmem:[#allocation4 + $0xf8] sm:$0xff]
      %v2902 = vadd.f32 %v2870, %v2744
      %v2903 = vadd.f32 %v2871, %v2747
      %v2904 = vadd.f32 %v2872, %v2752
      %v2905 = vadd.f32 %v2873, %v2755
      %v2906 = vadd.f32 %v2874, %v2760
      %v2907 = vadd.f32 %v2875, %v2763
      %v2908 = vadd.f32 %v2876, %v2768
      %v2909 = vadd.f32 %v2877, %v2771
      %v2910 = vadd.f32 %v2878, %v2776
      %v2911 = vadd.f32 %v2879, %v2779
      %v2912 = vadd.f32 %v2880, %v2784
      %v2913 = vadd.f32 %v2881, %v2787
      %v2914 = vadd.f32 %v2882, %v2792
      %v2915 = vadd.f32 %v2883, %v2795
      %v2916 = vadd.f32 %v2884, %v2800
      %v2917 = vadd.f32 %v2885, %v2803
      %v2918 = vadd.f32 %v2886, %v2808
      %v2919 = vadd.f32 %v2887, %v2811
      %v2920 = vadd.f32 %v2888, %v2816
      %v2921 = vadd.f32 %v2889, %v2819
      %v2922 = vadd.f32 %v2890, %v2824
      %v2923 = vadd.f32 %v2891, %v2827
      %v2924 = vadd.f32 %v2892, %v2832
      %v2925 = vadd.f32 %v2893, %v2835
      %v2926 = vadd.f32 %v2894, %v2840
      %v2927 = vadd.f32 %v2895, %v2843
      %v2928 = vadd.f32 %v2896, %v2848
      %v2929 = vadd.f32 %v2897, %v2851
      %v2930 = vadd.f32 %v2898, %v2856
      %v2931 = vadd.f32 %v2899, %v2859
      %v2932 = vadd.f32 %v2900, %v2864
      %v2933 = vadd.f32 %v2901, %v2867
      %2934 = vst [vmem:[#allocation4] sm:$0xff] %v2902
      %2935 = vst [vmem:[#allocation4 + $0x8] sm:$0xff] %v2903
      %2936 = vst [vmem:[#allocation4 + $0x10] sm:$0xff] %v2904
      %2937 = vst [vmem:[#allocation4 + $0x18] sm:$0xff] %v2905
      %2938 = vst [vmem:[#allocation4 + $0x20] sm:$0xff] %v2906
      %2939 = vst [vmem:[#allocation4 + $0x28] sm:$0xff] %v2907
      %2940 = vst [vmem:[#allocation4 + $0x30] sm:$0xff] %v2908
      %2941 = vst [vmem:[#allocation4 + $0x38] sm:$0xff] %v2909
      %2942 = vst [vmem:[#allocation4 + $0x40] sm:$0xff] %v2910
      %2943 = vst [vmem:[#allocation4 + $0x48] sm:$0xff] %v2911
      %2944 = vst [vmem:[#allocation4 + $0x50] sm:$0xff] %v2912
      %2945 = vst [vmem:[#allocation4 + $0x58] sm:$0xff] %v2913
      %2946 = vst [vmem:[#allocation4 + $0x60] sm:$0xff] %v2914
      %2947 = vst [vmem:[#allocation4 + $0x68] sm:$0xff] %v2915
      %2948 = vst [vmem:[#allocation4 + $0x70] sm:$0xff] %v2916
      %2949 = vst [vmem:[#allocation4 + $0x78] sm:$0xff] %v2917
      %2950 = vst [vmem:[#allocation4 + $0x80] sm:$0xff] %v2918
      %2951 = vst [vmem:[#allocation4 + $0x88] sm:$0xff] %v2919
      %2952 = vst [vmem:[#allocation4 + $0x90] sm:$0xff] %v2920
      %2953 = vst [vmem:[#allocation4 + $0x98] sm:$0xff] %v2921
      %2954 = vst [vmem:[#allocation4 + $0xa0] sm:$0xff] %v2922
      %2955 = vst [vmem:[#allocation4 + $0xa8] sm:$0xff] %v2923
      %2956 = vst [vmem:[#allocation4 + $0xb0] sm:$0xff] %v2924
      %2957 = vst [vmem:[#allocation4 + $0xb8] sm:$0xff] %v2925
      %2958 = vst [vmem:[#allocation4 + $0xc0] sm:$0xff] %v2926
      %2959 = vst [vmem:[#allocation4 + $0xc8] sm:$0xff] %v2927
      %2960 = vst [vmem:[#allocation4 + $0xd0] sm:$0xff] %v2928
      %2961 = vst [vmem:[#allocation4 + $0xd8] sm:$0xff] %v2929
      %2962 = vst [vmem:[#allocation4 + $0xe0] sm:$0xff] %v2930
      %2963 = vst [vmem:[#allocation4 + $0xe8] sm:$0xff] %v2931
      %2964 = vst [vmem:[#allocation4 + $0xf0] sm:$0xff] %v2932
      %2965 = vst [vmem:[#allocation4 + $0xf8] sm:$0xff] %v2933
      %s2966 = scalar_lea.vmem [#allocation3], 48
      %v2967 = vld [vmem:[%s2966] sm:$0xff]
      %v2968 = vld [vmem:[%s2966 + $0x8] sm:$0xf]
      %v2969 = vld [vmem:[%s2966 + $0xc] sm:$0xff]
      %v2970 = vld [vmem:[%s2966 + $0x14] sm:$0xf]
      %v2971 = vld [vmem:[%s2966 + $0x18] sm:$0xff]
      %v2972 = vld [vmem:[%s2966 + $0x20] sm:$0xf]
      %v2973 = vld [vmem:[%s2966 + $0x24] sm:$0xff]
      %v2974 = vld [vmem:[%s2966 + $0x2c] sm:$0xf]
      %v2975 = vld [vmem:[%s2966 + $0x30] sm:$0xff]
      %v2976 = vld [vmem:[%s2966 + $0x38] sm:$0xf]
      %v2977 = vld [vmem:[%s2966 + $0x3c] sm:$0xff]
      %v2978 = vld [vmem:[%s2966 + $0x44] sm:$0xf]
      %v2979 = vld [vmem:[%s2966 + $0x48] sm:$0xff]
      %v2980 = vld [vmem:[%s2966 + $0x50] sm:$0xf]
      %v2981 = vld [vmem:[%s2966 + $0x54] sm:$0xff]
      %v2982 = vld [vmem:[%s2966 + $0x5c] sm:$0xf]
      %v2983 = vld [vmem:[%s2966 + $0x60] sm:$0xff]
      %v2984 = vld [vmem:[%s2966 + $0x68] sm:$0xf]
      %v2985 = vld [vmem:[%s2966 + $0x6c] sm:$0xff]
      %v2986 = vld [vmem:[%s2966 + $0x74] sm:$0xf]
      %v2987 = vld [vmem:[%s2966 + $0x78] sm:$0xff]
      %v2988 = vld [vmem:[%s2966 + $0x80] sm:$0xf]
      %v2989 = vld [vmem:[%s2966 + $0x84] sm:$0xff]
      %v2990 = vld [vmem:[%s2966 + $0x8c] sm:$0xf]
      %v2991 = vld [vmem:[%s2966 + $0x90] sm:$0xff]
      %v2992 = vld [vmem:[%s2966 + $0x98] sm:$0xf]
      %v2993 = vld [vmem:[%s2966 + $0x9c] sm:$0xff]
      %v2994 = vld [vmem:[%s2966 + $0xa4] sm:$0xf]
      %v2995 = vld [vmem:[%s2966 + $0xa8] sm:$0xff]
      %v2996 = vld [vmem:[%s2966 + $0xb0] sm:$0xf]
      %v2997 = vld [vmem:[%s2966 + $0xb4] sm:$0xff]
      %v2998 = vld [vmem:[%s2966 + $0xbc] sm:$0xf]
      %v2999 = vld [vmem:[%s2966 + $0xc0] sm:$0xff]
      %v3000 = vld [vmem:[%s2966 + $0xc8] sm:$0xf]
      %v3001 = vld [vmem:[%s2966 + $0xcc] sm:$0xff]
      %v3002 = vld [vmem:[%s2966 + $0xd4] sm:$0xf]
      %v3003 = vld [vmem:[%s2966 + $0xd8] sm:$0xff]
      %v3004 = vld [vmem:[%s2966 + $0xe0] sm:$0xf]
      %v3005 = vld [vmem:[%s2966 + $0xe4] sm:$0xff]
      %v3006 = vld [vmem:[%s2966 + $0xec] sm:$0xf]
      %v3007 = vld [vmem:[%s2966 + $0xf0] sm:$0xff]
      %v3008 = vld [vmem:[%s2966 + $0xf8] sm:$0xf]
      %v3009 = vld [vmem:[%s2966 + $0xfc] sm:$0xff]
      %v3010 = vld [vmem:[%s2966 + $0x104] sm:$0xf]
      %v3011 = vld [vmem:[%s2966 + $0x108] sm:$0xff]
      %v3012 = vld [vmem:[%s2966 + $0x110] sm:$0xf]
      %v3013 = vld [vmem:[%s2966 + $0x114] sm:$0xff]
      %v3014 = vld [vmem:[%s2966 + $0x11c] sm:$0xf]
      %v3015 = vld [vmem:[%s2966 + $0x120] sm:$0xff]
      %v3016 = vld [vmem:[%s2966 + $0x128] sm:$0xf]
      %v3017 = vld [vmem:[%s2966 + $0x12c] sm:$0xff]
      %v3018 = vld [vmem:[%s2966 + $0x134] sm:$0xf]
      %v3019 = vld [vmem:[%s2966 + $0x138] sm:$0xff]
      %v3020 = vld [vmem:[%s2966 + $0x140] sm:$0xf]
      %v3021 = vld [vmem:[%s2966 + $0x144] sm:$0xff]
      %v3022 = vld [vmem:[%s2966 + $0x14c] sm:$0xf]
      %v3023 = vld [vmem:[%s2966 + $0x150] sm:$0xff]
      %v3024 = vld [vmem:[%s2966 + $0x158] sm:$0xf]
      %v3025 = vld [vmem:[%s2966 + $0x15c] sm:$0xff]
      %v3026 = vld [vmem:[%s2966 + $0x164] sm:$0xf]
      %v3027 = vld [vmem:[%s2966 + $0x168] sm:$0xff]
      %v3028 = vld [vmem:[%s2966 + $0x170] sm:$0xf]
      %v3029 = vld [vmem:[%s2966 + $0x174] sm:$0xff]
      %v3030 = vld [vmem:[%s2966 + $0x17c] sm:$0xf]
      %s3031 = scalar_lea.vmem %s3, 384
      %v3032 = vld [vmem:[%s3031] sm:$0xf]
      %v3033 = vld [vmem:[%s3031 + $0x4] sm:$0xf]
      %v3034 = vld [vmem:[%s3031 + $0x8] sm:$0xf]
      %v3035 = vld [vmem:[%s3031 + $0xc] sm:$0xf]
      %v3036 = vld [vmem:[%s3031 + $0x10] sm:$0xf]
      %v3037 = vld [vmem:[%s3031 + $0x14] sm:$0xf]
      %v3038 = vld [vmem:[%s3031 + $0x18] sm:$0xf]
      %v3039 = vld [vmem:[%s3031 + $0x1c] sm:$0xf]
      %v3040 = vld [vmem:[%s3031 + $0x20] sm:$0xf]
      %v3041 = vld [vmem:[%s3031 + $0x24] sm:$0xf]
      %v3042 = vld [vmem:[%s3031 + $0x28] sm:$0xf]
      %v3043 = vld [vmem:[%s3031 + $0x2c] sm:$0xf]
      %v3044 = vld [vmem:[%s3031 + $0x30] sm:$0xf]
      %v3045 = vld [vmem:[%s3031 + $0x34] sm:$0xf]
      %v3046 = vld [vmem:[%s3031 + $0x38] sm:$0xf]
      %v3047 = vld [vmem:[%s3031 + $0x3c] sm:$0xf]
      %v3048 = vld [vmem:[%s3031 + $0x40] sm:$0xf]
      %v3049 = vld [vmem:[%s3031 + $0x44] sm:$0xf]
      %v3050 = vld [vmem:[%s3031 + $0x48] sm:$0xf]
      %v3051 = vld [vmem:[%s3031 + $0x4c] sm:$0xf]
      %v3052 = vld [vmem:[%s3031 + $0x50] sm:$0xf]
      %v3053 = vld [vmem:[%s3031 + $0x54] sm:$0xf]
      %v3054 = vld [vmem:[%s3031 + $0x58] sm:$0xf]
      %v3055 = vld [vmem:[%s3031 + $0x5c] sm:$0xf]
      %v3056 = vld [vmem:[%s3031 + $0x60] sm:$0xf]
      %v3057 = vld [vmem:[%s3031 + $0x64] sm:$0xf]
      %v3058 = vld [vmem:[%s3031 + $0x68] sm:$0xf]
      %v3059 = vld [vmem:[%s3031 + $0x6c] sm:$0xf]
      %v3060 = vld [vmem:[%s3031 + $0x70] sm:$0xf]
      %v3061 = vld [vmem:[%s3031 + $0x74] sm:$0xf]
      %v3062 = vld [vmem:[%s3031 + $0x78] sm:$0xf]
      %v3063 = vld [vmem:[%s3031 + $0x7c] sm:$0xf]
      %v3064 = vld [vmem:[%s3031 + $0x80] sm:$0xf]
      %v3065 = vld [vmem:[%s3031 + $0x84] sm:$0xf]
      %v3066 = vld [vmem:[%s3031 + $0x88] sm:$0xf]
      %v3067 = vld [vmem:[%s3031 + $0x8c] sm:$0xf]
      %v3068 = vld [vmem:[%s3031 + $0x90] sm:$0xf]
      %v3069 = vld [vmem:[%s3031 + $0x94] sm:$0xf]
      %v3070 = vld [vmem:[%s3031 + $0x98] sm:$0xf]
      %v3071 = vld [vmem:[%s3031 + $0x9c] sm:$0xf]
      %v3072 = vld [vmem:[%s3031 + $0xa0] sm:$0xf]
      %v3073 = vld [vmem:[%s3031 + $0xa4] sm:$0xf]
      %v3074 = vld [vmem:[%s3031 + $0xa8] sm:$0xf]
      %v3075 = vld [vmem:[%s3031 + $0xac] sm:$0xf]
      %v3076 = vld [vmem:[%s3031 + $0xb0] sm:$0xf]
      %v3077 = vld [vmem:[%s3031 + $0xb4] sm:$0xf]
      %v3078 = vld [vmem:[%s3031 + $0xb8] sm:$0xf]
      %v3079 = vld [vmem:[%s3031 + $0xbc] sm:$0xf]
      %v3144 = vunpack.c.l.b16 %v2967
      %v3145 = vunpack.c.h.b16 %v2967
      %v3146 = vunpack.c.l.b16 %v2968
      %v3147 = vunpack.c.l.b16 %v2969
      %v3148 = vunpack.c.h.b16 %v2969
      %v3149 = vunpack.c.l.b16 %v2970
      %v3150 = vunpack.c.l.b16 %v2971
      %v3151 = vunpack.c.h.b16 %v2971
      %v3152 = vunpack.c.l.b16 %v2972
      %v3153 = vunpack.c.l.b16 %v2973
      %v3154 = vunpack.c.h.b16 %v2973
      %v3155 = vunpack.c.l.b16 %v2974
      %v3156 = vunpack.c.l.b16 %v2975
      %v3157 = vunpack.c.h.b16 %v2975
      %v3158 = vunpack.c.l.b16 %v2976
      %v3159 = vunpack.c.l.b16 %v2977
      %v3160 = vunpack.c.h.b16 %v2977
      %v3161 = vunpack.c.l.b16 %v2978
      %v3162 = vunpack.c.l.b16 %v2979
      %v3163 = vunpack.c.h.b16 %v2979
      %v3164 = vunpack.c.l.b16 %v2980
      %v3165 = vunpack.c.l.b16 %v2981
      %v3166 = vunpack.c.h.b16 %v2981
      %v3167 = vunpack.c.l.b16 %v2982
      %v3168 = vunpack.c.l.b16 %v2983
      %v3169 = vunpack.c.h.b16 %v2983
      %v3170 = vunpack.c.l.b16 %v2984
      %v3171 = vunpack.c.l.b16 %v2985
      %v3172 = vunpack.c.h.b16 %v2985
      %v3173 = vunpack.c.l.b16 %v2986
      %v3174 = vunpack.c.l.b16 %v2987
      %v3175 = vunpack.c.h.b16 %v2987
      %v3176 = vunpack.c.l.b16 %v2988
      %v3177 = vunpack.c.l.b16 %v2989
      %v3178 = vunpack.c.h.b16 %v2989
      %v3179 = vunpack.c.l.b16 %v2990
      %v3180 = vunpack.c.l.b16 %v2991
      %v3181 = vunpack.c.h.b16 %v2991
      %v3182 = vunpack.c.l.b16 %v2992
      %v3183 = vunpack.c.l.b16 %v2993
      %v3184 = vunpack.c.h.b16 %v2993
      %v3185 = vunpack.c.l.b16 %v2994
      %v3186 = vunpack.c.l.b16 %v2995
      %v3187 = vunpack.c.h.b16 %v2995
      %v3188 = vunpack.c.l.b16 %v2996
      %v3189 = vunpack.c.l.b16 %v2997
      %v3190 = vunpack.c.h.b16 %v2997
      %v3191 = vunpack.c.l.b16 %v2998
      %v3192 = vunpack.c.l.b16 %v2999
      %v3193 = vunpack.c.h.b16 %v2999
      %v3194 = vunpack.c.l.b16 %v3000
      %v3195 = vunpack.c.l.b16 %v3001
      %v3196 = vunpack.c.h.b16 %v3001
      %v3197 = vunpack.c.l.b16 %v3002
      %v3198 = vunpack.c.l.b16 %v3003
      %v3199 = vunpack.c.h.b16 %v3003
      %v3200 = vunpack.c.l.b16 %v3004
      %v3201 = vunpack.c.l.b16 %v3005
      %v3202 = vunpack.c.h.b16 %v3005
      %v3203 = vunpack.c.l.b16 %v3006
      %v3204 = vunpack.c.l.b16 %v3007
      %v3205 = vunpack.c.h.b16 %v3007
      %v3206 = vunpack.c.l.b16 %v3008
      %v3207 = vunpack.c.l.b16 %v3009
      %v3208 = vunpack.c.h.b16 %v3009
      %v3209 = vunpack.c.l.b16 %v3010
      %v3210 = vunpack.c.l.b16 %v3011
      %v3211 = vunpack.c.h.b16 %v3011
      %v3212 = vunpack.c.l.b16 %v3012
      %v3213 = vunpack.c.l.b16 %v3013
      %v3214 = vunpack.c.h.b16 %v3013
      %v3215 = vunpack.c.l.b16 %v3014
      %v3216 = vunpack.c.l.b16 %v3015
      %v3217 = vunpack.c.h.b16 %v3015
      %v3218 = vunpack.c.l.b16 %v3016
      %v3219 = vunpack.c.l.b16 %v3017
      %v3220 = vunpack.c.h.b16 %v3017
      %v3221 = vunpack.c.l.b16 %v3018
      %v3222 = vunpack.c.l.b16 %v3019
      %v3223 = vunpack.c.h.b16 %v3019
      %v3224 = vunpack.c.l.b16 %v3020
      %v3225 = vunpack.c.l.b16 %v3021
      %v3226 = vunpack.c.h.b16 %v3021
      %v3227 = vunpack.c.l.b16 %v3022
      %v3228 = vunpack.c.l.b16 %v3023
      %v3229 = vunpack.c.h.b16 %v3023
      %v3230 = vunpack.c.l.b16 %v3024
      %v3231 = vunpack.c.l.b16 %v3025
      %v3232 = vunpack.c.h.b16 %v3025
      %v3233 = vunpack.c.l.b16 %v3026
      %v3234 = vunpack.c.l.b16 %v3027
      %v3235 = vunpack.c.h.b16 %v3027
      %v3236 = vunpack.c.l.b16 %v3028
      %v3237 = vunpack.c.l.b16 %v3029
      %v3238 = vunpack.c.h.b16 %v3029
      %v3239 = vunpack.c.l.b16 %v3030
      %v3240 = vpack.c.b16 %v3147, %v3144
      %v3241 = vpack.c.b16 %v3148, %v3145
      %v3242 = vpack.c.b16 %v3149, %v3146
      %v3243 = vpack.c.b16 %v3153, %v3150
      %v3244 = vpack.c.b16 %v3154, %v3151
      %v3245 = vpack.c.b16 %v3155, %v3152
      %v3246 = vpack.c.b16 %v3159, %v3156
      %v3247 = vpack.c.b16 %v3160, %v3157
      %v3248 = vpack.c.b16 %v3161, %v3158
      %v3249 = vpack.c.b16 %v3165, %v3162
      %v3250 = vpack.c.b16 %v3166, %v3163
      %v3251 = vpack.c.b16 %v3167, %v3164
      %v3252 = vpack.c.b16 %v3171, %v3168
      %v3253 = vpack.c.b16 %v3172, %v3169
      %v3254 = vpack.c.b16 %v3173, %v3170
      %v3255 = vpack.c.b16 %v3177, %v3174
      %v3256 = vpack.c.b16 %v3178, %v3175
      %v3257 = vpack.c.b16 %v3179, %v3176
      %v3258 = vpack.c.b16 %v3183, %v3180
      %v3259 = vpack.c.b16 %v3184, %v3181
      %v3260 = vpack.c.b16 %v3185, %v3182
      %v3261 = vpack.c.b16 %v3189, %v3186
      %v3262 = vpack.c.b16 %v3190, %v3187
      %v3263 = vpack.c.b16 %v3191, %v3188
      %v3264 = vpack.c.b16 %v3195, %v3192
      %v3265 = vpack.c.b16 %v3196, %v3193
      %v3266 = vpack.c.b16 %v3197, %v3194
      %v3267 = vpack.c.b16 %v3201, %v3198
      %v3268 = vpack.c.b16 %v3202, %v3199
      %v3269 = vpack.c.b16 %v3203, %v3200
      %v3270 = vpack.c.b16 %v3207, %v3204
      %v3271 = vpack.c.b16 %v3208, %v3205
      %v3272 = vpack.c.b16 %v3209, %v3206
      %v3273 = vpack.c.b16 %v3213, %v3210
      %v3274 = vpack.c.b16 %v3214, %v3211
      %v3275 = vpack.c.b16 %v3215, %v3212
      %v3276 = vpack.c.b16 %v3219, %v3216
      %v3277 = vpack.c.b16 %v3220, %v3217
      %v3278 = vpack.c.b16 %v3221, %v3218
      %v3279 = vpack.c.b16 %v3225, %v3222
      %v3280 = vpack.c.b16 %v3226, %v3223
      %v3281 = vpack.c.b16 %v3227, %v3224
      %v3282 = vpack.c.b16 %v3231, %v3228
      %v3283 = vpack.c.b16 %v3232, %v3229
      %v3284 = vpack.c.b16 %v3233, %v3230
      %v3285 = vpack.c.b16 %v3237, %v3234
      %v3286 = vpack.c.b16 %v3238, %v3235
      %v3287 = vpack.c.b16 %v3239, %v3236
      %v3384 = vunpack.c.l.b16 %v3032
      %v3385 = vunpack.c.l.b16 %v3033
      %v3386 = vunpack.c.l.b16 %v3034
      %v3387 = vunpack.c.l.b16 %v3035
      %v3388 = vunpack.c.l.b16 %v3036
      %v3389 = vunpack.c.l.b16 %v3037
      %v3390 = vunpack.c.l.b16 %v3038
      %v3391 = vunpack.c.l.b16 %v3039
      %v3392 = vunpack.c.l.b16 %v3040
      %v3393 = vunpack.c.l.b16 %v3041
      %v3394 = vunpack.c.l.b16 %v3042
      %v3395 = vunpack.c.l.b16 %v3043
      %v3396 = vunpack.c.l.b16 %v3044
      %v3397 = vunpack.c.l.b16 %v3045
      %v3398 = vunpack.c.l.b16 %v3046
      %v3399 = vunpack.c.l.b16 %v3047
      %v3400 = vunpack.c.l.b16 %v3048
      %v3401 = vunpack.c.l.b16 %v3049
      %v3402 = vunpack.c.l.b16 %v3050
      %v3403 = vunpack.c.l.b16 %v3051
      %v3404 = vunpack.c.l.b16 %v3052
      %v3405 = vunpack.c.l.b16 %v3053
      %v3406 = vunpack.c.l.b16 %v3054
      %v3407 = vunpack.c.l.b16 %v3055
      %v3408 = vunpack.c.l.b16 %v3056
      %v3409 = vunpack.c.l.b16 %v3057
      %v3410 = vunpack.c.l.b16 %v3058
      %v3411 = vunpack.c.l.b16 %v3059
      %v3412 = vunpack.c.l.b16 %v3060
      %v3413 = vunpack.c.l.b16 %v3061
      %v3414 = vunpack.c.l.b16 %v3062
      %v3415 = vunpack.c.l.b16 %v3063
      %v3416 = vunpack.c.l.b16 %v3064
      %v3417 = vunpack.c.l.b16 %v3065
      %v3418 = vunpack.c.l.b16 %v3066
      %v3419 = vunpack.c.l.b16 %v3067
      %v3420 = vunpack.c.l.b16 %v3068
      %v3421 = vunpack.c.l.b16 %v3069
      %v3422 = vunpack.c.l.b16 %v3070
      %v3423 = vunpack.c.l.b16 %v3071
      %v3424 = vunpack.c.l.b16 %v3072
      %v3425 = vunpack.c.l.b16 %v3073
      %v3426 = vunpack.c.l.b16 %v3074
      %v3427 = vunpack.c.l.b16 %v3075
      %v3428 = vunpack.c.l.b16 %v3076
      %v3429 = vunpack.c.l.b16 %v3077
      %v3430 = vunpack.c.l.b16 %v3078
      %v3431 = vunpack.c.l.b16 %v3079
      %v3432 = vpack.c.b16 %v3385, %v3384
      %v3433 = vpack.c.b16 %v3387, %v3386
      %v3434 = vpack.c.b16 %v3389, %v3388
      %v3435 = vpack.c.b16 %v3391, %v3390
      %v3436 = vpack.c.b16 %v3393, %v3392
      %v3437 = vpack.c.b16 %v3395, %v3394
      %v3438 = vpack.c.b16 %v3397, %v3396
      %v3439 = vpack.c.b16 %v3399, %v3398
      %v3440 = vpack.c.b16 %v3401, %v3400
      %v3441 = vpack.c.b16 %v3403, %v3402
      %v3442 = vpack.c.b16 %v3405, %v3404
      %v3443 = vpack.c.b16 %v3407, %v3406
      %v3444 = vpack.c.b16 %v3409, %v3408
      %v3445 = vpack.c.b16 %v3411, %v3410
      %v3446 = vpack.c.b16 %v3413, %v3412
      %v3447 = vpack.c.b16 %v3415, %v3414
      %v3448 = vpack.c.b16 %v3417, %v3416
      %v3449 = vpack.c.b16 %v3419, %v3418
      %v3450 = vpack.c.b16 %v3421, %v3420
      %v3451 = vpack.c.b16 %v3423, %v3422
      %v3452 = vpack.c.b16 %v3425, %v3424
      %v3453 = vpack.c.b16 %v3427, %v3426
      %v3454 = vpack.c.b16 %v3429, %v3428
      %v3455 = vpack.c.b16 %v3431, %v3430
      %3480 = vmatprep.subr.bf16.mxu0 0
      %3481 = vmatpush1.bf16.msra.mxu0 %v3439
      %3482 = vmatprep.subr.bf16.mxu0 0
      %3483 = vmatpush1.bf16.msra.mxu0 %v3438
      %3484 = vmatprep.subr.bf16.mxu0 0
      %3485 = vmatpush1.bf16.msra.mxu0 %v3437
      %3486 = vmatprep.subr.bf16.mxu0 0
      %3487 = vmatpush1.bf16.msra.mxu0 %v3436
      %3488 = vmatprep.subr.bf16.mxu0 0
      %3489 = vmatpush1.bf16.msra.mxu0 %v3435
      %3490 = vmatprep.subr.bf16.mxu0 0
      %3491 = vmatpush1.bf16.msra.mxu0 %v3434
      %3492 = vmatprep.subr.bf16.mxu0 0
      %3493 = vmatpush1.bf16.msra.mxu0 %v3433
      %3494 = vmatprep.subr.bf16.mxu0 0
      %3495 = vmatpush1.bf16.msra.mxu0 %v3432
      %3496 = vmatprep.subr.bf16.mxu0 0
      %3497 = vmatpush2.bf16.msra.mxu0 %v3447
      %3498 = vmatprep.subr.bf16.mxu0 0
      %3499 = vmatpush2.bf16.msra.mxu0 %v3446
      %3500 = vmatprep.subr.bf16.mxu0 0
      %3501 = vmatpush2.bf16.msra.mxu0 %v3445
      %3502 = vmatprep.subr.bf16.mxu0 0
      %3503 = vmatpush2.bf16.msra.mxu0 %v3444
      %3504 = vmatprep.subr.bf16.mxu0 0
      %3505 = vmatpush2.bf16.msra.mxu0 %v3443
      %3506 = vmatprep.subr.bf16.mxu0 0
      %3507 = vmatpush2.bf16.msra.mxu0 %v3442
      %3508 = vmatprep.subr.bf16.mxu0 0
      %3509 = vmatpush2.bf16.msra.mxu0 %v3441
      %3510 = vmatprep.subr.bf16.mxu0 0
      %3511 = vmatpush2.bf16.msra.mxu0 %v3440
      %3512 = vmatprep.mubr.bf16.mxu0 %v3241
      %3513 = vmatmul.mubr.bf16.gmra.mxu0 %v3240
      %v3514 = vpop.f32.mrf.mxu0
      %v3515 = vadd.f32 0.0, %v3514
      %v3516 = vpop.f32.mrf.mxu0
      %v3517 = vpop.f32.mrf.mxu0
      %v3518 = vadd.f32 0.0, %v3517
      %v3519 = vpop.f32.mrf.mxu0
      %3520 = vmatprep.mubr.bf16.mxu0 %v3244
      %3521 = vmatmul.mubr.bf16.gmra.mxu0 %v3243
      %v3522 = vpop.f32.mrf.mxu0
      %v3523 = vadd.f32 0.0, %v3522
      %v3524 = vpop.f32.mrf.mxu0
      %v3525 = vpop.f32.mrf.mxu0
      %v3526 = vadd.f32 0.0, %v3525
      %v3527 = vpop.f32.mrf.mxu0
      %3528 = vmatprep.mubr.bf16.mxu0 %v3247
      %3529 = vmatmul.mubr.bf16.gmra.mxu0 %v3246
      %v3530 = vpop.f32.mrf.mxu0
      %v3531 = vadd.f32 0.0, %v3530
      %v3532 = vpop.f32.mrf.mxu0
      %v3533 = vpop.f32.mrf.mxu0
      %v3534 = vadd.f32 0.0, %v3533
      %v3535 = vpop.f32.mrf.mxu0
      %3536 = vmatprep.mubr.bf16.mxu0 %v3250
      %3537 = vmatmul.mubr.bf16.gmra.mxu0 %v3249
      %v3538 = vpop.f32.mrf.mxu0
      %v3539 = vadd.f32 0.0, %v3538
      %v3540 = vpop.f32.mrf.mxu0
      %v3541 = vpop.f32.mrf.mxu0
      %v3542 = vadd.f32 0.0, %v3541
      %v3543 = vpop.f32.mrf.mxu0
      %3544 = vmatprep.mubr.bf16.mxu0 %v3253
      %3545 = vmatmul.mubr.bf16.gmra.mxu0 %v3252
      %v3546 = vpop.f32.mrf.mxu0
      %v3547 = vadd.f32 0.0, %v3546
      %v3548 = vpop.f32.mrf.mxu0
      %v3549 = vpop.f32.mrf.mxu0
      %v3550 = vadd.f32 0.0, %v3549
      %v3551 = vpop.f32.mrf.mxu0
      %3552 = vmatprep.mubr.bf16.mxu0 %v3256
      %3553 = vmatmul.mubr.bf16.gmra.mxu0 %v3255
      %v3554 = vpop.f32.mrf.mxu0
      %v3555 = vadd.f32 0.0, %v3554
      %v3556 = vpop.f32.mrf.mxu0
      %v3557 = vpop.f32.mrf.mxu0
      %v3558 = vadd.f32 0.0, %v3557
      %v3559 = vpop.f32.mrf.mxu0
      %3560 = vmatprep.mubr.bf16.mxu0 %v3259
      %3561 = vmatmul.mubr.bf16.gmra.mxu0 %v3258
      %v3562 = vpop.f32.mrf.mxu0
      %v3563 = vadd.f32 0.0, %v3562
      %v3564 = vpop.f32.mrf.mxu0
      %v3565 = vpop.f32.mrf.mxu0
      %v3566 = vadd.f32 0.0, %v3565
      %v3567 = vpop.f32.mrf.mxu0
      %3568 = vmatprep.mubr.bf16.mxu0 %v3262
      %3569 = vmatmul.mubr.bf16.gmra.mxu0 %v3261
      %v3570 = vpop.f32.mrf.mxu0
      %v3571 = vadd.f32 0.0, %v3570
      %v3572 = vpop.f32.mrf.mxu0
      %v3573 = vpop.f32.mrf.mxu0
      %v3574 = vadd.f32 0.0, %v3573
      %v3575 = vpop.f32.mrf.mxu0
      %3576 = vmatprep.mubr.bf16.mxu0 %v3265
      %3577 = vmatmul.mubr.bf16.gmra.mxu0 %v3264
      %v3578 = vpop.f32.mrf.mxu0
      %v3579 = vadd.f32 0.0, %v3578
      %v3580 = vpop.f32.mrf.mxu0
      %v3581 = vpop.f32.mrf.mxu0
      %v3582 = vadd.f32 0.0, %v3581
      %v3583 = vpop.f32.mrf.mxu0
      %3584 = vmatprep.mubr.bf16.mxu0 %v3268
      %3585 = vmatmul.mubr.bf16.gmra.mxu0 %v3267
      %v3586 = vpop.f32.mrf.mxu0
      %v3587 = vadd.f32 0.0, %v3586
      %v3588 = vpop.f32.mrf.mxu0
      %v3589 = vpop.f32.mrf.mxu0
      %v3590 = vadd.f32 0.0, %v3589
      %v3591 = vpop.f32.mrf.mxu0
      %3592 = vmatprep.mubr.bf16.mxu0 %v3271
      %3593 = vmatmul.mubr.bf16.gmra.mxu0 %v3270
      %v3594 = vpop.f32.mrf.mxu0
      %v3595 = vadd.f32 0.0, %v3594
      %v3596 = vpop.f32.mrf.mxu0
      %v3597 = vpop.f32.mrf.mxu0
      %v3598 = vadd.f32 0.0, %v3597
      %v3599 = vpop.f32.mrf.mxu0
      %3600 = vmatprep.mubr.bf16.mxu0 %v3274
      %3601 = vmatmul.mubr.bf16.gmra.mxu0 %v3273
      %v3602 = vpop.f32.mrf.mxu0
      %v3603 = vadd.f32 0.0, %v3602
      %v3604 = vpop.f32.mrf.mxu0
      %v3605 = vpop.f32.mrf.mxu0
      %v3606 = vadd.f32 0.0, %v3605
      %v3607 = vpop.f32.mrf.mxu0
      %3608 = vmatprep.mubr.bf16.mxu0 %v3277
      %3609 = vmatmul.mubr.bf16.gmra.mxu0 %v3276
      %v3610 = vpop.f32.mrf.mxu0
      %v3611 = vadd.f32 0.0, %v3610
      %v3612 = vpop.f32.mrf.mxu0
      %v3613 = vpop.f32.mrf.mxu0
      %v3614 = vadd.f32 0.0, %v3613
      %v3615 = vpop.f32.mrf.mxu0
      %3616 = vmatprep.mubr.bf16.mxu0 %v3280
      %3617 = vmatmul.mubr.bf16.gmra.mxu0 %v3279
      %v3618 = vpop.f32.mrf.mxu0
      %v3619 = vadd.f32 0.0, %v3618
      %v3620 = vpop.f32.mrf.mxu0
      %v3621 = vpop.f32.mrf.mxu0
      %v3622 = vadd.f32 0.0, %v3621
      %v3623 = vpop.f32.mrf.mxu0
      %3624 = vmatprep.mubr.bf16.mxu0 %v3283
      %3625 = vmatmul.mubr.bf16.gmra.mxu0 %v3282
      %v3626 = vpop.f32.mrf.mxu0
      %v3627 = vadd.f32 0.0, %v3626
      %v3628 = vpop.f32.mrf.mxu0
      %v3629 = vpop.f32.mrf.mxu0
      %v3630 = vadd.f32 0.0, %v3629
      %v3631 = vpop.f32.mrf.mxu0
      %3632 = vmatprep.mubr.bf16.mxu0 %v3286
      %3633 = vmatmul.mubr.bf16.gmra.mxu0 %v3285
      %v3634 = vpop.f32.mrf.mxu0
      %v3635 = vadd.f32 0.0, %v3634
      %v3636 = vpop.f32.mrf.mxu0
      %v3637 = vpop.f32.mrf.mxu0
      %v3638 = vadd.f32 0.0, %v3637
      %v3639 = vpop.f32.mrf.mxu0
      %3640 = vdwg.mxu0
      %3641 = vmatprep.subr.bf16.mxu0 0
      %3642 = vmatpush1.bf16.msra.mxu0 %v3455
      %3643 = vmatprep.subr.bf16.mxu0 0
      %3644 = vmatpush1.bf16.msra.mxu0 %v3454
      %3645 = vmatprep.subr.bf16.mxu0 0
      %3646 = vmatpush1.bf16.msra.mxu0 %v3453
      %3647 = vmatprep.subr.bf16.mxu0 0
      %3648 = vmatpush1.bf16.msra.mxu0 %v3452
      %3649 = vmatprep.subr.bf16.mxu0 0
      %3650 = vmatpush1.bf16.msra.mxu0 %v3451
      %3651 = vmatprep.subr.bf16.mxu0 0
      %3652 = vmatpush1.bf16.msra.mxu0 %v3450
      %3653 = vmatprep.subr.bf16.mxu0 0
      %3654 = vmatpush1.bf16.msra.mxu0 %v3449
      %3655 = vmatprep.subr.bf16.mxu0 0
      %3656 = vmatpush1.bf16.msra.mxu0 %v3448
      %3657 = vmatprep.subr.bf16.mxu0 0
      %3658 = vmatpush2.bf16.msra.mxu0 0
      %3659 = vmatprep.subr.bf16.mxu0 0
      %3660 = vmatpush2.bf16.msra.mxu0 0
      %3661 = vmatprep.subr.bf16.mxu0 0
      %3662 = vmatpush2.bf16.msra.mxu0 0
      %3663 = vmatprep.subr.bf16.mxu0 0
      %3664 = vmatpush2.bf16.msra.mxu0 0
      %3665 = vmatprep.subr.bf16.mxu0 0
      %3666 = vmatpush2.bf16.msra.mxu0 0
      %3667 = vmatprep.subr.bf16.mxu0 0
      %3668 = vmatpush2.bf16.msra.mxu0 0
      %3669 = vmatprep.subr.bf16.mxu0 0
      %3670 = vmatpush2.bf16.msra.mxu0 0
      %3671 = vmatprep.subr.bf16.mxu0 0
      %3672 = vmatpush2.bf16.msra.mxu0 0
      %3673 = vmatprep.mubr.bf16.mxu0 0
      %3674 = vmatmul.mubr.bf16.gmra.mxu0 %v3242
      %v3675 = vpop.f32.mrf.mxu0
      %v3676 = vadd.f32 %v3515, %v3675
      %v3677 = vpop.f32.mrf.mxu0
      %v3678 = vpop.f32.mrf.mxu0
      %v3679 = vadd.f32 %v3518, %v3678
      %v3680 = vpop.f32.mrf.mxu0
      %3681 = vmatprep.mubr.bf16.mxu0 0
      %3682 = vmatmul.mubr.bf16.gmra.mxu0 %v3245
      %v3683 = vpop.f32.mrf.mxu0
      %v3684 = vadd.f32 %v3523, %v3683
      %v3685 = vpop.f32.mrf.mxu0
      %v3686 = vpop.f32.mrf.mxu0
      %v3687 = vadd.f32 %v3526, %v3686
      %v3688 = vpop.f32.mrf.mxu0
      %3689 = vmatprep.mubr.bf16.mxu0 0
      %3690 = vmatmul.mubr.bf16.gmra.mxu0 %v3248
      %v3691 = vpop.f32.mrf.mxu0
      %v3692 = vadd.f32 %v3531, %v3691
      %v3693 = vpop.f32.mrf.mxu0
      %v3694 = vpop.f32.mrf.mxu0
      %v3695 = vadd.f32 %v3534, %v3694
      %v3696 = vpop.f32.mrf.mxu0
      %3697 = vmatprep.mubr.bf16.mxu0 0
      %3698 = vmatmul.mubr.bf16.gmra.mxu0 %v3251
      %v3699 = vpop.f32.mrf.mxu0
      %v3700 = vadd.f32 %v3539, %v3699
      %v3701 = vpop.f32.mrf.mxu0
      %v3702 = vpop.f32.mrf.mxu0
      %v3703 = vadd.f32 %v3542, %v3702
      %v3704 = vpop.f32.mrf.mxu0
      %3705 = vmatprep.mubr.bf16.mxu0 0
      %3706 = vmatmul.mubr.bf16.gmra.mxu0 %v3254
      %v3707 = vpop.f32.mrf.mxu0
      %v3708 = vadd.f32 %v3547, %v3707
      %v3709 = vpop.f32.mrf.mxu0
      %v3710 = vpop.f32.mrf.mxu0
      %v3711 = vadd.f32 %v3550, %v3710
      %v3712 = vpop.f32.mrf.mxu0
      %3713 = vmatprep.mubr.bf16.mxu0 0
      %3714 = vmatmul.mubr.bf16.gmra.mxu0 %v3257
      %v3715 = vpop.f32.mrf.mxu0
      %v3716 = vadd.f32 %v3555, %v3715
      %v3717 = vpop.f32.mrf.mxu0
      %v3718 = vpop.f32.mrf.mxu0
      %v3719 = vadd.f32 %v3558, %v3718
      %v3720 = vpop.f32.mrf.mxu0
      %3721 = vmatprep.mubr.bf16.mxu0 0
      %3722 = vmatmul.mubr.bf16.gmra.mxu0 %v3260
      %v3723 = vpop.f32.mrf.mxu0
      %v3724 = vadd.f32 %v3563, %v3723
      %v3725 = vpop.f32.mrf.mxu0
      %v3726 = vpop.f32.mrf.mxu0
      %v3727 = vadd.f32 %v3566, %v3726
      %v3728 = vpop.f32.mrf.mxu0
      %3729 = vmatprep.mubr.bf16.mxu0 0
      %3730 = vmatmul.mubr.bf16.gmra.mxu0 %v3263
      %v3731 = vpop.f32.mrf.mxu0
      %v3732 = vadd.f32 %v3571, %v3731
      %v3733 = vpop.f32.mrf.mxu0
      %v3734 = vpop.f32.mrf.mxu0
      %v3735 = vadd.f32 %v3574, %v3734
      %v3736 = vpop.f32.mrf.mxu0
      %3737 = vmatprep.mubr.bf16.mxu0 0
      %3738 = vmatmul.mubr.bf16.gmra.mxu0 %v3266
      %v3739 = vpop.f32.mrf.mxu0
      %v3740 = vadd.f32 %v3579, %v3739
      %v3741 = vpop.f32.mrf.mxu0
      %v3742 = vpop.f32.mrf.mxu0
      %v3743 = vadd.f32 %v3582, %v3742
      %v3744 = vpop.f32.mrf.mxu0
      %3745 = vmatprep.mubr.bf16.mxu0 0
      %3746 = vmatmul.mubr.bf16.gmra.mxu0 %v3269
      %v3747 = vpop.f32.mrf.mxu0
      %v3748 = vadd.f32 %v3587, %v3747
      %v3749 = vpop.f32.mrf.mxu0
      %v3750 = vpop.f32.mrf.mxu0
      %v3751 = vadd.f32 %v3590, %v3750
      %v3752 = vpop.f32.mrf.mxu0
      %3753 = vmatprep.mubr.bf16.mxu0 0
      %3754 = vmatmul.mubr.bf16.gmra.mxu0 %v3272
      %v3755 = vpop.f32.mrf.mxu0
      %v3756 = vadd.f32 %v3595, %v3755
      %v3757 = vpop.f32.mrf.mxu0
      %v3758 = vpop.f32.mrf.mxu0
      %v3759 = vadd.f32 %v3598, %v3758
      %v3760 = vpop.f32.mrf.mxu0
      %3761 = vmatprep.mubr.bf16.mxu0 0
      %3762 = vmatmul.mubr.bf16.gmra.mxu0 %v3275
      %v3763 = vpop.f32.mrf.mxu0
      %v3764 = vadd.f32 %v3603, %v3763
      %v3765 = vpop.f32.mrf.mxu0
      %v3766 = vpop.f32.mrf.mxu0
      %v3767 = vadd.f32 %v3606, %v3766
      %v3768 = vpop.f32.mrf.mxu0
      %3769 = vmatprep.mubr.bf16.mxu0 0
      %3770 = vmatmul.mubr.bf16.gmra.mxu0 %v3278
      %v3771 = vpop.f32.mrf.mxu0
      %v3772 = vadd.f32 %v3611, %v3771
      %v3773 = vpop.f32.mrf.mxu0
      %v3774 = vpop.f32.mrf.mxu0
      %v3775 = vadd.f32 %v3614, %v3774
      %v3776 = vpop.f32.mrf.mxu0
      %3777 = vmatprep.mubr.bf16.mxu0 0
      %3778 = vmatmul.mubr.bf16.gmra.mxu0 %v3281
      %v3779 = vpop.f32.mrf.mxu0
      %v3780 = vadd.f32 %v3619, %v3779
      %v3781 = vpop.f32.mrf.mxu0
      %v3782 = vpop.f32.mrf.mxu0
      %v3783 = vadd.f32 %v3622, %v3782
      %v3784 = vpop.f32.mrf.mxu0
      %3785 = vmatprep.mubr.bf16.mxu0 0
      %3786 = vmatmul.mubr.bf16.gmra.mxu0 %v3284
      %v3787 = vpop.f32.mrf.mxu0
      %v3788 = vadd.f32 %v3627, %v3787
      %v3789 = vpop.f32.mrf.mxu0
      %v3790 = vpop.f32.mrf.mxu0
      %v3791 = vadd.f32 %v3630, %v3790
      %v3792 = vpop.f32.mrf.mxu0
      %3793 = vmatprep.mubr.bf16.mxu0 0
      %3794 = vmatmul.mubr.bf16.gmra.mxu0 %v3287
      %v3795 = vpop.f32.mrf.mxu0
      %v3796 = vadd.f32 %v3635, %v3795
      %v3797 = vpop.f32.mrf.mxu0
      %v3798 = vpop.f32.mrf.mxu0
      %v3799 = vadd.f32 %v3638, %v3798
      %v3800 = vpop.f32.mrf.mxu0
      %3801 = vdwg.mxu0
      %v3802 = vld [vmem:[#allocation4] sm:$0xff]
      %v3803 = vld [vmem:[#allocation4 + $0x8] sm:$0xff]
      %v3804 = vld [vmem:[#allocation4 + $0x10] sm:$0xff]
      %v3805 = vld [vmem:[#allocation4 + $0x18] sm:$0xff]
      %v3806 = vld [vmem:[#allocation4 + $0x20] sm:$0xff]
      %v3807 = vld [vmem:[#allocation4 + $0x28] sm:$0xff]
      %v3808 = vld [vmem:[#allocation4 + $0x30] sm:$0xff]
      %v3809 = vld [vmem:[#allocation4 + $0x38] sm:$0xff]
      %v3810 = vld [vmem:[#allocation4 + $0x40] sm:$0xff]
      %v3811 = vld [vmem:[#allocation4 + $0x48] sm:$0xff]
      %v3812 = vld [vmem:[#allocation4 + $0x50] sm:$0xff]
      %v3813 = vld [vmem:[#allocation4 + $0x58] sm:$0xff]
      %v3814 = vld [vmem:[#allocation4 + $0x60] sm:$0xff]
      %v3815 = vld [vmem:[#allocation4 + $0x68] sm:$0xff]
      %v3816 = vld [vmem:[#allocation4 + $0x70] sm:$0xff]
      %v3817 = vld [vmem:[#allocation4 + $0x78] sm:$0xff]
      %v3818 = vld [vmem:[#allocation4 + $0x80] sm:$0xff]
      %v3819 = vld [vmem:[#allocation4 + $0x88] sm:$0xff]
      %v3820 = vld [vmem:[#allocation4 + $0x90] sm:$0xff]
      %v3821 = vld [vmem:[#allocation4 + $0x98] sm:$0xff]
      %v3822 = vld [vmem:[#allocation4 + $0xa0] sm:$0xff]
      %v3823 = vld [vmem:[#allocation4 + $0xa8] sm:$0xff]
      %v3824 = vld [vmem:[#allocation4 + $0xb0] sm:$0xff]
      %v3825 = vld [vmem:[#allocation4 + $0xb8] sm:$0xff]
      %v3826 = vld [vmem:[#allocation4 + $0xc0] sm:$0xff]
      %v3827 = vld [vmem:[#allocation4 + $0xc8] sm:$0xff]
      %v3828 = vld [vmem:[#allocation4 + $0xd0] sm:$0xff]
      %v3829 = vld [vmem:[#allocation4 + $0xd8] sm:$0xff]
      %v3830 = vld [vmem:[#allocation4 + $0xe0] sm:$0xff]
      %v3831 = vld [vmem:[#allocation4 + $0xe8] sm:$0xff]
      %v3832 = vld [vmem:[#allocation4 + $0xf0] sm:$0xff]
      %v3833 = vld [vmem:[#allocation4 + $0xf8] sm:$0xff]
      %v3834 = vadd.f32 %v3802, %v3676
      %v3835 = vadd.f32 %v3803, %v3679
      %v3836 = vadd.f32 %v3804, %v3684
      %v3837 = vadd.f32 %v3805, %v3687
      %v3838 = vadd.f32 %v3806, %v3692
      %v3839 = vadd.f32 %v3807, %v3695
      %v3840 = vadd.f32 %v3808, %v3700
      %v3841 = vadd.f32 %v3809, %v3703
      %v3842 = vadd.f32 %v3810, %v3708
      %v3843 = vadd.f32 %v3811, %v3711
      %v3844 = vadd.f32 %v3812, %v3716
      %v3845 = vadd.f32 %v3813, %v3719
      %v3846 = vadd.f32 %v3814, %v3724
      %v3847 = vadd.f32 %v3815, %v3727
      %v3848 = vadd.f32 %v3816, %v3732
      %v3849 = vadd.f32 %v3817, %v3735
      %v3850 = vadd.f32 %v3818, %v3740
      %v3851 = vadd.f32 %v3819, %v3743
      %v3852 = vadd.f32 %v3820, %v3748
      %v3853 = vadd.f32 %v3821, %v3751
      %v3854 = vadd.f32 %v3822, %v3756
      %v3855 = vadd.f32 %v3823, %v3759
      %v3856 = vadd.f32 %v3824, %v3764
      %v3857 = vadd.f32 %v3825, %v3767
      %v3858 = vadd.f32 %v3826, %v3772
      %v3859 = vadd.f32 %v3827, %v3775
      %v3860 = vadd.f32 %v3828, %v3780
      %v3861 = vadd.f32 %v3829, %v3783
      %v3862 = vadd.f32 %v3830, %v3788
      %v3863 = vadd.f32 %v3831, %v3791
      %v3864 = vadd.f32 %v3832, %v3796
      %v3865 = vadd.f32 %v3833, %v3799
      %3866 = vst [vmem:[#allocation4] sm:$0xff] %v3834
      %3867 = vst [vmem:[#allocation4 + $0x8] sm:$0xff] %v3835
      %3868 = vst [vmem:[#allocation4 + $0x10] sm:$0xff] %v3836
      %3869 = vst [vmem:[#allocation4 + $0x18] sm:$0xff] %v3837
      %3870 = vst [vmem:[#allocation4 + $0x20] sm:$0xff] %v3838
      %3871 = vst [vmem:[#allocation4 + $0x28] sm:$0xff] %v3839
      %3872 = vst [vmem:[#allocation4 + $0x30] sm:$0xff] %v3840
      %3873 = vst [vmem:[#allocation4 + $0x38] sm:$0xff] %v3841
      %3874 = vst [vmem:[#allocation4 + $0x40] sm:$0xff] %v3842
      %3875 = vst [vmem:[#allocation4 + $0x48] sm:$0xff] %v3843
      %3876 = vst [vmem:[#allocation4 + $0x50] sm:$0xff] %v3844
      %3877 = vst [vmem:[#allocation4 + $0x58] sm:$0xff] %v3845
      %3878 = vst [vmem:[#allocation4 + $0x60] sm:$0xff] %v3846
      %3879 = vst [vmem:[#allocation4 + $0x68] sm:$0xff] %v3847
      %3880 = vst [vmem:[#allocation4 + $0x70] sm:$0xff] %v3848
      %3881 = vst [vmem:[#allocation4 + $0x78] sm:$0xff] %v3849
      %3882 = vst [vmem:[#allocation4 + $0x80] sm:$0xff] %v3850
      %3883 = vst [vmem:[#allocation4 + $0x88] sm:$0xff] %v3851
      %3884 = vst [vmem:[#allocation4 + $0x90] sm:$0xff] %v3852
      %3885 = vst [vmem:[#allocation4 + $0x98] sm:$0xff] %v3853
      %3886 = vst [vmem:[#allocation4 + $0xa0] sm:$0xff] %v3854
      %3887 = vst [vmem:[#allocation4 + $0xa8] sm:$0xff] %v3855
      %3888 = vst [vmem:[#allocation4 + $0xb0] sm:$0xff] %v3856
      %3889 = vst [vmem:[#allocation4 + $0xb8] sm:$0xff] %v3857
      %3890 = vst [vmem:[#allocation4 + $0xc0] sm:$0xff] %v3858
      %3891 = vst [vmem:[#allocation4 + $0xc8] sm:$0xff] %v3859
      %3892 = vst [vmem:[#allocation4 + $0xd0] sm:$0xff] %v3860
      %3893 = vst [vmem:[#allocation4 + $0xd8] sm:$0xff] %v3861
      %3894 = vst [vmem:[#allocation4 + $0xe0] sm:$0xff] %v3862
      %3895 = vst [vmem:[#allocation4 + $0xe8] sm:$0xff] %v3863
      %3896 = vst [vmem:[#allocation4 + $0xf0] sm:$0xff] %v3864
      %3897 = vst [vmem:[#allocation4 + $0xf8] sm:$0xff] %v3865
      %v3898 = vld [vmem:[#allocation4] sm:$0xff]
      %v3899 = vld [vmem:[#allocation4 + $0x8] sm:$0xff]
      %v3900 = vld [vmem:[#allocation4 + $0x10] sm:$0xff]
      %v3901 = vld [vmem:[#allocation4 + $0x18] sm:$0xff]
      %v3902 = vld [vmem:[#allocation4 + $0x20] sm:$0xff]
      %v3903 = vld [vmem:[#allocation4 + $0x28] sm:$0xff]
      %v3904 = vld [vmem:[#allocation4 + $0x30] sm:$0xff]
      %v3905 = vld [vmem:[#allocation4 + $0x38] sm:$0xff]
      %v3906 = vld [vmem:[#allocation4 + $0x40] sm:$0xff]
      %v3907 = vld [vmem:[#allocation4 + $0x48] sm:$0xff]
      %v3908 = vld [vmem:[#allocation4 + $0x50] sm:$0xff]
      %v3909 = vld [vmem:[#allocation4 + $0x58] sm:$0xff]
      %v3910 = vld [vmem:[#allocation4 + $0x60] sm:$0xff]
      %v3911 = vld [vmem:[#allocation4 + $0x68] sm:$0xff]
      %v3912 = vld [vmem:[#allocation4 + $0x70] sm:$0xff]
      %v3913 = vld [vmem:[#allocation4 + $0x78] sm:$0xff]
      %v3914 = vld [vmem:[#allocation4 + $0x80] sm:$0xff]
      %v3915 = vld [vmem:[#allocation4 + $0x88] sm:$0xff]
      %v3916 = vld [vmem:[#allocation4 + $0x90] sm:$0xff]
      %v3917 = vld [vmem:[#allocation4 + $0x98] sm:$0xff]
      %v3918 = vld [vmem:[#allocation4 + $0xa0] sm:$0xff]
      %v3919 = vld [vmem:[#allocation4 + $0xa8] sm:$0xff]
      %v3920 = vld [vmem:[#allocation4 + $0xb0] sm:$0xff]
      %v3921 = vld [vmem:[#allocation4 + $0xb8] sm:$0xff]
      %v3922 = vld [vmem:[#allocation4 + $0xc0] sm:$0xff]
      %v3923 = vld [vmem:[#allocation4 + $0xc8] sm:$0xff]
      %v3924 = vld [vmem:[#allocation4 + $0xd0] sm:$0xff]
      %v3925 = vld [vmem:[#allocation4 + $0xd8] sm:$0xff]
      %v3926 = vld [vmem:[#allocation4 + $0xe0] sm:$0xff]
      %v3927 = vld [vmem:[#allocation4 + $0xe8] sm:$0xff]
      %v3928 = vld [vmem:[#allocation4 + $0xf0] sm:$0xff]
      %v3929 = vld [vmem:[#allocation4 + $0xf8] sm:$0xff]
      %v3930 = vpack.c.bf16 %v3899, %v3898
      %v3931 = vpack.c.bf16 %v3901, %v3900
      %v3932 = vpack.c.bf16 %v3903, %v3902
      %v3933 = vpack.c.bf16 %v3905, %v3904
      %v3934 = vpack.c.bf16 %v3907, %v3906
      %v3935 = vpack.c.bf16 %v3909, %v3908
      %v3936 = vpack.c.bf16 %v3911, %v3910
      %v3937 = vpack.c.bf16 %v3913, %v3912
      %v3938 = vpack.c.bf16 %v3915, %v3914
      %v3939 = vpack.c.bf16 %v3917, %v3916
      %v3940 = vpack.c.bf16 %v3919, %v3918
      %v3941 = vpack.c.bf16 %v3921, %v3920
      %v3942 = vpack.c.bf16 %v3923, %v3922
      %v3943 = vpack.c.bf16 %v3925, %v3924
      %v3944 = vpack.c.bf16 %v3927, %v3926
      %v3945 = vpack.c.bf16 %v3929, %v3928
      %v3962 = vunpack.c.l.b16 %v3930
      %v3963 = vunpack.c.h.b16 %v3930
      %v3964 = vunpack.c.l.b16 %v3931
      %v3965 = vunpack.c.h.b16 %v3931
      %v3966 = vunpack.c.l.b16 %v3932
      %v3967 = vunpack.c.h.b16 %v3932
      %v3968 = vunpack.c.l.b16 %v3933
      %v3969 = vunpack.c.h.b16 %v3933
      %v3970 = vunpack.c.l.b16 %v3934
      %v3971 = vunpack.c.h.b16 %v3934
      %v3972 = vunpack.c.l.b16 %v3935
      %v3973 = vunpack.c.h.b16 %v3935
      %v3974 = vunpack.c.l.b16 %v3936
      %v3975 = vunpack.c.h.b16 %v3936
      %v3976 = vunpack.c.l.b16 %v3937
      %v3977 = vunpack.c.h.b16 %v3937
      %v3978 = vunpack.c.l.b16 %v3938
      %v3979 = vunpack.c.h.b16 %v3938
      %v3980 = vunpack.c.l.b16 %v3939
      %v3981 = vunpack.c.h.b16 %v3939
      %v3982 = vunpack.c.l.b16 %v3940
      %v3983 = vunpack.c.h.b16 %v3940
      %v3984 = vunpack.c.l.b16 %v3941
      %v3985 = vunpack.c.h.b16 %v3941
      %v3986 = vunpack.c.l.b16 %v3942
      %v3987 = vunpack.c.h.b16 %v3942
      %v3988 = vunpack.c.l.b16 %v3943
      %v3989 = vunpack.c.h.b16 %v3943
      %v3990 = vunpack.c.l.b16 %v3944
      %v3991 = vunpack.c.h.b16 %v3944
      %v3992 = vunpack.c.l.b16 %v3945
      %v3993 = vunpack.c.h.b16 %v3945
      %v3994 = vpack.c.b16 %v3962, %v3962
      %v3995 = vpack.c.b16 %v3963, %v3963
      %v3996 = vpack.c.b16 %v3964, %v3964
      %v3997 = vpack.c.b16 %v3965, %v3965
      %v3998 = vpack.c.b16 %v3966, %v3966
      %v3999 = vpack.c.b16 %v3967, %v3967
      %v4000 = vpack.c.b16 %v3968, %v3968
      %v4001 = vpack.c.b16 %v3969, %v3969
      %v4002 = vpack.c.b16 %v3970, %v3970
      %v4003 = vpack.c.b16 %v3971, %v3971
      %v4004 = vpack.c.b16 %v3972, %v3972
      %v4005 = vpack.c.b16 %v3973, %v3973
      %v4006 = vpack.c.b16 %v3974, %v3974
      %v4007 = vpack.c.b16 %v3975, %v3975
      %v4008 = vpack.c.b16 %v3976, %v3976
      %v4009 = vpack.c.b16 %v3977, %v3977
      %v4010 = vpack.c.b16 %v3978, %v3978
      %v4011 = vpack.c.b16 %v3979, %v3979
      %v4012 = vpack.c.b16 %v3980, %v3980
      %v4013 = vpack.c.b16 %v3981, %v3981
      %v4014 = vpack.c.b16 %v3982, %v3982
      %v4015 = vpack.c.b16 %v3983, %v3983
      %v4016 = vpack.c.b16 %v3984, %v3984
      %v4017 = vpack.c.b16 %v3985, %v3985
      %v4018 = vpack.c.b16 %v3986, %v3986
      %v4019 = vpack.c.b16 %v3987, %v3987
      %v4020 = vpack.c.b16 %v3988, %v3988
      %v4021 = vpack.c.b16 %v3989, %v3989
      %v4022 = vpack.c.b16 %v3990, %v3990
      %v4023 = vpack.c.b16 %v3991, %v3991
      %v4024 = vpack.c.b16 %v3992, %v3992
      %v4025 = vpack.c.b16 %v3993, %v3993
      %4058 = vst [vmem:[%s262] sm:$0xf] %v3994
      %4059 = vst [vmem:[%s262 + $0x4] sm:$0xf] %v3995
      %4060 = vst [vmem:[%s262 + $0x8] sm:$0xf] %v3996
      %4061 = vst [vmem:[%s262 + $0xc] sm:$0xf] %v3997
      %4062 = vst [vmem:[%s262 + $0x10] sm:$0xf] %v3998
      %4063 = vst [vmem:[%s262 + $0x14] sm:$0xf] %v3999
      %4064 = vst [vmem:[%s262 + $0x18] sm:$0xf] %v4000
      %4065 = vst [vmem:[%s262 + $0x1c] sm:$0xf] %v4001
      %4066 = vst [vmem:[%s262 + $0x20] sm:$0xf] %v4002
      %4067 = vst [vmem:[%s262 + $0x24] sm:$0xf] %v4003
      %4068 = vst [vmem:[%s262 + $0x28] sm:$0xf] %v4004
      %4069 = vst [vmem:[%s262 + $0x2c] sm:$0xf] %v4005
      %4070 = vst [vmem:[%s262 + $0x30] sm:$0xf] %v4006
      %4071 = vst [vmem:[%s262 + $0x34] sm:$0xf] %v4007
      %4072 = vst [vmem:[%s262 + $0x38] sm:$0xf] %v4008
      %4073 = vst [vmem:[%s262 + $0x3c] sm:$0xf] %v4009
      %4074 = vst [vmem:[%s262 + $0x40] sm:$0xf] %v4010
      %4075 = vst [vmem:[%s262 + $0x44] sm:$0xf] %v4011
      %4076 = vst [vmem:[%s262 + $0x48] sm:$0xf] %v4012
      %4077 = vst [vmem:[%s262 + $0x4c] sm:$0xf] %v4013
      %4078 = vst [vmem:[%s262 + $0x50] sm:$0xf] %v4014
      %4079 = vst [vmem:[%s262 + $0x54] sm:$0xf] %v4015
      %4080 = vst [vmem:[%s262 + $0x58] sm:$0xf] %v4016
      %4081 = vst [vmem:[%s262 + $0x5c] sm:$0xf] %v4017
      %4082 = vst [vmem:[%s262 + $0x60] sm:$0xf] %v4018
      %4083 = vst [vmem:[%s262 + $0x64] sm:$0xf] %v4019
      %4084 = vst [vmem:[%s262 + $0x68] sm:$0xf] %v4020
      %4085 = vst [vmem:[%s262 + $0x6c] sm:$0xf] %v4021
      %4086 = vst [vmem:[%s262 + $0x70] sm:$0xf] %v4022
      %4087 = vst [vmem:[%s262 + $0x74] sm:$0xf] %v4023
      %4088 = vst [vmem:[%s262 + $0x78] sm:$0xf] %v4024
      %4089 = vst [vmem:[%s262 + $0x7c] sm:$0xf] %v4025
      %v4090 = vadd.f32 %v3898, %v3899
      %v4091 = vadd.f32 %v4090, %v3900
      %v4092 = vadd.f32 %v4091, %v3901
      %v4093 = vadd.f32 %v4092, %v3902
      %v4094 = vadd.f32 %v4093, %v3903
      %v4095 = vadd.f32 %v4094, %v3904
      %v4096 = vadd.f32 %v4095, %v3905
      %v4097 = vadd.f32 %v4096, %v3906
      %v4098 = vadd.f32 %v4097, %v3907
      %v4099 = vadd.f32 %v4098, %v3908
      %v4100 = vadd.f32 %v4099, %v3909
      %v4101 = vadd.f32 %v4100, %v3910
      %v4102 = vadd.f32 %v4101, %v3911
      %v4103 = vadd.f32 %v4102, %v3912
      %v4104 = vadd.f32 %v4103, %v3913
      %v4105 = vadd.f32 %v4104, %v3914
      %v4106 = vadd.f32 %v4105, %v3915
      %v4107 = vadd.f32 %v4106, %v3916
      %v4108 = vadd.f32 %v4107, %v3917
      %v4109 = vadd.f32 %v4108, %v3918
      %v4110 = vadd.f32 %v4109, %v3919
      %v4111 = vadd.f32 %v4110, %v3920
      %v4112 = vadd.f32 %v4111, %v3921
      %v4113 = vadd.f32 %v4112, %v3922
      %v4114 = vadd.f32 %v4113, %v3923
      %v4115 = vadd.f32 %v4114, %v3924
      %v4116 = vadd.f32 %v4115, %v3925
      %v4117 = vadd.f32 %v4116, %v3926
      %v4118 = vadd.f32 %v4117, %v3927
      %v4119 = vadd.f32 %v4118, %v3928
      %v4120 = vadd.f32 %v4119, %v3929
      %v4121 = vrot.slane %v4120, 4
      %v4122 = vadd.f32 %v4120, %v4121
      %v4123 = vrot.slane %v4122, 2
      %v4124 = vadd.f32 %v4122, %v4123
      %v4125 = vrot.slane %v4124, 1
      %v4126 = vadd.f32 %v4124, %v4125
      %4127 = vst [vmem:[%s265] sm:$0x1] %v4126
      %v4128 = vmul.f32 %v3898, %v3898
      %v4129 = vmul.f32 %v3899, %v3899
      %v4130 = vmul.f32 %v3900, %v3900
      %v4131 = vmul.f32 %v3901, %v3901
      %v4132 = vmul.f32 %v3902, %v3902
      %v4133 = vmul.f32 %v3903, %v3903
      %v4134 = vmul.f32 %v3904, %v3904
      %v4135 = vmul.f32 %v3905, %v3905
      %v4136 = vmul.f32 %v3906, %v3906
      %v4137 = vmul.f32 %v3907, %v3907
      %v4138 = vmul.f32 %v3908, %v3908
      %v4139 = vmul.f32 %v3909, %v3909
      %v4140 = vmul.f32 %v3910, %v3910
      %v4141 = vmul.f32 %v3911, %v3911
      %v4142 = vmul.f32 %v3912, %v3912
      %v4143 = vmul.f32 %v3913, %v3913
      %v4144 = vmul.f32 %v3914, %v3914
      %v4145 = vmul.f32 %v3915, %v3915
      %v4146 = vmul.f32 %v3916, %v3916
      %v4147 = vmul.f32 %v3917, %v3917
      %v4148 = vmul.f32 %v3918, %v3918
      %v4149 = vmul.f32 %v3919, %v3919
      %v4150 = vmul.f32 %v3920, %v3920
      %v4151 = vmul.f32 %v3921, %v3921
      %v4152 = vmul.f32 %v3922, %v3922
      %v4153 = vmul.f32 %v3923, %v3923
      %v4154 = vmul.f32 %v3924, %v3924
      %v4155 = vmul.f32 %v3925, %v3925
      %v4156 = vmul.f32 %v3926, %v3926
      %v4157 = vmul.f32 %v3927, %v3927
      %v4158 = vmul.f32 %v3928, %v3928
      %v4159 = vmul.f32 %v3929, %v3929
      %v4160 = vadd.f32 %v4128, %v4129
      %v4161 = vadd.f32 %v4160, %v4130
      %v4162 = vadd.f32 %v4161, %v4131
      %v4163 = vadd.f32 %v4162, %v4132
      %v4164 = vadd.f32 %v4163, %v4133
      %v4165 = vadd.f32 %v4164, %v4134
      %v4166 = vadd.f32 %v4165, %v4135
      %v4167 = vadd.f32 %v4166, %v4136
      %v4168 = vadd.f32 %v4167, %v4137
      %v4169 = vadd.f32 %v4168, %v4138
      %v4170 = vadd.f32 %v4169, %v4139
      %v4171 = vadd.f32 %v4170, %v4140
      %v4172 = vadd.f32 %v4171, %v4141
      %v4173 = vadd.f32 %v4172, %v4142
      %v4174 = vadd.f32 %v4173, %v4143
      %v4175 = vadd.f32 %v4174, %v4144
      %v4176 = vadd.f32 %v4175, %v4145
      %v4177 = vadd.f32 %v4176, %v4146
      %v4178 = vadd.f32 %v4177, %v4147
      %v4179 = vadd.f32 %v4178, %v4148
      %v4180 = vadd.f32 %v4179, %v4149
      %v4181 = vadd.f32 %v4180, %v4150
      %v4182 = vadd.f32 %v4181, %v4151
      %v4183 = vadd.f32 %v4182, %v4152
      %v4184 = vadd.f32 %v4183, %v4153
      %v4185 = vadd.f32 %v4184, %v4154
      %v4186 = vadd.f32 %v4185, %v4155
      %v4187 = vadd.f32 %v4186, %v4156
      %v4188 = vadd.f32 %v4187, %v4157
      %v4189 = vadd.f32 %v4188, %v4158
      %v4190 = vadd.f32 %v4189, %v4159
      %v4191 = vrot.slane %v4190, 4
      %v4192 = vadd.f32 %v4190, %v4191
      %v4193 = vrot.slane %v4192, 2
      %v4194 = vadd.f32 %v4192, %v4193
      %v4195 = vrot.slane %v4194, 1
      %v4196 = vadd.f32 %v4194, %v4195
      %4197 = vst [vmem:[%s268] sm:$0x1] %v4196
      %p4198 = scmp.lt.s32.totalorder %s18, 1
      %s4199 = scalar_select %p4198, %s18, 1
      %s4200 = smul.addr %s4199, 32
      %s4201 = smul.addr %s4200, 4
      %s4202 = scalar_lea.vmem %s4, %s4201
      %p4203 = scmp.lt.s32.totalorder %s18, 1
      %s4204 = scalar_select %p4203, %s18, 1
      %s4205 = scalar_lea.vmem %s5, %s4204
      %p4206 = scmp.lt.s32.totalorder %s18, 1
      %s4207 = scalar_select %p4206, %s18, 1
      %s4208 = scalar_lea.vmem %s6, %s4207
      // Predicated region
      $region37: #{basic_block_forward.4} parent=35 // pred_check
        %p4209 = pneg %p125
      $region38: #{basic_block_forward.4} parent=35 // pred_check_branch
        %4211 = sbr.rel (%p4209) target = $region40
      $region39: #{basic_block_forward.4} parent=35 // pred_region
        _
      $region40: #{basic_block_forward.4} parent=35 // pred_fallthru
        _
      // Predicated region
      $region41: #{basic_block_forward.4} parent=35 // pred_check
        %p4212 = pneg %p151
      $region42: #{basic_block_forward.4} parent=35 // pred_check_branch
        %4214 = sbr.rel (%p4212) target = $region44
      $region43: #{basic_block_forward.4} parent=35 // pred_region
        _
      $region44: #{basic_block_forward.4} parent=35 // pred_fallthru
        _
      // Predicated region
      $region45: #{basic_block_forward.4} parent=35 // pred_check
        %p4215 = pneg %p177
      $region46: #{basic_block_forward.4} parent=35 // pred_check_branch
        %4217 = sbr.rel (%p4215) target = $region48
      $region47: #{basic_block_forward.4} parent=35 // pred_region
        _
      $region48: #{basic_block_forward.4} parent=35 // pred_fallthru
        _
    $region36: #{basic_block_forward.4} parent=5 // pred_fallthru
      _
    %p4218 = scmp.le.s32.totalorder 2, %s13
    // Predicated region
    $region49: #{basic_block_forward.4} parent=5 // pred_check
      %p4219 = pneg %p4218
    $region50: #{basic_block_forward.4} parent=5 // pred_check_branch
      %4221 = sbr.rel (%p4219) target = $region52
    $region51: #{basic_block_forward.4} parent=5 // pred_region
      %s4222 = ssub.s32 %s13, 2
      // Predicated region
      $region53: #{basic_block_forward.4} parent=51 // pred_check
        %p4223 = pneg %p131
      $region54: #{basic_block_forward.4} parent=51 // pred_check_branch
        %4225 = sbr.rel (%p4223) target = $region56
      $region55: #{basic_block_forward.4} parent=51 // pred_region
        %p4226 = scmp.lt.s32.totalorder %s19, 1
        %s4227 = scalar_select %p4226, %s19, 1
        %s4228 = smul.addr %s4227, 32
        %s4229 = smul.addr %s4228, 4
        %s4230 = scalar_lea.vmem %s4, %s4229
      $region56: #{basic_block_forward.4} parent=51 // pred_fallthru
        _
      // Predicated region
      $region57: #{basic_block_forward.4} parent=51 // pred_check
        %p4231 = pneg %p157
      $region58: #{basic_block_forward.4} parent=51 // pred_check_branch
        %4233 = sbr.rel (%p4231) target = $region60
      $region59: #{basic_block_forward.4} parent=51 // pred_region
        %p4234 = scmp.lt.s32.totalorder %s19, 1
        %s4235 = scalar_select %p4234, %s19, 1
        %s4236 = scalar_lea.vmem %s5, %s4235
      $region60: #{basic_block_forward.4} parent=51 // pred_fallthru
        _
      // Predicated region
      $region61: #{basic_block_forward.4} parent=51 // pred_check
        %p4237 = pneg %p183
      $region62: #{basic_block_forward.4} parent=51 // pred_check_branch
        %4239 = sbr.rel (%p4237) target = $region64
      $region63: #{basic_block_forward.4} parent=51 // pred_region
        %p4240 = scmp.lt.s32.totalorder %s19, 1
        %s4241 = scalar_select %p4240, %s19, 1
        %s4242 = scalar_lea.vmem %s6, %s4241
      $region64: #{basic_block_forward.4} parent=51 // pred_fallthru
        _
    $region52: #{basic_block_forward.4} parent=5 // pred_fallthru
      _
  $region6: #{basic_block_forward.4} parent=0 // loop_footer
    %s17 = sadd.s32 1, %s13
  $region7: #{basic_block_forward.4} parent=0 // loop_footer_branch
    %12 = sbr.rel target = $region3
  $region8: #{basic_block_forward.4} parent=0 // loop_exit
    _

// kernel: basic_block_forward.3
$region0: #{basic_block_forward.3}
  #allocation0 [shape = 'u32[]', space=smem, size = 0x4, offset = 0x4, fixed_abs, tag = 'smem constant byte address 0x4 - core index']
  #allocation1 [shape = 'u32[144,128]{1,0:T(1,128)}', space=vmem, size = 0x12000, scoped, tag = 'internal scratch']
  #allocation2 [shape = 'f32[18,18,128]{2,1,0:T(8,128)}', space=vmem, size = 0x36000, scoped, tag = 'scratch operand']
  #allocation3 [shape = 'bf16[18,16,384]{2,1,0:T(8,128)(2,1)}', space=vmem, size = 0x36000, scoped, tag = 'scratch operand']
  #allocation4 [shape = 'f32[256,128]{1,0:T(8,128)}', space=vmem, size = 0x20000, scoped, tag = 'scratch operand']
  %s0 = inlined_call_operand.vmem [shape: bf16[2,16,16,128], index: 0, kind: input, shape index: {}]
  %s1 = inlined_call_operand.vmem [shape: bf16[3,384,128], index: 1, kind: input, shape index: {}]
  %s2 = inlined_call_operand.vmem [shape: bf16[128,128], index: 2, kind: input, shape index: {}]
  %s3 = inlined_call_operand.vmem [shape: bf16[2,16,16,128], index: 3, kind: output, shape index: {0}]
  %s4 = inlined_call_operand.vmem [shape: f32[2,1,128], index: 4, kind: output, shape index: {1}]
  %s5 = inlined_call_operand.vmem [shape: f32[2,1,128], index: 5, kind: output, shape index: {2}]
  %s6 = inlined_call_operand.vmem [shape: bf16[2,16,16,128], index: 6, kind: output, shape index: {3}]
  %s7 = inlined_call_operand.vmem [shape: f32[2,1,128], index: 7, kind: output, shape index: {4}]
  %s8 = inlined_call_operand.vmem [shape: f32[2,1,128], index: 8, kind: output, shape index: {5}]
  %9 = xla_tuple %s3, %s4, %s5, %s6, %s7, %s8
  %s10 = sld [smem:[#allocation0]]
  $region85: #{basic_block_forward.3} parent=0
    _
  %s12 = ssub.s32 1, %s10
  %s13 = scalar_select 0, %s12, %s10
  loop: start=0, step=1, limit=4
  $region2: #{basic_block_forward.3} parent=0 // loop_pre_header
    _
  $region3: #{basic_block_forward.3} parent=0 // loop_header
    %s15 = sphi 0, %s19
    %p16 = scmp.ge.s32.totalorder %s15, 4
    %s25 = sphi 0, %s27
    %s28 = sphi 0, %s25
    %s29 = sphi 0, %s28
    %s45 = sphi 0, %s29
    %s49 = sphi 0, %s49
    %s51 = sphi 0, %s49
    %s52 = sphi 0, %s51
    %s66 = sphi 0, %s52
    %s70 = sphi 0, %s70
    %s72 = sphi 0, %s70
    %s73 = sphi 0, %s72
    %s87 = sphi 0, %s73
    %s93 = sphi 0, %s95
    %s96 = sphi 0, %s93
    %s97 = sphi 0, %s96
    %s113 = sphi 0, %s97
    %s119 = sphi 0, %s121
    %s122 = sphi 0, %s119
    %s123 = sphi 0, %s122
    %s139 = sphi 0, %s123
    %s145 = sphi 0, %s147
    %s148 = sphi 0, %s145
    %s149 = sphi 0, %s148
    %s165 = sphi 0, %s149
    %s171 = sphi 0, %s173
    %s174 = sphi 0, %s171
    %s175 = sphi 0, %s174
    %s191 = sphi 0, %s175
    %s197 = sphi 0, %s199
    %s200 = sphi 0, %s197
    %s201 = sphi 0, %s200
    %s217 = sphi 0, %s201
    %s223 = sphi 0, %s225
    %s226 = sphi 0, %s223
    %s227 = sphi 0, %s226
    %s243 = sphi 0, %s227
  $region4: #{basic_block_forward.3} parent=0 // loop_header_branch
    %18 = sbr.rel (%p16) target = $region8
  $region5: #{basic_block_forward.3} parent=0 // loop_body
    %s20 = ssub.s32 %s15, 1
    %s21 = ssub.s32 %s15, 2
    %s22 = sadd.s32 %s15, 1
    %s23 = ssub.s32 %s15, %s22
    %p24 = scmp.eq.s32.totalorder %s23, 0
    %s26 = sadd.s32 %s25, 1
    %s27 = scalar_select %p24, %s25, %s26
    %p30 = pneg %p24
    %p31 = scmp.eq.s32.totalorder %s15, 1
    %p32 = por %p30, %p31
    %p33 = scmp.ne.s32.totalorder %s25, %s28
    %p34 = scmp.eq.s32.totalorder %s15, 0
    %p35 = por %p33, %p34
    %p36 = scmp.ne.s32.totalorder %s25, %s28
    %p37 = scmp.eq.s32.totalorder %s20, 1
    %p38 = por %p36, %p37
    %p39 = scmp.ne.s32.totalorder %s28, %s29
    %p40 = scmp.eq.s32.totalorder %s20, 0
    %p41 = por %p39, %p40
    %p42 = scmp.ne.s32.totalorder %s28, %s29
    %p43 = scmp.eq.s32.totalorder %s21, 1
    %p44 = por %p42, %p43
    %p46 = scmp.ne.s32.totalorder %s29, %s45
    %p47 = scmp.eq.s32.totalorder %s21, 0
    %p48 = por %p46, %p47
    %s50 = sadd.s32 %s49, 1
    %p53 = scmp.eq.s32.totalorder %s15, 1
    %p54 = scmp.ne.s32.totalorder %s49, %s51
    %p55 = scmp.eq.s32.totalorder %s15, 0
    %p56 = por %p54, %p55
    %p57 = scmp.ne.s32.totalorder %s49, %s51
    %p58 = scmp.eq.s32.totalorder %s20, 1
    %p59 = por %p57, %p58
    %p60 = scmp.ne.s32.totalorder %s51, %s52
    %p61 = scmp.eq.s32.totalorder %s20, 0
    %p62 = por %p60, %p61
    %p63 = scmp.ne.s32.totalorder %s51, %s52
    %p64 = scmp.eq.s32.totalorder %s21, 1
    %p65 = por %p63, %p64
    %p67 = scmp.ne.s32.totalorder %s52, %s66
    %p68 = scmp.eq.s32.totalorder %s21, 0
    %p69 = por %p67, %p68
    %s71 = sadd.s32 %s70, 1
    %p74 = scmp.eq.s32.totalorder %s15, 1
    %p75 = scmp.ne.s32.totalorder %s70, %s72
    %p76 = scmp.eq.s32.totalorder %s15, 0
    %p77 = por %p75, %p76
    %p78 = scmp.ne.s32.totalorder %s70, %s72
    %p79 = scmp.eq.s32.totalorder %s20, 1
    %p80 = por %p78, %p79
    %p81 = scmp.ne.s32.totalorder %s72, %s73
    %p82 = scmp.eq.s32.totalorder %s20, 0
    %p83 = por %p81, %p82
    %p84 = scmp.ne.s32.totalorder %s72, %s73
    %p85 = scmp.eq.s32.totalorder %s21, 1
    %p86 = por %p84, %p85
    %p88 = scmp.ne.s32.totalorder %s73, %s87
    %p89 = scmp.eq.s32.totalorder %s21, 0
    %p90 = por %p88, %p89
    %s91 = ssub.s32 %s15, %s22
    %p92 = scmp.eq.s32.totalorder %s91, 0
    %s94 = sadd.s32 %s93, 1
    %s95 = scalar_select %p92, %s93, %s94
    %p98 = pneg %p92
    %p99 = scmp.eq.s32.totalorder %s15, 1
    %p100 = por %p98, %p99
    %p101 = scmp.ne.s32.totalorder %s93, %s96
    %p102 = scmp.eq.s32.totalorder %s15, 0
    %p103 = por %p101, %p102
    %p104 = scmp.ne.s32.totalorder %s93, %s96
    %p105 = scmp.eq.s32.totalorder %s20, 1
    %p106 = por %p104, %p105
    %p107 = scmp.ne.s32.totalorder %s96, %s97
    %p108 = scmp.eq.s32.totalorder %s20, 0
    %p109 = por %p107, %p108
    %p110 = scmp.ne.s32.totalorder %s96, %s97
    %p111 = scmp.eq.s32.totalorder %s21, 1
    %p112 = por %p110, %p111
    %p114 = scmp.ne.s32.totalorder %s97, %s113
    %p115 = scmp.eq.s32.totalorder %s21, 0
    %p116 = por %p114, %p115
    %s117 = ssub.s32 %s15, %s22
    %p118 = scmp.eq.s32.totalorder %s117, 0
    %s120 = sadd.s32 %s119, 1
    %s121 = scalar_select %p118, %s119, %s120
    %p124 = pneg %p118
    %p125 = scmp.eq.s32.totalorder %s15, 1
    %p126 = por %p124, %p125
    %p127 = scmp.ne.s32.totalorder %s119, %s122
    %p128 = scmp.eq.s32.totalorder %s15, 0
    %p129 = por %p127, %p128
    %p130 = scmp.ne.s32.totalorder %s119, %s122
    %p131 = scmp.eq.s32.totalorder %s20, 1
    %p132 = por %p130, %p131
    %p133 = scmp.ne.s32.totalorder %s122, %s123
    %p134 = scmp.eq.s32.totalorder %s20, 0
    %p135 = por %p133, %p134
    %p136 = scmp.ne.s32.totalorder %s122, %s123
    %p137 = scmp.eq.s32.totalorder %s21, 1
    %p138 = por %p136, %p137
    %p140 = scmp.ne.s32.totalorder %s123, %s139
    %p141 = scmp.eq.s32.totalorder %s21, 0
    %p142 = por %p140, %p141
    %s143 = ssub.s32 %s15, %s22
    %p144 = scmp.eq.s32.totalorder %s143, 0
    %s146 = sadd.s32 %s145, 1
    %s147 = scalar_select %p144, %s145, %s146
    %p150 = pneg %p144
    %p151 = scmp.eq.s32.totalorder %s15, 1
    %p152 = por %p150, %p151
    %p153 = scmp.ne.s32.totalorder %s145, %s148
    %p154 = scmp.eq.s32.totalorder %s15, 0
    %p155 = por %p153, %p154
    %p156 = scmp.ne.s32.totalorder %s145, %s148
    %p157 = scmp.eq.s32.totalorder %s20, 1
    %p158 = por %p156, %p157
    %p159 = scmp.ne.s32.totalorder %s148, %s149
    %p160 = scmp.eq.s32.totalorder %s20, 0
    %p161 = por %p159, %p160
    %p162 = scmp.ne.s32.totalorder %s148, %s149
    %p163 = scmp.eq.s32.totalorder %s21, 1
    %p164 = por %p162, %p163
    %p166 = scmp.ne.s32.totalorder %s149, %s165
    %p167 = scmp.eq.s32.totalorder %s21, 0
    %p168 = por %p166, %p167
    %s169 = ssub.s32 %s15, %s22
    %p170 = scmp.eq.s32.totalorder %s169, 0
    %s172 = sadd.s32 %s171, 1
    %s173 = scalar_select %p170, %s171, %s172
    %p176 = pneg %p170
    %p177 = scmp.eq.s32.totalorder %s15, 1
    %p178 = por %p176, %p177
    %p179 = scmp.ne.s32.totalorder %s171, %s174
    %p180 = scmp.eq.s32.totalorder %s15, 0
    %p181 = por %p179, %p180
    %p182 = scmp.ne.s32.totalorder %s171, %s174
    %p183 = scmp.eq.s32.totalorder %s20, 1
    %p184 = por %p182, %p183
    %p185 = scmp.ne.s32.totalorder %s174, %s175
    %p186 = scmp.eq.s32.totalorder %s20, 0
    %p187 = por %p185, %p186
    %p188 = scmp.ne.s32.totalorder %s174, %s175
    %p189 = scmp.eq.s32.totalorder %s21, 1
    %p190 = por %p188, %p189
    %p192 = scmp.ne.s32.totalorder %s175, %s191
    %p193 = scmp.eq.s32.totalorder %s21, 0
    %p194 = por %p192, %p193
    %s195 = ssub.s32 %s15, %s22
    %p196 = scmp.eq.s32.totalorder %s195, 0
    %s198 = sadd.s32 %s197, 1
    %s199 = scalar_select %p196, %s197, %s198
    %p202 = pneg %p196
    %p203 = scmp.eq.s32.totalorder %s15, 1
    %p204 = por %p202, %p203
    %p205 = scmp.ne.s32.totalorder %s197, %s200
    %p206 = scmp.eq.s32.totalorder %s15, 0
    %p207 = por %p205, %p206
    %p208 = scmp.ne.s32.totalorder %s197, %s200
    %p209 = scmp.eq.s32.totalorder %s20, 1
    %p210 = por %p208, %p209
    %p211 = scmp.ne.s32.totalorder %s200, %s201
    %p212 = scmp.eq.s32.totalorder %s20, 0
    %p213 = por %p211, %p212
    %p214 = scmp.ne.s32.totalorder %s200, %s201
    %p215 = scmp.eq.s32.totalorder %s21, 1
    %p216 = por %p214, %p215
    %p218 = scmp.ne.s32.totalorder %s201, %s217
    %p219 = scmp.eq.s32.totalorder %s21, 0
    %p220 = por %p218, %p219
    %s221 = ssub.s32 %s15, %s22
    %p222 = scmp.eq.s32.totalorder %s221, 0
    %s224 = sadd.s32 %s223, 1
    %s225 = scalar_select %p222, %s223, %s224
    %p228 = pneg %p222
    %p229 = scmp.eq.s32.totalorder %s15, 1
    %p230 = por %p228, %p229
    %p231 = scmp.ne.s32.totalorder %s223, %s226
    %p232 = scmp.eq.s32.totalorder %s15, 0
    %p233 = por %p231, %p232
    %p234 = scmp.ne.s32.totalorder %s223, %s226
    %p235 = scmp.eq.s32.totalorder %s20, 1
    %p236 = por %p234, %p235
    %p237 = scmp.ne.s32.totalorder %s226, %s227
    %p238 = scmp.eq.s32.totalorder %s20, 0
    %p239 = por %p237, %p238
    %p240 = scmp.ne.s32.totalorder %s226, %s227
    %p241 = scmp.eq.s32.totalorder %s21, 1
    %p242 = por %p240, %p241
    %p244 = scmp.ne.s32.totalorder %s227, %s243
    %p245 = scmp.eq.s32.totalorder %s21, 0
    %p246 = por %p244, %p245
    %p247 = scmp.le.s32.totalorder 1, %s15
    %p248 = scmp.lt.s32.totalorder %s15, 3
    %p249 = pnand %p247, %p248
    %p250 = pneg %p249
    // Predicated region
    $region9: #{basic_block_forward.3} parent=5 // pred_check
      _
    $region10: #{basic_block_forward.3} parent=5 // pred_check_branch
      %252 = sbr.rel (%p249) target = $region12
    $region11: #{basic_block_forward.3} parent=5 // pred_region
      %s253 = ssub.s32 %s15, 1
      // Predicated region
      $region13: #{basic_block_forward.3} parent=11 // pred_check
        %p254 = pneg %p62
      $region14: #{basic_block_forward.3} parent=11 // pred_check_branch
        %256 = sbr.rel (%p254) target = $region16
      $region15: #{basic_block_forward.3} parent=11 // pred_region
        _
      $region16: #{basic_block_forward.3} parent=11 // pred_fallthru
        _
      // Predicated region
      $region17: #{basic_block_forward.3} parent=11 // pred_check
        %p257 = pneg %p83
      $region18: #{basic_block_forward.3} parent=11 // pred_check_branch
        %259 = sbr.rel (%p257) target = $region20
      $region19: #{basic_block_forward.3} parent=11 // pred_region
        _
      $region20: #{basic_block_forward.3} parent=11 // pred_fallthru
        _
    $region12: #{basic_block_forward.3} parent=5 // pred_fallthru
      _
    %p260 = scmp.lt.s32.totalorder %s15, 2
    // Predicated region
    $region21: #{basic_block_forward.3} parent=5 // pred_check
      %p261 = pneg %p260
    $region22: #{basic_block_forward.3} parent=5 // pred_check_branch
      %263 = sbr.rel (%p261) target = $region24
    $region23: #{basic_block_forward.3} parent=5 // pred_region
      // Predicated region
      $region25: #{basic_block_forward.3} parent=23 // pred_check
        %p264 = pneg %p35
      $region26: #{basic_block_forward.3} parent=23 // pred_check_branch
        %266 = sbr.rel (%p264) target = $region28
      $region27: #{basic_block_forward.3} parent=23 // pred_region
        %p267 = scmp.lt.s32.totalorder %s15, 1
        %s268 = scalar_select %p267, %s15, 1
        %s269 = smul.addr %s268, 32
        %s270 = smul.addr %s269, 4
        %s271 = scalar_lea.vmem %s0, %s270
      $region28: #{basic_block_forward.3} parent=23 // pred_fallthru
        _
    $region24: #{basic_block_forward.3} parent=5 // pred_fallthru
      _
    %p272 = scmp.le.s32.totalorder 1, %s15
    %p273 = scmp.lt.s32.totalorder %s15, 3
    %p274 = pnand %p272, %p273
    %p275 = pneg %p274
    // Predicated region
    $region29: #{basic_block_forward.3} parent=5 // pred_check
      _
    $region30: #{basic_block_forward.3} parent=5 // pred_check_branch
      %277 = sbr.rel (%p274) target = $region32
    $region31: #{basic_block_forward.3} parent=5 // pred_region
      %s278 = ssub.s32 %s15, 1
      %p279 = scmp.lt.s32.totalorder %s20, 1
      %s280 = scalar_select %p279, %s20, 1
      %s281 = smul.addr %s280, 32
      %s282 = smul.addr %s281, 4
      %s283 = scalar_lea.vmem %s0, %s282
      %p284 = pneg %p41
      %p285 = pneg %p38
      %p286 = pneg %p62
      %p287 = pneg %p59
      %p288 = pneg %p83
      %p289 = pneg %p80
      %p290 = pneg %p109
      %p291 = pneg %p106
      %p292 = scmp.lt.s32.totalorder %s20, 1
      %s293 = scalar_select %p292, %s20, 1
      %s294 = smul.addr %s293, 32
      %s295 = smul.addr %s294, 4
      %s296 = scalar_lea.vmem %s3, %s295
      %p297 = pneg %p135
      %p298 = pneg %p132
      %p299 = scmp.lt.s32.totalorder %s20, 1
      %s300 = scalar_select %p299, %s20, 1
      %s301 = scalar_lea.vmem %s4, %s300
      %p302 = pneg %p161
      %p303 = pneg %p158
      %p304 = scmp.lt.s32.totalorder %s20, 1
      %s305 = scalar_select %p304, %s20, 1
      %s306 = scalar_lea.vmem %s5, %s305
      %p307 = pneg %p187
      %p308 = pneg %p184
      %p309 = scmp.lt.s32.totalorder %s20, 1
      %s310 = scalar_select %p309, %s20, 1
      %s311 = smul.addr %s310, 32
      %s312 = smul.addr %s311, 4
      %s313 = scalar_lea.vmem %s6, %s312
      %p314 = pneg %p213
      %p315 = pneg %p210
      %p316 = scmp.lt.s32.totalorder %s20, 1
      %s317 = scalar_select %p316, %s20, 1
      %s318 = scalar_lea.vmem %s7, %s317
      %p319 = pneg %p239
      %p320 = pneg %p236
      %p321 = scmp.lt.s32.totalorder %s20, 1
      %s322 = scalar_select %p321, %s20, 1
      %s323 = scalar_lea.vmem %s8, %s322
      %p324 = scmp.lt.s32.totalorder %s20, 1
      %s325 = scalar_select %p324, %s20, 1
      %s326 = smul.addr %s325, 32
      %s327 = smul.addr %s326, 4
      %s328 = scalar_lea.vmem %s0, %s327
      %p329 = scmp.lt.s32.totalorder %s20, 1
      %s330 = scalar_select %p329, %s20, 1
      %s331 = smul.addr %s330, 32
      %s332 = smul.addr %s331, 4
      %s333 = scalar_lea.vmem %s3, %s332
      %p334 = scmp.lt.s32.totalorder %s20, 1
      %s335 = scalar_select %p334, %s20, 1
      %s336 = scalar_lea.vmem %s4, %s335
      %p337 = scmp.lt.s32.totalorder %s20, 1
      %s338 = scalar_select %p337, %s20, 1
      %s339 = scalar_lea.vmem %s5, %s338
      %p340 = scmp.lt.s32.totalorder %s20, 1
      %s341 = scalar_select %p340, %s20, 1
      %s342 = smul.addr %s341, 32
      %s343 = smul.addr %s342, 4
      %s344 = scalar_lea.vmem %s6, %s343
      %p345 = scmp.lt.s32.totalorder %s20, 1
      %s346 = scalar_select %p345, %s20, 1
      %s347 = scalar_lea.vmem %s7, %s346
      %p348 = scmp.lt.s32.totalorder %s20, 1
      %s349 = scalar_select %p348, %s20, 1
      %s350 = scalar_lea.vmem %s8, %s349
      %352 = vst [vmem:[#allocation2] sm:$0xff] 0.0
      %353 = vst [vmem:[#allocation2 + $0x8] sm:$0xff] 0.0
      %354 = vst [vmem:[#allocation2 + $0x10] sm:$0x3] 0.0
      %s355 = scalar_lea.vmem [#allocation2], 408
      %356 = vst [vmem:[%s355] sm:$0xff] 0.0
      %357 = vst [vmem:[%s355 + $0x8] sm:$0xff] 0.0
      %358 = vst [vmem:[%s355 + $0x10] sm:$0x3] 0.0
      %359 = vst [vmem:[#allocation2] sm:$0x1] 0.0
      %360 = vst [vmem:[#allocation2 + $0x18] sm:$0x1] 0.0
      %361 = vst [vmem:[#allocation2 + $0x30] sm:$0x1] 0.0
      %362 = vst [vmem:[#allocation2 + $0x48] sm:$0x1] 0.0
      %363 = vst [vmem:[#allocation2 + $0x60] sm:$0x1] 0.0
      %364 = vst [vmem:[#allocation2 + $0x78] sm:$0x1] 0.0
      %365 = vst [vmem:[#allocation2 + $0x90] sm:$0x1] 0.0
      %366 = vst [vmem:[#allocation2 + $0xa8] sm:$0x1] 0.0
      %367 = vst [vmem:[#allocation2 + $0xc0] sm:$0x1] 0.0
      %368 = vst [vmem:[#allocation2 + $0xd8] sm:$0x1] 0.0
      %369 = vst [vmem:[#allocation2 + $0xf0] sm:$0x1] 0.0
      %370 = vst [vmem:[#allocation2 + $0x108] sm:$0x1] 0.0
      %371 = vst [vmem:[#allocation2 + $0x120] sm:$0x1] 0.0
      %372 = vst [vmem:[#allocation2 + $0x138] sm:$0x1] 0.0
      %373 = vst [vmem:[#allocation2 + $0x150] sm:$0x1] 0.0
      %374 = vst [vmem:[#allocation2 + $0x168] sm:$0x1] 0.0
      %375 = vst [vmem:[#allocation2 + $0x180] sm:$0x1] 0.0
      %376 = vst [vmem:[#allocation2 + $0x198] sm:$0x1] 0.0
      %377 = vst [vmem:[#allocation2 + $0x11] sm:$0x1] 0.0
      %378 = vst [vmem:[#allocation2 + $0x29] sm:$0x1] 0.0
      %379 = vst [vmem:[#allocation2 + $0x41] sm:$0x1] 0.0
      %380 = vst [vmem:[#allocation2 + $0x59] sm:$0x1] 0.0
      %381 = vst [vmem:[#allocation2 + $0x71] sm:$0x1] 0.0
      %382 = vst [vmem:[#allocation2 + $0x89] sm:$0x1] 0.0
      %383 = vst [vmem:[#allocation2 + $0xa1] sm:$0x1] 0.0
      %384 = vst [vmem:[#allocation2 + $0xb9] sm:$0x1] 0.0
      %385 = vst [vmem:[#allocation2 + $0xd1] sm:$0x1] 0.0
      %386 = vst [vmem:[#allocation2 + $0xe9] sm:$0x1] 0.0
      %387 = vst [vmem:[#allocation2 + $0x101] sm:$0x1] 0.0
      %388 = vst [vmem:[#allocation2 + $0x119] sm:$0x1] 0.0
      %389 = vst [vmem:[#allocation2 + $0x131] sm:$0x1] 0.0
      %390 = vst [vmem:[#allocation2 + $0x149] sm:$0x1] 0.0
      %391 = vst [vmem:[#allocation2 + $0x161] sm:$0x1] 0.0
      %392 = vst [vmem:[#allocation2 + $0x179] sm:$0x1] 0.0
      %393 = vst [vmem:[#allocation2 + $0x191] sm:$0x1] 0.0
      %394 = vst [vmem:[#allocation2 + $0x1a9] sm:$0x1] 0.0
      %v395 = vld [vmem:[%s328] sm:$0xf]
      %v396 = vld [vmem:[%s328 + $0x4] sm:$0xf]
      %v397 = vld [vmem:[%s328 + $0x8] sm:$0xf]
      %v398 = vld [vmem:[%s328 + $0xc] sm:$0xf]
      %v399 = vld [vmem:[%s328 + $0x10] sm:$0xf]
      %v400 = vld [vmem:[%s328 + $0x14] sm:$0xf]
      %v401 = vld [vmem:[%s328 + $0x18] sm:$0xf]
      %v402 = vld [vmem:[%s328 + $0x1c] sm:$0xf]
      %v403 = vld [vmem:[%s328 + $0x20] sm:$0xf]
      %v404 = vld [vmem:[%s328 + $0x24] sm:$0xf]
      %v405 = vld [vmem:[%s328 + $0x28] sm:$0xf]
      %v406 = vld [vmem:[%s328 + $0x2c] sm:$0xf]
      %v407 = vld [vmem:[%s328 + $0x30] sm:$0xf]
      %v408 = vld [vmem:[%s328 + $0x34] sm:$0xf]
      %v409 = vld [vmem:[%s328 + $0x38] sm:$0xf]
      %v410 = vld [vmem:[%s328 + $0x3c] sm:$0xf]
      %v411 = vld [vmem:[%s328 + $0x40] sm:$0xf]
      %v412 = vld [vmem:[%s328 + $0x44] sm:$0xf]
      %v413 = vld [vmem:[%s328 + $0x48] sm:$0xf]
      %v414 = vld [vmem:[%s328 + $0x4c] sm:$0xf]
      %v415 = vld [vmem:[%s328 + $0x50] sm:$0xf]
      %v416 = vld [vmem:[%s328 + $0x54] sm:$0xf]
      %v417 = vld [vmem:[%s328 + $0x58] sm:$0xf]
      %v418 = vld [vmem:[%s328 + $0x5c] sm:$0xf]
      %v419 = vld [vmem:[%s328 + $0x60] sm:$0xf]
      %v420 = vld [vmem:[%s328 + $0x64] sm:$0xf]
      %v421 = vld [vmem:[%s328 + $0x68] sm:$0xf]
      %v422 = vld [vmem:[%s328 + $0x6c] sm:$0xf]
      %v423 = vld [vmem:[%s328 + $0x70] sm:$0xf]
      %v424 = vld [vmem:[%s328 + $0x74] sm:$0xf]
      %v425 = vld [vmem:[%s328 + $0x78] sm:$0xf]
      %v426 = vld [vmem:[%s328 + $0x7c] sm:$0xf]
      %v427 = vunpack.c.l.bf16 %v395
      %v428 = vunpack.c.l.bf16 %v396
      %v429 = vunpack.c.l.bf16 %v397
      %v430 = vunpack.c.l.bf16 %v398
      %v431 = vunpack.c.l.bf16 %v399
      %v432 = vunpack.c.l.bf16 %v400
      %v433 = vunpack.c.l.bf16 %v401
      %v434 = vunpack.c.l.bf16 %v402
      %v435 = vunpack.c.l.bf16 %v403
      %v436 = vunpack.c.l.bf16 %v404
      %v437 = vunpack.c.l.bf16 %v405
      %v438 = vunpack.c.l.bf16 %v406
      %v439 = vunpack.c.l.bf16 %v407
      %v440 = vunpack.c.l.bf16 %v408
      %v441 = vunpack.c.l.bf16 %v409
      %v442 = vunpack.c.l.bf16 %v410
      %v443 = vunpack.c.l.bf16 %v411
      %v444 = vunpack.c.l.bf16 %v412
      %v445 = vunpack.c.l.bf16 %v413
      %v446 = vunpack.c.l.bf16 %v414
      %v447 = vunpack.c.l.bf16 %v415
      %v448 = vunpack.c.l.bf16 %v416
      %v449 = vunpack.c.l.bf16 %v417
      %v450 = vunpack.c.l.bf16 %v418
      %v451 = vunpack.c.l.bf16 %v419
      %v452 = vunpack.c.l.bf16 %v420
      %v453 = vunpack.c.l.bf16 %v421
      %v454 = vunpack.c.l.bf16 %v422
      %v455 = vunpack.c.l.bf16 %v423
      %v456 = vunpack.c.l.bf16 %v424
      %v457 = vunpack.c.l.bf16 %v425
      %v458 = vunpack.c.l.bf16 %v426
      %s459 = scalar_lea.vmem [#allocation2], 24
      %460 = vst [vmem:[%s459 + $0x1] sm:$0xff] %v427
      %461 = vst [vmem:[%s459 + $0x9] sm:$0xff] %v428
      %462 = vst [vmem:[%s459 + $0x19] sm:$0xff] %v429
      %463 = vst [vmem:[%s459 + $0x21] sm:$0xff] %v430
      %464 = vst [vmem:[%s459 + $0x31] sm:$0xff] %v431
      %465 = vst [vmem:[%s459 + $0x39] sm:$0xff] %v432
      %466 = vst [vmem:[%s459 + $0x49] sm:$0xff] %v433
      %467 = vst [vmem:[%s459 + $0x51] sm:$0xff] %v434
      %468 = vst [vmem:[%s459 + $0x61] sm:$0xff] %v435
      %469 = vst [vmem:[%s459 + $0x69] sm:$0xff] %v436
      %470 = vst [vmem:[%s459 + $0x79] sm:$0xff] %v437
      %471 = vst [vmem:[%s459 + $0x81] sm:$0xff] %v438
      %472 = vst [vmem:[%s459 + $0x91] sm:$0xff] %v439
      %473 = vst [vmem:[%s459 + $0x99] sm:$0xff] %v440
      %474 = vst [vmem:[%s459 + $0xa9] sm:$0xff] %v441
      %475 = vst [vmem:[%s459 + $0xb1] sm:$0xff] %v442
      %476 = vst [vmem:[%s459 + $0xc1] sm:$0xff] %v443
      %477 = vst [vmem:[%s459 + $0xc9] sm:$0xff] %v444
      %478 = vst [vmem:[%s459 + $0xd9] sm:$0xff] %v445
      %479 = vst [vmem:[%s459 + $0xe1] sm:$0xff] %v446
      %480 = vst [vmem:[%s459 + $0xf1] sm:$0xff] %v447
      %481 = vst [vmem:[%s459 + $0xf9] sm:$0xff] %v448
      %482 = vst [vmem:[%s459 + $0x109] sm:$0xff] %v449
      %483 = vst [vmem:[%s459 + $0x111] sm:$0xff] %v450
      %484 = vst [vmem:[%s459 + $0x121] sm:$0xff] %v451
      %485 = vst [vmem:[%s459 + $0x129] sm:$0xff] %v452
      %486 = vst [vmem:[%s459 + $0x139] sm:$0xff] %v453
      %487 = vst [vmem:[%s459 + $0x141] sm:$0xff] %v454
      %488 = vst [vmem:[%s459 + $0x151] sm:$0xff] %v455
      %489 = vst [vmem:[%s459 + $0x159] sm:$0xff] %v456
      %490 = vst [vmem:[%s459 + $0x169] sm:$0xff] %v457
      %491 = vst [vmem:[%s459 + $0x171] sm:$0xff] %v458
      %v492 = vld [vmem:[#allocation2] sm:$0xff]
      %v493 = vld [vmem:[#allocation2 + $0x8] sm:$0xff]
      %v494 = vld [vmem:[#allocation2 + $0x18] sm:$0xff]
      %v495 = vld [vmem:[#allocation2 + $0x20] sm:$0xff]
      %v496 = vld [vmem:[#allocation2 + $0x30] sm:$0xff]
      %v497 = vld [vmem:[#allocation2 + $0x38] sm:$0xff]
      %v498 = vld [vmem:[#allocation2 + $0x48] sm:$0xff]
      %v499 = vld [vmem:[#allocation2 + $0x50] sm:$0xff]
      %v500 = vld [vmem:[#allocation2 + $0x60] sm:$0xff]
      %v501 = vld [vmem:[#allocation2 + $0x68] sm:$0xff]
      %v502 = vld [vmem:[#allocation2 + $0x78] sm:$0xff]
      %v503 = vld [vmem:[#allocation2 + $0x80] sm:$0xff]
      %v504 = vld [vmem:[#allocation2 + $0x90] sm:$0xff]
      %v505 = vld [vmem:[#allocation2 + $0x98] sm:$0xff]
      %v506 = vld [vmem:[#allocation2 + $0xa8] sm:$0xff]
      %v507 = vld [vmem:[#allocation2 + $0xb0] sm:$0xff]
      %v508 = vld [vmem:[#allocation2 + $0xc0] sm:$0xff]
      %v509 = vld [vmem:[#allocation2 + $0xc8] sm:$0xff]
      %v510 = vld [vmem:[#allocation2 + $0xd8] sm:$0xff]
      %v511 = vld [vmem:[#allocation2 + $0xe0] sm:$0xff]
      %v512 = vld [vmem:[#allocation2 + $0xf0] sm:$0xff]
      %v513 = vld [vmem:[#allocation2 + $0xf8] sm:$0xff]
      %v514 = vld [vmem:[#allocation2 + $0x108] sm:$0xff]
      %v515 = vld [vmem:[#allocation2 + $0x110] sm:$0xff]
      %v516 = vld [vmem:[#allocation2 + $0x120] sm:$0xff]
      %v517 = vld [vmem:[#allocation2 + $0x128] sm:$0xff]
      %v518 = vld [vmem:[#allocation2 + $0x138] sm:$0xff]
      %v519 = vld [vmem:[#allocation2 + $0x140] sm:$0xff]
      %v520 = vld [vmem:[#allocation2 + $0x150] sm:$0xff]
      %v521 = vld [vmem:[#allocation2 + $0x158] sm:$0xff]
      %v522 = vld [vmem:[#allocation2 + $0x168] sm:$0xff]
      %v523 = vld [vmem:[#allocation2 + $0x170] sm:$0xff]
      %v524 = vld [vmem:[#allocation2 + $0x180] sm:$0xff]
      %v525 = vld [vmem:[#allocation2 + $0x188] sm:$0xff]
      %v526 = vld [vmem:[#allocation2 + $0x198] sm:$0xff]
      %v527 = vld [vmem:[#allocation2 + $0x1a0] sm:$0xff]
      %v528 = vpack.c.bf16 %v493, %v492
      %v529 = vpack.c.bf16 %v495, %v494
      %v530 = vpack.c.bf16 %v497, %v496
      %v531 = vpack.c.bf16 %v499, %v498
      %v532 = vpack.c.bf16 %v501, %v500
      %v533 = vpack.c.bf16 %v503, %v502
      %v534 = vpack.c.bf16 %v505, %v504
      %v535 = vpack.c.bf16 %v507, %v506
      %v536 = vpack.c.bf16 %v509, %v508
      %v537 = vpack.c.bf16 %v511, %v510
      %v538 = vpack.c.bf16 %v513, %v512
      %v539 = vpack.c.bf16 %v515, %v514
      %v540 = vpack.c.bf16 %v517, %v516
      %v541 = vpack.c.bf16 %v519, %v518
      %v542 = vpack.c.bf16 %v521, %v520
      %v543 = vpack.c.bf16 %v523, %v522
      %v544 = vpack.c.bf16 %v525, %v524
      %v545 = vpack.c.bf16 %v527, %v526
      %v564 = vunpack.c.l.b16 %v528
      %v565 = vunpack.c.h.b16 %v528
      %v566 = vunpack.c.l.b16 %v529
      %v567 = vunpack.c.h.b16 %v529
      %v568 = vunpack.c.l.b16 %v530
      %v569 = vunpack.c.h.b16 %v530
      %v570 = vunpack.c.l.b16 %v531
      %v571 = vunpack.c.h.b16 %v531
      %v572 = vunpack.c.l.b16 %v532
      %v573 = vunpack.c.h.b16 %v532
      %v574 = vunpack.c.l.b16 %v533
      %v575 = vunpack.c.h.b16 %v533
      %v576 = vunpack.c.l.b16 %v534
      %v577 = vunpack.c.h.b16 %v534
      %v578 = vunpack.c.l.b16 %v535
      %v579 = vunpack.c.h.b16 %v535
      %v580 = vunpack.c.l.b16 %v536
      %v581 = vunpack.c.h.b16 %v536
      %v582 = vunpack.c.l.b16 %v537
      %v583 = vunpack.c.h.b16 %v537
      %v584 = vunpack.c.l.b16 %v538
      %v585 = vunpack.c.h.b16 %v538
      %v586 = vunpack.c.l.b16 %v539
      %v587 = vunpack.c.h.b16 %v539
      %v588 = vunpack.c.l.b16 %v540
      %v589 = vunpack.c.h.b16 %v540
      %v590 = vunpack.c.l.b16 %v541
      %v591 = vunpack.c.h.b16 %v541
      %v592 = vunpack.c.l.b16 %v542
      %v593 = vunpack.c.h.b16 %v542
      %v594 = vunpack.c.l.b16 %v543
      %v595 = vunpack.c.h.b16 %v543
      %v596 = vunpack.c.l.b16 %v544
      %v597 = vunpack.c.h.b16 %v544
      %v598 = vunpack.c.l.b16 %v545
      %v599 = vunpack.c.h.b16 %v545
      %v600 = vpack.c.b16 %v564, %v564
      %v601 = vpack.c.b16 %v565, %v565
      %v602 = vpack.c.b16 %v566, %v566
      %v603 = vpack.c.b16 %v567, %v567
      %v604 = vpack.c.b16 %v568, %v568
      %v605 = vpack.c.b16 %v569, %v569
      %v606 = vpack.c.b16 %v570, %v570
      %v607 = vpack.c.b16 %v571, %v571
      %v608 = vpack.c.b16 %v572, %v572
      %v609 = vpack.c.b16 %v573, %v573
      %v610 = vpack.c.b16 %v574, %v574
      %v611 = vpack.c.b16 %v575, %v575
      %v612 = vpack.c.b16 %v576, %v576
      %v613 = vpack.c.b16 %v577, %v577
      %v614 = vpack.c.b16 %v578, %v578
      %v615 = vpack.c.b16 %v579, %v579
      %v616 = vpack.c.b16 %v580, %v580
      %v617 = vpack.c.b16 %v581, %v581
      %v618 = vpack.c.b16 %v582, %v582
      %v619 = vpack.c.b16 %v583, %v583
      %v620 = vpack.c.b16 %v584, %v584
      %v621 = vpack.c.b16 %v585, %v585
      %v622 = vpack.c.b16 %v586, %v586
      %v623 = vpack.c.b16 %v587, %v587
      %v624 = vpack.c.b16 %v588, %v588
      %v625 = vpack.c.b16 %v589, %v589
      %v626 = vpack.c.b16 %v590, %v590
      %v627 = vpack.c.b16 %v591, %v591
      %v628 = vpack.c.b16 %v592, %v592
      %v629 = vpack.c.b16 %v593, %v593
      %v630 = vpack.c.b16 %v594, %v594
      %v631 = vpack.c.b16 %v595, %v595
      %v632 = vpack.c.b16 %v596, %v596
      %v633 = vpack.c.b16 %v597, %v597
      %v634 = vpack.c.b16 %v598, %v598
      %v635 = vpack.c.b16 %v599, %v599
      %672 = vst [vmem:[#allocation3] sm:$0xf] %v600
      %673 = vst [vmem:[#allocation3 + $0xc] sm:$0xf] %v601
      %674 = vst [vmem:[#allocation3 + $0x18] sm:$0xf] %v602
      %675 = vst [vmem:[#allocation3 + $0x24] sm:$0xf] %v603
      %676 = vst [vmem:[#allocation3 + $0x30] sm:$0xf] %v604
      %677 = vst [vmem:[#allocation3 + $0x3c] sm:$0xf] %v605
      %678 = vst [vmem:[#allocation3 + $0x48] sm:$0xf] %v606
      %679 = vst [vmem:[#allocation3 + $0x54] sm:$0xf] %v607
      %680 = vst [vmem:[#allocation3 + $0x60] sm:$0xf] %v608
      %681 = vst [vmem:[#allocation3 + $0x6c] sm:$0xf] %v609
      %682 = vst [vmem:[#allocation3 + $0x78] sm:$0xf] %v610
      %683 = vst [vmem:[#allocation3 + $0x84] sm:$0xf] %v611
      %684 = vst [vmem:[#allocation3 + $0x90] sm:$0xf] %v612
      %685 = vst [vmem:[#allocation3 + $0x9c] sm:$0xf] %v613
      %686 = vst [vmem:[#allocation3 + $0xa8] sm:$0xf] %v614
      %687 = vst [vmem:[#allocation3 + $0xb4] sm:$0xf] %v615
      %688 = vst [vmem:[#allocation3 + $0xc0] sm:$0xf] %v616
      %689 = vst [vmem:[#allocation3 + $0xcc] sm:$0xf] %v617
      %690 = vst [vmem:[#allocation3 + $0xd8] sm:$0xf] %v618
      %691 = vst [vmem:[#allocation3 + $0xe4] sm:$0xf] %v619
      %692 = vst [vmem:[#allocation3 + $0xf0] sm:$0xf] %v620
      %693 = vst [vmem:[#allocation3 + $0xfc] sm:$0xf] %v621
      %694 = vst [vmem:[#allocation3 + $0x108] sm:$0xf] %v622
      %695 = vst [vmem:[#allocation3 + $0x114] sm:$0xf] %v623
      %696 = vst [vmem:[#allocation3 + $0x120] sm:$0xf] %v624
      %697 = vst [vmem:[#allocation3 + $0x12c] sm:$0xf] %v625
      %698 = vst [vmem:[#allocation3 + $0x138] sm:$0xf] %v626
      %699 = vst [vmem:[#allocation3 + $0x144] sm:$0xf] %v627
      %700 = vst [vmem:[#allocation3 + $0x150] sm:$0xf] %v628
      %701 = vst [vmem:[#allocation3 + $0x15c] sm:$0xf] %v629
      %702 = vst [vmem:[#allocation3 + $0x168] sm:$0xf] %v630
      %703 = vst [vmem:[#allocation3 + $0x174] sm:$0xf] %v631
      %704 = vst [vmem:[#allocation3 + $0x180] sm:$0xf] %v632
      %705 = vst [vmem:[#allocation3 + $0x18c] sm:$0xf] %v633
      %706 = vst [vmem:[#allocation3 + $0x198] sm:$0xf] %v634
      %707 = vst [vmem:[#allocation3 + $0x1a4] sm:$0xf] %v635
      %v708 = vld [vmem:[#allocation2 + $0x1] sm:$0xff]
      %v709 = vld [vmem:[#allocation2 + $0x9] sm:$0xff]
      %v710 = vld [vmem:[#allocation2 + $0x19] sm:$0xff]
      %v711 = vld [vmem:[#allocation2 + $0x21] sm:$0xff]
      %v712 = vld [vmem:[#allocation2 + $0x31] sm:$0xff]
      %v713 = vld [vmem:[#allocation2 + $0x39] sm:$0xff]
      %v714 = vld [vmem:[#allocation2 + $0x49] sm:$0xff]
      %v715 = vld [vmem:[#allocation2 + $0x51] sm:$0xff]
      %v716 = vld [vmem:[#allocation2 + $0x61] sm:$0xff]
      %v717 = vld [vmem:[#allocation2 + $0x69] sm:$0xff]
      %v718 = vld [vmem:[#allocation2 + $0x79] sm:$0xff]
      %v719 = vld [vmem:[#allocation2 + $0x81] sm:$0xff]
      %v720 = vld [vmem:[#allocation2 + $0x91] sm:$0xff]
      %v721 = vld [vmem:[#allocation2 + $0x99] sm:$0xff]
      %v722 = vld [vmem:[#allocation2 + $0xa9] sm:$0xff]
      %v723 = vld [vmem:[#allocation2 + $0xb1] sm:$0xff]
      %v724 = vld [vmem:[#allocation2 + $0xc1] sm:$0xff]
      %v725 = vld [vmem:[#allocation2 + $0xc9] sm:$0xff]
      %v726 = vld [vmem:[#allocation2 + $0xd9] sm:$0xff]
      %v727 = vld [vmem:[#allocation2 + $0xe1] sm:$0xff]
      %v728 = vld [vmem:[#allocation2 + $0xf1] sm:$0xff]
      %v729 = vld [vmem:[#allocation2 + $0xf9] sm:$0xff]
      %v730 = vld [vmem:[#allocation2 + $0x109] sm:$0xff]
      %v731 = vld [vmem:[#allocation2 + $0x111] sm:$0xff]
      %v732 = vld [vmem:[#allocation2 + $0x121] sm:$0xff]
      %v733 = vld [vmem:[#allocation2 + $0x129] sm:$0xff]
      %v734 = vld [vmem:[#allocation2 + $0x139] sm:$0xff]
      %v735 = vld [vmem:[#allocation2 + $0x141] sm:$0xff]
      %v736 = vld [vmem:[#allocation2 + $0x151] sm:$0xff]
      %v737 = vld [vmem:[#allocation2 + $0x159] sm:$0xff]
      %v738 = vld [vmem:[#allocation2 + $0x169] sm:$0xff]
      %v739 = vld [vmem:[#allocation2 + $0x171] sm:$0xff]
      %v740 = vld [vmem:[#allocation2 + $0x181] sm:$0xff]
      %v741 = vld [vmem:[#allocation2 + $0x189] sm:$0xff]
      %v742 = vld [vmem:[#allocation2 + $0x199] sm:$0xff]
      %v743 = vld [vmem:[#allocation2 + $0x1a1] sm:$0xff]
      %v744 = vpack.c.bf16 %v709, %v708
      %v745 = vpack.c.bf16 %v711, %v710
      %v746 = vpack.c.bf16 %v713, %v712
      %v747 = vpack.c.bf16 %v715, %v714
      %v748 = vpack.c.bf16 %v717, %v716
      %v749 = vpack.c.bf16 %v719, %v718
      %v750 = vpack.c.bf16 %v721, %v720
      %v751 = vpack.c.bf16 %v723, %v722
      %v752 = vpack.c.bf16 %v725, %v724
      %v753 = vpack.c.bf16 %v727, %v726
      %v754 = vpack.c.bf16 %v729, %v728
      %v755 = vpack.c.bf16 %v731, %v730
      %v756 = vpack.c.bf16 %v733, %v732
      %v757 = vpack.c.bf16 %v735, %v734
      %v758 = vpack.c.bf16 %v737, %v736
      %v759 = vpack.c.bf16 %v739, %v738
      %v760 = vpack.c.bf16 %v741, %v740
      %v761 = vpack.c.bf16 %v743, %v742
      %v780 = vunpack.c.l.b16 %v744
      %v781 = vunpack.c.h.b16 %v744
      %v782 = vunpack.c.l.b16 %v745
      %v783 = vunpack.c.h.b16 %v745
      %v784 = vunpack.c.l.b16 %v746
      %v785 = vunpack.c.h.b16 %v746
      %v786 = vunpack.c.l.b16 %v747
      %v787 = vunpack.c.h.b16 %v747
      %v788 = vunpack.c.l.b16 %v748
      %v789 = vunpack.c.h.b16 %v748
      %v790 = vunpack.c.l.b16 %v749
      %v791 = vunpack.c.h.b16 %v749
      %v792 = vunpack.c.l.b16 %v750
      %v793 = vunpack.c.h.b16 %v750
      %v794 = vunpack.c.l.b16 %v751
      %v795 = vunpack.c.h.b16 %v751
      %v796 = vunpack.c.l.b16 %v752
      %v797 = vunpack.c.h.b16 %v752
      %v798 = vunpack.c.l.b16 %v753
      %v799 = vunpack.c.h.b16 %v753
      %v800 = vunpack.c.l.b16 %v754
      %v801 = vunpack.c.h.b16 %v754
      %v802 = vunpack.c.l.b16 %v755
      %v803 = vunpack.c.h.b16 %v755
      %v804 = vunpack.c.l.b16 %v756
      %v805 = vunpack.c.h.b16 %v756
      %v806 = vunpack.c.l.b16 %v757
      %v807 = vunpack.c.h.b16 %v757
      %v808 = vunpack.c.l.b16 %v758
      %v809 = vunpack.c.h.b16 %v758
      %v810 = vunpack.c.l.b16 %v759
      %v811 = vunpack.c.h.b16 %v759
      %v812 = vunpack.c.l.b16 %v760
      %v813 = vunpack.c.h.b16 %v760
      %v814 = vunpack.c.l.b16 %v761
      %v815 = vunpack.c.h.b16 %v761
      %v816 = vpack.c.b16 %v780, %v780
      %v817 = vpack.c.b16 %v781, %v781
      %v818 = vpack.c.b16 %v782, %v782
      %v819 = vpack.c.b16 %v783, %v783
      %v820 = vpack.c.b16 %v784, %v784
      %v821 = vpack.c.b16 %v785, %v785
      %v822 = vpack.c.b16 %v786, %v786
      %v823 = vpack.c.b16 %v787, %v787
      %v824 = vpack.c.b16 %v788, %v788
      %v825 = vpack.c.b16 %v789, %v789
      %v826 = vpack.c.b16 %v790, %v790
      %v827 = vpack.c.b16 %v791, %v791
      %v828 = vpack.c.b16 %v792, %v792
      %v829 = vpack.c.b16 %v793, %v793
      %v830 = vpack.c.b16 %v794, %v794
      %v831 = vpack.c.b16 %v795, %v795
      %v832 = vpack.c.b16 %v796, %v796
      %v833 = vpack.c.b16 %v797, %v797
      %v834 = vpack.c.b16 %v798, %v798
      %v835 = vpack.c.b16 %v799, %v799
      %v836 = vpack.c.b16 %v800, %v800
      %v837 = vpack.c.b16 %v801, %v801
      %v838 = vpack.c.b16 %v802, %v802
      %v839 = vpack.c.b16 %v803, %v803
      %v840 = vpack.c.b16 %v804, %v804
      %v841 = vpack.c.b16 %v805, %v805
      %v842 = vpack.c.b16 %v806, %v806
      %v843 = vpack.c.b16 %v807, %v807
      %v844 = vpack.c.b16 %v808, %v808
      %v845 = vpack.c.b16 %v809, %v809
      %v846 = vpack.c.b16 %v810, %v810
      %v847 = vpack.c.b16 %v811, %v811
      %v848 = vpack.c.b16 %v812, %v812
      %v849 = vpack.c.b16 %v813, %v813
      %v850 = vpack.c.b16 %v814, %v814
      %v851 = vpack.c.b16 %v815, %v815
      %888 = vst [vmem:[#allocation3 + $0x4] sm:$0xf] %v816
      %889 = vst [vmem:[#allocation3 + $0x10] sm:$0xf] %v817
      %890 = vst [vmem:[#allocation3 + $0x1c] sm:$0xf] %v818
      %891 = vst [vmem:[#allocation3 + $0x28] sm:$0xf] %v819
      %892 = vst [vmem:[#allocation3 + $0x34] sm:$0xf] %v820
      %893 = vst [vmem:[#allocation3 + $0x40] sm:$0xf] %v821
      %894 = vst [vmem:[#allocation3 + $0x4c] sm:$0xf] %v822
      %895 = vst [vmem:[#allocation3 + $0x58] sm:$0xf] %v823
      %896 = vst [vmem:[#allocation3 + $0x64] sm:$0xf] %v824
      %897 = vst [vmem:[#allocation3 + $0x70] sm:$0xf] %v825
      %898 = vst [vmem:[#allocation3 + $0x7c] sm:$0xf] %v826
      %899 = vst [vmem:[#allocation3 + $0x88] sm:$0xf] %v827
      %900 = vst [vmem:[#allocation3 + $0x94] sm:$0xf] %v828
      %901 = vst [vmem:[#allocation3 + $0xa0] sm:$0xf] %v829
      %902 = vst [vmem:[#allocation3 + $0xac] sm:$0xf] %v830
      %903 = vst [vmem:[#allocation3 + $0xb8] sm:$0xf] %v831
      %904 = vst [vmem:[#allocation3 + $0xc4] sm:$0xf] %v832
      %905 = vst [vmem:[#allocation3 + $0xd0] sm:$0xf] %v833
      %906 = vst [vmem:[#allocation3 + $0xdc] sm:$0xf] %v834
      %907 = vst [vmem:[#allocation3 + $0xe8] sm:$0xf] %v835
      %908 = vst [vmem:[#allocation3 + $0xf4] sm:$0xf] %v836
      %909 = vst [vmem:[#allocation3 + $0x100] sm:$0xf] %v837
      %910 = vst [vmem:[#allocation3 + $0x10c] sm:$0xf] %v838
      %911 = vst [vmem:[#allocation3 + $0x118] sm:$0xf] %v839
      %912 = vst [vmem:[#allocation3 + $0x124] sm:$0xf] %v840
      %913 = vst [vmem:[#allocation3 + $0x130] sm:$0xf] %v841
      %914 = vst [vmem:[#allocation3 + $0x13c] sm:$0xf] %v842
      %915 = vst [vmem:[#allocation3 + $0x148] sm:$0xf] %v843
      %916 = vst [vmem:[#allocation3 + $0x154] sm:$0xf] %v844
      %917 = vst [vmem:[#allocation3 + $0x160] sm:$0xf] %v845
      %918 = vst [vmem:[#allocation3 + $0x16c] sm:$0xf] %v846
      %919 = vst [vmem:[#allocation3 + $0x178] sm:$0xf] %v847
      %920 = vst [vmem:[#allocation3 + $0x184] sm:$0xf] %v848
      %921 = vst [vmem:[#allocation3 + $0x190] sm:$0xf] %v849
      %922 = vst [vmem:[#allocation3 + $0x19c] sm:$0xf] %v850
      %923 = vst [vmem:[#allocation3 + $0x1a8] sm:$0xf] %v851
      %v924 = vld [vmem:[#allocation2 + $0x2] sm:$0xff]
      %v925 = vld [vmem:[#allocation2 + $0xa] sm:$0xff]
      %v926 = vld [vmem:[#allocation2 + $0x1a] sm:$0xff]
      %v927 = vld [vmem:[#allocation2 + $0x22] sm:$0xff]
      %v928 = vld [vmem:[#allocation2 + $0x32] sm:$0xff]
      %v929 = vld [vmem:[#allocation2 + $0x3a] sm:$0xff]
      %v930 = vld [vmem:[#allocation2 + $0x4a] sm:$0xff]
      %v931 = vld [vmem:[#allocation2 + $0x52] sm:$0xff]
      %v932 = vld [vmem:[#allocation2 + $0x62] sm:$0xff]
      %v933 = vld [vmem:[#allocation2 + $0x6a] sm:$0xff]
      %v934 = vld [vmem:[#allocation2 + $0x7a] sm:$0xff]
      %v935 = vld [vmem:[#allocation2 + $0x82] sm:$0xff]
      %v936 = vld [vmem:[#allocation2 + $0x92] sm:$0xff]
      %v937 = vld [vmem:[#allocation2 + $0x9a] sm:$0xff]
      %v938 = vld [vmem:[#allocation2 + $0xaa] sm:$0xff]
      %v939 = vld [vmem:[#allocation2 + $0xb2] sm:$0xff]
      %v940 = vld [vmem:[#allocation2 + $0xc2] sm:$0xff]
      %v941 = vld [vmem:[#allocation2 + $0xca] sm:$0xff]
      %v942 = vld [vmem:[#allocation2 + $0xda] sm:$0xff]
      %v943 = vld [vmem:[#allocation2 + $0xe2] sm:$0xff]
      %v944 = vld [vmem:[#allocation2 + $0xf2] sm:$0xff]
      %v945 = vld [vmem:[#allocation2 + $0xfa] sm:$0xff]
      %v946 = vld [vmem:[#allocation2 + $0x10a] sm:$0xff]
      %v947 = vld [vmem:[#allocation2 + $0x112] sm:$0xff]
      %v948 = vld [vmem:[#allocation2 + $0x122] sm:$0xff]
      %v949 = vld [vmem:[#allocation2 + $0x12a] sm:$0xff]
      %v950 = vld [vmem:[#allocation2 + $0x13a] sm:$0xff]
      %v951 = vld [vmem:[#allocation2 + $0x142] sm:$0xff]
      %v952 = vld [vmem:[#allocation2 + $0x152] sm:$0xff]
      %v953 = vld [vmem:[#allocation2 + $0x15a] sm:$0xff]
      %v954 = vld [vmem:[#allocation2 + $0x16a] sm:$0xff]
      %v955 = vld [vmem:[#allocation2 + $0x172] sm:$0xff]
      %v956 = vld [vmem:[#allocation2 + $0x182] sm:$0xff]
      %v957 = vld [vmem:[#allocation2 + $0x18a] sm:$0xff]
      %v958 = vld [vmem:[#allocation2 + $0x19a] sm:$0xff]
      %v959 = vld [vmem:[#allocation2 + $0x1a2] sm:$0xff]
      %v960 = vpack.c.bf16 %v925, %v924
      %v961 = vpack.c.bf16 %v927, %v926
      %v962 = vpack.c.bf16 %v929, %v928
      %v963 = vpack.c.bf16 %v931, %v930
      %v964 = vpack.c.bf16 %v933, %v932
      %v965 = vpack.c.bf16 %v935, %v934
      %v966 = vpack.c.bf16 %v937, %v936
      %v967 = vpack.c.bf16 %v939, %v938
      %v968 = vpack.c.bf16 %v941, %v940
      %v969 = vpack.c.bf16 %v943, %v942
      %v970 = vpack.c.bf16 %v945, %v944
      %v971 = vpack.c.bf16 %v947, %v946
      %v972 = vpack.c.bf16 %v949, %v948
      %v973 = vpack.c.bf16 %v951, %v950
      %v974 = vpack.c.bf16 %v953, %v952
      %v975 = vpack.c.bf16 %v955, %v954
      %v976 = vpack.c.bf16 %v957, %v956
      %v977 = vpack.c.bf16 %v959, %v958
      %v996 = vunpack.c.l.b16 %v960
      %v997 = vunpack.c.h.b16 %v960
      %v998 = vunpack.c.l.b16 %v961
      %v999 = vunpack.c.h.b16 %v961
      %v1000 = vunpack.c.l.b16 %v962
      %v1001 = vunpack.c.h.b16 %v962
      %v1002 = vunpack.c.l.b16 %v963
      %v1003 = vunpack.c.h.b16 %v963
      %v1004 = vunpack.c.l.b16 %v964
      %v1005 = vunpack.c.h.b16 %v964
      %v1006 = vunpack.c.l.b16 %v965
      %v1007 = vunpack.c.h.b16 %v965
      %v1008 = vunpack.c.l.b16 %v966
      %v1009 = vunpack.c.h.b16 %v966
      %v1010 = vunpack.c.l.b16 %v967
      %v1011 = vunpack.c.h.b16 %v967
      %v1012 = vunpack.c.l.b16 %v968
      %v1013 = vunpack.c.h.b16 %v968
      %v1014 = vunpack.c.l.b16 %v969
      %v1015 = vunpack.c.h.b16 %v969
      %v1016 = vunpack.c.l.b16 %v970
      %v1017 = vunpack.c.h.b16 %v970
      %v1018 = vunpack.c.l.b16 %v971
      %v1019 = vunpack.c.h.b16 %v971
      %v1020 = vunpack.c.l.b16 %v972
      %v1021 = vunpack.c.h.b16 %v972
      %v1022 = vunpack.c.l.b16 %v973
      %v1023 = vunpack.c.h.b16 %v973
      %v1024 = vunpack.c.l.b16 %v974
      %v1025 = vunpack.c.h.b16 %v974
      %v1026 = vunpack.c.l.b16 %v975
      %v1027 = vunpack.c.h.b16 %v975
      %v1028 = vunpack.c.l.b16 %v976
      %v1029 = vunpack.c.h.b16 %v976
      %v1030 = vunpack.c.l.b16 %v977
      %v1031 = vunpack.c.h.b16 %v977
      %v1032 = vpack.c.b16 %v996, %v996
      %v1033 = vpack.c.b16 %v997, %v997
      %v1034 = vpack.c.b16 %v998, %v998
      %v1035 = vpack.c.b16 %v999, %v999
      %v1036 = vpack.c.b16 %v1000, %v1000
      %v1037 = vpack.c.b16 %v1001, %v1001
      %v1038 = vpack.c.b16 %v1002, %v1002
      %v1039 = vpack.c.b16 %v1003, %v1003
      %v1040 = vpack.c.b16 %v1004, %v1004
      %v1041 = vpack.c.b16 %v1005, %v1005
      %v1042 = vpack.c.b16 %v1006, %v1006
      %v1043 = vpack.c.b16 %v1007, %v1007
      %v1044 = vpack.c.b16 %v1008, %v1008
      %v1045 = vpack.c.b16 %v1009, %v1009
      %v1046 = vpack.c.b16 %v1010, %v1010
      %v1047 = vpack.c.b16 %v1011, %v1011
      %v1048 = vpack.c.b16 %v1012, %v1012
      %v1049 = vpack.c.b16 %v1013, %v1013
      %v1050 = vpack.c.b16 %v1014, %v1014
      %v1051 = vpack.c.b16 %v1015, %v1015
      %v1052 = vpack.c.b16 %v1016, %v1016
      %v1053 = vpack.c.b16 %v1017, %v1017
      %v1054 = vpack.c.b16 %v1018, %v1018
      %v1055 = vpack.c.b16 %v1019, %v1019
      %v1056 = vpack.c.b16 %v1020, %v1020
      %v1057 = vpack.c.b16 %v1021, %v1021
      %v1058 = vpack.c.b16 %v1022, %v1022
      %v1059 = vpack.c.b16 %v1023, %v1023
      %v1060 = vpack.c.b16 %v1024, %v1024
      %v1061 = vpack.c.b16 %v1025, %v1025
      %v1062 = vpack.c.b16 %v1026, %v1026
      %v1063 = vpack.c.b16 %v1027, %v1027
      %v1064 = vpack.c.b16 %v1028, %v1028
      %v1065 = vpack.c.b16 %v1029, %v1029
      %v1066 = vpack.c.b16 %v1030, %v1030
      %v1067 = vpack.c.b16 %v1031, %v1031
      %1104 = vst [vmem:[#allocation3 + $0x8] sm:$0xf] %v1032
      %1105 = vst [vmem:[#allocation3 + $0x14] sm:$0xf] %v1033
      %1106 = vst [vmem:[#allocation3 + $0x20] sm:$0xf] %v1034
      %1107 = vst [vmem:[#allocation3 + $0x2c] sm:$0xf] %v1035
      %1108 = vst [vmem:[#allocation3 + $0x38] sm:$0xf] %v1036
      %1109 = vst [vmem:[#allocation3 + $0x44] sm:$0xf] %v1037
      %1110 = vst [vmem:[#allocation3 + $0x50] sm:$0xf] %v1038
      %1111 = vst [vmem:[#allocation3 + $0x5c] sm:$0xf] %v1039
      %1112 = vst [vmem:[#allocation3 + $0x68] sm:$0xf] %v1040
      %1113 = vst [vmem:[#allocation3 + $0x74] sm:$0xf] %v1041
      %1114 = vst [vmem:[#allocation3 + $0x80] sm:$0xf] %v1042
      %1115 = vst [vmem:[#allocation3 + $0x8c] sm:$0xf] %v1043
      %1116 = vst [vmem:[#allocation3 + $0x98] sm:$0xf] %v1044
      %1117 = vst [vmem:[#allocation3 + $0xa4] sm:$0xf] %v1045
      %1118 = vst [vmem:[#allocation3 + $0xb0] sm:$0xf] %v1046
      %1119 = vst [vmem:[#allocation3 + $0xbc] sm:$0xf] %v1047
      %1120 = vst [vmem:[#allocation3 + $0xc8] sm:$0xf] %v1048
      %1121 = vst [vmem:[#allocation3 + $0xd4] sm:$0xf] %v1049
      %1122 = vst [vmem:[#allocation3 + $0xe0] sm:$0xf] %v1050
      %1123 = vst [vmem:[#allocation3 + $0xec] sm:$0xf] %v1051
      %1124 = vst [vmem:[#allocation3 + $0xf8] sm:$0xf] %v1052
      %1125 = vst [vmem:[#allocation3 + $0x104] sm:$0xf] %v1053
      %1126 = vst [vmem:[#allocation3 + $0x110] sm:$0xf] %v1054
      %1127 = vst [vmem:[#allocation3 + $0x11c] sm:$0xf] %v1055
      %1128 = vst [vmem:[#allocation3 + $0x128] sm:$0xf] %v1056
      %1129 = vst [vmem:[#allocation3 + $0x134] sm:$0xf] %v1057
      %1130 = vst [vmem:[#allocation3 + $0x140] sm:$0xf] %v1058
      %1131 = vst [vmem:[#allocation3 + $0x14c] sm:$0xf] %v1059
      %1132 = vst [vmem:[#allocation3 + $0x158] sm:$0xf] %v1060
      %1133 = vst [vmem:[#allocation3 + $0x164] sm:$0xf] %v1061
      %1134 = vst [vmem:[#allocation3 + $0x170] sm:$0xf] %v1062
      %1135 = vst [vmem:[#allocation3 + $0x17c] sm:$0xf] %v1063
      %1136 = vst [vmem:[#allocation3 + $0x188] sm:$0xf] %v1064
      %1137 = vst [vmem:[#allocation3 + $0x194] sm:$0xf] %v1065
      %1138 = vst [vmem:[#allocation3 + $0x1a0] sm:$0xf] %v1066
      %1139 = vst [vmem:[#allocation3 + $0x1ac] sm:$0xf] %v1067
      %v1140 = vld [vmem:[#allocation3] sm:$0xff]
      %v1141 = vld [vmem:[#allocation3 + $0x8] sm:$0xf]
      %v1142 = vld [vmem:[#allocation3 + $0xc] sm:$0xff]
      %v1143 = vld [vmem:[#allocation3 + $0x14] sm:$0xf]
      %v1144 = vld [vmem:[#allocation3 + $0x18] sm:$0xff]
      %v1145 = vld [vmem:[#allocation3 + $0x20] sm:$0xf]
      %v1146 = vld [vmem:[#allocation3 + $0x24] sm:$0xff]
      %v1147 = vld [vmem:[#allocation3 + $0x2c] sm:$0xf]
      %v1148 = vld [vmem:[#allocation3 + $0x30] sm:$0xff]
      %v1149 = vld [vmem:[#allocation3 + $0x38] sm:$0xf]
      %v1150 = vld [vmem:[#allocation3 + $0x3c] sm:$0xff]
      %v1151 = vld [vmem:[#allocation3 + $0x44] sm:$0xf]
      %v1152 = vld [vmem:[#allocation3 + $0x48] sm:$0xff]
      %v1153 = vld [vmem:[#allocation3 + $0x50] sm:$0xf]
      %v1154 = vld [vmem:[#allocation3 + $0x54] sm:$0xff]
      %v1155 = vld [vmem:[#allocation3 + $0x5c] sm:$0xf]
      %v1156 = vld [vmem:[#allocation3 + $0x60] sm:$0xff]
      %v1157 = vld [vmem:[#allocation3 + $0x68] sm:$0xf]
      %v1158 = vld [vmem:[#allocation3 + $0x6c] sm:$0xff]
      %v1159 = vld [vmem:[#allocation3 + $0x74] sm:$0xf]
      %v1160 = vld [vmem:[#allocation3 + $0x78] sm:$0xff]
      %v1161 = vld [vmem:[#allocation3 + $0x80] sm:$0xf]
      %v1162 = vld [vmem:[#allocation3 + $0x84] sm:$0xff]
      %v1163 = vld [vmem:[#allocation3 + $0x8c] sm:$0xf]
      %v1164 = vld [vmem:[#allocation3 + $0x90] sm:$0xff]
      %v1165 = vld [vmem:[#allocation3 + $0x98] sm:$0xf]
      %v1166 = vld [vmem:[#allocation3 + $0x9c] sm:$0xff]
      %v1167 = vld [vmem:[#allocation3 + $0xa4] sm:$0xf]
      %v1168 = vld [vmem:[#allocation3 + $0xa8] sm:$0xff]
      %v1169 = vld [vmem:[#allocation3 + $0xb0] sm:$0xf]
      %v1170 = vld [vmem:[#allocation3 + $0xb4] sm:$0xff]
      %v1171 = vld [vmem:[#allocation3 + $0xbc] sm:$0xf]
      %v1172 = vld [vmem:[#allocation3 + $0xc0] sm:$0xff]
      %v1173 = vld [vmem:[#allocation3 + $0xc8] sm:$0xf]
      %v1174 = vld [vmem:[#allocation3 + $0xcc] sm:$0xff]
      %v1175 = vld [vmem:[#allocation3 + $0xd4] sm:$0xf]
      %v1176 = vld [vmem:[#allocation3 + $0xd8] sm:$0xff]
      %v1177 = vld [vmem:[#allocation3 + $0xe0] sm:$0xf]
      %v1178 = vld [vmem:[#allocation3 + $0xe4] sm:$0xff]
      %v1179 = vld [vmem:[#allocation3 + $0xec] sm:$0xf]
      %v1180 = vld [vmem:[#allocation3 + $0xf0] sm:$0xff]
      %v1181 = vld [vmem:[#allocation3 + $0xf8] sm:$0xf]
      %v1182 = vld [vmem:[#allocation3 + $0xfc] sm:$0xff]
      %v1183 = vld [vmem:[#allocation3 + $0x104] sm:$0xf]
      %v1184 = vld [vmem:[#allocation3 + $0x108] sm:$0xff]
      %v1185 = vld [vmem:[#allocation3 + $0x110] sm:$0xf]
      %v1186 = vld [vmem:[#allocation3 + $0x114] sm:$0xff]
      %v1187 = vld [vmem:[#allocation3 + $0x11c] sm:$0xf]
      %v1188 = vld [vmem:[#allocation3 + $0x120] sm:$0xff]
      %v1189 = vld [vmem:[#allocation3 + $0x128] sm:$0xf]
      %v1190 = vld [vmem:[#allocation3 + $0x12c] sm:$0xff]
      %v1191 = vld [vmem:[#allocation3 + $0x134] sm:$0xf]
      %v1192 = vld [vmem:[#allocation3 + $0x138] sm:$0xff]
      %v1193 = vld [vmem:[#allocation3 + $0x140] sm:$0xf]
      %v1194 = vld [vmem:[#allocation3 + $0x144] sm:$0xff]
      %v1195 = vld [vmem:[#allocation3 + $0x14c] sm:$0xf]
      %v1196 = vld [vmem:[#allocation3 + $0x150] sm:$0xff]
      %v1197 = vld [vmem:[#allocation3 + $0x158] sm:$0xf]
      %v1198 = vld [vmem:[#allocation3 + $0x15c] sm:$0xff]
      %v1199 = vld [vmem:[#allocation3 + $0x164] sm:$0xf]
      %v1200 = vld [vmem:[#allocation3 + $0x168] sm:$0xff]
      %v1201 = vld [vmem:[#allocation3 + $0x170] sm:$0xf]
      %v1202 = vld [vmem:[#allocation3 + $0x174] sm:$0xff]
      %v1203 = vld [vmem:[#allocation3 + $0x17c] sm:$0xf]
      %v1204 = vld [vmem:[%s1] sm:$0xf]
      %v1205 = vld [vmem:[%s1 + $0x4] sm:$0xf]
      %v1206 = vld [vmem:[%s1 + $0x8] sm:$0xf]
      %v1207 = vld [vmem:[%s1 + $0xc] sm:$0xf]
      %v1208 = vld [vmem:[%s1 + $0x10] sm:$0xf]
      %v1209 = vld [vmem:[%s1 + $0x14] sm:$0xf]
      %v1210 = vld [vmem:[%s1 + $0x18] sm:$0xf]
      %v1211 = vld [vmem:[%s1 + $0x1c] sm:$0xf]
      %v1212 = vld [vmem:[%s1 + $0x20] sm:$0xf]
      %v1213 = vld [vmem:[%s1 + $0x24] sm:$0xf]
      %v1214 = vld [vmem:[%s1 + $0x28] sm:$0xf]
      %v1215 = vld [vmem:[%s1 + $0x2c] sm:$0xf]
      %v1216 = vld [vmem:[%s1 + $0x30] sm:$0xf]
      %v1217 = vld [vmem:[%s1 + $0x34] sm:$0xf]
      %v1218 = vld [vmem:[%s1 + $0x38] sm:$0xf]
      %v1219 = vld [vmem:[%s1 + $0x3c] sm:$0xf]
      %v1220 = vld [vmem:[%s1 + $0x40] sm:$0xf]
      %v1221 = vld [vmem:[%s1 + $0x44] sm:$0xf]
      %v1222 = vld [vmem:[%s1 + $0x48] sm:$0xf]
      %v1223 = vld [vmem:[%s1 + $0x4c] sm:$0xf]
      %v1224 = vld [vmem:[%s1 + $0x50] sm:$0xf]
      %v1225 = vld [vmem:[%s1 + $0x54] sm:$0xf]
      %v1226 = vld [vmem:[%s1 + $0x58] sm:$0xf]
      %v1227 = vld [vmem:[%s1 + $0x5c] sm:$0xf]
      %v1228 = vld [vmem:[%s1 + $0x60] sm:$0xf]
      %v1229 = vld [vmem:[%s1 + $0x64] sm:$0xf]
      %v1230 = vld [vmem:[%s1 + $0x68] sm:$0xf]
      %v1231 = vld [vmem:[%s1 + $0x6c] sm:$0xf]
      %v1232 = vld [vmem:[%s1 + $0x70] sm:$0xf]
      %v1233 = vld [vmem:[%s1 + $0x74] sm:$0xf]
      %v1234 = vld [vmem:[%s1 + $0x78] sm:$0xf]
      %v1235 = vld [vmem:[%s1 + $0x7c] sm:$0xf]
      %v1236 = vld [vmem:[%s1 + $0x80] sm:$0xf]
      %v1237 = vld [vmem:[%s1 + $0x84] sm:$0xf]
      %v1238 = vld [vmem:[%s1 + $0x88] sm:$0xf]
      %v1239 = vld [vmem:[%s1 + $0x8c] sm:$0xf]
      %v1240 = vld [vmem:[%s1 + $0x90] sm:$0xf]
      %v1241 = vld [vmem:[%s1 + $0x94] sm:$0xf]
      %v1242 = vld [vmem:[%s1 + $0x98] sm:$0xf]
      %v1243 = vld [vmem:[%s1 + $0x9c] sm:$0xf]
      %v1244 = vld [vmem:[%s1 + $0xa0] sm:$0xf]
      %v1245 = vld [vmem:[%s1 + $0xa4] sm:$0xf]
      %v1246 = vld [vmem:[%s1 + $0xa8] sm:$0xf]
      %v1247 = vld [vmem:[%s1 + $0xac] sm:$0xf]
      %v1248 = vld [vmem:[%s1 + $0xb0] sm:$0xf]
      %v1249 = vld [vmem:[%s1 + $0xb4] sm:$0xf]
      %v1250 = vld [vmem:[%s1 + $0xb8] sm:$0xf]
      %v1251 = vld [vmem:[%s1 + $0xbc] sm:$0xf]
      %v1316 = vunpack.c.l.b16 %v1140
      %v1317 = vunpack.c.h.b16 %v1140
      %v1318 = vunpack.c.l.b16 %v1141
      %v1319 = vunpack.c.l.b16 %v1142
      %v1320 = vunpack.c.h.b16 %v1142
      %v1321 = vunpack.c.l.b16 %v1143
      %v1322 = vunpack.c.l.b16 %v1144
      %v1323 = vunpack.c.h.b16 %v1144
      %v1324 = vunpack.c.l.b16 %v1145
      %v1325 = vunpack.c.l.b16 %v1146
      %v1326 = vunpack.c.h.b16 %v1146
      %v1327 = vunpack.c.l.b16 %v1147
      %v1328 = vunpack.c.l.b16 %v1148
      %v1329 = vunpack.c.h.b16 %v1148
      %v1330 = vunpack.c.l.b16 %v1149
      %v1331 = vunpack.c.l.b16 %v1150
      %v1332 = vunpack.c.h.b16 %v1150
      %v1333 = vunpack.c.l.b16 %v1151
      %v1334 = vunpack.c.l.b16 %v1152
      %v1335 = vunpack.c.h.b16 %v1152
      %v1336 = vunpack.c.l.b16 %v1153
      %v1337 = vunpack.c.l.b16 %v1154
      %v1338 = vunpack.c.h.b16 %v1154
      %v1339 = vunpack.c.l.b16 %v1155
      %v1340 = vunpack.c.l.b16 %v1156
      %v1341 = vunpack.c.h.b16 %v1156
      %v1342 = vunpack.c.l.b16 %v1157
      %v1343 = vunpack.c.l.b16 %v1158
      %v1344 = vunpack.c.h.b16 %v1158
      %v1345 = vunpack.c.l.b16 %v1159
      %v1346 = vunpack.c.l.b16 %v1160
      %v1347 = vunpack.c.h.b16 %v1160
      %v1348 = vunpack.c.l.b16 %v1161
      %v1349 = vunpack.c.l.b16 %v1162
      %v1350 = vunpack.c.h.b16 %v1162
      %v1351 = vunpack.c.l.b16 %v1163
      %v1352 = vunpack.c.l.b16 %v1164
      %v1353 = vunpack.c.h.b16 %v1164
      %v1354 = vunpack.c.l.b16 %v1165
      %v1355 = vunpack.c.l.b16 %v1166
      %v1356 = vunpack.c.h.b16 %v1166
      %v1357 = vunpack.c.l.b16 %v1167
      %v1358 = vunpack.c.l.b16 %v1168
      %v1359 = vunpack.c.h.b16 %v1168
      %v1360 = vunpack.c.l.b16 %v1169
      %v1361 = vunpack.c.l.b16 %v1170
      %v1362 = vunpack.c.h.b16 %v1170
      %v1363 = vunpack.c.l.b16 %v1171
      %v1364 = vunpack.c.l.b16 %v1172
      %v1365 = vunpack.c.h.b16 %v1172
      %v1366 = vunpack.c.l.b16 %v1173
      %v1367 = vunpack.c.l.b16 %v1174
      %v1368 = vunpack.c.h.b16 %v1174
      %v1369 = vunpack.c.l.b16 %v1175
      %v1370 = vunpack.c.l.b16 %v1176
      %v1371 = vunpack.c.h.b16 %v1176
      %v1372 = vunpack.c.l.b16 %v1177
      %v1373 = vunpack.c.l.b16 %v1178
      %v1374 = vunpack.c.h.b16 %v1178
      %v1375 = vunpack.c.l.b16 %v1179
      %v1376 = vunpack.c.l.b16 %v1180
      %v1377 = vunpack.c.h.b16 %v1180
      %v1378 = vunpack.c.l.b16 %v1181
      %v1379 = vunpack.c.l.b16 %v1182
      %v1380 = vunpack.c.h.b16 %v1182
      %v1381 = vunpack.c.l.b16 %v1183
      %v1382 = vunpack.c.l.b16 %v1184
      %v1383 = vunpack.c.h.b16 %v1184
      %v1384 = vunpack.c.l.b16 %v1185
      %v1385 = vunpack.c.l.b16 %v1186
      %v1386 = vunpack.c.h.b16 %v1186
      %v1387 = vunpack.c.l.b16 %v1187
      %v1388 = vunpack.c.l.b16 %v1188
      %v1389 = vunpack.c.h.b16 %v1188
      %v1390 = vunpack.c.l.b16 %v1189
      %v1391 = vunpack.c.l.b16 %v1190
      %v1392 = vunpack.c.h.b16 %v1190
      %v1393 = vunpack.c.l.b16 %v1191
      %v1394 = vunpack.c.l.b16 %v1192
      %v1395 = vunpack.c.h.b16 %v1192
      %v1396 = vunpack.c.l.b16 %v1193
      %v1397 = vunpack.c.l.b16 %v1194
      %v1398 = vunpack.c.h.b16 %v1194
      %v1399 = vunpack.c.l.b16 %v1195
      %v1400 = vunpack.c.l.b16 %v1196
      %v1401 = vunpack.c.h.b16 %v1196
      %v1402 = vunpack.c.l.b16 %v1197
      %v1403 = vunpack.c.l.b16 %v1198
      %v1404 = vunpack.c.h.b16 %v1198
      %v1405 = vunpack.c.l.b16 %v1199
      %v1406 = vunpack.c.l.b16 %v1200
      %v1407 = vunpack.c.h.b16 %v1200
      %v1408 = vunpack.c.l.b16 %v1201
      %v1409 = vunpack.c.l.b16 %v1202
      %v1410 = vunpack.c.h.b16 %v1202
      %v1411 = vunpack.c.l.b16 %v1203
      %v1412 = vpack.c.b16 %v1319, %v1316
      %v1413 = vpack.c.b16 %v1320, %v1317
      %v1414 = vpack.c.b16 %v1321, %v1318
      %v1415 = vpack.c.b16 %v1325, %v1322
      %v1416 = vpack.c.b16 %v1326, %v1323
      %v1417 = vpack.c.b16 %v1327, %v1324
      %v1418 = vpack.c.b16 %v1331, %v1328
      %v1419 = vpack.c.b16 %v1332, %v1329
      %v1420 = vpack.c.b16 %v1333, %v1330
      %v1421 = vpack.c.b16 %v1337, %v1334
      %v1422 = vpack.c.b16 %v1338, %v1335
      %v1423 = vpack.c.b16 %v1339, %v1336
      %v1424 = vpack.c.b16 %v1343, %v1340
      %v1425 = vpack.c.b16 %v1344, %v1341
      %v1426 = vpack.c.b16 %v1345, %v1342
      %v1427 = vpack.c.b16 %v1349, %v1346
      %v1428 = vpack.c.b16 %v1350, %v1347
      %v1429 = vpack.c.b16 %v1351, %v1348
      %v1430 = vpack.c.b16 %v1355, %v1352
      %v1431 = vpack.c.b16 %v1356, %v1353
      %v1432 = vpack.c.b16 %v1357, %v1354
      %v1433 = vpack.c.b16 %v1361, %v1358
      %v1434 = vpack.c.b16 %v1362, %v1359
      %v1435 = vpack.c.b16 %v1363, %v1360
      %v1436 = vpack.c.b16 %v1367, %v1364
      %v1437 = vpack.c.b16 %v1368, %v1365
      %v1438 = vpack.c.b16 %v1369, %v1366
      %v1439 = vpack.c.b16 %v1373, %v1370
      %v1440 = vpack.c.b16 %v1374, %v1371
      %v1441 = vpack.c.b16 %v1375, %v1372
      %v1442 = vpack.c.b16 %v1379, %v1376
      %v1443 = vpack.c.b16 %v1380, %v1377
      %v1444 = vpack.c.b16 %v1381, %v1378
      %v1445 = vpack.c.b16 %v1385, %v1382
      %v1446 = vpack.c.b16 %v1386, %v1383
      %v1447 = vpack.c.b16 %v1387, %v1384
      %v1448 = vpack.c.b16 %v1391, %v1388
      %v1449 = vpack.c.b16 %v1392, %v1389
      %v1450 = vpack.c.b16 %v1393, %v1390
      %v1451 = vpack.c.b16 %v1397, %v1394
      %v1452 = vpack.c.b16 %v1398, %v1395
      %v1453 = vpack.c.b16 %v1399, %v1396
      %v1454 = vpack.c.b16 %v1403, %v1400
      %v1455 = vpack.c.b16 %v1404, %v1401
      %v1456 = vpack.c.b16 %v1405, %v1402
      %v1457 = vpack.c.b16 %v1409, %v1406
      %v1458 = vpack.c.b16 %v1410, %v1407
      %v1459 = vpack.c.b16 %v1411, %v1408
      %v1556 = vunpack.c.l.b16 %v1204
      %v1557 = vunpack.c.l.b16 %v1205
      %v1558 = vunpack.c.l.b16 %v1206
      %v1559 = vunpack.c.l.b16 %v1207
      %v1560 = vunpack.c.l.b16 %v1208
      %v1561 = vunpack.c.l.b16 %v1209
      %v1562 = vunpack.c.l.b16 %v1210
      %v1563 = vunpack.c.l.b16 %v1211
      %v1564 = vunpack.c.l.b16 %v1212
      %v1565 = vunpack.c.l.b16 %v1213
      %v1566 = vunpack.c.l.b16 %v1214
      %v1567 = vunpack.c.l.b16 %v1215
      %v1568 = vunpack.c.l.b16 %v1216
      %v1569 = vunpack.c.l.b16 %v1217
      %v1570 = vunpack.c.l.b16 %v1218
      %v1571 = vunpack.c.l.b16 %v1219
      %v1572 = vunpack.c.l.b16 %v1220
      %v1573 = vunpack.c.l.b16 %v1221
      %v1574 = vunpack.c.l.b16 %v1222
      %v1575 = vunpack.c.l.b16 %v1223
      %v1576 = vunpack.c.l.b16 %v1224
      %v1577 = vunpack.c.l.b16 %v1225
      %v1578 = vunpack.c.l.b16 %v1226
      %v1579 = vunpack.c.l.b16 %v1227
      %v1580 = vunpack.c.l.b16 %v1228
      %v1581 = vunpack.c.l.b16 %v1229
      %v1582 = vunpack.c.l.b16 %v1230
      %v1583 = vunpack.c.l.b16 %v1231
      %v1584 = vunpack.c.l.b16 %v1232
      %v1585 = vunpack.c.l.b16 %v1233
      %v1586 = vunpack.c.l.b16 %v1234
      %v1587 = vunpack.c.l.b16 %v1235
      %v1588 = vunpack.c.l.b16 %v1236
      %v1589 = vunpack.c.l.b16 %v1237
      %v1590 = vunpack.c.l.b16 %v1238
      %v1591 = vunpack.c.l.b16 %v1239
      %v1592 = vunpack.c.l.b16 %v1240
      %v1593 = vunpack.c.l.b16 %v1241
      %v1594 = vunpack.c.l.b16 %v1242
      %v1595 = vunpack.c.l.b16 %v1243
      %v1596 = vunpack.c.l.b16 %v1244
      %v1597 = vunpack.c.l.b16 %v1245
      %v1598 = vunpack.c.l.b16 %v1246
      %v1599 = vunpack.c.l.b16 %v1247
      %v1600 = vunpack.c.l.b16 %v1248
      %v1601 = vunpack.c.l.b16 %v1249
      %v1602 = vunpack.c.l.b16 %v1250
      %v1603 = vunpack.c.l.b16 %v1251
      %v1604 = vpack.c.b16 %v1557, %v1556
      %v1605 = vpack.c.b16 %v1559, %v1558
      %v1606 = vpack.c.b16 %v1561, %v1560
      %v1607 = vpack.c.b16 %v1563, %v1562
      %v1608 = vpack.c.b16 %v1565, %v1564
      %v1609 = vpack.c.b16 %v1567, %v1566
      %v1610 = vpack.c.b16 %v1569, %v1568
      %v1611 = vpack.c.b16 %v1571, %v1570
      %v1612 = vpack.c.b16 %v1573, %v1572
      %v1613 = vpack.c.b16 %v1575, %v1574
      %v1614 = vpack.c.b16 %v1577, %v1576
      %v1615 = vpack.c.b16 %v1579, %v1578
      %v1616 = vpack.c.b16 %v1581, %v1580
      %v1617 = vpack.c.b16 %v1583, %v1582
      %v1618 = vpack.c.b16 %v1585, %v1584
      %v1619 = vpack.c.b16 %v1587, %v1586
      %v1620 = vpack.c.b16 %v1589, %v1588
      %v1621 = vpack.c.b16 %v1591, %v1590
      %v1622 = vpack.c.b16 %v1593, %v1592
      %v1623 = vpack.c.b16 %v1595, %v1594
      %v1624 = vpack.c.b16 %v1597, %v1596
      %v1625 = vpack.c.b16 %v1599, %v1598
      %v1626 = vpack.c.b16 %v1601, %v1600
      %v1627 = vpack.c.b16 %v1603, %v1602
      %1652 = vmatprep.subr.bf16.mxu0 0
      %1653 = vmatpush1.bf16.msra.mxu0 %v1611
      %1654 = vmatprep.subr.bf16.mxu0 0
      %1655 = vmatpush1.bf16.msra.mxu0 %v1610
      %1656 = vmatprep.subr.bf16.mxu0 0
      %1657 = vmatpush1.bf16.msra.mxu0 %v1609
      %1658 = vmatprep.subr.bf16.mxu0 0
      %1659 = vmatpush1.bf16.msra.mxu0 %v1608
      %1660 = vmatprep.subr.bf16.mxu0 0
      %1661 = vmatpush1.bf16.msra.mxu0 %v1607
      %1662 = vmatprep.subr.bf16.mxu0 0
      %1663 = vmatpush1.bf16.msra.mxu0 %v1606
      %1664 = vmatprep.subr.bf16.mxu0 0
      %1665 = vmatpush1.bf16.msra.mxu0 %v1605
      %1666 = vmatprep.subr.bf16.mxu0 0
      %1667 = vmatpush1.bf16.msra.mxu0 %v1604
      %1668 = vmatprep.subr.bf16.mxu0 0
      %1669 = vmatpush2.bf16.msra.mxu0 %v1619
      %1670 = vmatprep.subr.bf16.mxu0 0
      %1671 = vmatpush2.bf16.msra.mxu0 %v1618
      %1672 = vmatprep.subr.bf16.mxu0 0
      %1673 = vmatpush2.bf16.msra.mxu0 %v1617
      %1674 = vmatprep.subr.bf16.mxu0 0
      %1675 = vmatpush2.bf16.msra.mxu0 %v1616
      %1676 = vmatprep.subr.bf16.mxu0 0
      %1677 = vmatpush2.bf16.msra.mxu0 %v1615
      %1678 = vmatprep.subr.bf16.mxu0 0
      %1679 = vmatpush2.bf16.msra.mxu0 %v1614
      %1680 = vmatprep.subr.bf16.mxu0 0
      %1681 = vmatpush2.bf16.msra.mxu0 %v1613
      %1682 = vmatprep.subr.bf16.mxu0 0
      %1683 = vmatpush2.bf16.msra.mxu0 %v1612
      %1684 = vmatprep.mubr.bf16.mxu0 %v1413
      %1685 = vmatmul.mubr.bf16.gmra.mxu0 %v1412
      %v1686 = vpop.f32.mrf.mxu0
      %v1687 = vadd.f32 0.0, %v1686
      %v1688 = vpop.f32.mrf.mxu0
      %v1689 = vpop.f32.mrf.mxu0
      %v1690 = vadd.f32 0.0, %v1689
      %v1691 = vpop.f32.mrf.mxu0
      %1692 = vmatprep.mubr.bf16.mxu0 %v1416
      %1693 = vmatmul.mubr.bf16.gmra.mxu0 %v1415
      %v1694 = vpop.f32.mrf.mxu0
      %v1695 = vadd.f32 0.0, %v1694
      %v1696 = vpop.f32.mrf.mxu0
      %v1697 = vpop.f32.mrf.mxu0
      %v1698 = vadd.f32 0.0, %v1697
      %v1699 = vpop.f32.mrf.mxu0
      %1700 = vmatprep.mubr.bf16.mxu0 %v1419
      %1701 = vmatmul.mubr.bf16.gmra.mxu0 %v1418
      %v1702 = vpop.f32.mrf.mxu0
      %v1703 = vadd.f32 0.0, %v1702
      %v1704 = vpop.f32.mrf.mxu0
      %v1705 = vpop.f32.mrf.mxu0
      %v1706 = vadd.f32 0.0, %v1705
      %v1707 = vpop.f32.mrf.mxu0
      %1708 = vmatprep.mubr.bf16.mxu0 %v1422
      %1709 = vmatmul.mubr.bf16.gmra.mxu0 %v1421
      %v1710 = vpop.f32.mrf.mxu0
      %v1711 = vadd.f32 0.0, %v1710
      %v1712 = vpop.f32.mrf.mxu0
      %v1713 = vpop.f32.mrf.mxu0
      %v1714 = vadd.f32 0.0, %v1713
      %v1715 = vpop.f32.mrf.mxu0
      %1716 = vmatprep.mubr.bf16.mxu0 %v1425
      %1717 = vmatmul.mubr.bf16.gmra.mxu0 %v1424
      %v1718 = vpop.f32.mrf.mxu0
      %v1719 = vadd.f32 0.0, %v1718
      %v1720 = vpop.f32.mrf.mxu0
      %v1721 = vpop.f32.mrf.mxu0
      %v1722 = vadd.f32 0.0, %v1721
      %v1723 = vpop.f32.mrf.mxu0
      %1724 = vmatprep.mubr.bf16.mxu0 %v1428
      %1725 = vmatmul.mubr.bf16.gmra.mxu0 %v1427
      %v1726 = vpop.f32.mrf.mxu0
      %v1727 = vadd.f32 0.0, %v1726
      %v1728 = vpop.f32.mrf.mxu0
      %v1729 = vpop.f32.mrf.mxu0
      %v1730 = vadd.f32 0.0, %v1729
      %v1731 = vpop.f32.mrf.mxu0
      %1732 = vmatprep.mubr.bf16.mxu0 %v1431
      %1733 = vmatmul.mubr.bf16.gmra.mxu0 %v1430
      %v1734 = vpop.f32.mrf.mxu0
      %v1735 = vadd.f32 0.0, %v1734
      %v1736 = vpop.f32.mrf.mxu0
      %v1737 = vpop.f32.mrf.mxu0
      %v1738 = vadd.f32 0.0, %v1737
      %v1739 = vpop.f32.mrf.mxu0
      %1740 = vmatprep.mubr.bf16.mxu0 %v1434
      %1741 = vmatmul.mubr.bf16.gmra.mxu0 %v1433
      %v1742 = vpop.f32.mrf.mxu0
      %v1743 = vadd.f32 0.0, %v1742
      %v1744 = vpop.f32.mrf.mxu0
      %v1745 = vpop.f32.mrf.mxu0
      %v1746 = vadd.f32 0.0, %v1745
      %v1747 = vpop.f32.mrf.mxu0
      %1748 = vmatprep.mubr.bf16.mxu0 %v1437
      %1749 = vmatmul.mubr.bf16.gmra.mxu0 %v1436
      %v1750 = vpop.f32.mrf.mxu0
      %v1751 = vadd.f32 0.0, %v1750
      %v1752 = vpop.f32.mrf.mxu0
      %v1753 = vpop.f32.mrf.mxu0
      %v1754 = vadd.f32 0.0, %v1753
      %v1755 = vpop.f32.mrf.mxu0
      %1756 = vmatprep.mubr.bf16.mxu0 %v1440
      %1757 = vmatmul.mubr.bf16.gmra.mxu0 %v1439
      %v1758 = vpop.f32.mrf.mxu0
      %v1759 = vadd.f32 0.0, %v1758
      %v1760 = vpop.f32.mrf.mxu0
      %v1761 = vpop.f32.mrf.mxu0
      %v1762 = vadd.f32 0.0, %v1761
      %v1763 = vpop.f32.mrf.mxu0
      %1764 = vmatprep.mubr.bf16.mxu0 %v1443
      %1765 = vmatmul.mubr.bf16.gmra.mxu0 %v1442
      %v1766 = vpop.f32.mrf.mxu0
      %v1767 = vadd.f32 0.0, %v1766
      %v1768 = vpop.f32.mrf.mxu0
      %v1769 = vpop.f32.mrf.mxu0
      %v1770 = vadd.f32 0.0, %v1769
      %v1771 = vpop.f32.mrf.mxu0
      %1772 = vmatprep.mubr.bf16.mxu0 %v1446
      %1773 = vmatmul.mubr.bf16.gmra.mxu0 %v1445
      %v1774 = vpop.f32.mrf.mxu0
      %v1775 = vadd.f32 0.0, %v1774
      %v1776 = vpop.f32.mrf.mxu0
      %v1777 = vpop.f32.mrf.mxu0
      %v1778 = vadd.f32 0.0, %v1777
      %v1779 = vpop.f32.mrf.mxu0
      %1780 = vmatprep.mubr.bf16.mxu0 %v1449
      %1781 = vmatmul.mubr.bf16.gmra.mxu0 %v1448
      %v1782 = vpop.f32.mrf.mxu0
      %v1783 = vadd.f32 0.0, %v1782
      %v1784 = vpop.f32.mrf.mxu0
      %v1785 = vpop.f32.mrf.mxu0
      %v1786 = vadd.f32 0.0, %v1785
      %v1787 = vpop.f32.mrf.mxu0
      %1788 = vmatprep.mubr.bf16.mxu0 %v1452
      %1789 = vmatmul.mubr.bf16.gmra.mxu0 %v1451
      %v1790 = vpop.f32.mrf.mxu0
      %v1791 = vadd.f32 0.0, %v1790
      %v1792 = vpop.f32.mrf.mxu0
      %v1793 = vpop.f32.mrf.mxu0
      %v1794 = vadd.f32 0.0, %v1793
      %v1795 = vpop.f32.mrf.mxu0
      %1796 = vmatprep.mubr.bf16.mxu0 %v1455
      %1797 = vmatmul.mubr.bf16.gmra.mxu0 %v1454
      %v1798 = vpop.f32.mrf.mxu0
      %v1799 = vadd.f32 0.0, %v1798
      %v1800 = vpop.f32.mrf.mxu0
      %v1801 = vpop.f32.mrf.mxu0
      %v1802 = vadd.f32 0.0, %v1801
      %v1803 = vpop.f32.mrf.mxu0
      %1804 = vmatprep.mubr.bf16.mxu0 %v1458
      %1805 = vmatmul.mubr.bf16.gmra.mxu0 %v1457
      %v1806 = vpop.f32.mrf.mxu0
      %v1807 = vadd.f32 0.0, %v1806
      %v1808 = vpop.f32.mrf.mxu0
      %v1809 = vpop.f32.mrf.mxu0
      %v1810 = vadd.f32 0.0, %v1809
      %v1811 = vpop.f32.mrf.mxu0
      %1812 = vdwg.mxu0
      %1813 = vmatprep.subr.bf16.mxu0 0
      %1814 = vmatpush1.bf16.msra.mxu0 %v1627
      %1815 = vmatprep.subr.bf16.mxu0 0
      %1816 = vmatpush1.bf16.msra.mxu0 %v1626
      %1817 = vmatprep.subr.bf16.mxu0 0
      %1818 = vmatpush1.bf16.msra.mxu0 %v1625
      %1819 = vmatprep.subr.bf16.mxu0 0
      %1820 = vmatpush1.bf16.msra.mxu0 %v1624
      %1821 = vmatprep.subr.bf16.mxu0 0
      %1822 = vmatpush1.bf16.msra.mxu0 %v1623
      %1823 = vmatprep.subr.bf16.mxu0 0
      %1824 = vmatpush1.bf16.msra.mxu0 %v1622
      %1825 = vmatprep.subr.bf16.mxu0 0
      %1826 = vmatpush1.bf16.msra.mxu0 %v1621
      %1827 = vmatprep.subr.bf16.mxu0 0
      %1828 = vmatpush1.bf16.msra.mxu0 %v1620
      %1829 = vmatprep.subr.bf16.mxu0 0
      %1830 = vmatpush2.bf16.msra.mxu0 0
      %1831 = vmatprep.subr.bf16.mxu0 0
      %1832 = vmatpush2.bf16.msra.mxu0 0
      %1833 = vmatprep.subr.bf16.mxu0 0
      %1834 = vmatpush2.bf16.msra.mxu0 0
      %1835 = vmatprep.subr.bf16.mxu0 0
      %1836 = vmatpush2.bf16.msra.mxu0 0
      %1837 = vmatprep.subr.bf16.mxu0 0
      %1838 = vmatpush2.bf16.msra.mxu0 0
      %1839 = vmatprep.subr.bf16.mxu0 0
      %1840 = vmatpush2.bf16.msra.mxu0 0
      %1841 = vmatprep.subr.bf16.mxu0 0
      %1842 = vmatpush2.bf16.msra.mxu0 0
      %1843 = vmatprep.subr.bf16.mxu0 0
      %1844 = vmatpush2.bf16.msra.mxu0 0
      %1845 = vmatprep.mubr.bf16.mxu0 0
      %1846 = vmatmul.mubr.bf16.gmra.mxu0 %v1414
      %v1847 = vpop.f32.mrf.mxu0
      %v1848 = vadd.f32 %v1687, %v1847
      %v1849 = vpop.f32.mrf.mxu0
      %v1850 = vpop.f32.mrf.mxu0
      %v1851 = vadd.f32 %v1690, %v1850
      %v1852 = vpop.f32.mrf.mxu0
      %1853 = vmatprep.mubr.bf16.mxu0 0
      %1854 = vmatmul.mubr.bf16.gmra.mxu0 %v1417
      %v1855 = vpop.f32.mrf.mxu0
      %v1856 = vadd.f32 %v1695, %v1855
      %v1857 = vpop.f32.mrf.mxu0
      %v1858 = vpop.f32.mrf.mxu0
      %v1859 = vadd.f32 %v1698, %v1858
      %v1860 = vpop.f32.mrf.mxu0
      %1861 = vmatprep.mubr.bf16.mxu0 0
      %1862 = vmatmul.mubr.bf16.gmra.mxu0 %v1420
      %v1863 = vpop.f32.mrf.mxu0
      %v1864 = vadd.f32 %v1703, %v1863
      %v1865 = vpop.f32.mrf.mxu0
      %v1866 = vpop.f32.mrf.mxu0
      %v1867 = vadd.f32 %v1706, %v1866
      %v1868 = vpop.f32.mrf.mxu0
      %1869 = vmatprep.mubr.bf16.mxu0 0
      %1870 = vmatmul.mubr.bf16.gmra.mxu0 %v1423
      %v1871 = vpop.f32.mrf.mxu0
      %v1872 = vadd.f32 %v1711, %v1871
      %v1873 = vpop.f32.mrf.mxu0
      %v1874 = vpop.f32.mrf.mxu0
      %v1875 = vadd.f32 %v1714, %v1874
      %v1876 = vpop.f32.mrf.mxu0
      %1877 = vmatprep.mubr.bf16.mxu0 0
      %1878 = vmatmul.mubr.bf16.gmra.mxu0 %v1426
      %v1879 = vpop.f32.mrf.mxu0
      %v1880 = vadd.f32 %v1719, %v1879
      %v1881 = vpop.f32.mrf.mxu0
      %v1882 = vpop.f32.mrf.mxu0
      %v1883 = vadd.f32 %v1722, %v1882
      %v1884 = vpop.f32.mrf.mxu0
      %1885 = vmatprep.mubr.bf16.mxu0 0
      %1886 = vmatmul.mubr.bf16.gmra.mxu0 %v1429
      %v1887 = vpop.f32.mrf.mxu0
      %v1888 = vadd.f32 %v1727, %v1887
      %v1889 = vpop.f32.mrf.mxu0
      %v1890 = vpop.f32.mrf.mxu0
      %v1891 = vadd.f32 %v1730, %v1890
      %v1892 = vpop.f32.mrf.mxu0
      %1893 = vmatprep.mubr.bf16.mxu0 0
      %1894 = vmatmul.mubr.bf16.gmra.mxu0 %v1432
      %v1895 = vpop.f32.mrf.mxu0
      %v1896 = vadd.f32 %v1735, %v1895
      %v1897 = vpop.f32.mrf.mxu0
      %v1898 = vpop.f32.mrf.mxu0
      %v1899 = vadd.f32 %v1738, %v1898
      %v1900 = vpop.f32.mrf.mxu0
      %1901 = vmatprep.mubr.bf16.mxu0 0
      %1902 = vmatmul.mubr.bf16.gmra.mxu0 %v1435
      %v1903 = vpop.f32.mrf.mxu0
      %v1904 = vadd.f32 %v1743, %v1903
      %v1905 = vpop.f32.mrf.mxu0
      %v1906 = vpop.f32.mrf.mxu0
      %v1907 = vadd.f32 %v1746, %v1906
      %v1908 = vpop.f32.mrf.mxu0
      %1909 = vmatprep.mubr.bf16.mxu0 0
      %1910 = vmatmul.mubr.bf16.gmra.mxu0 %v1438
      %v1911 = vpop.f32.mrf.mxu0
      %v1912 = vadd.f32 %v1751, %v1911
      %v1913 = vpop.f32.mrf.mxu0
      %v1914 = vpop.f32.mrf.mxu0
      %v1915 = vadd.f32 %v1754, %v1914
      %v1916 = vpop.f32.mrf.mxu0
      %1917 = vmatprep.mubr.bf16.mxu0 0
      %1918 = vmatmul.mubr.bf16.gmra.mxu0 %v1441
      %v1919 = vpop.f32.mrf.mxu0
      %v1920 = vadd.f32 %v1759, %v1919
      %v1921 = vpop.f32.mrf.mxu0
      %v1922 = vpop.f32.mrf.mxu0
      %v1923 = vadd.f32 %v1762, %v1922
      %v1924 = vpop.f32.mrf.mxu0
      %1925 = vmatprep.mubr.bf16.mxu0 0
      %1926 = vmatmul.mubr.bf16.gmra.mxu0 %v1444
      %v1927 = vpop.f32.mrf.mxu0
      %v1928 = vadd.f32 %v1767, %v1927
      %v1929 = vpop.f32.mrf.mxu0
      %v1930 = vpop.f32.mrf.mxu0
      %v1931 = vadd.f32 %v1770, %v1930
      %v1932 = vpop.f32.mrf.mxu0
      %1933 = vmatprep.mubr.bf16.mxu0 0
      %1934 = vmatmul.mubr.bf16.gmra.mxu0 %v1447
      %v1935 = vpop.f32.mrf.mxu0
      %v1936 = vadd.f32 %v1775, %v1935
      %v1937 = vpop.f32.mrf.mxu0
      %v1938 = vpop.f32.mrf.mxu0
      %v1939 = vadd.f32 %v1778, %v1938
      %v1940 = vpop.f32.mrf.mxu0
      %1941 = vmatprep.mubr.bf16.mxu0 0
      %1942 = vmatmul.mubr.bf16.gmra.mxu0 %v1450
      %v1943 = vpop.f32.mrf.mxu0
      %v1944 = vadd.f32 %v1783, %v1943
      %v1945 = vpop.f32.mrf.mxu0
      %v1946 = vpop.f32.mrf.mxu0
      %v1947 = vadd.f32 %v1786, %v1946
      %v1948 = vpop.f32.mrf.mxu0
      %1949 = vmatprep.mubr.bf16.mxu0 0
      %1950 = vmatmul.mubr.bf16.gmra.mxu0 %v1453
      %v1951 = vpop.f32.mrf.mxu0
      %v1952 = vadd.f32 %v1791, %v1951
      %v1953 = vpop.f32.mrf.mxu0
      %v1954 = vpop.f32.mrf.mxu0
      %v1955 = vadd.f32 %v1794, %v1954
      %v1956 = vpop.f32.mrf.mxu0
      %1957 = vmatprep.mubr.bf16.mxu0 0
      %1958 = vmatmul.mubr.bf16.gmra.mxu0 %v1456
      %v1959 = vpop.f32.mrf.mxu0
      %v1960 = vadd.f32 %v1799, %v1959
      %v1961 = vpop.f32.mrf.mxu0
      %v1962 = vpop.f32.mrf.mxu0
      %v1963 = vadd.f32 %v1802, %v1962
      %v1964 = vpop.f32.mrf.mxu0
      %1965 = vmatprep.mubr.bf16.mxu0 0
      %1966 = vmatmul.mubr.bf16.gmra.mxu0 %v1459
      %v1967 = vpop.f32.mrf.mxu0
      %v1968 = vadd.f32 %v1807, %v1967
      %v1969 = vpop.f32.mrf.mxu0
      %v1970 = vpop.f32.mrf.mxu0
      %v1971 = vadd.f32 %v1810, %v1970
      %v1972 = vpop.f32.mrf.mxu0
      %1973 = vdwg.mxu0
      %1974 = vst [vmem:[#allocation4] sm:$0xff] %v1848
      %1975 = vst [vmem:[#allocation4 + $0x8] sm:$0xff] %v1851
      %1976 = vst [vmem:[#allocation4 + $0x10] sm:$0xff] %v1856
      %1977 = vst [vmem:[#allocation4 + $0x18] sm:$0xff] %v1859
      %1978 = vst [vmem:[#allocation4 + $0x20] sm:$0xff] %v1864
      %1979 = vst [vmem:[#allocation4 + $0x28] sm:$0xff] %v1867
      %1980 = vst [vmem:[#allocation4 + $0x30] sm:$0xff] %v1872
      %1981 = vst [vmem:[#allocation4 + $0x38] sm:$0xff] %v1875
      %1982 = vst [vmem:[#allocation4 + $0x40] sm:$0xff] %v1880
      %1983 = vst [vmem:[#allocation4 + $0x48] sm:$0xff] %v1883
      %1984 = vst [vmem:[#allocation4 + $0x50] sm:$0xff] %v1888
      %1985 = vst [vmem:[#allocation4 + $0x58] sm:$0xff] %v1891
      %1986 = vst [vmem:[#allocation4 + $0x60] sm:$0xff] %v1896
      %1987 = vst [vmem:[#allocation4 + $0x68] sm:$0xff] %v1899
      %1988 = vst [vmem:[#allocation4 + $0x70] sm:$0xff] %v1904
      %1989 = vst [vmem:[#allocation4 + $0x78] sm:$0xff] %v1907
      %1990 = vst [vmem:[#allocation4 + $0x80] sm:$0xff] %v1912
      %1991 = vst [vmem:[#allocation4 + $0x88] sm:$0xff] %v1915
      %1992 = vst [vmem:[#allocation4 + $0x90] sm:$0xff] %v1920
      %1993 = vst [vmem:[#allocation4 + $0x98] sm:$0xff] %v1923
      %1994 = vst [vmem:[#allocation4 + $0xa0] sm:$0xff] %v1928
      %1995 = vst [vmem:[#allocation4 + $0xa8] sm:$0xff] %v1931
      %1996 = vst [vmem:[#allocation4 + $0xb0] sm:$0xff] %v1936
      %1997 = vst [vmem:[#allocation4 + $0xb8] sm:$0xff] %v1939
      %1998 = vst [vmem:[#allocation4 + $0xc0] sm:$0xff] %v1944
      %1999 = vst [vmem:[#allocation4 + $0xc8] sm:$0xff] %v1947
      %2000 = vst [vmem:[#allocation4 + $0xd0] sm:$0xff] %v1952
      %2001 = vst [vmem:[#allocation4 + $0xd8] sm:$0xff] %v1955
      %2002 = vst [vmem:[#allocation4 + $0xe0] sm:$0xff] %v1960
      %2003 = vst [vmem:[#allocation4 + $0xe8] sm:$0xff] %v1963
      %2004 = vst [vmem:[#allocation4 + $0xf0] sm:$0xff] %v1968
      %2005 = vst [vmem:[#allocation4 + $0xf8] sm:$0xff] %v1971
      %s2006 = scalar_lea.vmem [#allocation3], 24
      %v2007 = vld [vmem:[%s2006] sm:$0xff]
      %v2008 = vld [vmem:[%s2006 + $0x8] sm:$0xf]
      %v2009 = vld [vmem:[%s2006 + $0xc] sm:$0xff]
      %v2010 = vld [vmem:[%s2006 + $0x14] sm:$0xf]
      %v2011 = vld [vmem:[%s2006 + $0x18] sm:$0xff]
      %v2012 = vld [vmem:[%s2006 + $0x20] sm:$0xf]
      %v2013 = vld [vmem:[%s2006 + $0x24] sm:$0xff]
      %v2014 = vld [vmem:[%s2006 + $0x2c] sm:$0xf]
      %v2015 = vld [vmem:[%s2006 + $0x30] sm:$0xff]
      %v2016 = vld [vmem:[%s2006 + $0x38] sm:$0xf]
      %v2017 = vld [vmem:[%s2006 + $0x3c] sm:$0xff]
      %v2018 = vld [vmem:[%s2006 + $0x44] sm:$0xf]
      %v2019 = vld [vmem:[%s2006 + $0x48] sm:$0xff]
      %v2020 = vld [vmem:[%s2006 + $0x50] sm:$0xf]
      %v2021 = vld [vmem:[%s2006 + $0x54] sm:$0xff]
      %v2022 = vld [vmem:[%s2006 + $0x5c] sm:$0xf]
      %v2023 = vld [vmem:[%s2006 + $0x60] sm:$0xff]
      %v2024 = vld [vmem:[%s2006 + $0x68] sm:$0xf]
      %v2025 = vld [vmem:[%s2006 + $0x6c] sm:$0xff]
      %v2026 = vld [vmem:[%s2006 + $0x74] sm:$0xf]
      %v2027 = vld [vmem:[%s2006 + $0x78] sm:$0xff]
      %v2028 = vld [vmem:[%s2006 + $0x80] sm:$0xf]
      %v2029 = vld [vmem:[%s2006 + $0x84] sm:$0xff]
      %v2030 = vld [vmem:[%s2006 + $0x8c] sm:$0xf]
      %v2031 = vld [vmem:[%s2006 + $0x90] sm:$0xff]
      %v2032 = vld [vmem:[%s2006 + $0x98] sm:$0xf]
      %v2033 = vld [vmem:[%s2006 + $0x9c] sm:$0xff]
      %v2034 = vld [vmem:[%s2006 + $0xa4] sm:$0xf]
      %v2035 = vld [vmem:[%s2006 + $0xa8] sm:$0xff]
      %v2036 = vld [vmem:[%s2006 + $0xb0] sm:$0xf]
      %v2037 = vld [vmem:[%s2006 + $0xb4] sm:$0xff]
      %v2038 = vld [vmem:[%s2006 + $0xbc] sm:$0xf]
      %v2039 = vld [vmem:[%s2006 + $0xc0] sm:$0xff]
      %v2040 = vld [vmem:[%s2006 + $0xc8] sm:$0xf]
      %v2041 = vld [vmem:[%s2006 + $0xcc] sm:$0xff]
      %v2042 = vld [vmem:[%s2006 + $0xd4] sm:$0xf]
      %v2043 = vld [vmem:[%s2006 + $0xd8] sm:$0xff]
      %v2044 = vld [vmem:[%s2006 + $0xe0] sm:$0xf]
      %v2045 = vld [vmem:[%s2006 + $0xe4] sm:$0xff]
      %v2046 = vld [vmem:[%s2006 + $0xec] sm:$0xf]
      %v2047 = vld [vmem:[%s2006 + $0xf0] sm:$0xff]
      %v2048 = vld [vmem:[%s2006 + $0xf8] sm:$0xf]
      %v2049 = vld [vmem:[%s2006 + $0xfc] sm:$0xff]
      %v2050 = vld [vmem:[%s2006 + $0x104] sm:$0xf]
      %v2051 = vld [vmem:[%s2006 + $0x108] sm:$0xff]
      %v2052 = vld [vmem:[%s2006 + $0x110] sm:$0xf]
      %v2053 = vld [vmem:[%s2006 + $0x114] sm:$0xff]
      %v2054 = vld [vmem:[%s2006 + $0x11c] sm:$0xf]
      %v2055 = vld [vmem:[%s2006 + $0x120] sm:$0xff]
      %v2056 = vld [vmem:[%s2006 + $0x128] sm:$0xf]
      %v2057 = vld [vmem:[%s2006 + $0x12c] sm:$0xff]
      %v2058 = vld [vmem:[%s2006 + $0x134] sm:$0xf]
      %v2059 = vld [vmem:[%s2006 + $0x138] sm:$0xff]
      %v2060 = vld [vmem:[%s2006 + $0x140] sm:$0xf]
      %v2061 = vld [vmem:[%s2006 + $0x144] sm:$0xff]
      %v2062 = vld [vmem:[%s2006 + $0x14c] sm:$0xf]
      %v2063 = vld [vmem:[%s2006 + $0x150] sm:$0xff]
      %v2064 = vld [vmem:[%s2006 + $0x158] sm:$0xf]
      %v2065 = vld [vmem:[%s2006 + $0x15c] sm:$0xff]
      %v2066 = vld [vmem:[%s2006 + $0x164] sm:$0xf]
      %v2067 = vld [vmem:[%s2006 + $0x168] sm:$0xff]
      %v2068 = vld [vmem:[%s2006 + $0x170] sm:$0xf]
      %v2069 = vld [vmem:[%s2006 + $0x174] sm:$0xff]
      %v2070 = vld [vmem:[%s2006 + $0x17c] sm:$0xf]
      %s2071 = scalar_lea.vmem %s1, 192
      %v2072 = vld [vmem:[%s2071] sm:$0xf]
      %v2073 = vld [vmem:[%s2071 + $0x4] sm:$0xf]
      %v2074 = vld [vmem:[%s2071 + $0x8] sm:$0xf]
      %v2075 = vld [vmem:[%s2071 + $0xc] sm:$0xf]
      %v2076 = vld [vmem:[%s2071 + $0x10] sm:$0xf]
      %v2077 = vld [vmem:[%s2071 + $0x14] sm:$0xf]
      %v2078 = vld [vmem:[%s2071 + $0x18] sm:$0xf]
      %v2079 = vld [vmem:[%s2071 + $0x1c] sm:$0xf]
      %v2080 = vld [vmem:[%s2071 + $0x20] sm:$0xf]
      %v2081 = vld [vmem:[%s2071 + $0x24] sm:$0xf]
      %v2082 = vld [vmem:[%s2071 + $0x28] sm:$0xf]
      %v2083 = vld [vmem:[%s2071 + $0x2c] sm:$0xf]
      %v2084 = vld [vmem:[%s2071 + $0x30] sm:$0xf]
      %v2085 = vld [vmem:[%s2071 + $0x34] sm:$0xf]
      %v2086 = vld [vmem:[%s2071 + $0x38] sm:$0xf]
      %v2087 = vld [vmem:[%s2071 + $0x3c] sm:$0xf]
      %v2088 = vld [vmem:[%s2071 + $0x40] sm:$0xf]
      %v2089 = vld [vmem:[%s2071 + $0x44] sm:$0xf]
      %v2090 = vld [vmem:[%s2071 + $0x48] sm:$0xf]
      %v2091 = vld [vmem:[%s2071 + $0x4c] sm:$0xf]
      %v2092 = vld [vmem:[%s2071 + $0x50] sm:$0xf]
      %v2093 = vld [vmem:[%s2071 + $0x54] sm:$0xf]
      %v2094 = vld [vmem:[%s2071 + $0x58] sm:$0xf]
      %v2095 = vld [vmem:[%s2071 + $0x5c] sm:$0xf]
      %v2096 = vld [vmem:[%s2071 + $0x60] sm:$0xf]
      %v2097 = vld [vmem:[%s2071 + $0x64] sm:$0xf]
      %v2098 = vld [vmem:[%s2071 + $0x68] sm:$0xf]
      %v2099 = vld [vmem:[%s2071 + $0x6c] sm:$0xf]
      %v2100 = vld [vmem:[%s2071 + $0x70] sm:$0xf]
      %v2101 = vld [vmem:[%s2071 + $0x74] sm:$0xf]
      %v2102 = vld [vmem:[%s2071 + $0x78] sm:$0xf]
      %v2103 = vld [vmem:[%s2071 + $0x7c] sm:$0xf]
      %v2104 = vld [vmem:[%s2071 + $0x80] sm:$0xf]
      %v2105 = vld [vmem:[%s2071 + $0x84] sm:$0xf]
      %v2106 = vld [vmem:[%s2071 + $0x88] sm:$0xf]
      %v2107 = vld [vmem:[%s2071 + $0x8c] sm:$0xf]
      %v2108 = vld [vmem:[%s2071 + $0x90] sm:$0xf]
      %v2109 = vld [vmem:[%s2071 + $0x94] sm:$0xf]
      %v2110 = vld [vmem:[%s2071 + $0x98] sm:$0xf]
      %v2111 = vld [vmem:[%s2071 + $0x9c] sm:$0xf]
      %v2112 = vld [vmem:[%s2071 + $0xa0] sm:$0xf]
      %v2113 = vld [vmem:[%s2071 + $0xa4] sm:$0xf]
      %v2114 = vld [vmem:[%s2071 + $0xa8] sm:$0xf]
      %v2115 = vld [vmem:[%s2071 + $0xac] sm:$0xf]
      %v2116 = vld [vmem:[%s2071 + $0xb0] sm:$0xf]
      %v2117 = vld [vmem:[%s2071 + $0xb4] sm:$0xf]
      %v2118 = vld [vmem:[%s2071 + $0xb8] sm:$0xf]
      %v2119 = vld [vmem:[%s2071 + $0xbc] sm:$0xf]
      %v2184 = vunpack.c.l.b16 %v2007
      %v2185 = vunpack.c.h.b16 %v2007
      %v2186 = vunpack.c.l.b16 %v2008
      %v2187 = vunpack.c.l.b16 %v2009
      %v2188 = vunpack.c.h.b16 %v2009
      %v2189 = vunpack.c.l.b16 %v2010
      %v2190 = vunpack.c.l.b16 %v2011
      %v2191 = vunpack.c.h.b16 %v2011
      %v2192 = vunpack.c.l.b16 %v2012
      %v2193 = vunpack.c.l.b16 %v2013
      %v2194 = vunpack.c.h.b16 %v2013
      %v2195 = vunpack.c.l.b16 %v2014
      %v2196 = vunpack.c.l.b16 %v2015
      %v2197 = vunpack.c.h.b16 %v2015
      %v2198 = vunpack.c.l.b16 %v2016
      %v2199 = vunpack.c.l.b16 %v2017
      %v2200 = vunpack.c.h.b16 %v2017
      %v2201 = vunpack.c.l.b16 %v2018
      %v2202 = vunpack.c.l.b16 %v2019
      %v2203 = vunpack.c.h.b16 %v2019
      %v2204 = vunpack.c.l.b16 %v2020
      %v2205 = vunpack.c.l.b16 %v2021
      %v2206 = vunpack.c.h.b16 %v2021
      %v2207 = vunpack.c.l.b16 %v2022
      %v2208 = vunpack.c.l.b16 %v2023
      %v2209 = vunpack.c.h.b16 %v2023
      %v2210 = vunpack.c.l.b16 %v2024
      %v2211 = vunpack.c.l.b16 %v2025
      %v2212 = vunpack.c.h.b16 %v2025
      %v2213 = vunpack.c.l.b16 %v2026
      %v2214 = vunpack.c.l.b16 %v2027
      %v2215 = vunpack.c.h.b16 %v2027
      %v2216 = vunpack.c.l.b16 %v2028
      %v2217 = vunpack.c.l.b16 %v2029
      %v2218 = vunpack.c.h.b16 %v2029
      %v2219 = vunpack.c.l.b16 %v2030
      %v2220 = vunpack.c.l.b16 %v2031
      %v2221 = vunpack.c.h.b16 %v2031
      %v2222 = vunpack.c.l.b16 %v2032
      %v2223 = vunpack.c.l.b16 %v2033
      %v2224 = vunpack.c.h.b16 %v2033
      %v2225 = vunpack.c.l.b16 %v2034
      %v2226 = vunpack.c.l.b16 %v2035
      %v2227 = vunpack.c.h.b16 %v2035
      %v2228 = vunpack.c.l.b16 %v2036
      %v2229 = vunpack.c.l.b16 %v2037
      %v2230 = vunpack.c.h.b16 %v2037
      %v2231 = vunpack.c.l.b16 %v2038
      %v2232 = vunpack.c.l.b16 %v2039
      %v2233 = vunpack.c.h.b16 %v2039
      %v2234 = vunpack.c.l.b16 %v2040
      %v2235 = vunpack.c.l.b16 %v2041
      %v2236 = vunpack.c.h.b16 %v2041
      %v2237 = vunpack.c.l.b16 %v2042
      %v2238 = vunpack.c.l.b16 %v2043
      %v2239 = vunpack.c.h.b16 %v2043
      %v2240 = vunpack.c.l.b16 %v2044
      %v2241 = vunpack.c.l.b16 %v2045
      %v2242 = vunpack.c.h.b16 %v2045
      %v2243 = vunpack.c.l.b16 %v2046
      %v2244 = vunpack.c.l.b16 %v2047
      %v2245 = vunpack.c.h.b16 %v2047
      %v2246 = vunpack.c.l.b16 %v2048
      %v2247 = vunpack.c.l.b16 %v2049
      %v2248 = vunpack.c.h.b16 %v2049
      %v2249 = vunpack.c.l.b16 %v2050
      %v2250 = vunpack.c.l.b16 %v2051
      %v2251 = vunpack.c.h.b16 %v2051
      %v2252 = vunpack.c.l.b16 %v2052
      %v2253 = vunpack.c.l.b16 %v2053
      %v2254 = vunpack.c.h.b16 %v2053
      %v2255 = vunpack.c.l.b16 %v2054
      %v2256 = vunpack.c.l.b16 %v2055
      %v2257 = vunpack.c.h.b16 %v2055
      %v2258 = vunpack.c.l.b16 %v2056
      %v2259 = vunpack.c.l.b16 %v2057
      %v2260 = vunpack.c.h.b16 %v2057
      %v2261 = vunpack.c.l.b16 %v2058
      %v2262 = vunpack.c.l.b16 %v2059
      %v2263 = vunpack.c.h.b16 %v2059
      %v2264 = vunpack.c.l.b16 %v2060
      %v2265 = vunpack.c.l.b16 %v2061
      %v2266 = vunpack.c.h.b16 %v2061
      %v2267 = vunpack.c.l.b16 %v2062
      %v2268 = vunpack.c.l.b16 %v2063
      %v2269 = vunpack.c.h.b16 %v2063
      %v2270 = vunpack.c.l.b16 %v2064
      %v2271 = vunpack.c.l.b16 %v2065
      %v2272 = vunpack.c.h.b16 %v2065
      %v2273 = vunpack.c.l.b16 %v2066
      %v2274 = vunpack.c.l.b16 %v2067
      %v2275 = vunpack.c.h.b16 %v2067
      %v2276 = vunpack.c.l.b16 %v2068
      %v2277 = vunpack.c.l.b16 %v2069
      %v2278 = vunpack.c.h.b16 %v2069
      %v2279 = vunpack.c.l.b16 %v2070
      %v2280 = vpack.c.b16 %v2187, %v2184
      %v2281 = vpack.c.b16 %v2188, %v2185
      %v2282 = vpack.c.b16 %v2189, %v2186
      %v2283 = vpack.c.b16 %v2193, %v2190
      %v2284 = vpack.c.b16 %v2194, %v2191
      %v2285 = vpack.c.b16 %v2195, %v2192
      %v2286 = vpack.c.b16 %v2199, %v2196
      %v2287 = vpack.c.b16 %v2200, %v2197
      %v2288 = vpack.c.b16 %v2201, %v2198
      %v2289 = vpack.c.b16 %v2205, %v2202
      %v2290 = vpack.c.b16 %v2206, %v2203
      %v2291 = vpack.c.b16 %v2207, %v2204
      %v2292 = vpack.c.b16 %v2211, %v2208
      %v2293 = vpack.c.b16 %v2212, %v2209
      %v2294 = vpack.c.b16 %v2213, %v2210
      %v2295 = vpack.c.b16 %v2217, %v2214
      %v2296 = vpack.c.b16 %v2218, %v2215
      %v2297 = vpack.c.b16 %v2219, %v2216
      %v2298 = vpack.c.b16 %v2223, %v2220
      %v2299 = vpack.c.b16 %v2224, %v2221
      %v2300 = vpack.c.b16 %v2225, %v2222
      %v2301 = vpack.c.b16 %v2229, %v2226
      %v2302 = vpack.c.b16 %v2230, %v2227
      %v2303 = vpack.c.b16 %v2231, %v2228
      %v2304 = vpack.c.b16 %v2235, %v2232
      %v2305 = vpack.c.b16 %v2236, %v2233
      %v2306 = vpack.c.b16 %v2237, %v2234
      %v2307 = vpack.c.b16 %v2241, %v2238
      %v2308 = vpack.c.b16 %v2242, %v2239
      %v2309 = vpack.c.b16 %v2243, %v2240
      %v2310 = vpack.c.b16 %v2247, %v2244
      %v2311 = vpack.c.b16 %v2248, %v2245
      %v2312 = vpack.c.b16 %v2249, %v2246
      %v2313 = vpack.c.b16 %v2253, %v2250
      %v2314 = vpack.c.b16 %v2254, %v2251
      %v2315 = vpack.c.b16 %v2255, %v2252
      %v2316 = vpack.c.b16 %v2259, %v2256
      %v2317 = vpack.c.b16 %v2260, %v2257
      %v2318 = vpack.c.b16 %v2261, %v2258
      %v2319 = vpack.c.b16 %v2265, %v2262
      %v2320 = vpack.c.b16 %v2266, %v2263
      %v2321 = vpack.c.b16 %v2267, %v2264
      %v2322 = vpack.c.b16 %v2271, %v2268
      %v2323 = vpack.c.b16 %v2272, %v2269
      %v2324 = vpack.c.b16 %v2273, %v2270
      %v2325 = vpack.c.b16 %v2277, %v2274
      %v2326 = vpack.c.b16 %v2278, %v2275
      %v2327 = vpack.c.b16 %v2279, %v2276
      %v2424 = vunpack.c.l.b16 %v2072
      %v2425 = vunpack.c.l.b16 %v2073
      %v2426 = vunpack.c.l.b16 %v2074
      %v2427 = vunpack.c.l.b16 %v2075
      %v2428 = vunpack.c.l.b16 %v2076
      %v2429 = vunpack.c.l.b16 %v2077
      %v2430 = vunpack.c.l.b16 %v2078
      %v2431 = vunpack.c.l.b16 %v2079
      %v2432 = vunpack.c.l.b16 %v2080
      %v2433 = vunpack.c.l.b16 %v2081
      %v2434 = vunpack.c.l.b16 %v2082
      %v2435 = vunpack.c.l.b16 %v2083
      %v2436 = vunpack.c.l.b16 %v2084
      %v2437 = vunpack.c.l.b16 %v2085
      %v2438 = vunpack.c.l.b16 %v2086
      %v2439 = vunpack.c.l.b16 %v2087
      %v2440 = vunpack.c.l.b16 %v2088
      %v2441 = vunpack.c.l.b16 %v2089
      %v2442 = vunpack.c.l.b16 %v2090
      %v2443 = vunpack.c.l.b16 %v2091
      %v2444 = vunpack.c.l.b16 %v2092
      %v2445 = vunpack.c.l.b16 %v2093
      %v2446 = vunpack.c.l.b16 %v2094
      %v2447 = vunpack.c.l.b16 %v2095
      %v2448 = vunpack.c.l.b16 %v2096
      %v2449 = vunpack.c.l.b16 %v2097
      %v2450 = vunpack.c.l.b16 %v2098
      %v2451 = vunpack.c.l.b16 %v2099
      %v2452 = vunpack.c.l.b16 %v2100
      %v2453 = vunpack.c.l.b16 %v2101
      %v2454 = vunpack.c.l.b16 %v2102
      %v2455 = vunpack.c.l.b16 %v2103
      %v2456 = vunpack.c.l.b16 %v2104
      %v2457 = vunpack.c.l.b16 %v2105
      %v2458 = vunpack.c.l.b16 %v2106
      %v2459 = vunpack.c.l.b16 %v2107
      %v2460 = vunpack.c.l.b16 %v2108
      %v2461 = vunpack.c.l.b16 %v2109
      %v2462 = vunpack.c.l.b16 %v2110
      %v2463 = vunpack.c.l.b16 %v2111
      %v2464 = vunpack.c.l.b16 %v2112
      %v2465 = vunpack.c.l.b16 %v2113
      %v2466 = vunpack.c.l.b16 %v2114
      %v2467 = vunpack.c.l.b16 %v2115
      %v2468 = vunpack.c.l.b16 %v2116
      %v2469 = vunpack.c.l.b16 %v2117
      %v2470 = vunpack.c.l.b16 %v2118
      %v2471 = vunpack.c.l.b16 %v2119
      %v2472 = vpack.c.b16 %v2425, %v2424
      %v2473 = vpack.c.b16 %v2427, %v2426
      %v2474 = vpack.c.b16 %v2429, %v2428
      %v2475 = vpack.c.b16 %v2431, %v2430
      %v2476 = vpack.c.b16 %v2433, %v2432
      %v2477 = vpack.c.b16 %v2435, %v2434
      %v2478 = vpack.c.b16 %v2437, %v2436
      %v2479 = vpack.c.b16 %v2439, %v2438
      %v2480 = vpack.c.b16 %v2441, %v2440
      %v2481 = vpack.c.b16 %v2443, %v2442
      %v2482 = vpack.c.b16 %v2445, %v2444
      %v2483 = vpack.c.b16 %v2447, %v2446
      %v2484 = vpack.c.b16 %v2449, %v2448
      %v2485 = vpack.c.b16 %v2451, %v2450
      %v2486 = vpack.c.b16 %v2453, %v2452
      %v2487 = vpack.c.b16 %v2455, %v2454
      %v2488 = vpack.c.b16 %v2457, %v2456
      %v2489 = vpack.c.b16 %v2459, %v2458
      %v2490 = vpack.c.b16 %v2461, %v2460
      %v2491 = vpack.c.b16 %v2463, %v2462
      %v2492 = vpack.c.b16 %v2465, %v2464
      %v2493 = vpack.c.b16 %v2467, %v2466
      %v2494 = vpack.c.b16 %v2469, %v2468
      %v2495 = vpack.c.b16 %v2471, %v2470
      %2520 = vmatprep.subr.bf16.mxu0 0
      %2521 = vmatpush1.bf16.msra.mxu0 %v2479
      %2522 = vmatprep.subr.bf16.mxu0 0
      %2523 = vmatpush1.bf16.msra.mxu0 %v2478
      %2524 = vmatprep.subr.bf16.mxu0 0
      %2525 = vmatpush1.bf16.msra.mxu0 %v2477
      %2526 = vmatprep.subr.bf16.mxu0 0
      %2527 = vmatpush1.bf16.msra.mxu0 %v2476
      %2528 = vmatprep.subr.bf16.mxu0 0
      %2529 = vmatpush1.bf16.msra.mxu0 %v2475
      %2530 = vmatprep.subr.bf16.mxu0 0
      %2531 = vmatpush1.bf16.msra.mxu0 %v2474
      %2532 = vmatprep.subr.bf16.mxu0 0
      %2533 = vmatpush1.bf16.msra.mxu0 %v2473
      %2534 = vmatprep.subr.bf16.mxu0 0
      %2535 = vmatpush1.bf16.msra.mxu0 %v2472
      %2536 = vmatprep.subr.bf16.mxu0 0
      %2537 = vmatpush2.bf16.msra.mxu0 %v2487
      %2538 = vmatprep.subr.bf16.mxu0 0
      %2539 = vmatpush2.bf16.msra.mxu0 %v2486
      %2540 = vmatprep.subr.bf16.mxu0 0
      %2541 = vmatpush2.bf16.msra.mxu0 %v2485
      %2542 = vmatprep.subr.bf16.mxu0 0
      %2543 = vmatpush2.bf16.msra.mxu0 %v2484
      %2544 = vmatprep.subr.bf16.mxu0 0
      %2545 = vmatpush2.bf16.msra.mxu0 %v2483
      %2546 = vmatprep.subr.bf16.mxu0 0
      %2547 = vmatpush2.bf16.msra.mxu0 %v2482
      %2548 = vmatprep.subr.bf16.mxu0 0
      %2549 = vmatpush2.bf16.msra.mxu0 %v2481
      %2550 = vmatprep.subr.bf16.mxu0 0
      %2551 = vmatpush2.bf16.msra.mxu0 %v2480
      %2552 = vmatprep.mubr.bf16.mxu0 %v2281
      %2553 = vmatmul.mubr.bf16.gmra.mxu0 %v2280
      %v2554 = vpop.f32.mrf.mxu0
      %v2555 = vadd.f32 0.0, %v2554
      %v2556 = vpop.f32.mrf.mxu0
      %v2557 = vpop.f32.mrf.mxu0
      %v2558 = vadd.f32 0.0, %v2557
      %v2559 = vpop.f32.mrf.mxu0
      %2560 = vmatprep.mubr.bf16.mxu0 %v2284
      %2561 = vmatmul.mubr.bf16.gmra.mxu0 %v2283
      %v2562 = vpop.f32.mrf.mxu0
      %v2563 = vadd.f32 0.0, %v2562
      %v2564 = vpop.f32.mrf.mxu0
      %v2565 = vpop.f32.mrf.mxu0
      %v2566 = vadd.f32 0.0, %v2565
      %v2567 = vpop.f32.mrf.mxu0
      %2568 = vmatprep.mubr.bf16.mxu0 %v2287
      %2569 = vmatmul.mubr.bf16.gmra.mxu0 %v2286
      %v2570 = vpop.f32.mrf.mxu0
      %v2571 = vadd.f32 0.0, %v2570
      %v2572 = vpop.f32.mrf.mxu0
      %v2573 = vpop.f32.mrf.mxu0
      %v2574 = vadd.f32 0.0, %v2573
      %v2575 = vpop.f32.mrf.mxu0
      %2576 = vmatprep.mubr.bf16.mxu0 %v2290
      %2577 = vmatmul.mubr.bf16.gmra.mxu0 %v2289
      %v2578 = vpop.f32.mrf.mxu0
      %v2579 = vadd.f32 0.0, %v2578
      %v2580 = vpop.f32.mrf.mxu0
      %v2581 = vpop.f32.mrf.mxu0
      %v2582 = vadd.f32 0.0, %v2581
      %v2583 = vpop.f32.mrf.mxu0
      %2584 = vmatprep.mubr.bf16.mxu0 %v2293
      %2585 = vmatmul.mubr.bf16.gmra.mxu0 %v2292
      %v2586 = vpop.f32.mrf.mxu0
      %v2587 = vadd.f32 0.0, %v2586
      %v2588 = vpop.f32.mrf.mxu0
      %v2589 = vpop.f32.mrf.mxu0
      %v2590 = vadd.f32 0.0, %v2589
      %v2591 = vpop.f32.mrf.mxu0
      %2592 = vmatprep.mubr.bf16.mxu0 %v2296
      %2593 = vmatmul.mubr.bf16.gmra.mxu0 %v2295
      %v2594 = vpop.f32.mrf.mxu0
      %v2595 = vadd.f32 0.0, %v2594
      %v2596 = vpop.f32.mrf.mxu0
      %v2597 = vpop.f32.mrf.mxu0
      %v2598 = vadd.f32 0.0, %v2597
      %v2599 = vpop.f32.mrf.mxu0
      %2600 = vmatprep.mubr.bf16.mxu0 %v2299
      %2601 = vmatmul.mubr.bf16.gmra.mxu0 %v2298
      %v2602 = vpop.f32.mrf.mxu0
      %v2603 = vadd.f32 0.0, %v2602
      %v2604 = vpop.f32.mrf.mxu0
      %v2605 = vpop.f32.mrf.mxu0
      %v2606 = vadd.f32 0.0, %v2605
      %v2607 = vpop.f32.mrf.mxu0
      %2608 = vmatprep.mubr.bf16.mxu0 %v2302
      %2609 = vmatmul.mubr.bf16.gmra.mxu0 %v2301
      %v2610 = vpop.f32.mrf.mxu0
      %v2611 = vadd.f32 0.0, %v2610
      %v2612 = vpop.f32.mrf.mxu0
      %v2613 = vpop.f32.mrf.mxu0
      %v2614 = vadd.f32 0.0, %v2613
      %v2615 = vpop.f32.mrf.mxu0
      %2616 = vmatprep.mubr.bf16.mxu0 %v2305
      %2617 = vmatmul.mubr.bf16.gmra.mxu0 %v2304
      %v2618 = vpop.f32.mrf.mxu0
      %v2619 = vadd.f32 0.0, %v2618
      %v2620 = vpop.f32.mrf.mxu0
      %v2621 = vpop.f32.mrf.mxu0
      %v2622 = vadd.f32 0.0, %v2621
      %v2623 = vpop.f32.mrf.mxu0
      %2624 = vmatprep.mubr.bf16.mxu0 %v2308
      %2625 = vmatmul.mubr.bf16.gmra.mxu0 %v2307
      %v2626 = vpop.f32.mrf.mxu0
      %v2627 = vadd.f32 0.0, %v2626
      %v2628 = vpop.f32.mrf.mxu0
      %v2629 = vpop.f32.mrf.mxu0
      %v2630 = vadd.f32 0.0, %v2629
      %v2631 = vpop.f32.mrf.mxu0
      %2632 = vmatprep.mubr.bf16.mxu0 %v2311
      %2633 = vmatmul.mubr.bf16.gmra.mxu0 %v2310
      %v2634 = vpop.f32.mrf.mxu0
      %v2635 = vadd.f32 0.0, %v2634
      %v2636 = vpop.f32.mrf.mxu0
      %v2637 = vpop.f32.mrf.mxu0
      %v2638 = vadd.f32 0.0, %v2637
      %v2639 = vpop.f32.mrf.mxu0
      %2640 = vmatprep.mubr.bf16.mxu0 %v2314
      %2641 = vmatmul.mubr.bf16.gmra.mxu0 %v2313
      %v2642 = vpop.f32.mrf.mxu0
      %v2643 = vadd.f32 0.0, %v2642
      %v2644 = vpop.f32.mrf.mxu0
      %v2645 = vpop.f32.mrf.mxu0
      %v2646 = vadd.f32 0.0, %v2645
      %v2647 = vpop.f32.mrf.mxu0
      %2648 = vmatprep.mubr.bf16.mxu0 %v2317
      %2649 = vmatmul.mubr.bf16.gmra.mxu0 %v2316
      %v2650 = vpop.f32.mrf.mxu0
      %v2651 = vadd.f32 0.0, %v2650
      %v2652 = vpop.f32.mrf.mxu0
      %v2653 = vpop.f32.mrf.mxu0
      %v2654 = vadd.f32 0.0, %v2653
      %v2655 = vpop.f32.mrf.mxu0
      %2656 = vmatprep.mubr.bf16.mxu0 %v2320
      %2657 = vmatmul.mubr.bf16.gmra.mxu0 %v2319
      %v2658 = vpop.f32.mrf.mxu0
      %v2659 = vadd.f32 0.0, %v2658
      %v2660 = vpop.f32.mrf.mxu0
      %v2661 = vpop.f32.mrf.mxu0
      %v2662 = vadd.f32 0.0, %v2661
      %v2663 = vpop.f32.mrf.mxu0
      %2664 = vmatprep.mubr.bf16.mxu0 %v2323
      %2665 = vmatmul.mubr.bf16.gmra.mxu0 %v2322
      %v2666 = vpop.f32.mrf.mxu0
      %v2667 = vadd.f32 0.0, %v2666
      %v2668 = vpop.f32.mrf.mxu0
      %v2669 = vpop.f32.mrf.mxu0
      %v2670 = vadd.f32 0.0, %v2669
      %v2671 = vpop.f32.mrf.mxu0
      %2672 = vmatprep.mubr.bf16.mxu0 %v2326
      %2673 = vmatmul.mubr.bf16.gmra.mxu0 %v2325
      %v2674 = vpop.f32.mrf.mxu0
      %v2675 = vadd.f32 0.0, %v2674
      %v2676 = vpop.f32.mrf.mxu0
      %v2677 = vpop.f32.mrf.mxu0
      %v2678 = vadd.f32 0.0, %v2677
      %v2679 = vpop.f32.mrf.mxu0
      %2680 = vdwg.mxu0
      %2681 = vmatprep.subr.bf16.mxu0 0
      %2682 = vmatpush1.bf16.msra.mxu0 %v2495
      %2683 = vmatprep.subr.bf16.mxu0 0
      %2684 = vmatpush1.bf16.msra.mxu0 %v2494
      %2685 = vmatprep.subr.bf16.mxu0 0
      %2686 = vmatpush1.bf16.msra.mxu0 %v2493
      %2687 = vmatprep.subr.bf16.mxu0 0
      %2688 = vmatpush1.bf16.msra.mxu0 %v2492
      %2689 = vmatprep.subr.bf16.mxu0 0
      %2690 = vmatpush1.bf16.msra.mxu0 %v2491
      %2691 = vmatprep.subr.bf16.mxu0 0
      %2692 = vmatpush1.bf16.msra.mxu0 %v2490
      %2693 = vmatprep.subr.bf16.mxu0 0
      %2694 = vmatpush1.bf16.msra.mxu0 %v2489
      %2695 = vmatprep.subr.bf16.mxu0 0
      %2696 = vmatpush1.bf16.msra.mxu0 %v2488
      %2697 = vmatprep.subr.bf16.mxu0 0
      %2698 = vmatpush2.bf16.msra.mxu0 0
      %2699 = vmatprep.subr.bf16.mxu0 0
      %2700 = vmatpush2.bf16.msra.mxu0 0
      %2701 = vmatprep.subr.bf16.mxu0 0
      %2702 = vmatpush2.bf16.msra.mxu0 0
      %2703 = vmatprep.subr.bf16.mxu0 0
      %2704 = vmatpush2.bf16.msra.mxu0 0
      %2705 = vmatprep.subr.bf16.mxu0 0
      %2706 = vmatpush2.bf16.msra.mxu0 0
      %2707 = vmatprep.subr.bf16.mxu0 0
      %2708 = vmatpush2.bf16.msra.mxu0 0
      %2709 = vmatprep.subr.bf16.mxu0 0
      %2710 = vmatpush2.bf16.msra.mxu0 0
      %2711 = vmatprep.subr.bf16.mxu0 0
      %2712 = vmatpush2.bf16.msra.mxu0 0
      %2713 = vmatprep.mubr.bf16.mxu0 0
      %2714 = vmatmul.mubr.bf16.gmra.mxu0 %v2282
      %v2715 = vpop.f32.mrf.mxu0
      %v2716 = vadd.f32 %v2555, %v2715
      %v2717 = vpop.f32.mrf.mxu0
      %v2718 = vpop.f32.mrf.mxu0
      %v2719 = vadd.f32 %v2558, %v2718
      %v2720 = vpop.f32.mrf.mxu0
      %2721 = vmatprep.mubr.bf16.mxu0 0
      %2722 = vmatmul.mubr.bf16.gmra.mxu0 %v2285
      %v2723 = vpop.f32.mrf.mxu0
      %v2724 = vadd.f32 %v2563, %v2723
      %v2725 = vpop.f32.mrf.mxu0
      %v2726 = vpop.f32.mrf.mxu0
      %v2727 = vadd.f32 %v2566, %v2726
      %v2728 = vpop.f32.mrf.mxu0
      %2729 = vmatprep.mubr.bf16.mxu0 0
      %2730 = vmatmul.mubr.bf16.gmra.mxu0 %v2288
      %v2731 = vpop.f32.mrf.mxu0
      %v2732 = vadd.f32 %v2571, %v2731
      %v2733 = vpop.f32.mrf.mxu0
      %v2734 = vpop.f32.mrf.mxu0
      %v2735 = vadd.f32 %v2574, %v2734
      %v2736 = vpop.f32.mrf.mxu0
      %2737 = vmatprep.mubr.bf16.mxu0 0
      %2738 = vmatmul.mubr.bf16.gmra.mxu0 %v2291
      %v2739 = vpop.f32.mrf.mxu0
      %v2740 = vadd.f32 %v2579, %v2739
      %v2741 = vpop.f32.mrf.mxu0
      %v2742 = vpop.f32.mrf.mxu0
      %v2743 = vadd.f32 %v2582, %v2742
      %v2744 = vpop.f32.mrf.mxu0
      %2745 = vmatprep.mubr.bf16.mxu0 0
      %2746 = vmatmul.mubr.bf16.gmra.mxu0 %v2294
      %v2747 = vpop.f32.mrf.mxu0
      %v2748 = vadd.f32 %v2587, %v2747
      %v2749 = vpop.f32.mrf.mxu0
      %v2750 = vpop.f32.mrf.mxu0
      %v2751 = vadd.f32 %v2590, %v2750
      %v2752 = vpop.f32.mrf.mxu0
      %2753 = vmatprep.mubr.bf16.mxu0 0
      %2754 = vmatmul.mubr.bf16.gmra.mxu0 %v2297
      %v2755 = vpop.f32.mrf.mxu0
      %v2756 = vadd.f32 %v2595, %v2755
      %v2757 = vpop.f32.mrf.mxu0
      %v2758 = vpop.f32.mrf.mxu0
      %v2759 = vadd.f32 %v2598, %v2758
      %v2760 = vpop.f32.mrf.mxu0
      %2761 = vmatprep.mubr.bf16.mxu0 0
      %2762 = vmatmul.mubr.bf16.gmra.mxu0 %v2300
      %v2763 = vpop.f32.mrf.mxu0
      %v2764 = vadd.f32 %v2603, %v2763
      %v2765 = vpop.f32.mrf.mxu0
      %v2766 = vpop.f32.mrf.mxu0
      %v2767 = vadd.f32 %v2606, %v2766
      %v2768 = vpop.f32.mrf.mxu0
      %2769 = vmatprep.mubr.bf16.mxu0 0
      %2770 = vmatmul.mubr.bf16.gmra.mxu0 %v2303
      %v2771 = vpop.f32.mrf.mxu0
      %v2772 = vadd.f32 %v2611, %v2771
      %v2773 = vpop.f32.mrf.mxu0
      %v2774 = vpop.f32.mrf.mxu0
      %v2775 = vadd.f32 %v2614, %v2774
      %v2776 = vpop.f32.mrf.mxu0
      %2777 = vmatprep.mubr.bf16.mxu0 0
      %2778 = vmatmul.mubr.bf16.gmra.mxu0 %v2306
      %v2779 = vpop.f32.mrf.mxu0
      %v2780 = vadd.f32 %v2619, %v2779
      %v2781 = vpop.f32.mrf.mxu0
      %v2782 = vpop.f32.mrf.mxu0
      %v2783 = vadd.f32 %v2622, %v2782
      %v2784 = vpop.f32.mrf.mxu0
      %2785 = vmatprep.mubr.bf16.mxu0 0
      %2786 = vmatmul.mubr.bf16.gmra.mxu0 %v2309
      %v2787 = vpop.f32.mrf.mxu0
      %v2788 = vadd.f32 %v2627, %v2787
      %v2789 = vpop.f32.mrf.mxu0
      %v2790 = vpop.f32.mrf.mxu0
      %v2791 = vadd.f32 %v2630, %v2790
      %v2792 = vpop.f32.mrf.mxu0
      %2793 = vmatprep.mubr.bf16.mxu0 0
      %2794 = vmatmul.mubr.bf16.gmra.mxu0 %v2312
      %v2795 = vpop.f32.mrf.mxu0
      %v2796 = vadd.f32 %v2635, %v2795
      %v2797 = vpop.f32.mrf.mxu0
      %v2798 = vpop.f32.mrf.mxu0
      %v2799 = vadd.f32 %v2638, %v2798
      %v2800 = vpop.f32.mrf.mxu0
      %2801 = vmatprep.mubr.bf16.mxu0 0
      %2802 = vmatmul.mubr.bf16.gmra.mxu0 %v2315
      %v2803 = vpop.f32.mrf.mxu0
      %v2804 = vadd.f32 %v2643, %v2803
      %v2805 = vpop.f32.mrf.mxu0
      %v2806 = vpop.f32.mrf.mxu0
      %v2807 = vadd.f32 %v2646, %v2806
      %v2808 = vpop.f32.mrf.mxu0
      %2809 = vmatprep.mubr.bf16.mxu0 0
      %2810 = vmatmul.mubr.bf16.gmra.mxu0 %v2318
      %v2811 = vpop.f32.mrf.mxu0
      %v2812 = vadd.f32 %v2651, %v2811
      %v2813 = vpop.f32.mrf.mxu0
      %v2814 = vpop.f32.mrf.mxu0
      %v2815 = vadd.f32 %v2654, %v2814
      %v2816 = vpop.f32.mrf.mxu0
      %2817 = vmatprep.mubr.bf16.mxu0 0
      %2818 = vmatmul.mubr.bf16.gmra.mxu0 %v2321
      %v2819 = vpop.f32.mrf.mxu0
      %v2820 = vadd.f32 %v2659, %v2819
      %v2821 = vpop.f32.mrf.mxu0
      %v2822 = vpop.f32.mrf.mxu0
      %v2823 = vadd.f32 %v2662, %v2822
      %v2824 = vpop.f32.mrf.mxu0
      %2825 = vmatprep.mubr.bf16.mxu0 0
      %2826 = vmatmul.mubr.bf16.gmra.mxu0 %v2324
      %v2827 = vpop.f32.mrf.mxu0
      %v2828 = vadd.f32 %v2667, %v2827
      %v2829 = vpop.f32.mrf.mxu0
      %v2830 = vpop.f32.mrf.mxu0
      %v2831 = vadd.f32 %v2670, %v2830
      %v2832 = vpop.f32.mrf.mxu0
      %2833 = vmatprep.mubr.bf16.mxu0 0
      %2834 = vmatmul.mubr.bf16.gmra.mxu0 %v2327
      %v2835 = vpop.f32.mrf.mxu0
      %v2836 = vadd.f32 %v2675, %v2835
      %v2837 = vpop.f32.mrf.mxu0
      %v2838 = vpop.f32.mrf.mxu0
      %v2839 = vadd.f32 %v2678, %v2838
      %v2840 = vpop.f32.mrf.mxu0
      %2841 = vdwg.mxu0
      %v2842 = vld [vmem:[#allocation4] sm:$0xff]
      %v2843 = vld [vmem:[#allocation4 + $0x8] sm:$0xff]
      %v2844 = vld [vmem:[#allocation4 + $0x10] sm:$0xff]
      %v2845 = vld [vmem:[#allocation4 + $0x18] sm:$0xff]
      %v2846 = vld [vmem:[#allocation4 + $0x20] sm:$0xff]
      %v2847 = vld [vmem:[#allocation4 + $0x28] sm:$0xff]
      %v2848 = vld [vmem:[#allocation4 + $0x30] sm:$0xff]
      %v2849 = vld [vmem:[#allocation4 + $0x38] sm:$0xff]
      %v2850 = vld [vmem:[#allocation4 + $0x40] sm:$0xff]
      %v2851 = vld [vmem:[#allocation4 + $0x48] sm:$0xff]
      %v2852 = vld [vmem:[#allocation4 + $0x50] sm:$0xff]
      %v2853 = vld [vmem:[#allocation4 + $0x58] sm:$0xff]
      %v2854 = vld [vmem:[#allocation4 + $0x60] sm:$0xff]
      %v2855 = vld [vmem:[#allocation4 + $0x68] sm:$0xff]
      %v2856 = vld [vmem:[#allocation4 + $0x70] sm:$0xff]
      %v2857 = vld [vmem:[#allocation4 + $0x78] sm:$0xff]
      %v2858 = vld [vmem:[#allocation4 + $0x80] sm:$0xff]
      %v2859 = vld [vmem:[#allocation4 + $0x88] sm:$0xff]
      %v2860 = vld [vmem:[#allocation4 + $0x90] sm:$0xff]
      %v2861 = vld [vmem:[#allocation4 + $0x98] sm:$0xff]
      %v2862 = vld [vmem:[#allocation4 + $0xa0] sm:$0xff]
      %v2863 = vld [vmem:[#allocation4 + $0xa8] sm:$0xff]
      %v2864 = vld [vmem:[#allocation4 + $0xb0] sm:$0xff]
      %v2865 = vld [vmem:[#allocation4 + $0xb8] sm:$0xff]
      %v2866 = vld [vmem:[#allocation4 + $0xc0] sm:$0xff]
      %v2867 = vld [vmem:[#allocation4 + $0xc8] sm:$0xff]
      %v2868 = vld [vmem:[#allocation4 + $0xd0] sm:$0xff]
      %v2869 = vld [vmem:[#allocation4 + $0xd8] sm:$0xff]
      %v2870 = vld [vmem:[#allocation4 + $0xe0] sm:$0xff]
      %v2871 = vld [vmem:[#allocation4 + $0xe8] sm:$0xff]
      %v2872 = vld [vmem:[#allocation4 + $0xf0] sm:$0xff]
      %v2873 = vld [vmem:[#allocation4 + $0xf8] sm:$0xff]
      %v2874 = vadd.f32 %v2842, %v2716
      %v2875 = vadd.f32 %v2843, %v2719
      %v2876 = vadd.f32 %v2844, %v2724
      %v2877 = vadd.f32 %v2845, %v2727
      %v2878 = vadd.f32 %v2846, %v2732
      %v2879 = vadd.f32 %v2847, %v2735
      %v2880 = vadd.f32 %v2848, %v2740
      %v2881 = vadd.f32 %v2849, %v2743
      %v2882 = vadd.f32 %v2850, %v2748
      %v2883 = vadd.f32 %v2851, %v2751
      %v2884 = vadd.f32 %v2852, %v2756
      %v2885 = vadd.f32 %v2853, %v2759
      %v2886 = vadd.f32 %v2854, %v2764
      %v2887 = vadd.f32 %v2855, %v2767
      %v2888 = vadd.f32 %v2856, %v2772
      %v2889 = vadd.f32 %v2857, %v2775
      %v2890 = vadd.f32 %v2858, %v2780
      %v2891 = vadd.f32 %v2859, %v2783
      %v2892 = vadd.f32 %v2860, %v2788
      %v2893 = vadd.f32 %v2861, %v2791
      %v2894 = vadd.f32 %v2862, %v2796
      %v2895 = vadd.f32 %v2863, %v2799
      %v2896 = vadd.f32 %v2864, %v2804
      %v2897 = vadd.f32 %v2865, %v2807
      %v2898 = vadd.f32 %v2866, %v2812
      %v2899 = vadd.f32 %v2867, %v2815
      %v2900 = vadd.f32 %v2868, %v2820
      %v2901 = vadd.f32 %v2869, %v2823
      %v2902 = vadd.f32 %v2870, %v2828
      %v2903 = vadd.f32 %v2871, %v2831
      %v2904 = vadd.f32 %v2872, %v2836
      %v2905 = vadd.f32 %v2873, %v2839
      %2906 = vst [vmem:[#allocation4] sm:$0xff] %v2874
      %2907 = vst [vmem:[#allocation4 + $0x8] sm:$0xff] %v2875
      %2908 = vst [vmem:[#allocation4 + $0x10] sm:$0xff] %v2876
      %2909 = vst [vmem:[#allocation4 + $0x18] sm:$0xff] %v2877
      %2910 = vst [vmem:[#allocation4 + $0x20] sm:$0xff] %v2878
      %2911 = vst [vmem:[#allocation4 + $0x28] sm:$0xff] %v2879
      %2912 = vst [vmem:[#allocation4 + $0x30] sm:$0xff] %v2880
      %2913 = vst [vmem:[#allocation4 + $0x38] sm:$0xff] %v2881
      %2914 = vst [vmem:[#allocation4 + $0x40] sm:$0xff] %v2882
      %2915 = vst [vmem:[#allocation4 + $0x48] sm:$0xff] %v2883
      %2916 = vst [vmem:[#allocation4 + $0x50] sm:$0xff] %v2884
      %2917 = vst [vmem:[#allocation4 + $0x58] sm:$0xff] %v2885
      %2918 = vst [vmem:[#allocation4 + $0x60] sm:$0xff] %v2886
      %2919 = vst [vmem:[#allocation4 + $0x68] sm:$0xff] %v2887
      %2920 = vst [vmem:[#allocation4 + $0x70] sm:$0xff] %v2888
      %2921 = vst [vmem:[#allocation4 + $0x78] sm:$0xff] %v2889
      %2922 = vst [vmem:[#allocation4 + $0x80] sm:$0xff] %v2890
      %2923 = vst [vmem:[#allocation4 + $0x88] sm:$0xff] %v2891
      %2924 = vst [vmem:[#allocation4 + $0x90] sm:$0xff] %v2892
      %2925 = vst [vmem:[#allocation4 + $0x98] sm:$0xff] %v2893
      %2926 = vst [vmem:[#allocation4 + $0xa0] sm:$0xff] %v2894
      %2927 = vst [vmem:[#allocation4 + $0xa8] sm:$0xff] %v2895
      %2928 = vst [vmem:[#allocation4 + $0xb0] sm:$0xff] %v2896
      %2929 = vst [vmem:[#allocation4 + $0xb8] sm:$0xff] %v2897
      %2930 = vst [vmem:[#allocation4 + $0xc0] sm:$0xff] %v2898
      %2931 = vst [vmem:[#allocation4 + $0xc8] sm:$0xff] %v2899
      %2932 = vst [vmem:[#allocation4 + $0xd0] sm:$0xff] %v2900
      %2933 = vst [vmem:[#allocation4 + $0xd8] sm:$0xff] %v2901
      %2934 = vst [vmem:[#allocation4 + $0xe0] sm:$0xff] %v2902
      %2935 = vst [vmem:[#allocation4 + $0xe8] sm:$0xff] %v2903
      %2936 = vst [vmem:[#allocation4 + $0xf0] sm:$0xff] %v2904
      %2937 = vst [vmem:[#allocation4 + $0xf8] sm:$0xff] %v2905
      %s2938 = scalar_lea.vmem [#allocation3], 48
      %v2939 = vld [vmem:[%s2938] sm:$0xff]
      %v2940 = vld [vmem:[%s2938 + $0x8] sm:$0xf]
      %v2941 = vld [vmem:[%s2938 + $0xc] sm:$0xff]
      %v2942 = vld [vmem:[%s2938 + $0x14] sm:$0xf]
      %v2943 = vld [vmem:[%s2938 + $0x18] sm:$0xff]
      %v2944 = vld [vmem:[%s2938 + $0x20] sm:$0xf]
      %v2945 = vld [vmem:[%s2938 + $0x24] sm:$0xff]
      %v2946 = vld [vmem:[%s2938 + $0x2c] sm:$0xf]
      %v2947 = vld [vmem:[%s2938 + $0x30] sm:$0xff]
      %v2948 = vld [vmem:[%s2938 + $0x38] sm:$0xf]
      %v2949 = vld [vmem:[%s2938 + $0x3c] sm:$0xff]
      %v2950 = vld [vmem:[%s2938 + $0x44] sm:$0xf]
      %v2951 = vld [vmem:[%s2938 + $0x48] sm:$0xff]
      %v2952 = vld [vmem:[%s2938 + $0x50] sm:$0xf]
      %v2953 = vld [vmem:[%s2938 + $0x54] sm:$0xff]
      %v2954 = vld [vmem:[%s2938 + $0x5c] sm:$0xf]
      %v2955 = vld [vmem:[%s2938 + $0x60] sm:$0xff]
      %v2956 = vld [vmem:[%s2938 + $0x68] sm:$0xf]
      %v2957 = vld [vmem:[%s2938 + $0x6c] sm:$0xff]
      %v2958 = vld [vmem:[%s2938 + $0x74] sm:$0xf]
      %v2959 = vld [vmem:[%s2938 + $0x78] sm:$0xff]
      %v2960 = vld [vmem:[%s2938 + $0x80] sm:$0xf]
      %v2961 = vld [vmem:[%s2938 + $0x84] sm:$0xff]
      %v2962 = vld [vmem:[%s2938 + $0x8c] sm:$0xf]
      %v2963 = vld [vmem:[%s2938 + $0x90] sm:$0xff]
      %v2964 = vld [vmem:[%s2938 + $0x98] sm:$0xf]
      %v2965 = vld [vmem:[%s2938 + $0x9c] sm:$0xff]
      %v2966 = vld [vmem:[%s2938 + $0xa4] sm:$0xf]
      %v2967 = vld [vmem:[%s2938 + $0xa8] sm:$0xff]
      %v2968 = vld [vmem:[%s2938 + $0xb0] sm:$0xf]
      %v2969 = vld [vmem:[%s2938 + $0xb4] sm:$0xff]
      %v2970 = vld [vmem:[%s2938 + $0xbc] sm:$0xf]
      %v2971 = vld [vmem:[%s2938 + $0xc0] sm:$0xff]
      %v2972 = vld [vmem:[%s2938 + $0xc8] sm:$0xf]
      %v2973 = vld [vmem:[%s2938 + $0xcc] sm:$0xff]
      %v2974 = vld [vmem:[%s2938 + $0xd4] sm:$0xf]
      %v2975 = vld [vmem:[%s2938 + $0xd8] sm:$0xff]
      %v2976 = vld [vmem:[%s2938 + $0xe0] sm:$0xf]
      %v2977 = vld [vmem:[%s2938 + $0xe4] sm:$0xff]
      %v2978 = vld [vmem:[%s2938 + $0xec] sm:$0xf]
      %v2979 = vld [vmem:[%s2938 + $0xf0] sm:$0xff]
      %v2980 = vld [vmem:[%s2938 + $0xf8] sm:$0xf]
      %v2981 = vld [vmem:[%s2938 + $0xfc] sm:$0xff]
      %v2982 = vld [vmem:[%s2938 + $0x104] sm:$0xf]
      %v2983 = vld [vmem:[%s2938 + $0x108] sm:$0xff]
      %v2984 = vld [vmem:[%s2938 + $0x110] sm:$0xf]
      %v2985 = vld [vmem:[%s2938 + $0x114] sm:$0xff]
      %v2986 = vld [vmem:[%s2938 + $0x11c] sm:$0xf]
      %v2987 = vld [vmem:[%s2938 + $0x120] sm:$0xff]
      %v2988 = vld [vmem:[%s2938 + $0x128] sm:$0xf]
      %v2989 = vld [vmem:[%s2938 + $0x12c] sm:$0xff]
      %v2990 = vld [vmem:[%s2938 + $0x134] sm:$0xf]
      %v2991 = vld [vmem:[%s2938 + $0x138] sm:$0xff]
      %v2992 = vld [vmem:[%s2938 + $0x140] sm:$0xf]
      %v2993 = vld [vmem:[%s2938 + $0x144] sm:$0xff]
      %v2994 = vld [vmem:[%s2938 + $0x14c] sm:$0xf]
      %v2995 = vld [vmem:[%s2938 + $0x150] sm:$0xff]
      %v2996 = vld [vmem:[%s2938 + $0x158] sm:$0xf]
      %v2997 = vld [vmem:[%s2938 + $0x15c] sm:$0xff]
      %v2998 = vld [vmem:[%s2938 + $0x164] sm:$0xf]
      %v2999 = vld [vmem:[%s2938 + $0x168] sm:$0xff]
      %v3000 = vld [vmem:[%s2938 + $0x170] sm:$0xf]
      %v3001 = vld [vmem:[%s2938 + $0x174] sm:$0xff]
      %v3002 = vld [vmem:[%s2938 + $0x17c] sm:$0xf]
      %s3003 = scalar_lea.vmem %s1, 384
      %v3004 = vld [vmem:[%s3003] sm:$0xf]
      %v3005 = vld [vmem:[%s3003 + $0x4] sm:$0xf]
      %v3006 = vld [vmem:[%s3003 + $0x8] sm:$0xf]
      %v3007 = vld [vmem:[%s3003 + $0xc] sm:$0xf]
      %v3008 = vld [vmem:[%s3003 + $0x10] sm:$0xf]
      %v3009 = vld [vmem:[%s3003 + $0x14] sm:$0xf]
      %v3010 = vld [vmem:[%s3003 + $0x18] sm:$0xf]
      %v3011 = vld [vmem:[%s3003 + $0x1c] sm:$0xf]
      %v3012 = vld [vmem:[%s3003 + $0x20] sm:$0xf]
      %v3013 = vld [vmem:[%s3003 + $0x24] sm:$0xf]
      %v3014 = vld [vmem:[%s3003 + $0x28] sm:$0xf]
      %v3015 = vld [vmem:[%s3003 + $0x2c] sm:$0xf]
      %v3016 = vld [vmem:[%s3003 + $0x30] sm:$0xf]
      %v3017 = vld [vmem:[%s3003 + $0x34] sm:$0xf]
      %v3018 = vld [vmem:[%s3003 + $0x38] sm:$0xf]
      %v3019 = vld [vmem:[%s3003 + $0x3c] sm:$0xf]
      %v3020 = vld [vmem:[%s3003 + $0x40] sm:$0xf]
      %v3021 = vld [vmem:[%s3003 + $0x44] sm:$0xf]
      %v3022 = vld [vmem:[%s3003 + $0x48] sm:$0xf]
      %v3023 = vld [vmem:[%s3003 + $0x4c] sm:$0xf]
      %v3024 = vld [vmem:[%s3003 + $0x50] sm:$0xf]
      %v3025 = vld [vmem:[%s3003 + $0x54] sm:$0xf]
      %v3026 = vld [vmem:[%s3003 + $0x58] sm:$0xf]
      %v3027 = vld [vmem:[%s3003 + $0x5c] sm:$0xf]
      %v3028 = vld [vmem:[%s3003 + $0x60] sm:$0xf]
      %v3029 = vld [vmem:[%s3003 + $0x64] sm:$0xf]
      %v3030 = vld [vmem:[%s3003 + $0x68] sm:$0xf]
      %v3031 = vld [vmem:[%s3003 + $0x6c] sm:$0xf]
      %v3032 = vld [vmem:[%s3003 + $0x70] sm:$0xf]
      %v3033 = vld [vmem:[%s3003 + $0x74] sm:$0xf]
      %v3034 = vld [vmem:[%s3003 + $0x78] sm:$0xf]
      %v3035 = vld [vmem:[%s3003 + $0x7c] sm:$0xf]
      %v3036 = vld [vmem:[%s3003 + $0x80] sm:$0xf]
      %v3037 = vld [vmem:[%s3003 + $0x84] sm:$0xf]
      %v3038 = vld [vmem:[%s3003 + $0x88] sm:$0xf]
      %v3039 = vld [vmem:[%s3003 + $0x8c] sm:$0xf]
      %v3040 = vld [vmem:[%s3003 + $0x90] sm:$0xf]
      %v3041 = vld [vmem:[%s3003 + $0x94] sm:$0xf]
      %v3042 = vld [vmem:[%s3003 + $0x98] sm:$0xf]
      %v3043 = vld [vmem:[%s3003 + $0x9c] sm:$0xf]
      %v3044 = vld [vmem:[%s3003 + $0xa0] sm:$0xf]
      %v3045 = vld [vmem:[%s3003 + $0xa4] sm:$0xf]
      %v3046 = vld [vmem:[%s3003 + $0xa8] sm:$0xf]
      %v3047 = vld [vmem:[%s3003 + $0xac] sm:$0xf]
      %v3048 = vld [vmem:[%s3003 + $0xb0] sm:$0xf]
      %v3049 = vld [vmem:[%s3003 + $0xb4] sm:$0xf]
      %v3050 = vld [vmem:[%s3003 + $0xb8] sm:$0xf]
      %v3051 = vld [vmem:[%s3003 + $0xbc] sm:$0xf]
      %v3116 = vunpack.c.l.b16 %v2939
      %v3117 = vunpack.c.h.b16 %v2939
      %v3118 = vunpack.c.l.b16 %v2940
      %v3119 = vunpack.c.l.b16 %v2941
      %v3120 = vunpack.c.h.b16 %v2941
      %v3121 = vunpack.c.l.b16 %v2942
      %v3122 = vunpack.c.l.b16 %v2943
      %v3123 = vunpack.c.h.b16 %v2943
      %v3124 = vunpack.c.l.b16 %v2944
      %v3125 = vunpack.c.l.b16 %v2945
      %v3126 = vunpack.c.h.b16 %v2945
      %v3127 = vunpack.c.l.b16 %v2946
      %v3128 = vunpack.c.l.b16 %v2947
      %v3129 = vunpack.c.h.b16 %v2947
      %v3130 = vunpack.c.l.b16 %v2948
      %v3131 = vunpack.c.l.b16 %v2949
      %v3132 = vunpack.c.h.b16 %v2949
      %v3133 = vunpack.c.l.b16 %v2950
      %v3134 = vunpack.c.l.b16 %v2951
      %v3135 = vunpack.c.h.b16 %v2951
      %v3136 = vunpack.c.l.b16 %v2952
      %v3137 = vunpack.c.l.b16 %v2953
      %v3138 = vunpack.c.h.b16 %v2953
      %v3139 = vunpack.c.l.b16 %v2954
      %v3140 = vunpack.c.l.b16 %v2955
      %v3141 = vunpack.c.h.b16 %v2955
      %v3142 = vunpack.c.l.b16 %v2956
      %v3143 = vunpack.c.l.b16 %v2957
      %v3144 = vunpack.c.h.b16 %v2957
      %v3145 = vunpack.c.l.b16 %v2958
      %v3146 = vunpack.c.l.b16 %v2959
      %v3147 = vunpack.c.h.b16 %v2959
      %v3148 = vunpack.c.l.b16 %v2960
      %v3149 = vunpack.c.l.b16 %v2961
      %v3150 = vunpack.c.h.b16 %v2961
      %v3151 = vunpack.c.l.b16 %v2962
      %v3152 = vunpack.c.l.b16 %v2963
      %v3153 = vunpack.c.h.b16 %v2963
      %v3154 = vunpack.c.l.b16 %v2964
      %v3155 = vunpack.c.l.b16 %v2965
      %v3156 = vunpack.c.h.b16 %v2965
      %v3157 = vunpack.c.l.b16 %v2966
      %v3158 = vunpack.c.l.b16 %v2967
      %v3159 = vunpack.c.h.b16 %v2967
      %v3160 = vunpack.c.l.b16 %v2968
      %v3161 = vunpack.c.l.b16 %v2969
      %v3162 = vunpack.c.h.b16 %v2969
      %v3163 = vunpack.c.l.b16 %v2970
      %v3164 = vunpack.c.l.b16 %v2971
      %v3165 = vunpack.c.h.b16 %v2971
      %v3166 = vunpack.c.l.b16 %v2972
      %v3167 = vunpack.c.l.b16 %v2973
      %v3168 = vunpack.c.h.b16 %v2973
      %v3169 = vunpack.c.l.b16 %v2974
      %v3170 = vunpack.c.l.b16 %v2975
      %v3171 = vunpack.c.h.b16 %v2975
      %v3172 = vunpack.c.l.b16 %v2976
      %v3173 = vunpack.c.l.b16 %v2977
      %v3174 = vunpack.c.h.b16 %v2977
      %v3175 = vunpack.c.l.b16 %v2978
      %v3176 = vunpack.c.l.b16 %v2979
      %v3177 = vunpack.c.h.b16 %v2979
      %v3178 = vunpack.c.l.b16 %v2980
      %v3179 = vunpack.c.l.b16 %v2981
      %v3180 = vunpack.c.h.b16 %v2981
      %v3181 = vunpack.c.l.b16 %v2982
      %v3182 = vunpack.c.l.b16 %v2983
      %v3183 = vunpack.c.h.b16 %v2983
      %v3184 = vunpack.c.l.b16 %v2984
      %v3185 = vunpack.c.l.b16 %v2985
      %v3186 = vunpack.c.h.b16 %v2985
      %v3187 = vunpack.c.l.b16 %v2986
      %v3188 = vunpack.c.l.b16 %v2987
      %v3189 = vunpack.c.h.b16 %v2987
      %v3190 = vunpack.c.l.b16 %v2988
      %v3191 = vunpack.c.l.b16 %v2989
      %v3192 = vunpack.c.h.b16 %v2989
      %v3193 = vunpack.c.l.b16 %v2990
      %v3194 = vunpack.c.l.b16 %v2991
      %v3195 = vunpack.c.h.b16 %v2991
      %v3196 = vunpack.c.l.b16 %v2992
      %v3197 = vunpack.c.l.b16 %v2993
      %v3198 = vunpack.c.h.b16 %v2993
      %v3199 = vunpack.c.l.b16 %v2994
      %v3200 = vunpack.c.l.b16 %v2995
      %v3201 = vunpack.c.h.b16 %v2995
      %v3202 = vunpack.c.l.b16 %v2996
      %v3203 = vunpack.c.l.b16 %v2997
      %v3204 = vunpack.c.h.b16 %v2997
      %v3205 = vunpack.c.l.b16 %v2998
      %v3206 = vunpack.c.l.b16 %v2999
      %v3207 = vunpack.c.h.b16 %v2999
      %v3208 = vunpack.c.l.b16 %v3000
      %v3209 = vunpack.c.l.b16 %v3001
      %v3210 = vunpack.c.h.b16 %v3001
      %v3211 = vunpack.c.l.b16 %v3002
      %v3212 = vpack.c.b16 %v3119, %v3116
      %v3213 = vpack.c.b16 %v3120, %v3117
      %v3214 = vpack.c.b16 %v3121, %v3118
      %v3215 = vpack.c.b16 %v3125, %v3122
      %v3216 = vpack.c.b16 %v3126, %v3123
      %v3217 = vpack.c.b16 %v3127, %v3124
      %v3218 = vpack.c.b16 %v3131, %v3128
      %v3219 = vpack.c.b16 %v3132, %v3129
      %v3220 = vpack.c.b16 %v3133, %v3130
      %v3221 = vpack.c.b16 %v3137, %v3134
      %v3222 = vpack.c.b16 %v3138, %v3135
      %v3223 = vpack.c.b16 %v3139, %v3136
      %v3224 = vpack.c.b16 %v3143, %v3140
      %v3225 = vpack.c.b16 %v3144, %v3141
      %v3226 = vpack.c.b16 %v3145, %v3142
      %v3227 = vpack.c.b16 %v3149, %v3146
      %v3228 = vpack.c.b16 %v3150, %v3147
      %v3229 = vpack.c.b16 %v3151, %v3148
      %v3230 = vpack.c.b16 %v3155, %v3152
      %v3231 = vpack.c.b16 %v3156, %v3153
      %v3232 = vpack.c.b16 %v3157, %v3154
      %v3233 = vpack.c.b16 %v3161, %v3158
      %v3234 = vpack.c.b16 %v3162, %v3159
      %v3235 = vpack.c.b16 %v3163, %v3160
      %v3236 = vpack.c.b16 %v3167, %v3164
      %v3237 = vpack.c.b16 %v3168, %v3165
      %v3238 = vpack.c.b16 %v3169, %v3166
      %v3239 = vpack.c.b16 %v3173, %v3170
      %v3240 = vpack.c.b16 %v3174, %v3171
      %v3241 = vpack.c.b16 %v3175, %v3172
      %v3242 = vpack.c.b16 %v3179, %v3176
      %v3243 = vpack.c.b16 %v3180, %v3177
      %v3244 = vpack.c.b16 %v3181, %v3178
      %v3245 = vpack.c.b16 %v3185, %v3182
      %v3246 = vpack.c.b16 %v3186, %v3183
      %v3247 = vpack.c.b16 %v3187, %v3184
      %v3248 = vpack.c.b16 %v3191, %v3188
      %v3249 = vpack.c.b16 %v3192, %v3189
      %v3250 = vpack.c.b16 %v3193, %v3190
      %v3251 = vpack.c.b16 %v3197, %v3194
      %v3252 = vpack.c.b16 %v3198, %v3195
      %v3253 = vpack.c.b16 %v3199, %v3196
      %v3254 = vpack.c.b16 %v3203, %v3200
      %v3255 = vpack.c.b16 %v3204, %v3201
      %v3256 = vpack.c.b16 %v3205, %v3202
      %v3257 = vpack.c.b16 %v3209, %v3206
      %v3258 = vpack.c.b16 %v3210, %v3207
      %v3259 = vpack.c.b16 %v3211, %v3208
      %v3356 = vunpack.c.l.b16 %v3004
      %v3357 = vunpack.c.l.b16 %v3005
      %v3358 = vunpack.c.l.b16 %v3006
      %v3359 = vunpack.c.l.b16 %v3007
      %v3360 = vunpack.c.l.b16 %v3008
      %v3361 = vunpack.c.l.b16 %v3009
      %v3362 = vunpack.c.l.b16 %v3010
      %v3363 = vunpack.c.l.b16 %v3011
      %v3364 = vunpack.c.l.b16 %v3012
      %v3365 = vunpack.c.l.b16 %v3013
      %v3366 = vunpack.c.l.b16 %v3014
      %v3367 = vunpack.c.l.b16 %v3015
      %v3368 = vunpack.c.l.b16 %v3016
      %v3369 = vunpack.c.l.b16 %v3017
      %v3370 = vunpack.c.l.b16 %v3018
      %v3371 = vunpack.c.l.b16 %v3019
      %v3372 = vunpack.c.l.b16 %v3020
      %v3373 = vunpack.c.l.b16 %v3021
      %v3374 = vunpack.c.l.b16 %v3022
      %v3375 = vunpack.c.l.b16 %v3023
      %v3376 = vunpack.c.l.b16 %v3024
      %v3377 = vunpack.c.l.b16 %v3025
      %v3378 = vunpack.c.l.b16 %v3026
      %v3379 = vunpack.c.l.b16 %v3027
      %v3380 = vunpack.c.l.b16 %v3028
      %v3381 = vunpack.c.l.b16 %v3029
      %v3382 = vunpack.c.l.b16 %v3030
      %v3383 = vunpack.c.l.b16 %v3031
      %v3384 = vunpack.c.l.b16 %v3032
      %v3385 = vunpack.c.l.b16 %v3033
      %v3386 = vunpack.c.l.b16 %v3034
      %v3387 = vunpack.c.l.b16 %v3035
      %v3388 = vunpack.c.l.b16 %v3036
      %v3389 = vunpack.c.l.b16 %v3037
      %v3390 = vunpack.c.l.b16 %v3038
      %v3391 = vunpack.c.l.b16 %v3039
      %v3392 = vunpack.c.l.b16 %v3040
      %v3393 = vunpack.c.l.b16 %v3041
      %v3394 = vunpack.c.l.b16 %v3042
      %v3395 = vunpack.c.l.b16 %v3043
      %v3396 = vunpack.c.l.b16 %v3044
      %v3397 = vunpack.c.l.b16 %v3045
      %v3398 = vunpack.c.l.b16 %v3046
      %v3399 = vunpack.c.l.b16 %v3047
      %v3400 = vunpack.c.l.b16 %v3048
      %v3401 = vunpack.c.l.b16 %v3049
      %v3402 = vunpack.c.l.b16 %v3050
      %v3403 = vunpack.c.l.b16 %v3051
      %v3404 = vpack.c.b16 %v3357, %v3356
      %v3405 = vpack.c.b16 %v3359, %v3358
      %v3406 = vpack.c.b16 %v3361, %v3360
      %v3407 = vpack.c.b16 %v3363, %v3362
      %v3408 = vpack.c.b16 %v3365, %v3364
      %v3409 = vpack.c.b16 %v3367, %v3366
      %v3410 = vpack.c.b16 %v3369, %v3368
      %v3411 = vpack.c.b16 %v3371, %v3370
      %v3412 = vpack.c.b16 %v3373, %v3372
      %v3413 = vpack.c.b16 %v3375, %v3374
      %v3414 = vpack.c.b16 %v3377, %v3376
      %v3415 = vpack.c.b16 %v3379, %v3378
      %v3416 = vpack.c.b16 %v3381, %v3380
      %v3417 = vpack.c.b16 %v3383, %v3382
      %v3418 = vpack.c.b16 %v3385, %v3384
      %v3419 = vpack.c.b16 %v3387, %v3386
      %v3420 = vpack.c.b16 %v3389, %v3388
      %v3421 = vpack.c.b16 %v3391, %v3390
      %v3422 = vpack.c.b16 %v3393, %v3392
      %v3423 = vpack.c.b16 %v3395, %v3394
      %v3424 = vpack.c.b16 %v3397, %v3396
      %v3425 = vpack.c.b16 %v3399, %v3398
      %v3426 = vpack.c.b16 %v3401, %v3400
      %v3427 = vpack.c.b16 %v3403, %v3402
      %3452 = vmatprep.subr.bf16.mxu0 0
      %3453 = vmatpush1.bf16.msra.mxu0 %v3411
      %3454 = vmatprep.subr.bf16.mxu0 0
      %3455 = vmatpush1.bf16.msra.mxu0 %v3410
      %3456 = vmatprep.subr.bf16.mxu0 0
      %3457 = vmatpush1.bf16.msra.mxu0 %v3409
      %3458 = vmatprep.subr.bf16.mxu0 0
      %3459 = vmatpush1.bf16.msra.mxu0 %v3408
      %3460 = vmatprep.subr.bf16.mxu0 0
      %3461 = vmatpush1.bf16.msra.mxu0 %v3407
      %3462 = vmatprep.subr.bf16.mxu0 0
      %3463 = vmatpush1.bf16.msra.mxu0 %v3406
      %3464 = vmatprep.subr.bf16.mxu0 0
      %3465 = vmatpush1.bf16.msra.mxu0 %v3405
      %3466 = vmatprep.subr.bf16.mxu0 0
      %3467 = vmatpush1.bf16.msra.mxu0 %v3404
      %3468 = vmatprep.subr.bf16.mxu0 0
      %3469 = vmatpush2.bf16.msra.mxu0 %v3419
      %3470 = vmatprep.subr.bf16.mxu0 0
      %3471 = vmatpush2.bf16.msra.mxu0 %v3418
      %3472 = vmatprep.subr.bf16.mxu0 0
      %3473 = vmatpush2.bf16.msra.mxu0 %v3417
      %3474 = vmatprep.subr.bf16.mxu0 0
      %3475 = vmatpush2.bf16.msra.mxu0 %v3416
      %3476 = vmatprep.subr.bf16.mxu0 0
      %3477 = vmatpush2.bf16.msra.mxu0 %v3415
      %3478 = vmatprep.subr.bf16.mxu0 0
      %3479 = vmatpush2.bf16.msra.mxu0 %v3414
      %3480 = vmatprep.subr.bf16.mxu0 0
      %3481 = vmatpush2.bf16.msra.mxu0 %v3413
      %3482 = vmatprep.subr.bf16.mxu0 0
      %3483 = vmatpush2.bf16.msra.mxu0 %v3412
      %3484 = vmatprep.mubr.bf16.mxu0 %v3213
      %3485 = vmatmul.mubr.bf16.gmra.mxu0 %v3212
      %v3486 = vpop.f32.mrf.mxu0
      %v3487 = vadd.f32 0.0, %v3486
      %v3488 = vpop.f32.mrf.mxu0
      %v3489 = vpop.f32.mrf.mxu0
      %v3490 = vadd.f32 0.0, %v3489
      %v3491 = vpop.f32.mrf.mxu0
      %3492 = vmatprep.mubr.bf16.mxu0 %v3216
      %3493 = vmatmul.mubr.bf16.gmra.mxu0 %v3215
      %v3494 = vpop.f32.mrf.mxu0
      %v3495 = vadd.f32 0.0, %v3494
      %v3496 = vpop.f32.mrf.mxu0
      %v3497 = vpop.f32.mrf.mxu0
      %v3498 = vadd.f32 0.0, %v3497
      %v3499 = vpop.f32.mrf.mxu0
      %3500 = vmatprep.mubr.bf16.mxu0 %v3219
      %3501 = vmatmul.mubr.bf16.gmra.mxu0 %v3218
      %v3502 = vpop.f32.mrf.mxu0
      %v3503 = vadd.f32 0.0, %v3502
      %v3504 = vpop.f32.mrf.mxu0
      %v3505 = vpop.f32.mrf.mxu0
      %v3506 = vadd.f32 0.0, %v3505
      %v3507 = vpop.f32.mrf.mxu0
      %3508 = vmatprep.mubr.bf16.mxu0 %v3222
      %3509 = vmatmul.mubr.bf16.gmra.mxu0 %v3221
      %v3510 = vpop.f32.mrf.mxu0
      %v3511 = vadd.f32 0.0, %v3510
      %v3512 = vpop.f32.mrf.mxu0
      %v3513 = vpop.f32.mrf.mxu0
      %v3514 = vadd.f32 0.0, %v3513
      %v3515 = vpop.f32.mrf.mxu0
      %3516 = vmatprep.mubr.bf16.mxu0 %v3225
      %3517 = vmatmul.mubr.bf16.gmra.mxu0 %v3224
      %v3518 = vpop.f32.mrf.mxu0
      %v3519 = vadd.f32 0.0, %v3518
      %v3520 = vpop.f32.mrf.mxu0
      %v3521 = vpop.f32.mrf.mxu0
      %v3522 = vadd.f32 0.0, %v3521
      %v3523 = vpop.f32.mrf.mxu0
      %3524 = vmatprep.mubr.bf16.mxu0 %v3228
      %3525 = vmatmul.mubr.bf16.gmra.mxu0 %v3227
      %v3526 = vpop.f32.mrf.mxu0
      %v3527 = vadd.f32 0.0, %v3526
      %v3528 = vpop.f32.mrf.mxu0
      %v3529 = vpop.f32.mrf.mxu0
      %v3530 = vadd.f32 0.0, %v3529
      %v3531 = vpop.f32.mrf.mxu0
      %3532 = vmatprep.mubr.bf16.mxu0 %v3231
      %3533 = vmatmul.mubr.bf16.gmra.mxu0 %v3230
      %v3534 = vpop.f32.mrf.mxu0
      %v3535 = vadd.f32 0.0, %v3534
      %v3536 = vpop.f32.mrf.mxu0
      %v3537 = vpop.f32.mrf.mxu0
      %v3538 = vadd.f32 0.0, %v3537
      %v3539 = vpop.f32.mrf.mxu0
      %3540 = vmatprep.mubr.bf16.mxu0 %v3234
      %3541 = vmatmul.mubr.bf16.gmra.mxu0 %v3233
      %v3542 = vpop.f32.mrf.mxu0
      %v3543 = vadd.f32 0.0, %v3542
      %v3544 = vpop.f32.mrf.mxu0
      %v3545 = vpop.f32.mrf.mxu0
      %v3546 = vadd.f32 0.0, %v3545
      %v3547 = vpop.f32.mrf.mxu0
      %3548 = vmatprep.mubr.bf16.mxu0 %v3237
      %3549 = vmatmul.mubr.bf16.gmra.mxu0 %v3236
      %v3550 = vpop.f32.mrf.mxu0
      %v3551 = vadd.f32 0.0, %v3550
      %v3552 = vpop.f32.mrf.mxu0
      %v3553 = vpop.f32.mrf.mxu0
      %v3554 = vadd.f32 0.0, %v3553
      %v3555 = vpop.f32.mrf.mxu0
      %3556 = vmatprep.mubr.bf16.mxu0 %v3240
      %3557 = vmatmul.mubr.bf16.gmra.mxu0 %v3239
      %v3558 = vpop.f32.mrf.mxu0
      %v3559 = vadd.f32 0.0, %v3558
      %v3560 = vpop.f32.mrf.mxu0
      %v3561 = vpop.f32.mrf.mxu0
      %v3562 = vadd.f32 0.0, %v3561
      %v3563 = vpop.f32.mrf.mxu0
      %3564 = vmatprep.mubr.bf16.mxu0 %v3243
      %3565 = vmatmul.mubr.bf16.gmra.mxu0 %v3242
      %v3566 = vpop.f32.mrf.mxu0
      %v3567 = vadd.f32 0.0, %v3566
      %v3568 = vpop.f32.mrf.mxu0
      %v3569 = vpop.f32.mrf.mxu0
      %v3570 = vadd.f32 0.0, %v3569
      %v3571 = vpop.f32.mrf.mxu0
      %3572 = vmatprep.mubr.bf16.mxu0 %v3246
      %3573 = vmatmul.mubr.bf16.gmra.mxu0 %v3245
      %v3574 = vpop.f32.mrf.mxu0
      %v3575 = vadd.f32 0.0, %v3574
      %v3576 = vpop.f32.mrf.mxu0
      %v3577 = vpop.f32.mrf.mxu0
      %v3578 = vadd.f32 0.0, %v3577
      %v3579 = vpop.f32.mrf.mxu0
      %3580 = vmatprep.mubr.bf16.mxu0 %v3249
      %3581 = vmatmul.mubr.bf16.gmra.mxu0 %v3248
      %v3582 = vpop.f32.mrf.mxu0
      %v3583 = vadd.f32 0.0, %v3582
      %v3584 = vpop.f32.mrf.mxu0
      %v3585 = vpop.f32.mrf.mxu0
      %v3586 = vadd.f32 0.0, %v3585
      %v3587 = vpop.f32.mrf.mxu0
      %3588 = vmatprep.mubr.bf16.mxu0 %v3252
      %3589 = vmatmul.mubr.bf16.gmra.mxu0 %v3251
      %v3590 = vpop.f32.mrf.mxu0
      %v3591 = vadd.f32 0.0, %v3590
      %v3592 = vpop.f32.mrf.mxu0
      %v3593 = vpop.f32.mrf.mxu0
      %v3594 = vadd.f32 0.0, %v3593
      %v3595 = vpop.f32.mrf.mxu0
      %3596 = vmatprep.mubr.bf16.mxu0 %v3255
      %3597 = vmatmul.mubr.bf16.gmra.mxu0 %v3254
      %v3598 = vpop.f32.mrf.mxu0
      %v3599 = vadd.f32 0.0, %v3598
      %v3600 = vpop.f32.mrf.mxu0
      %v3601 = vpop.f32.mrf.mxu0
      %v3602 = vadd.f32 0.0, %v3601
      %v3603 = vpop.f32.mrf.mxu0
      %3604 = vmatprep.mubr.bf16.mxu0 %v3258
      %3605 = vmatmul.mubr.bf16.gmra.mxu0 %v3257
      %v3606 = vpop.f32.mrf.mxu0
      %v3607 = vadd.f32 0.0, %v3606
      %v3608 = vpop.f32.mrf.mxu0
      %v3609 = vpop.f32.mrf.mxu0
      %v3610 = vadd.f32 0.0, %v3609
      %v3611 = vpop.f32.mrf.mxu0
      %3612 = vdwg.mxu0
      %3613 = vmatprep.subr.bf16.mxu0 0
      %3614 = vmatpush1.bf16.msra.mxu0 %v3427
      %3615 = vmatprep.subr.bf16.mxu0 0
      %3616 = vmatpush1.bf16.msra.mxu0 %v3426
      %3617 = vmatprep.subr.bf16.mxu0 0
      %3618 = vmatpush1.bf16.msra.mxu0 %v3425
      %3619 = vmatprep.subr.bf16.mxu0 0
      %3620 = vmatpush1.bf16.msra.mxu0 %v3424
      %3621 = vmatprep.subr.bf16.mxu0 0
      %3622 = vmatpush1.bf16.msra.mxu0 %v3423
      %3623 = vmatprep.subr.bf16.mxu0 0
      %3624 = vmatpush1.bf16.msra.mxu0 %v3422
      %3625 = vmatprep.subr.bf16.mxu0 0
      %3626 = vmatpush1.bf16.msra.mxu0 %v3421
      %3627 = vmatprep.subr.bf16.mxu0 0
      %3628 = vmatpush1.bf16.msra.mxu0 %v3420
      %3629 = vmatprep.subr.bf16.mxu0 0
      %3630 = vmatpush2.bf16.msra.mxu0 0
      %3631 = vmatprep.subr.bf16.mxu0 0
      %3632 = vmatpush2.bf16.msra.mxu0 0
      %3633 = vmatprep.subr.bf16.mxu0 0
      %3634 = vmatpush2.bf16.msra.mxu0 0
      %3635 = vmatprep.subr.bf16.mxu0 0
      %3636 = vmatpush2.bf16.msra.mxu0 0
      %3637 = vmatprep.subr.bf16.mxu0 0
      %3638 = vmatpush2.bf16.msra.mxu0 0
      %3639 = vmatprep.subr.bf16.mxu0 0
      %3640 = vmatpush2.bf16.msra.mxu0 0
      %3641 = vmatprep.subr.bf16.mxu0 0
      %3642 = vmatpush2.bf16.msra.mxu0 0
      %3643 = vmatprep.subr.bf16.mxu0 0
      %3644 = vmatpush2.bf16.msra.mxu0 0
      %3645 = vmatprep.mubr.bf16.mxu0 0
      %3646 = vmatmul.mubr.bf16.gmra.mxu0 %v3214
      %v3647 = vpop.f32.mrf.mxu0
      %v3648 = vadd.f32 %v3487, %v3647
      %v3649 = vpop.f32.mrf.mxu0
      %v3650 = vpop.f32.mrf.mxu0
      %v3651 = vadd.f32 %v3490, %v3650
      %v3652 = vpop.f32.mrf.mxu0
      %3653 = vmatprep.mubr.bf16.mxu0 0
      %3654 = vmatmul.mubr.bf16.gmra.mxu0 %v3217
      %v3655 = vpop.f32.mrf.mxu0
      %v3656 = vadd.f32 %v3495, %v3655
      %v3657 = vpop.f32.mrf.mxu0
      %v3658 = vpop.f32.mrf.mxu0
      %v3659 = vadd.f32 %v3498, %v3658
      %v3660 = vpop.f32.mrf.mxu0
      %3661 = vmatprep.mubr.bf16.mxu0 0
      %3662 = vmatmul.mubr.bf16.gmra.mxu0 %v3220
      %v3663 = vpop.f32.mrf.mxu0
      %v3664 = vadd.f32 %v3503, %v3663
      %v3665 = vpop.f32.mrf.mxu0
      %v3666 = vpop.f32.mrf.mxu0
      %v3667 = vadd.f32 %v3506, %v3666
      %v3668 = vpop.f32.mrf.mxu0
      %3669 = vmatprep.mubr.bf16.mxu0 0
      %3670 = vmatmul.mubr.bf16.gmra.mxu0 %v3223
      %v3671 = vpop.f32.mrf.mxu0
      %v3672 = vadd.f32 %v3511, %v3671
      %v3673 = vpop.f32.mrf.mxu0
      %v3674 = vpop.f32.mrf.mxu0
      %v3675 = vadd.f32 %v3514, %v3674
      %v3676 = vpop.f32.mrf.mxu0
      %3677 = vmatprep.mubr.bf16.mxu0 0
      %3678 = vmatmul.mubr.bf16.gmra.mxu0 %v3226
      %v3679 = vpop.f32.mrf.mxu0
      %v3680 = vadd.f32 %v3519, %v3679
      %v3681 = vpop.f32.mrf.mxu0
      %v3682 = vpop.f32.mrf.mxu0
      %v3683 = vadd.f32 %v3522, %v3682
      %v3684 = vpop.f32.mrf.mxu0
      %3685 = vmatprep.mubr.bf16.mxu0 0
      %3686 = vmatmul.mubr.bf16.gmra.mxu0 %v3229
      %v3687 = vpop.f32.mrf.mxu0
      %v3688 = vadd.f32 %v3527, %v3687
      %v3689 = vpop.f32.mrf.mxu0
      %v3690 = vpop.f32.mrf.mxu0
      %v3691 = vadd.f32 %v3530, %v3690
      %v3692 = vpop.f32.mrf.mxu0
      %3693 = vmatprep.mubr.bf16.mxu0 0
      %3694 = vmatmul.mubr.bf16.gmra.mxu0 %v3232
      %v3695 = vpop.f32.mrf.mxu0
      %v3696 = vadd.f32 %v3535, %v3695
      %v3697 = vpop.f32.mrf.mxu0
      %v3698 = vpop.f32.mrf.mxu0
      %v3699 = vadd.f32 %v3538, %v3698
      %v3700 = vpop.f32.mrf.mxu0
      %3701 = vmatprep.mubr.bf16.mxu0 0
      %3702 = vmatmul.mubr.bf16.gmra.mxu0 %v3235
      %v3703 = vpop.f32.mrf.mxu0
      %v3704 = vadd.f32 %v3543, %v3703
      %v3705 = vpop.f32.mrf.mxu0
      %v3706 = vpop.f32.mrf.mxu0
      %v3707 = vadd.f32 %v3546, %v3706
      %v3708 = vpop.f32.mrf.mxu0
      %3709 = vmatprep.mubr.bf16.mxu0 0
      %3710 = vmatmul.mubr.bf16.gmra.mxu0 %v3238
      %v3711 = vpop.f32.mrf.mxu0
      %v3712 = vadd.f32 %v3551, %v3711
      %v3713 = vpop.f32.mrf.mxu0
      %v3714 = vpop.f32.mrf.mxu0
      %v3715 = vadd.f32 %v3554, %v3714
      %v3716 = vpop.f32.mrf.mxu0
      %3717 = vmatprep.mubr.bf16.mxu0 0
      %3718 = vmatmul.mubr.bf16.gmra.mxu0 %v3241
      %v3719 = vpop.f32.mrf.mxu0
      %v3720 = vadd.f32 %v3559, %v3719
      %v3721 = vpop.f32.mrf.mxu0
      %v3722 = vpop.f32.mrf.mxu0
      %v3723 = vadd.f32 %v3562, %v3722
      %v3724 = vpop.f32.mrf.mxu0
      %3725 = vmatprep.mubr.bf16.mxu0 0
      %3726 = vmatmul.mubr.bf16.gmra.mxu0 %v3244
      %v3727 = vpop.f32.mrf.mxu0
      %v3728 = vadd.f32 %v3567, %v3727
      %v3729 = vpop.f32.mrf.mxu0
      %v3730 = vpop.f32.mrf.mxu0
      %v3731 = vadd.f32 %v3570, %v3730
      %v3732 = vpop.f32.mrf.mxu0
      %3733 = vmatprep.mubr.bf16.mxu0 0
      %3734 = vmatmul.mubr.bf16.gmra.mxu0 %v3247
      %v3735 = vpop.f32.mrf.mxu0
      %v3736 = vadd.f32 %v3575, %v3735
      %v3737 = vpop.f32.mrf.mxu0
      %v3738 = vpop.f32.mrf.mxu0
      %v3739 = vadd.f32 %v3578, %v3738
      %v3740 = vpop.f32.mrf.mxu0
      %3741 = vmatprep.mubr.bf16.mxu0 0
      %3742 = vmatmul.mubr.bf16.gmra.mxu0 %v3250
      %v3743 = vpop.f32.mrf.mxu0
      %v3744 = vadd.f32 %v3583, %v3743
      %v3745 = vpop.f32.mrf.mxu0
      %v3746 = vpop.f32.mrf.mxu0
      %v3747 = vadd.f32 %v3586, %v3746
      %v3748 = vpop.f32.mrf.mxu0
      %3749 = vmatprep.mubr.bf16.mxu0 0
      %3750 = vmatmul.mubr.bf16.gmra.mxu0 %v3253
      %v3751 = vpop.f32.mrf.mxu0
      %v3752 = vadd.f32 %v3591, %v3751
      %v3753 = vpop.f32.mrf.mxu0
      %v3754 = vpop.f32.mrf.mxu0
      %v3755 = vadd.f32 %v3594, %v3754
      %v3756 = vpop.f32.mrf.mxu0
      %3757 = vmatprep.mubr.bf16.mxu0 0
      %3758 = vmatmul.mubr.bf16.gmra.mxu0 %v3256
      %v3759 = vpop.f32.mrf.mxu0
      %v3760 = vadd.f32 %v3599, %v3759
      %v3761 = vpop.f32.mrf.mxu0
      %v3762 = vpop.f32.mrf.mxu0
      %v3763 = vadd.f32 %v3602, %v3762
      %v3764 = vpop.f32.mrf.mxu0
      %3765 = vmatprep.mubr.bf16.mxu0 0
      %3766 = vmatmul.mubr.bf16.gmra.mxu0 %v3259
      %v3767 = vpop.f32.mrf.mxu0
      %v3768 = vadd.f32 %v3607, %v3767
      %v3769 = vpop.f32.mrf.mxu0
      %v3770 = vpop.f32.mrf.mxu0
      %v3771 = vadd.f32 %v3610, %v3770
      %v3772 = vpop.f32.mrf.mxu0
      %3773 = vdwg.mxu0
      %v3774 = vld [vmem:[#allocation4] sm:$0xff]
      %v3775 = vld [vmem:[#allocation4 + $0x8] sm:$0xff]
      %v3776 = vld [vmem:[#allocation4 + $0x10] sm:$0xff]
      %v3777 = vld [vmem:[#allocation4 + $0x18] sm:$0xff]
      %v3778 = vld [vmem:[#allocation4 + $0x20] sm:$0xff]
      %v3779 = vld [vmem:[#allocation4 + $0x28] sm:$0xff]
      %v3780 = vld [vmem:[#allocation4 + $0x30] sm:$0xff]
      %v3781 = vld [vmem:[#allocation4 + $0x38] sm:$0xff]
      %v3782 = vld [vmem:[#allocation4 + $0x40] sm:$0xff]
      %v3783 = vld [vmem:[#allocation4 + $0x48] sm:$0xff]
      %v3784 = vld [vmem:[#allocation4 + $0x50] sm:$0xff]
      %v3785 = vld [vmem:[#allocation4 + $0x58] sm:$0xff]
      %v3786 = vld [vmem:[#allocation4 + $0x60] sm:$0xff]
      %v3787 = vld [vmem:[#allocation4 + $0x68] sm:$0xff]
      %v3788 = vld [vmem:[#allocation4 + $0x70] sm:$0xff]
      %v3789 = vld [vmem:[#allocation4 + $0x78] sm:$0xff]
      %v3790 = vld [vmem:[#allocation4 + $0x80] sm:$0xff]
      %v3791 = vld [vmem:[#allocation4 + $0x88] sm:$0xff]
      %v3792 = vld [vmem:[#allocation4 + $0x90] sm:$0xff]
      %v3793 = vld [vmem:[#allocation4 + $0x98] sm:$0xff]
      %v3794 = vld [vmem:[#allocation4 + $0xa0] sm:$0xff]
      %v3795 = vld [vmem:[#allocation4 + $0xa8] sm:$0xff]
      %v3796 = vld [vmem:[#allocation4 + $0xb0] sm:$0xff]
      %v3797 = vld [vmem:[#allocation4 + $0xb8] sm:$0xff]
      %v3798 = vld [vmem:[#allocation4 + $0xc0] sm:$0xff]
      %v3799 = vld [vmem:[#allocation4 + $0xc8] sm:$0xff]
      %v3800 = vld [vmem:[#allocation4 + $0xd0] sm:$0xff]
      %v3801 = vld [vmem:[#allocation4 + $0xd8] sm:$0xff]
      %v3802 = vld [vmem:[#allocation4 + $0xe0] sm:$0xff]
      %v3803 = vld [vmem:[#allocation4 + $0xe8] sm:$0xff]
      %v3804 = vld [vmem:[#allocation4 + $0xf0] sm:$0xff]
      %v3805 = vld [vmem:[#allocation4 + $0xf8] sm:$0xff]
      %v3806 = vadd.f32 %v3774, %v3648
      %v3807 = vadd.f32 %v3775, %v3651
      %v3808 = vadd.f32 %v3776, %v3656
      %v3809 = vadd.f32 %v3777, %v3659
      %v3810 = vadd.f32 %v3778, %v3664
      %v3811 = vadd.f32 %v3779, %v3667
      %v3812 = vadd.f32 %v3780, %v3672
      %v3813 = vadd.f32 %v3781, %v3675
      %v3814 = vadd.f32 %v3782, %v3680
      %v3815 = vadd.f32 %v3783, %v3683
      %v3816 = vadd.f32 %v3784, %v3688
      %v3817 = vadd.f32 %v3785, %v3691
      %v3818 = vadd.f32 %v3786, %v3696
      %v3819 = vadd.f32 %v3787, %v3699
      %v3820 = vadd.f32 %v3788, %v3704
      %v3821 = vadd.f32 %v3789, %v3707
      %v3822 = vadd.f32 %v3790, %v3712
      %v3823 = vadd.f32 %v3791, %v3715
      %v3824 = vadd.f32 %v3792, %v3720
      %v3825 = vadd.f32 %v3793, %v3723
      %v3826 = vadd.f32 %v3794, %v3728
      %v3827 = vadd.f32 %v3795, %v3731
      %v3828 = vadd.f32 %v3796, %v3736
      %v3829 = vadd.f32 %v3797, %v3739
      %v3830 = vadd.f32 %v3798, %v3744
      %v3831 = vadd.f32 %v3799, %v3747
      %v3832 = vadd.f32 %v3800, %v3752
      %v3833 = vadd.f32 %v3801, %v3755
      %v3834 = vadd.f32 %v3802, %v3760
      %v3835 = vadd.f32 %v3803, %v3763
      %v3836 = vadd.f32 %v3804, %v3768
      %v3837 = vadd.f32 %v3805, %v3771
      %3838 = vst [vmem:[#allocation4] sm:$0xff] %v3806
      %3839 = vst [vmem:[#allocation4 + $0x8] sm:$0xff] %v3807
      %3840 = vst [vmem:[#allocation4 + $0x10] sm:$0xff] %v3808
      %3841 = vst [vmem:[#allocation4 + $0x18] sm:$0xff] %v3809
      %3842 = vst [vmem:[#allocation4 + $0x20] sm:$0xff] %v3810
      %3843 = vst [vmem:[#allocation4 + $0x28] sm:$0xff] %v3811
      %3844 = vst [vmem:[#allocation4 + $0x30] sm:$0xff] %v3812
      %3845 = vst [vmem:[#allocation4 + $0x38] sm:$0xff] %v3813
      %3846 = vst [vmem:[#allocation4 + $0x40] sm:$0xff] %v3814
      %3847 = vst [vmem:[#allocation4 + $0x48] sm:$0xff] %v3815
      %3848 = vst [vmem:[#allocation4 + $0x50] sm:$0xff] %v3816
      %3849 = vst [vmem:[#allocation4 + $0x58] sm:$0xff] %v3817
      %3850 = vst [vmem:[#allocation4 + $0x60] sm:$0xff] %v3818
      %3851 = vst [vmem:[#allocation4 + $0x68] sm:$0xff] %v3819
      %3852 = vst [vmem:[#allocation4 + $0x70] sm:$0xff] %v3820
      %3853 = vst [vmem:[#allocation4 + $0x78] sm:$0xff] %v3821
      %3854 = vst [vmem:[#allocation4 + $0x80] sm:$0xff] %v3822
      %3855 = vst [vmem:[#allocation4 + $0x88] sm:$0xff] %v3823
      %3856 = vst [vmem:[#allocation4 + $0x90] sm:$0xff] %v3824
      %3857 = vst [vmem:[#allocation4 + $0x98] sm:$0xff] %v3825
      %3858 = vst [vmem:[#allocation4 + $0xa0] sm:$0xff] %v3826
      %3859 = vst [vmem:[#allocation4 + $0xa8] sm:$0xff] %v3827
      %3860 = vst [vmem:[#allocation4 + $0xb0] sm:$0xff] %v3828
      %3861 = vst [vmem:[#allocation4 + $0xb8] sm:$0xff] %v3829
      %3862 = vst [vmem:[#allocation4 + $0xc0] sm:$0xff] %v3830
      %3863 = vst [vmem:[#allocation4 + $0xc8] sm:$0xff] %v3831
      %3864 = vst [vmem:[#allocation4 + $0xd0] sm:$0xff] %v3832
      %3865 = vst [vmem:[#allocation4 + $0xd8] sm:$0xff] %v3833
      %3866 = vst [vmem:[#allocation4 + $0xe0] sm:$0xff] %v3834
      %3867 = vst [vmem:[#allocation4 + $0xe8] sm:$0xff] %v3835
      %3868 = vst [vmem:[#allocation4 + $0xf0] sm:$0xff] %v3836
      %3869 = vst [vmem:[#allocation4 + $0xf8] sm:$0xff] %v3837
      %v3870 = vld [vmem:[#allocation4] sm:$0xff]
      %v3871 = vld [vmem:[#allocation4 + $0x8] sm:$0xff]
      %v3872 = vld [vmem:[#allocation4 + $0x10] sm:$0xff]
      %v3873 = vld [vmem:[#allocation4 + $0x18] sm:$0xff]
      %v3874 = vld [vmem:[#allocation4 + $0x20] sm:$0xff]
      %v3875 = vld [vmem:[#allocation4 + $0x28] sm:$0xff]
      %v3876 = vld [vmem:[#allocation4 + $0x30] sm:$0xff]
      %v3877 = vld [vmem:[#allocation4 + $0x38] sm:$0xff]
      %v3878 = vld [vmem:[#allocation4 + $0x40] sm:$0xff]
      %v3879 = vld [vmem:[#allocation4 + $0x48] sm:$0xff]
      %v3880 = vld [vmem:[#allocation4 + $0x50] sm:$0xff]
      %v3881 = vld [vmem:[#allocation4 + $0x58] sm:$0xff]
      %v3882 = vld [vmem:[#allocation4 + $0x60] sm:$0xff]
      %v3883 = vld [vmem:[#allocation4 + $0x68] sm:$0xff]
      %v3884 = vld [vmem:[#allocation4 + $0x70] sm:$0xff]
      %v3885 = vld [vmem:[#allocation4 + $0x78] sm:$0xff]
      %v3886 = vld [vmem:[#allocation4 + $0x80] sm:$0xff]
      %v3887 = vld [vmem:[#allocation4 + $0x88] sm:$0xff]
      %v3888 = vld [vmem:[#allocation4 + $0x90] sm:$0xff]
      %v3889 = vld [vmem:[#allocation4 + $0x98] sm:$0xff]
      %v3890 = vld [vmem:[#allocation4 + $0xa0] sm:$0xff]
      %v3891 = vld [vmem:[#allocation4 + $0xa8] sm:$0xff]
      %v3892 = vld [vmem:[#allocation4 + $0xb0] sm:$0xff]
      %v3893 = vld [vmem:[#allocation4 + $0xb8] sm:$0xff]
      %v3894 = vld [vmem:[#allocation4 + $0xc0] sm:$0xff]
      %v3895 = vld [vmem:[#allocation4 + $0xc8] sm:$0xff]
      %v3896 = vld [vmem:[#allocation4 + $0xd0] sm:$0xff]
      %v3897 = vld [vmem:[#allocation4 + $0xd8] sm:$0xff]
      %v3898 = vld [vmem:[#allocation4 + $0xe0] sm:$0xff]
      %v3899 = vld [vmem:[#allocation4 + $0xe8] sm:$0xff]
      %v3900 = vld [vmem:[#allocation4 + $0xf0] sm:$0xff]
      %v3901 = vld [vmem:[#allocation4 + $0xf8] sm:$0xff]
      %v3902 = vpack.c.bf16 %v3871, %v3870
      %v3903 = vpack.c.bf16 %v3873, %v3872
      %v3904 = vpack.c.bf16 %v3875, %v3874
      %v3905 = vpack.c.bf16 %v3877, %v3876
      %v3906 = vpack.c.bf16 %v3879, %v3878
      %v3907 = vpack.c.bf16 %v3881, %v3880
      %v3908 = vpack.c.bf16 %v3883, %v3882
      %v3909 = vpack.c.bf16 %v3885, %v3884
      %v3910 = vpack.c.bf16 %v3887, %v3886
      %v3911 = vpack.c.bf16 %v3889, %v3888
      %v3912 = vpack.c.bf16 %v3891, %v3890
      %v3913 = vpack.c.bf16 %v3893, %v3892
      %v3914 = vpack.c.bf16 %v3895, %v3894
      %v3915 = vpack.c.bf16 %v3897, %v3896
      %v3916 = vpack.c.bf16 %v3899, %v3898
      %v3917 = vpack.c.bf16 %v3901, %v3900
      %v3934 = vunpack.c.l.b16 %v3902
      %v3935 = vunpack.c.h.b16 %v3902
      %v3936 = vunpack.c.l.b16 %v3903
      %v3937 = vunpack.c.h.b16 %v3903
      %v3938 = vunpack.c.l.b16 %v3904
      %v3939 = vunpack.c.h.b16 %v3904
      %v3940 = vunpack.c.l.b16 %v3905
      %v3941 = vunpack.c.h.b16 %v3905
      %v3942 = vunpack.c.l.b16 %v3906
      %v3943 = vunpack.c.h.b16 %v3906
      %v3944 = vunpack.c.l.b16 %v3907
      %v3945 = vunpack.c.h.b16 %v3907
      %v3946 = vunpack.c.l.b16 %v3908
      %v3947 = vunpack.c.h.b16 %v3908
      %v3948 = vunpack.c.l.b16 %v3909
      %v3949 = vunpack.c.h.b16 %v3909
      %v3950 = vunpack.c.l.b16 %v3910
      %v3951 = vunpack.c.h.b16 %v3910
      %v3952 = vunpack.c.l.b16 %v3911
      %v3953 = vunpack.c.h.b16 %v3911
      %v3954 = vunpack.c.l.b16 %v3912
      %v3955 = vunpack.c.h.b16 %v3912
      %v3956 = vunpack.c.l.b16 %v3913
      %v3957 = vunpack.c.h.b16 %v3913
      %v3958 = vunpack.c.l.b16 %v3914
      %v3959 = vunpack.c.h.b16 %v3914
      %v3960 = vunpack.c.l.b16 %v3915
      %v3961 = vunpack.c.h.b16 %v3915
      %v3962 = vunpack.c.l.b16 %v3916
      %v3963 = vunpack.c.h.b16 %v3916
      %v3964 = vunpack.c.l.b16 %v3917
      %v3965 = vunpack.c.h.b16 %v3917
      %v3966 = vpack.c.b16 %v3934, %v3934
      %v3967 = vpack.c.b16 %v3935, %v3935
      %v3968 = vpack.c.b16 %v3936, %v3936
      %v3969 = vpack.c.b16 %v3937, %v3937
      %v3970 = vpack.c.b16 %v3938, %v3938
      %v3971 = vpack.c.b16 %v3939, %v3939
      %v3972 = vpack.c.b16 %v3940, %v3940
      %v3973 = vpack.c.b16 %v3941, %v3941
      %v3974 = vpack.c.b16 %v3942, %v3942
      %v3975 = vpack.c.b16 %v3943, %v3943
      %v3976 = vpack.c.b16 %v3944, %v3944
      %v3977 = vpack.c.b16 %v3945, %v3945
      %v3978 = vpack.c.b16 %v3946, %v3946
      %v3979 = vpack.c.b16 %v3947, %v3947
      %v3980 = vpack.c.b16 %v3948, %v3948
      %v3981 = vpack.c.b16 %v3949, %v3949
      %v3982 = vpack.c.b16 %v3950, %v3950
      %v3983 = vpack.c.b16 %v3951, %v3951
      %v3984 = vpack.c.b16 %v3952, %v3952
      %v3985 = vpack.c.b16 %v3953, %v3953
      %v3986 = vpack.c.b16 %v3954, %v3954
      %v3987 = vpack.c.b16 %v3955, %v3955
      %v3988 = vpack.c.b16 %v3956, %v3956
      %v3989 = vpack.c.b16 %v3957, %v3957
      %v3990 = vpack.c.b16 %v3958, %v3958
      %v3991 = vpack.c.b16 %v3959, %v3959
      %v3992 = vpack.c.b16 %v3960, %v3960
      %v3993 = vpack.c.b16 %v3961, %v3961
      %v3994 = vpack.c.b16 %v3962, %v3962
      %v3995 = vpack.c.b16 %v3963, %v3963
      %v3996 = vpack.c.b16 %v3964, %v3964
      %v3997 = vpack.c.b16 %v3965, %v3965
      %4030 = vst [vmem:[%s333] sm:$0xf] %v3966
      %4031 = vst [vmem:[%s333 + $0x4] sm:$0xf] %v3967
      %4032 = vst [vmem:[%s333 + $0x8] sm:$0xf] %v3968
      %4033 = vst [vmem:[%s333 + $0xc] sm:$0xf] %v3969
      %4034 = vst [vmem:[%s333 + $0x10] sm:$0xf] %v3970
      %4035 = vst [vmem:[%s333 + $0x14] sm:$0xf] %v3971
      %4036 = vst [vmem:[%s333 + $0x18] sm:$0xf] %v3972
      %4037 = vst [vmem:[%s333 + $0x1c] sm:$0xf] %v3973
      %4038 = vst [vmem:[%s333 + $0x20] sm:$0xf] %v3974
      %4039 = vst [vmem:[%s333 + $0x24] sm:$0xf] %v3975
      %4040 = vst [vmem:[%s333 + $0x28] sm:$0xf] %v3976
      %4041 = vst [vmem:[%s333 + $0x2c] sm:$0xf] %v3977
      %4042 = vst [vmem:[%s333 + $0x30] sm:$0xf] %v3978
      %4043 = vst [vmem:[%s333 + $0x34] sm:$0xf] %v3979
      %4044 = vst [vmem:[%s333 + $0x38] sm:$0xf] %v3980
      %4045 = vst [vmem:[%s333 + $0x3c] sm:$0xf] %v3981
      %4046 = vst [vmem:[%s333 + $0x40] sm:$0xf] %v3982
      %4047 = vst [vmem:[%s333 + $0x44] sm:$0xf] %v3983
      %4048 = vst [vmem:[%s333 + $0x48] sm:$0xf] %v3984
      %4049 = vst [vmem:[%s333 + $0x4c] sm:$0xf] %v3985
      %4050 = vst [vmem:[%s333 + $0x50] sm:$0xf] %v3986
      %4051 = vst [vmem:[%s333 + $0x54] sm:$0xf] %v3987
      %4052 = vst [vmem:[%s333 + $0x58] sm:$0xf] %v3988
      %4053 = vst [vmem:[%s333 + $0x5c] sm:$0xf] %v3989
      %4054 = vst [vmem:[%s333 + $0x60] sm:$0xf] %v3990
      %4055 = vst [vmem:[%s333 + $0x64] sm:$0xf] %v3991
      %4056 = vst [vmem:[%s333 + $0x68] sm:$0xf] %v3992
      %4057 = vst [vmem:[%s333 + $0x6c] sm:$0xf] %v3993
      %4058 = vst [vmem:[%s333 + $0x70] sm:$0xf] %v3994
      %4059 = vst [vmem:[%s333 + $0x74] sm:$0xf] %v3995
      %4060 = vst [vmem:[%s333 + $0x78] sm:$0xf] %v3996
      %4061 = vst [vmem:[%s333 + $0x7c] sm:$0xf] %v3997
      %v4062 = vadd.f32 %v3870, %v3871
      %v4063 = vadd.f32 %v4062, %v3872
      %v4064 = vadd.f32 %v4063, %v3873
      %v4065 = vadd.f32 %v4064, %v3874
      %v4066 = vadd.f32 %v4065, %v3875
      %v4067 = vadd.f32 %v4066, %v3876
      %v4068 = vadd.f32 %v4067, %v3877
      %v4069 = vadd.f32 %v4068, %v3878
      %v4070 = vadd.f32 %v4069, %v3879
      %v4071 = vadd.f32 %v4070, %v3880
      %v4072 = vadd.f32 %v4071, %v3881
      %v4073 = vadd.f32 %v4072, %v3882
      %v4074 = vadd.f32 %v4073, %v3883
      %v4075 = vadd.f32 %v4074, %v3884
      %v4076 = vadd.f32 %v4075, %v3885
      %v4077 = vadd.f32 %v4076, %v3886
      %v4078 = vadd.f32 %v4077, %v3887
      %v4079 = vadd.f32 %v4078, %v3888
      %v4080 = vadd.f32 %v4079, %v3889
      %v4081 = vadd.f32 %v4080, %v3890
      %v4082 = vadd.f32 %v4081, %v3891
      %v4083 = vadd.f32 %v4082, %v3892
      %v4084 = vadd.f32 %v4083, %v3893
      %v4085 = vadd.f32 %v4084, %v3894
      %v4086 = vadd.f32 %v4085, %v3895
      %v4087 = vadd.f32 %v4086, %v3896
      %v4088 = vadd.f32 %v4087, %v3897
      %v4089 = vadd.f32 %v4088, %v3898
      %v4090 = vadd.f32 %v4089, %v3899
      %v4091 = vadd.f32 %v4090, %v3900
      %v4092 = vadd.f32 %v4091, %v3901
      %v4093 = vrot.slane %v4092, 4
      %v4094 = vadd.f32 %v4092, %v4093
      %v4095 = vrot.slane %v4094, 2
      %v4096 = vadd.f32 %v4094, %v4095
      %v4097 = vrot.slane %v4096, 1
      %v4098 = vadd.f32 %v4096, %v4097
      %4099 = vst [vmem:[%s336] sm:$0x1] %v4098
      %v4100 = vmul.f32 %v3870, %v3870
      %v4101 = vmul.f32 %v3871, %v3871
      %v4102 = vmul.f32 %v3872, %v3872
      %v4103 = vmul.f32 %v3873, %v3873
      %v4104 = vmul.f32 %v3874, %v3874
      %v4105 = vmul.f32 %v3875, %v3875
      %v4106 = vmul.f32 %v3876, %v3876
      %v4107 = vmul.f32 %v3877, %v3877
      %v4108 = vmul.f32 %v3878, %v3878
      %v4109 = vmul.f32 %v3879, %v3879
      %v4110 = vmul.f32 %v3880, %v3880
      %v4111 = vmul.f32 %v3881, %v3881
      %v4112 = vmul.f32 %v3882, %v3882
      %v4113 = vmul.f32 %v3883, %v3883
      %v4114 = vmul.f32 %v3884, %v3884
      %v4115 = vmul.f32 %v3885, %v3885
      %v4116 = vmul.f32 %v3886, %v3886
      %v4117 = vmul.f32 %v3887, %v3887
      %v4118 = vmul.f32 %v3888, %v3888
      %v4119 = vmul.f32 %v3889, %v3889
      %v4120 = vmul.f32 %v3890, %v3890
      %v4121 = vmul.f32 %v3891, %v3891
      %v4122 = vmul.f32 %v3892, %v3892
      %v4123 = vmul.f32 %v3893, %v3893
      %v4124 = vmul.f32 %v3894, %v3894
      %v4125 = vmul.f32 %v3895, %v3895
      %v4126 = vmul.f32 %v3896, %v3896
      %v4127 = vmul.f32 %v3897, %v3897
      %v4128 = vmul.f32 %v3898, %v3898
      %v4129 = vmul.f32 %v3899, %v3899
      %v4130 = vmul.f32 %v3900, %v3900
      %v4131 = vmul.f32 %v3901, %v3901
      %v4132 = vadd.f32 %v4100, %v4101
      %v4133 = vadd.f32 %v4132, %v4102
      %v4134 = vadd.f32 %v4133, %v4103
      %v4135 = vadd.f32 %v4134, %v4104
      %v4136 = vadd.f32 %v4135, %v4105
      %v4137 = vadd.f32 %v4136, %v4106
      %v4138 = vadd.f32 %v4137, %v4107
      %v4139 = vadd.f32 %v4138, %v4108
      %v4140 = vadd.f32 %v4139, %v4109
      %v4141 = vadd.f32 %v4140, %v4110
      %v4142 = vadd.f32 %v4141, %v4111
      %v4143 = vadd.f32 %v4142, %v4112
      %v4144 = vadd.f32 %v4143, %v4113
      %v4145 = vadd.f32 %v4144, %v4114
      %v4146 = vadd.f32 %v4145, %v4115
      %v4147 = vadd.f32 %v4146, %v4116
      %v4148 = vadd.f32 %v4147, %v4117
      %v4149 = vadd.f32 %v4148, %v4118
      %v4150 = vadd.f32 %v4149, %v4119
      %v4151 = vadd.f32 %v4150, %v4120
      %v4152 = vadd.f32 %v4151, %v4121
      %v4153 = vadd.f32 %v4152, %v4122
      %v4154 = vadd.f32 %v4153, %v4123
      %v4155 = vadd.f32 %v4154, %v4124
      %v4156 = vadd.f32 %v4155, %v4125
      %v4157 = vadd.f32 %v4156, %v4126
      %v4158 = vadd.f32 %v4157, %v4127
      %v4159 = vadd.f32 %v4158, %v4128
      %v4160 = vadd.f32 %v4159, %v4129
      %v4161 = vadd.f32 %v4160, %v4130
      %v4162 = vadd.f32 %v4161, %v4131
      %v4163 = vrot.slane %v4162, 4
      %v4164 = vadd.f32 %v4162, %v4163
      %v4165 = vrot.slane %v4164, 2
      %v4166 = vadd.f32 %v4164, %v4165
      %v4167 = vrot.slane %v4166, 1
      %v4168 = vadd.f32 %v4166, %v4167
      %4169 = vst [vmem:[%s339] sm:$0x1] %v4168
      %v4170 = vrot.slane %v2007, 4
      %v4171 = vrot.slane %v2009, 4
      %v4172 = vrot.slane %v2011, 4
      %v4173 = vrot.slane %v2013, 4
      %v4174 = vrot.slane %v2015, 4
      %v4175 = vrot.slane %v2017, 4
      %v4176 = vrot.slane %v2019, 4
      %v4177 = vrot.slane %v2021, 4
      %v4178 = vrot.slane %v2023, 4
      %v4179 = vrot.slane %v2025, 4
      %v4180 = vrot.slane %v2027, 4
      %v4181 = vrot.slane %v2029, 4
      %v4182 = vrot.slane %v2031, 4
      %v4183 = vrot.slane %v2033, 4
      %v4184 = vrot.slane %v2035, 4
      %v4185 = vrot.slane %v2037, 4
      %v4186 = vrot.slane %v2039, 4
      %v4187 = vrot.slane %v2041, 4
      %v4188 = vrot.slane %v2043, 4
      %v4189 = vrot.slane %v2045, 4
      %v4190 = vrot.slane %v2047, 4
      %v4191 = vrot.slane %v2049, 4
      %v4192 = vrot.slane %v2051, 4
      %v4193 = vrot.slane %v2053, 4
      %v4194 = vrot.slane %v2055, 4
      %v4195 = vrot.slane %v2057, 4
      %v4196 = vrot.slane %v2059, 4
      %v4197 = vrot.slane %v2061, 4
      %v4198 = vrot.slane %v2063, 4
      %v4199 = vrot.slane %v2065, 4
      %v4200 = vrot.slane %v2067, 4
      %v4201 = vrot.slane %v2069, 4
      %v4202 = vld [vmem:[%s2] sm:$0xf]
      %v4203 = vld [vmem:[%s2 + $0x4] sm:$0xf]
      %v4204 = vld [vmem:[%s2 + $0x8] sm:$0xf]
      %v4205 = vld [vmem:[%s2 + $0xc] sm:$0xf]
      %v4206 = vld [vmem:[%s2 + $0x10] sm:$0xf]
      %v4207 = vld [vmem:[%s2 + $0x14] sm:$0xf]
      %v4208 = vld [vmem:[%s2 + $0x18] sm:$0xf]
      %v4209 = vld [vmem:[%s2 + $0x1c] sm:$0xf]
      %v4210 = vld [vmem:[%s2 + $0x20] sm:$0xf]
      %v4211 = vld [vmem:[%s2 + $0x24] sm:$0xf]
      %v4212 = vld [vmem:[%s2 + $0x28] sm:$0xf]
      %v4213 = vld [vmem:[%s2 + $0x2c] sm:$0xf]
      %v4214 = vld [vmem:[%s2 + $0x30] sm:$0xf]
      %v4215 = vld [vmem:[%s2 + $0x34] sm:$0xf]
      %v4216 = vld [vmem:[%s2 + $0x38] sm:$0xf]
      %v4217 = vld [vmem:[%s2 + $0x3c] sm:$0xf]
      %v4218 = vunpack.c.l.b16 %v4170
      %v4219 = vunpack.c.l.b16 %v4171
      %v4220 = vunpack.c.l.b16 %v4172
      %v4221 = vunpack.c.l.b16 %v4173
      %v4222 = vunpack.c.l.b16 %v4174
      %v4223 = vunpack.c.l.b16 %v4175
      %v4224 = vunpack.c.l.b16 %v4176
      %v4225 = vunpack.c.l.b16 %v4177
      %v4226 = vunpack.c.l.b16 %v4178
      %v4227 = vunpack.c.l.b16 %v4179
      %v4228 = vunpack.c.l.b16 %v4180
      %v4229 = vunpack.c.l.b16 %v4181
      %v4230 = vunpack.c.l.b16 %v4182
      %v4231 = vunpack.c.l.b16 %v4183
      %v4232 = vunpack.c.l.b16 %v4184
      %v4233 = vunpack.c.l.b16 %v4185
      %v4234 = vunpack.c.l.b16 %v4186
      %v4235 = vunpack.c.l.b16 %v4187
      %v4236 = vunpack.c.l.b16 %v4188
      %v4237 = vunpack.c.l.b16 %v4189
      %v4238 = vunpack.c.l.b16 %v4190
      %v4239 = vunpack.c.l.b16 %v4191
      %v4240 = vunpack.c.l.b16 %v4192
      %v4241 = vunpack.c.l.b16 %v4193
      %v4242 = vunpack.c.l.b16 %v4194
      %v4243 = vunpack.c.l.b16 %v4195
      %v4244 = vunpack.c.l.b16 %v4196
      %v4245 = vunpack.c.l.b16 %v4197
      %v4246 = vunpack.c.l.b16 %v4198
      %v4247 = vunpack.c.l.b16 %v4199
      %v4248 = vunpack.c.l.b16 %v4200
      %v4249 = vunpack.c.l.b16 %v4201
      %v4250 = vpack.c.b16 %v4219, %v4218
      %v4251 = vpack.c.b16 %v4221, %v4220
      %v4252 = vpack.c.b16 %v4223, %v4222
      %v4253 = vpack.c.b16 %v4225, %v4224
      %v4254 = vpack.c.b16 %v4227, %v4226
      %v4255 = vpack.c.b16 %v4229, %v4228
      %v4256 = vpack.c.b16 %v4231, %v4230
      %v4257 = vpack.c.b16 %v4233, %v4232
      %v4258 = vpack.c.b16 %v4235, %v4234
      %v4259 = vpack.c.b16 %v4237, %v4236
      %v4260 = vpack.c.b16 %v4239, %v4238
      %v4261 = vpack.c.b16 %v4241, %v4240
      %v4262 = vpack.c.b16 %v4243, %v4242
      %v4263 = vpack.c.b16 %v4245, %v4244
      %v4264 = vpack.c.b16 %v4247, %v4246
      %v4265 = vpack.c.b16 %v4249, %v4248
      %v4298 = vunpack.c.l.b16 %v4202
      %v4299 = vunpack.c.l.b16 %v4203
      %v4300 = vunpack.c.l.b16 %v4204
      %v4301 = vunpack.c.l.b16 %v4205
      %v4302 = vunpack.c.l.b16 %v4206
      %v4303 = vunpack.c.l.b16 %v4207
      %v4304 = vunpack.c.l.b16 %v4208
      %v4305 = vunpack.c.l.b16 %v4209
      %v4306 = vunpack.c.l.b16 %v4210
      %v4307 = vunpack.c.l.b16 %v4211
      %v4308 = vunpack.c.l.b16 %v4212
      %v4309 = vunpack.c.l.b16 %v4213
      %v4310 = vunpack.c.l.b16 %v4214
      %v4311 = vunpack.c.l.b16 %v4215
      %v4312 = vunpack.c.l.b16 %v4216
      %v4313 = vunpack.c.l.b16 %v4217
      %v4314 = vpack.c.b16 %v4299, %v4298
      %v4315 = vpack.c.b16 %v4301, %v4300
      %v4316 = vpack.c.b16 %v4303, %v4302
      %v4317 = vpack.c.b16 %v4305, %v4304
      %v4318 = vpack.c.b16 %v4307, %v4306
      %v4319 = vpack.c.b16 %v4309, %v4308
      %v4320 = vpack.c.b16 %v4311, %v4310
      %v4321 = vpack.c.b16 %v4313, %v4312
      %4330 = vmatprep.subr.bf16.mxu0 0
      %4331 = vmatpush1.bf16.msra.mxu0 %v4321
      %4332 = vmatprep.subr.bf16.mxu0 0
      %4333 = vmatpush1.bf16.msra.mxu0 %v4320
      %4334 = vmatprep.subr.bf16.mxu0 0
      %4335 = vmatpush1.bf16.msra.mxu0 %v4319
      %4336 = vmatprep.subr.bf16.mxu0 0
      %4337 = vmatpush1.bf16.msra.mxu0 %v4318
      %4338 = vmatprep.subr.bf16.mxu0 0
      %4339 = vmatpush1.bf16.msra.mxu0 %v4317
      %4340 = vmatprep.subr.bf16.mxu0 0
      %4341 = vmatpush1.bf16.msra.mxu0 %v4316
      %4342 = vmatprep.subr.bf16.mxu0 0
      %4343 = vmatpush1.bf16.msra.mxu0 %v4315
      %4344 = vmatprep.subr.bf16.mxu0 0
      %4345 = vmatpush1.bf16.msra.mxu0 %v4314
      %4346 = vmatprep.subr.bf16.mxu0 0
      %4347 = vmatpush2.bf16.msra.mxu0 0
      %4348 = vmatprep.subr.bf16.mxu0 0
      %4349 = vmatpush2.bf16.msra.mxu0 0
      %4350 = vmatprep.subr.bf16.mxu0 0
      %4351 = vmatpush2.bf16.msra.mxu0 0
      %4352 = vmatprep.subr.bf16.mxu0 0
      %4353 = vmatpush2.bf16.msra.mxu0 0
      %4354 = vmatprep.subr.bf16.mxu0 0
      %4355 = vmatpush2.bf16.msra.mxu0 0
      %4356 = vmatprep.subr.bf16.mxu0 0
      %4357 = vmatpush2.bf16.msra.mxu0 0
      %4358 = vmatprep.subr.bf16.mxu0 0
      %4359 = vmatpush2.bf16.msra.mxu0 0
      %4360 = vmatprep.subr.bf16.mxu0 0
      %4361 = vmatpush2.bf16.msra.mxu0 0
      %4362 = vmatprep.mubr.bf16.mxu0 0
      %4363 = vmatmul.mubr.bf16.gmra.mxu0 %v4250
      %v4364 = vpop.f32.mrf.mxu0
      %v4365 = vadd.f32 0.0, %v4364
      %v4366 = vpop.f32.mrf.mxu0
      %v4367 = vpop.f32.mrf.mxu0
      %v4368 = vadd.f32 0.0, %v4367
      %v4369 = vpop.f32.mrf.mxu0
      %4370 = vmatprep.mubr.bf16.mxu0 0
      %4371 = vmatmul.mubr.bf16.gmra.mxu0 %v4251
      %v4372 = vpop.f32.mrf.mxu0
      %v4373 = vadd.f32 0.0, %v4372
      %v4374 = vpop.f32.mrf.mxu0
      %v4375 = vpop.f32.mrf.mxu0
      %v4376 = vadd.f32 0.0, %v4375
      %v4377 = vpop.f32.mrf.mxu0
      %4378 = vmatprep.mubr.bf16.mxu0 0
      %4379 = vmatmul.mubr.bf16.gmra.mxu0 %v4252
      %v4380 = vpop.f32.mrf.mxu0
      %v4381 = vadd.f32 0.0, %v4380
      %v4382 = vpop.f32.mrf.mxu0
      %v4383 = vpop.f32.mrf.mxu0
      %v4384 = vadd.f32 0.0, %v4383
      %v4385 = vpop.f32.mrf.mxu0
      %4386 = vmatprep.mubr.bf16.mxu0 0
      %4387 = vmatmul.mubr.bf16.gmra.mxu0 %v4253
      %v4388 = vpop.f32.mrf.mxu0
      %v4389 = vadd.f32 0.0, %v4388
      %v4390 = vpop.f32.mrf.mxu0
      %v4391 = vpop.f32.mrf.mxu0
      %v4392 = vadd.f32 0.0, %v4391
      %v4393 = vpop.f32.mrf.mxu0
      %4394 = vmatprep.mubr.bf16.mxu0 0
      %4395 = vmatmul.mubr.bf16.gmra.mxu0 %v4254
      %v4396 = vpop.f32.mrf.mxu0
      %v4397 = vadd.f32 0.0, %v4396
      %v4398 = vpop.f32.mrf.mxu0
      %v4399 = vpop.f32.mrf.mxu0
      %v4400 = vadd.f32 0.0, %v4399
      %v4401 = vpop.f32.mrf.mxu0
      %4402 = vmatprep.mubr.bf16.mxu0 0
      %4403 = vmatmul.mubr.bf16.gmra.mxu0 %v4255
      %v4404 = vpop.f32.mrf.mxu0
      %v4405 = vadd.f32 0.0, %v4404
      %v4406 = vpop.f32.mrf.mxu0
      %v4407 = vpop.f32.mrf.mxu0
      %v4408 = vadd.f32 0.0, %v4407
      %v4409 = vpop.f32.mrf.mxu0
      %4410 = vmatprep.mubr.bf16.mxu0 0
      %4411 = vmatmul.mubr.bf16.gmra.mxu0 %v4256
      %v4412 = vpop.f32.mrf.mxu0
      %v4413 = vadd.f32 0.0, %v4412
      %v4414 = vpop.f32.mrf.mxu0
      %v4415 = vpop.f32.mrf.mxu0
      %v4416 = vadd.f32 0.0, %v4415
      %v4417 = vpop.f32.mrf.mxu0
      %4418 = vmatprep.mubr.bf16.mxu0 0
      %4419 = vmatmul.mubr.bf16.gmra.mxu0 %v4257
      %v4420 = vpop.f32.mrf.mxu0
      %v4421 = vadd.f32 0.0, %v4420
      %v4422 = vpop.f32.mrf.mxu0
      %v4423 = vpop.f32.mrf.mxu0
      %v4424 = vadd.f32 0.0, %v4423
      %v4425 = vpop.f32.mrf.mxu0
      %4426 = vmatprep.mubr.bf16.mxu0 0
      %4427 = vmatmul.mubr.bf16.gmra.mxu0 %v4258
      %v4428 = vpop.f32.mrf.mxu0
      %v4429 = vadd.f32 0.0, %v4428
      %v4430 = vpop.f32.mrf.mxu0
      %v4431 = vpop.f32.mrf.mxu0
      %v4432 = vadd.f32 0.0, %v4431
      %v4433 = vpop.f32.mrf.mxu0
      %4434 = vmatprep.mubr.bf16.mxu0 0
      %4435 = vmatmul.mubr.bf16.gmra.mxu0 %v4259
      %v4436 = vpop.f32.mrf.mxu0
      %v4437 = vadd.f32 0.0, %v4436
      %v4438 = vpop.f32.mrf.mxu0
      %v4439 = vpop.f32.mrf.mxu0
      %v4440 = vadd.f32 0.0, %v4439
      %v4441 = vpop.f32.mrf.mxu0
      %4442 = vmatprep.mubr.bf16.mxu0 0
      %4443 = vmatmul.mubr.bf16.gmra.mxu0 %v4260
      %v4444 = vpop.f32.mrf.mxu0
      %v4445 = vadd.f32 0.0, %v4444
      %v4446 = vpop.f32.mrf.mxu0
      %v4447 = vpop.f32.mrf.mxu0
      %v4448 = vadd.f32 0.0, %v4447
      %v4449 = vpop.f32.mrf.mxu0
      %4450 = vmatprep.mubr.bf16.mxu0 0
      %4451 = vmatmul.mubr.bf16.gmra.mxu0 %v4261
      %v4452 = vpop.f32.mrf.mxu0
      %v4453 = vadd.f32 0.0, %v4452
      %v4454 = vpop.f32.mrf.mxu0
      %v4455 = vpop.f32.mrf.mxu0
      %v4456 = vadd.f32 0.0, %v4455
      %v4457 = vpop.f32.mrf.mxu0
      %4458 = vmatprep.mubr.bf16.mxu0 0
      %4459 = vmatmul.mubr.bf16.gmra.mxu0 %v4262
      %v4460 = vpop.f32.mrf.mxu0
      %v4461 = vadd.f32 0.0, %v4460
      %v4462 = vpop.f32.mrf.mxu0
      %v4463 = vpop.f32.mrf.mxu0
      %v4464 = vadd.f32 0.0, %v4463
      %v4465 = vpop.f32.mrf.mxu0
      %4466 = vmatprep.mubr.bf16.mxu0 0
      %4467 = vmatmul.mubr.bf16.gmra.mxu0 %v4263
      %v4468 = vpop.f32.mrf.mxu0
      %v4469 = vadd.f32 0.0, %v4468
      %v4470 = vpop.f32.mrf.mxu0
      %v4471 = vpop.f32.mrf.mxu0
      %v4472 = vadd.f32 0.0, %v4471
      %v4473 = vpop.f32.mrf.mxu0
      %4474 = vmatprep.mubr.bf16.mxu0 0
      %4475 = vmatmul.mubr.bf16.gmra.mxu0 %v4264
      %v4476 = vpop.f32.mrf.mxu0
      %v4477 = vadd.f32 0.0, %v4476
      %v4478 = vpop.f32.mrf.mxu0
      %v4479 = vpop.f32.mrf.mxu0
      %v4480 = vadd.f32 0.0, %v4479
      %v4481 = vpop.f32.mrf.mxu0
      %4482 = vmatprep.mubr.bf16.mxu0 0
      %4483 = vmatmul.mubr.bf16.gmra.mxu0 %v4265
      %v4484 = vpop.f32.mrf.mxu0
      %v4485 = vadd.f32 0.0, %v4484
      %v4486 = vpop.f32.mrf.mxu0
      %v4487 = vpop.f32.mrf.mxu0
      %v4488 = vadd.f32 0.0, %v4487
      %v4489 = vpop.f32.mrf.mxu0
      %4490 = vdwg.mxu0
      %v4491 = vpack.c.bf16 %v4368, %v4365
      %v4492 = vpack.c.bf16 %v4376, %v4373
      %v4493 = vpack.c.bf16 %v4384, %v4381
      %v4494 = vpack.c.bf16 %v4392, %v4389
      %v4495 = vpack.c.bf16 %v4400, %v4397
      %v4496 = vpack.c.bf16 %v4408, %v4405
      %v4497 = vpack.c.bf16 %v4416, %v4413
      %v4498 = vpack.c.bf16 %v4424, %v4421
      %v4499 = vpack.c.bf16 %v4432, %v4429
      %v4500 = vpack.c.bf16 %v4440, %v4437
      %v4501 = vpack.c.bf16 %v4448, %v4445
      %v4502 = vpack.c.bf16 %v4456, %v4453
      %v4503 = vpack.c.bf16 %v4464, %v4461
      %v4504 = vpack.c.bf16 %v4472, %v4469
      %v4505 = vpack.c.bf16 %v4480, %v4477
      %v4506 = vpack.c.bf16 %v4488, %v4485
      %v4523 = vunpack.c.l.b16 %v4491
      %v4524 = vunpack.c.h.b16 %v4491
      %v4525 = vunpack.c.l.b16 %v4492
      %v4526 = vunpack.c.h.b16 %v4492
      %v4527 = vunpack.c.l.b16 %v4493
      %v4528 = vunpack.c.h.b16 %v4493
      %v4529 = vunpack.c.l.b16 %v4494
      %v4530 = vunpack.c.h.b16 %v4494
      %v4531 = vunpack.c.l.b16 %v4495
      %v4532 = vunpack.c.h.b16 %v4495
      %v4533 = vunpack.c.l.b16 %v4496
      %v4534 = vunpack.c.h.b16 %v4496
      %v4535 = vunpack.c.l.b16 %v4497
      %v4536 = vunpack.c.h.b16 %v4497
      %v4537 = vunpack.c.l.b16 %v4498
      %v4538 = vunpack.c.h.b16 %v4498
      %v4539 = vunpack.c.l.b16 %v4499
      %v4540 = vunpack.c.h.b16 %v4499
      %v4541 = vunpack.c.l.b16 %v4500
      %v4542 = vunpack.c.h.b16 %v4500
      %v4543 = vunpack.c.l.b16 %v4501
      %v4544 = vunpack.c.h.b16 %v4501
      %v4545 = vunpack.c.l.b16 %v4502
      %v4546 = vunpack.c.h.b16 %v4502
      %v4547 = vunpack.c.l.b16 %v4503
      %v4548 = vunpack.c.h.b16 %v4503
      %v4549 = vunpack.c.l.b16 %v4504
      %v4550 = vunpack.c.h.b16 %v4504
      %v4551 = vunpack.c.l.b16 %v4505
      %v4552 = vunpack.c.h.b16 %v4505
      %v4553 = vunpack.c.l.b16 %v4506
      %v4554 = vunpack.c.h.b16 %v4506
      %v4555 = vpack.c.b16 %v4523, %v4523
      %v4556 = vpack.c.b16 %v4524, %v4524
      %v4557 = vpack.c.b16 %v4525, %v4525
      %v4558 = vpack.c.b16 %v4526, %v4526
      %v4559 = vpack.c.b16 %v4527, %v4527
      %v4560 = vpack.c.b16 %v4528, %v4528
      %v4561 = vpack.c.b16 %v4529, %v4529
      %v4562 = vpack.c.b16 %v4530, %v4530
      %v4563 = vpack.c.b16 %v4531, %v4531
      %v4564 = vpack.c.b16 %v4532, %v4532
      %v4565 = vpack.c.b16 %v4533, %v4533
      %v4566 = vpack.c.b16 %v4534, %v4534
      %v4567 = vpack.c.b16 %v4535, %v4535
      %v4568 = vpack.c.b16 %v4536, %v4536
      %v4569 = vpack.c.b16 %v4537, %v4537
      %v4570 = vpack.c.b16 %v4538, %v4538
      %v4571 = vpack.c.b16 %v4539, %v4539
      %v4572 = vpack.c.b16 %v4540, %v4540
      %v4573 = vpack.c.b16 %v4541, %v4541
      %v4574 = vpack.c.b16 %v4542, %v4542
      %v4575 = vpack.c.b16 %v4543, %v4543
      %v4576 = vpack.c.b16 %v4544, %v4544
      %v4577 = vpack.c.b16 %v4545, %v4545
      %v4578 = vpack.c.b16 %v4546, %v4546
      %v4579 = vpack.c.b16 %v4547, %v4547
      %v4580 = vpack.c.b16 %v4548, %v4548
      %v4581 = vpack.c.b16 %v4549, %v4549
      %v4582 = vpack.c.b16 %v4550, %v4550
      %v4583 = vpack.c.b16 %v4551, %v4551
      %v4584 = vpack.c.b16 %v4552, %v4552
      %v4585 = vpack.c.b16 %v4553, %v4553
      %v4586 = vpack.c.b16 %v4554, %v4554
      %4619 = vst [vmem:[%s344] sm:$0xf] %v4555
      %4620 = vst [vmem:[%s344 + $0x4] sm:$0xf] %v4556
      %4621 = vst [vmem:[%s344 + $0x8] sm:$0xf] %v4557
      %4622 = vst [vmem:[%s344 + $0xc] sm:$0xf] %v4558
      %4623 = vst [vmem:[%s344 + $0x10] sm:$0xf] %v4559
      %4624 = vst [vmem:[%s344 + $0x14] sm:$0xf] %v4560
      %4625 = vst [vmem:[%s344 + $0x18] sm:$0xf] %v4561
      %4626 = vst [vmem:[%s344 + $0x1c] sm:$0xf] %v4562
      %4627 = vst [vmem:[%s344 + $0x20] sm:$0xf] %v4563
      %4628 = vst [vmem:[%s344 + $0x24] sm:$0xf] %v4564
      %4629 = vst [vmem:[%s344 + $0x28] sm:$0xf] %v4565
      %4630 = vst [vmem:[%s344 + $0x2c] sm:$0xf] %v4566
      %4631 = vst [vmem:[%s344 + $0x30] sm:$0xf] %v4567
      %4632 = vst [vmem:[%s344 + $0x34] sm:$0xf] %v4568
      %4633 = vst [vmem:[%s344 + $0x38] sm:$0xf] %v4569
      %4634 = vst [vmem:[%s344 + $0x3c] sm:$0xf] %v4570
      %4635 = vst [vmem:[%s344 + $0x40] sm:$0xf] %v4571
      %4636 = vst [vmem:[%s344 + $0x44] sm:$0xf] %v4572
      %4637 = vst [vmem:[%s344 + $0x48] sm:$0xf] %v4573
      %4638 = vst [vmem:[%s344 + $0x4c] sm:$0xf] %v4574
      %4639 = vst [vmem:[%s344 + $0x50] sm:$0xf] %v4575
      %4640 = vst [vmem:[%s344 + $0x54] sm:$0xf] %v4576
      %4641 = vst [vmem:[%s344 + $0x58] sm:$0xf] %v4577
      %4642 = vst [vmem:[%s344 + $0x5c] sm:$0xf] %v4578
      %4643 = vst [vmem:[%s344 + $0x60] sm:$0xf] %v4579
      %4644 = vst [vmem:[%s344 + $0x64] sm:$0xf] %v4580
      %4645 = vst [vmem:[%s344 + $0x68] sm:$0xf] %v4581
      %4646 = vst [vmem:[%s344 + $0x6c] sm:$0xf] %v4582
      %4647 = vst [vmem:[%s344 + $0x70] sm:$0xf] %v4583
      %4648 = vst [vmem:[%s344 + $0x74] sm:$0xf] %v4584
      %4649 = vst [vmem:[%s344 + $0x78] sm:$0xf] %v4585
      %4650 = vst [vmem:[%s344 + $0x7c] sm:$0xf] %v4586
      %v4651 = vadd.f32 %v4365, %v4368
      %v4652 = vadd.f32 %v4651, %v4373
      %v4653 = vadd.f32 %v4652, %v4376
      %v4654 = vadd.f32 %v4653, %v4381
      %v4655 = vadd.f32 %v4654, %v4384
      %v4656 = vadd.f32 %v4655, %v4389
      %v4657 = vadd.f32 %v4656, %v4392
      %v4658 = vadd.f32 %v4657, %v4397
      %v4659 = vadd.f32 %v4658, %v4400
      %v4660 = vadd.f32 %v4659, %v4405
      %v4661 = vadd.f32 %v4660, %v4408
      %v4662 = vadd.f32 %v4661, %v4413
      %v4663 = vadd.f32 %v4662, %v4416
      %v4664 = vadd.f32 %v4663, %v4421
      %v4665 = vadd.f32 %v4664, %v4424
      %v4666 = vadd.f32 %v4665, %v4429
      %v4667 = vadd.f32 %v4666, %v4432
      %v4668 = vadd.f32 %v4667, %v4437
      %v4669 = vadd.f32 %v4668, %v4440
      %v4670 = vadd.f32 %v4669, %v4445
      %v4671 = vadd.f32 %v4670, %v4448
      %v4672 = vadd.f32 %v4671, %v4453
      %v4673 = vadd.f32 %v4672, %v4456
      %v4674 = vadd.f32 %v4673, %v4461
      %v4675 = vadd.f32 %v4674, %v4464
      %v4676 = vadd.f32 %v4675, %v4469
      %v4677 = vadd.f32 %v4676, %v4472
      %v4678 = vadd.f32 %v4677, %v4477
      %v4679 = vadd.f32 %v4678, %v4480
      %v4680 = vadd.f32 %v4679, %v4485
      %v4681 = vadd.f32 %v4680, %v4488
      %v4682 = vrot.slane %v4681, 4
      %v4683 = vadd.f32 %v4681, %v4682
      %v4684 = vrot.slane %v4683, 2
      %v4685 = vadd.f32 %v4683, %v4684
      %v4686 = vrot.slane %v4685, 1
      %v4687 = vadd.f32 %v4685, %v4686
      %4688 = vst [vmem:[%s347] sm:$0x1] %v4687
      %v4689 = vmul.f32 %v4365, %v4365
      %v4690 = vmul.f32 %v4368, %v4368
      %v4691 = vmul.f32 %v4373, %v4373
      %v4692 = vmul.f32 %v4376, %v4376
      %v4693 = vmul.f32 %v4381, %v4381
      %v4694 = vmul.f32 %v4384, %v4384
      %v4695 = vmul.f32 %v4389, %v4389
      %v4696 = vmul.f32 %v4392, %v4392
      %v4697 = vmul.f32 %v4397, %v4397
      %v4698 = vmul.f32 %v4400, %v4400
      %v4699 = vmul.f32 %v4405, %v4405
      %v4700 = vmul.f32 %v4408, %v4408
      %v4701 = vmul.f32 %v4413, %v4413
      %v4702 = vmul.f32 %v4416, %v4416
      %v4703 = vmul.f32 %v4421, %v4421
      %v4704 = vmul.f32 %v4424, %v4424
      %v4705 = vmul.f32 %v4429, %v4429
      %v4706 = vmul.f32 %v4432, %v4432
      %v4707 = vmul.f32 %v4437, %v4437
      %v4708 = vmul.f32 %v4440, %v4440
      %v4709 = vmul.f32 %v4445, %v4445
      %v4710 = vmul.f32 %v4448, %v4448
      %v4711 = vmul.f32 %v4453, %v4453
      %v4712 = vmul.f32 %v4456, %v4456
      %v4713 = vmul.f32 %v4461, %v4461
      %v4714 = vmul.f32 %v4464, %v4464
      %v4715 = vmul.f32 %v4469, %v4469
      %v4716 = vmul.f32 %v4472, %v4472
      %v4717 = vmul.f32 %v4477, %v4477
      %v4718 = vmul.f32 %v4480, %v4480
      %v4719 = vmul.f32 %v4485, %v4485
      %v4720 = vmul.f32 %v4488, %v4488
      %v4721 = vadd.f32 %v4689, %v4690
      %v4722 = vadd.f32 %v4721, %v4691
      %v4723 = vadd.f32 %v4722, %v4692
      %v4724 = vadd.f32 %v4723, %v4693
      %v4725 = vadd.f32 %v4724, %v4694
      %v4726 = vadd.f32 %v4725, %v4695
      %v4727 = vadd.f32 %v4726, %v4696
      %v4728 = vadd.f32 %v4727, %v4697
      %v4729 = vadd.f32 %v4728, %v4698
      %v4730 = vadd.f32 %v4729, %v4699
      %v4731 = vadd.f32 %v4730, %v4700
      %v4732 = vadd.f32 %v4731, %v4701
      %v4733 = vadd.f32 %v4732, %v4702
      %v4734 = vadd.f32 %v4733, %v4703
      %v4735 = vadd.f32 %v4734, %v4704
      %v4736 = vadd.f32 %v4735, %v4705
      %v4737 = vadd.f32 %v4736, %v4706
      %v4738 = vadd.f32 %v4737, %v4707
      %v4739 = vadd.f32 %v4738, %v4708
      %v4740 = vadd.f32 %v4739, %v4709
      %v4741 = vadd.f32 %v4740, %v4710
      %v4742 = vadd.f32 %v4741, %v4711
      %v4743 = vadd.f32 %v4742, %v4712
      %v4744 = vadd.f32 %v4743, %v4713
      %v4745 = vadd.f32 %v4744, %v4714
      %v4746 = vadd.f32 %v4745, %v4715
      %v4747 = vadd.f32 %v4746, %v4716
      %v4748 = vadd.f32 %v4747, %v4717
      %v4749 = vadd.f32 %v4748, %v4718
      %v4750 = vadd.f32 %v4749, %v4719
      %v4751 = vadd.f32 %v4750, %v4720
      %v4752 = vrot.slane %v4751, 4
      %v4753 = vadd.f32 %v4751, %v4752
      %v4754 = vrot.slane %v4753, 2
      %v4755 = vadd.f32 %v4753, %v4754
      %v4756 = vrot.slane %v4755, 1
      %v4757 = vadd.f32 %v4755, %v4756
      %4758 = vst [vmem:[%s350] sm:$0x1] %v4757
      %p4759 = scmp.lt.s32.totalorder %s20, 1
      %s4760 = scalar_select %p4759, %s20, 1
      %s4761 = smul.addr %s4760, 32
      %s4762 = smul.addr %s4761, 4
      %s4763 = scalar_lea.vmem %s3, %s4762
      %p4764 = scmp.lt.s32.totalorder %s20, 1
      %s4765 = scalar_select %p4764, %s20, 1
      %s4766 = scalar_lea.vmem %s4, %s4765
      %p4767 = scmp.lt.s32.totalorder %s20, 1
      %s4768 = scalar_select %p4767, %s20, 1
      %s4769 = scalar_lea.vmem %s5, %s4768
      %p4770 = scmp.lt.s32.totalorder %s20, 1
      %s4771 = scalar_select %p4770, %s20, 1
      %s4772 = smul.addr %s4771, 32
      %s4773 = smul.addr %s4772, 4
      %s4774 = scalar_lea.vmem %s6, %s4773
      %p4775 = scmp.lt.s32.totalorder %s20, 1
      %s4776 = scalar_select %p4775, %s20, 1
      %s4777 = scalar_lea.vmem %s7, %s4776
      %p4778 = scmp.lt.s32.totalorder %s20, 1
      %s4779 = scalar_select %p4778, %s20, 1
      %s4780 = scalar_lea.vmem %s8, %s4779
      // Predicated region
      $region33: #{basic_block_forward.3} parent=31 // pred_check
        %p4781 = pneg %p106
      $region34: #{basic_block_forward.3} parent=31 // pred_check_branch
        %4783 = sbr.rel (%p4781) target = $region36
      $region35: #{basic_block_forward.3} parent=31 // pred_region
        _
      $region36: #{basic_block_forward.3} parent=31 // pred_fallthru
        _
      // Predicated region
      $region37: #{basic_block_forward.3} parent=31 // pred_check
        %p4784 = pneg %p132
      $region38: #{basic_block_forward.3} parent=31 // pred_check_branch
        %4786 = sbr.rel (%p4784) target = $region40
      $region39: #{basic_block_forward.3} parent=31 // pred_region
        _
      $region40: #{basic_block_forward.3} parent=31 // pred_fallthru
        _
      // Predicated region
      $region41: #{basic_block_forward.3} parent=31 // pred_check
        %p4787 = pneg %p158
      $region42: #{basic_block_forward.3} parent=31 // pred_check_branch
        %4789 = sbr.rel (%p4787) target = $region44
      $region43: #{basic_block_forward.3} parent=31 // pred_region
        _
      $region44: #{basic_block_forward.3} parent=31 // pred_fallthru
        _
      // Predicated region
      $region45: #{basic_block_forward.3} parent=31 // pred_check
        %p4790 = pneg %p184
      $region46: #{basic_block_forward.3} parent=31 // pred_check_branch
        %4792 = sbr.rel (%p4790) target = $region48
      $region47: #{basic_block_forward.3} parent=31 // pred_region
        _
      $region48: #{basic_block_forward.3} parent=31 // pred_fallthru
        _
      // Predicated region
      $region49: #{basic_block_forward.3} parent=31 // pred_check
        %p4793 = pneg %p210
      $region50: #{basic_block_forward.3} parent=31 // pred_check_branch
        %4795 = sbr.rel (%p4793) target = $region52
      $region51: #{basic_block_forward.3} parent=31 // pred_region
        _
      $region52: #{basic_block_forward.3} parent=31 // pred_fallthru
        _
      // Predicated region
      $region53: #{basic_block_forward.3} parent=31 // pred_check
        %p4796 = pneg %p236
      $region54: #{basic_block_forward.3} parent=31 // pred_check_branch
        %4798 = sbr.rel (%p4796) target = $region56
      $region55: #{basic_block_forward.3} parent=31 // pred_region
        _
      $region56: #{basic_block_forward.3} parent=31 // pred_fallthru
        _
    $region32: #{basic_block_forward.3} parent=5 // pred_fallthru
      _
    %p4799 = scmp.le.s32.totalorder 2, %s15
    // Predicated region
    $region57: #{basic_block_forward.3} parent=5 // pred_check
      %p4800 = pneg %p4799
    $region58: #{basic_block_forward.3} parent=5 // pred_check_branch
      %4802 = sbr.rel (%p4800) target = $region60
    $region59: #{basic_block_forward.3} parent=5 // pred_region
      %s4803 = ssub.s32 %s15, 2
      // Predicated region
      $region61: #{basic_block_forward.3} parent=59 // pred_check
        %p4804 = pneg %p112
      $region62: #{basic_block_forward.3} parent=59 // pred_check_branch
        %4806 = sbr.rel (%p4804) target = $region64
      $region63: #{basic_block_forward.3} parent=59 // pred_region
        %p4807 = scmp.lt.s32.totalorder %s21, 1
        %s4808 = scalar_select %p4807, %s21, 1
        %s4809 = smul.addr %s4808, 32
        %s4810 = smul.addr %s4809, 4
        %s4811 = scalar_lea.vmem %s3, %s4810
      $region64: #{basic_block_forward.3} parent=59 // pred_fallthru
        _
      // Predicated region
      $region65: #{basic_block_forward.3} parent=59 // pred_check
        %p4812 = pneg %p138
      $region66: #{basic_block_forward.3} parent=59 // pred_check_branch
        %4814 = sbr.rel (%p4812) target = $region68
      $region67: #{basic_block_forward.3} parent=59 // pred_region
        %p4815 = scmp.lt.s32.totalorder %s21, 1
        %s4816 = scalar_select %p4815, %s21, 1
        %s4817 = scalar_lea.vmem %s4, %s4816
      $region68: #{basic_block_forward.3} parent=59 // pred_fallthru
        _
      // Predicated region
      $region69: #{basic_block_forward.3} parent=59 // pred_check
        %p4818 = pneg %p164
      $region70: #{basic_block_forward.3} parent=59 // pred_check_branch
        %4820 = sbr.rel (%p4818) target = $region72
      $region71: #{basic_block_forward.3} parent=59 // pred_region
        %p4821 = scmp.lt.s32.totalorder %s21, 1
        %s4822 = scalar_select %p4821, %s21, 1
        %s4823 = scalar_lea.vmem %s5, %s4822
      $region72: #{basic_block_forward.3} parent=59 // pred_fallthru
        _
      // Predicated region
      $region73: #{basic_block_forward.3} parent=59 // pred_check
        %p4824 = pneg %p190
      $region74: #{basic_block_forward.3} parent=59 // pred_check_branch
        %4826 = sbr.rel (%p4824) target = $region76
      $region75: #{basic_block_forward.3} parent=59 // pred_region
        %p4827 = scmp.lt.s32.totalorder %s21, 1
        %s4828 = scalar_select %p4827, %s21, 1
        %s4829 = smul.addr %s4828, 32
        %s4830 = smul.addr %s4829, 4
        %s4831 = scalar_lea.vmem %s6, %s4830
      $region76: #{basic_block_forward.3} parent=59 // pred_fallthru
        _
      // Predicated region
      $region77: #{basic_block_forward.3} parent=59 // pred_check
        %p4832 = pneg %p216
      $region78: #{basic_block_forward.3} parent=59 // pred_check_branch
        %4834 = sbr.rel (%p4832) target = $region80
      $region79: #{basic_block_forward.3} parent=59 // pred_region
        %p4835 = scmp.lt.s32.totalorder %s21, 1
        %s4836 = scalar_select %p4835, %s21, 1
        %s4837 = scalar_lea.vmem %s7, %s4836
      $region80: #{basic_block_forward.3} parent=59 // pred_fallthru
        _
      // Predicated region
      $region81: #{basic_block_forward.3} parent=59 // pred_check
        %p4838 = pneg %p242
      $region82: #{basic_block_forward.3} parent=59 // pred_check_branch
        %4840 = sbr.rel (%p4838) target = $region84
      $region83: #{basic_block_forward.3} parent=59 // pred_region
        %p4841 = scmp.lt.s32.totalorder %s21, 1
        %s4842 = scalar_select %p4841, %s21, 1
        %s4843 = scalar_lea.vmem %s8, %s4842
      $region84: #{basic_block_forward.3} parent=59 // pred_fallthru
        _
    $region60: #{basic_block_forward.3} parent=5 // pred_fallthru
      _
  $region6: #{basic_block_forward.3} parent=0 // loop_footer
    %s19 = sadd.s32 1, %s15
  $region7: #{basic_block_forward.3} parent=0 // loop_footer_branch
    %14 = sbr.rel target = $region3
  $region8: #{basic_block_forward.3} parent=0 // loop_exit
    _

</llo_original>
